<compile_context>
chip_gen: v5e
topology: v5e:2x2
jax: 0.10.0
libtpu: 0.0.40
codegen_flags: <defaults>
</compile_context>

<pallas_src>
import functools

import numpy as np
import jax
import jax.numpy as jnp
from jax.experimental import pallas as pl
from jax.experimental.pallas import tpu as pltpu


# ----------------------------------------------------------------------------
# Per-generation VMEM budget.
# ----------------------------------------------------------------------------
try:
    _VMEM_CAP = int(pltpu.get_tpu_info().vmem_capacity_bytes)
except Exception:  # pragma: no cover - query not available; assume v7x-safe cap
    _VMEM_CAP = 64 * 1024 * 1024
_VMEM_LIMIT = max(min(_VMEM_CAP - 16 * 1024 * 1024, 112 * 1024 * 1024),
                  32 * 1024 * 1024)

_NEG = -1e30  # "masked out" logit; exp(NEG - m) underflows to exactly 0 in f32


# ----------------------------------------------------------------------------
# Static NATTEN index helpers (host side, depend only on static H, W, k, dil).
# ----------------------------------------------------------------------------
def _window_start(length, kernel_size, dilation):
    ns = kernel_size // 2
    out = np.zeros((length,), dtype=np.int32)
    for i in range(length):
        if dilation <= 1:
            s = max(i - ns, 0) + (i + ns >= length) * (length - i - ns - 1)
        else:
            ni = i - ns * dilation
            if ni < 0:
                s = i % dilation
            elif i + ns * dilation >= length:
                imodd = i % dilation
                a = (length // dilation) * dilation
                b = length - a
                if imodd < b:
                    s = length - b + imodd - 2 * ns * dilation
                else:
                    s = a + imodd - kernel_size * dilation
            else:
                s = ni
        out[i] = s
    return out


def _pb_start(length, kernel_size, dilation):
    ns = kernel_size // 2
    out = np.zeros((length,), dtype=np.int32)
    for i in range(length):
        if dilation <= 1:
            s = ns + (i < ns) * (ns - i) + (i + ns >= length) * (length - i - 1 - ns)
        else:
            if i - ns * dilation < 0:
                s = kernel_size - 1 - (i // dilation)
            elif i + ns * dilation >= length:
                s = (length - i - 1) // dilation
            else:
                s = ns
        out[i] = s
    return out


def _split_indices(H, W, kernel_size, dilation):
    """Flattened neighbor indices (into H*W) and rpb indices (into (2k-1)^2)."""
    k = kernel_size
    kk = np.arange(k)
    ri = _window_start(H, k, dilation)
    ci = _window_start(W, k, dilation)
    pi = _pb_start(H, k, dilation)
    pj = _pb_start(W, k, dilation)
    row_idx = ri[:, None] + kk[None, :] * dilation            # (H, k)
    col_idx = ci[:, None] + kk[None, :] * dilation            # (W, k)
    nb_idx = (row_idx[:, None, :, None] * W
              + col_idx[None, :, None, :]).reshape(H * W, k * k)
    pb_row = pi[:, None] + kk[None, :]                        # (H, k)
    pb_col = pj[:, None] + kk[None, :]                        # (W, k)
    pb_idx = (pb_row[:, None, :, None] * (2 * k - 1)
              + pb_col[None, :, None, :]).reshape(H * W, k * k)
    return nb_idx.astype(np.int32), pb_idx.astype(np.int32)


def _build_biasmask(rpb_list, meta, H, W):
    """Dense (num_heads, P, P) f32: rpb bias where slab pixel is a neighbor,
    -1e30 otherwise.  Encodes every split's kernel size / dilation, so one
    fused kernel can process all heads.  Built with an XLA scatter (small)."""
    P = H * W
    blocks = []
    for ks, dil, rpb in zip(meta["kernel_sizes"], meta["dilations"], rpb_list):
        hs = rpb.shape[0]
        K2 = ks * ks
        nb_idx, pb_idx = _split_indices(H, W, ks, dil)         # np (P, K2)
        vals = jnp.take(rpb.reshape(hs, -1).astype(jnp.float32),
                        jnp.asarray(pb_idx), axis=1)           # (hs, P, K2)
        base = jnp.full((hs, P, P), _NEG, jnp.float32)
        p_idx = np.broadcast_to(np.arange(P, dtype=np.int32)[:, None], (P, K2))
        # Neighbor indices of a pixel are all distinct -> scatter has no dups.
        blocks.append(base.at[:, p_idx, nb_idx].set(vals))
    return blocks[0] if len(blocks) == 1 else jnp.concatenate(blocks, axis=0)


def _pick_tile(n, candidates):
    for t in candidates:
        if n % t == 0:
            return t
    return n  # full dimension (always legal for BlockSpec)


def _pick_tp(P, C, num_heads, budget):
    """Pixel-tile size sized against the per-generation VMEM budget."""
    cands = [t for t in (512, 256, 128, 64, 32, 16) if P % t == 0] or [P]
    for tp in cands:
        need = (2 * (num_heads * tp * P * 4 + 2 * tp * C * 2)   # bm + q/out blocks
                + 2 * 2 * P * C * 2                              # K/V slabs (bf16)
                + 6 * tp * P * 4)                                # in-kernel f32 temps
        if need <= budget:
            return tp
    return cands[-1]


# ----------------------------------------------------------------------------
# Linear (qkv / proj): bf16 MXU matmul + f32 bias, tiled (M, N) parallel grid.
# ----------------------------------------------------------------------------
def _linear_kernel(x_ref, w_ref, b_ref, o_ref):
    x = x_ref[...]
    if x.dtype != jnp.bfloat16:
        x = x.astype(jnp.bfloat16)
    acc = jnp.dot(x, w_ref[...], preferred_element_type=jnp.float32)
    o_ref[...] = (acc + b_ref[...]).astype(o_ref.dtype)


def linear_pallas(x, w, b, *, out_dtype):
    """x: (M, K) f32/bf16, w: (K, N) bf16, b: (N,) f32 -> (M, N) out_dtype."""
    M, K = x.shape
    N = w.shape[1]
    tm = _pick_tile(M, (1024, 512, 256, 128, 64, 32, 16))
    tn = _pick_tile(N, (512, 256, 128))
    out_bytes = 2 if out_dtype == jnp.bfloat16 else 4
    cost = pl.CostEstimate(
        flops=2 * M * N * K,
        transcendentals=0,
        bytes_accessed=M * K * x.dtype.itemsize + K * N * 2 + M * N * out_bytes + N * 4)
    return pl.pallas_call(
        _linear_kernel,
        out_shape=jax.ShapeDtypeStruct((M, N), out_dtype),
        grid=(M // tm, N // tn),
        in_specs=[
            pl.BlockSpec((tm, K), lambda i, j: (i, 0)),
            pl.BlockSpec((K, tn), lambda i, j: (0, j)),
            pl.BlockSpec((1, tn), lambda i, j: (0, j)),
        ],
        out_specs=pl.BlockSpec((tm, tn), lambda i, j: (i, j)),
        compiler_params=pltpu.CompilerParams(
            dimension_semantics=("parallel", "parallel"),
            vmem_limit_bytes=_VMEM_LIMIT),
        cost_estimate=cost,
    )(x, w, b.reshape(1, N))


# ----------------------------------------------------------------------------
# Fused neighborhood attention: all heads / all splits in one kernel.
# ----------------------------------------------------------------------------
def _na_kernel(q_ref, k_ref, v_ref, bm_ref, o_ref, *, num_heads, hd):
    f32 = jnp.float32
    bf16 = jnp.bfloat16
    q = q_ref[...].astype(bf16)          # (tp, C)  scale already folded into q
    k = k_ref[...].astype(bf16)          # (P,  C)  full per-batch slab, resident
    v = v_ref[...].astype(bf16)          # (P,  C)

    head_outs = []
    for h in range(num_heads):
        sl = slice(h * hd, (h + 1) * hd)
        qh = q[:, sl]                    # (tp, hd)
        kh = k[:, sl]                    # (P,  hd)
        vh = v[:, sl]                    # (P,  hd)
        # One q@k^T matmul per head over the slab ("NT" contraction on hd).
        s = jax.lax.dot_general(qh, kh, (((1,), (1,)), ((), ())),
                                preferred_element_type=f32)     # (tp, P)
        # Masked neighborhood logits: rpb bias where neighbor, -1e30 otherwise.
        logits = s + bm_ref[h]                                  # (tp, P)
        # Lane-dense softmax over the slab axis == softmax over the K2 neighbors.
        m = jnp.max(logits, axis=-1, keepdims=True)
        e = jnp.exp(logits - m)
        denom = jnp.sum(e, axis=-1, keepdims=True)
        attn = (e * pl.reciprocal(denom, approx=True)).astype(bf16)
        head_outs.append(jnp.dot(attn, vh, preferred_element_type=f32))

    out = head_outs[0] if num_heads == 1 else jnp.concatenate(head_outs, axis=-1)
    o_ref[...] = out.astype(o_ref.dtype)


def na_pallas(q_arr, k_arr, v_arr, bm, *, hd, col_blocks=(0, 0, 0)):
    """Fused neighborhood attention over all heads.

    q_arr/k_arr/v_arr: (B, P, *) bf16.  They may all be the same packed qkv
    activation; col_blocks are the column-*block* offsets (in units of C) of
    q/k/v inside that array (zero-copy path when C % 128 == 0).
    bm: (num_heads, P, P) f32 bias-mask (no batch duplication).
    """
    B, P, _ = q_arr.shape
    num_heads = bm.shape[0]
    C = num_heads * hd
    tp = _pick_tp(P, C, num_heads, _VMEM_LIMIT // 2)
    qb, kb, vb = col_blocks
    kern = functools.partial(_na_kernel, num_heads=num_heads, hd=hd)
    cost = pl.CostEstimate(
        flops=4 * B * P * P * C,
        transcendentals=B * num_heads * P * P,
        bytes_accessed=3 * B * P * C * 2 + B * P * C * 2
        + B * num_heads * P * P * 4)
    return pl.pallas_call(
        kern,
        out_shape=jax.ShapeDtypeStruct((B, P, C), jnp.bfloat16),
        grid=(B, P // tp),
        in_specs=[
            # q: pixel tile of the q columns.
            pl.BlockSpec((None, tp, C), lambda b, p: (b, p, qb)),
            # K/V: full per-batch slab, block index constant along p -> DMA'd
            # once per batch.
            pl.BlockSpec((None, P, C), lambda b, p: (b, 0, kb)),
            pl.BlockSpec((None, P, C), lambda b, p: (b, 0, vb)),
            # Bias-mask: independent of batch.
            pl.BlockSpec((num_heads, tp, P), lambda b, p: (0, p, 0)),
        ],
        out_specs=pl.BlockSpec((None, tp, C), lambda b, p: (b, p, 0)),
        compiler_params=pltpu.CompilerParams(
            dimension_semantics=("parallel", "parallel"),
            vmem_limit_bytes=_VMEM_LIMIT),
        cost_estimate=cost,
    )(q_arr, k_arr, v_arr, bm)


# ----------------------------------------------------------------------------
# HydraNA parameters / forward.
# ----------------------------------------------------------------------------
def _head_partition(num_heads, num_splits):
    base = num_heads // num_splits
    diff = num_heads - num_splits * base
    if diff == 0:
        return [base] * num_splits
    return [base] * (num_splits - diff) + [base + 1] * diff


def init_hydra_na(key, dim, kernel_sizes, num_heads, dilations=(1,), qk_scale=None):
    kernel_sizes = list(kernel_sizes)
    dilations = list(dilations)
    if len(kernel_sizes) == 1 and len(dilations) != 1:
        kernel_sizes = [kernel_sizes[0]] * len(dilations)
    elif len(dilations) == 1 and len(kernel_sizes) != 1:
        dilations = [dilations[0]] * len(kernel_sizes)
    assert len(kernel_sizes) == len(dilations)
    for k in kernel_sizes:
        assert k > 1 and k % 2 == 1, "kernel sizes must be >1 and odd"
    num_splits = len(kernel_sizes)
    head_dim = dim // num_heads
    scale = qk_scale or head_dim ** (-0.5)
    head_splits = _head_partition(num_heads, num_splits)

    keys = jax.random.split(key, 4 + num_splits)
    qkv_w = 0.02 * jax.random.normal(keys[0], (dim, 3 * dim), jnp.float32)
    qkv_b = 0.02 * jax.random.normal(keys[1], (3 * dim,), jnp.float32)
    # Fold the qk scale into the q columns of the qkv projection (exact:
    # (x @ W_q + b_q) * scale == x @ (scale*W_q) + scale*b_q) -> no runtime mul.
    qkv_w = qkv_w.at[:, :dim].multiply(scale)
    qkv_b = qkv_b.at[:dim].multiply(scale)
    params = {
        # Weights stored as bf16 once (MXU operand dtype); biases stay f32.
        "qkv_w": qkv_w.astype(jnp.bfloat16),
        "qkv_b": qkv_b,
        "proj_w": (0.02 * jax.random.normal(keys[2], (dim, dim),
                                            jnp.float32)).astype(jnp.bfloat16),
        "proj_b": 0.02 * jax.random.normal(keys[3], (dim,), jnp.float32),
        "rpb": [
            0.02 * jax.random.truncated_normal(
                keys[4 + s], -2.0, 2.0, (h, 2 * k - 1, 2 * k - 1), jnp.float32)
            for s, (h, k) in enumerate(zip(head_splits, kernel_sizes))
        ],
    }
    meta = dict(dim=dim, num_heads=num_heads, head_dim=head_dim, scale=scale,
                kernel_sizes=kernel_sizes, dilations=dilations,
                head_splits=head_splits)
    return params, meta


def hydra_na_forward(params, meta, x):
    B, H, W, C = x.shape
    P = H * W
    hd = meta["head_dim"]

    # qkv projection (bf16 output halves the intermediate HBM traffic).  Output
    # columns are laid out (qkv, head, head_dim), so q/k/v are column slices.
    qkv = linear_pallas(x.reshape(B * P, C), params["qkv_w"], params["qkv_b"],
                        out_dtype=jnp.bfloat16)
    qkv = qkv.reshape(B, P, 3 * C)

    # Dense bias-mask encoding every split's neighborhood + rpb bias.
    bm = _build_biasmask(params["rpb"], meta, H, W)            # (heads, P, P)

    if C % 128 == 0:
        # Zero-copy path: read q/k/v straight out of the packed qkv activation
        # via lane-dense column-block offsets.
        attn = na_pallas(qkv, qkv, qkv, bm, hd=hd, col_blocks=(0, 1, 2))
    else:
        q = qkv[:, :, 0 * C:1 * C]
        k = qkv[:, :, 1 * C:2 * C]
        v = qkv[:, :, 2 * C:3 * C]
        attn = na_pallas(q, k, v, bm, hd=hd)

    # Attention output (bf16, full C) feeds proj directly -- no concat.
    out = linear_pallas(attn.reshape(B * P, C), params["proj_w"], params["proj_b"],
                        out_dtype=jnp.float32)
    return out.reshape(B, H, W, C)


def hydra_na_reference(params, meta, x):
    """Pure-JAX reference (gather formulation; bf16 matmul operands, f32 attn)."""
    B, H, W, C = x.shape
    P = H * W
    hd = meta["head_dim"]
    bf16 = jnp.bfloat16
    qkv = jnp.dot(x.reshape(B * P, C).astype(bf16), params["qkv_w"],
                  preferred_element_type=jnp.float32) + params["qkv_b"]
    qkv = qkv.reshape(B, P, 3 * C)
    outs = []
    h0 = 0
    for ks, dil, hs, rpb in zip(meta["kernel_sizes"], meta["dilations"],
                                meta["head_splits"], params["rpb"]):
        cs = hs * hd
        nb_idx, pb_idx = _split_indices(H, W, ks, dil)
        bias = jnp.take(rpb.reshape(hs, -1), jnp.asarray(pb_idx), axis=1)
        bias = jnp.transpose(bias, (1, 2, 0))                  # (P, K2, hs)
        q_s = qkv[:, :, h0 * hd:h0 * hd + cs].reshape(B, P, hs, hd)
        k_s = qkv[:, :, C + h0 * hd:C + h0 * hd + cs]
        v_s = qkv[:, :, 2 * C + h0 * hd:2 * C + h0 * hd + cs]
        knb = jnp.take(k_s, jnp.asarray(nb_idx), axis=1).reshape(B, P, ks * ks, hs, hd)
        vnb = jnp.take(v_s, jnp.asarray(nb_idx), axis=1).reshape(B, P, ks * ks, hs, hd)
        logits = jnp.einsum("bphd,bpkhd->bpkh", q_s, knb) + bias[None]
        attn = jax.nn.softmax(logits, axis=2)
        o = jnp.einsum("bpkh,bpkhd->bphd", attn, vnb).reshape(B, P, cs)
        outs.append(o)
        h0 += hs
    xo = outs[0] if len(outs) == 1 else jnp.concatenate(outs, axis=-1)
    out = jnp.dot(xo.reshape(B * P, C).astype(bf16), params["proj_w"],
                  preferred_element_type=jnp.float32) + params["proj_b"]
    return out.reshape(B, H, W, C)


if __name__ == "__main__":
    def _check(B, H, W, C, num_heads, kernel_sizes, dilations):
        key = jax.random.PRNGKey(0)
        pkey, xkey = jax.random.split(key)
        params, meta = init_hydra_na(pkey, C, kernel_sizes, num_heads, dilations)
        x = jax.random.normal(xkey, (B, H, W, C), jnp.float32)
        fwd = jax.jit(lambda p, xx: hydra_na_forward(p, meta, xx))
        out = jax.block_until_ready(fwd(params, x))
        assert out.shape == (B, H, W, C)
        ref = hydra_na_reference(params, meta, x)
        np.testing.assert_allclose(np.asarray(out), np.asarray(ref),
                                   rtol=2e-2, atol=5e-3)

    # Config 1: two splits (k=3 dil=1, k=5 dil=2), C=32 -> slice path, fused
    # 4-head kernel with hd=8.
    _check(B=2, H=16, W=16, C=32, num_heads=4,
           kernel_sizes=[3, 5], dilations=[1, 2])
    # Config 2: single split with 128-wide heads -> exercises the zero-copy
    # column-block path reading q/k/v straight out of the packed qkv activation.
    _check(B=1, H=8, W=8, C=256, num_heads=2,
           kernel_sizes=[3], dilations=[1])
    print("KERNEL_OK")
</pallas_src>

<mosaic_0001>
module attributes {stable_mosaic.version = 11 : i64} {
  func.func @_linear_kernel(%arg0: i32, %arg1: i32, %arg2: memref<512x32xf32, #tpu.memory_space<vmem>>, %arg3: memref<32x96xbf16, #tpu.memory_space<vmem>>, %arg4: memref<1x96xf32, #tpu.memory_space<vmem>>, %arg5: memref<512x96xbf16, #tpu.memory_space<vmem>>) attributes {dimension_semantics = [#tpu.dimension_semantics<parallel>, #tpu.dimension_semantics<parallel>], iteration_bounds = array<i64: 1, 1>, scalar_prefetch = 0 : i64, scratch_operands = 0 : i64, tpu.core_type = #tpu.core_type<tc>, window_params = [{transform_indices = @transform_0, window_bounds = array<i64: 512, 32>}, {transform_indices = @transform_1, window_bounds = array<i64: 32, 96>}, {transform_indices = @transform_2, window_bounds = array<i64: 1, 96>}, {transform_indices = @transform_3, window_bounds = array<i64: 512, 96>}]} {
    %c0 = arith.constant 0 : index
    %c0_0 = arith.constant 0 : index
    %0 = vector.load %arg2[%c0, %c0_0] : memref<512x32xf32, #tpu.memory_space<vmem>>, vector<512x32xf32>
    %1 = arith.truncf %0 : vector<512x32xf32> to vector<512x32xbf16>
    %c0_1 = arith.constant 0 : index
    %c0_2 = arith.constant 0 : index
    %2 = vector.load %arg3[%c0_1, %c0_2] : memref<32x96xbf16, #tpu.memory_space<vmem>>, vector<32x96xbf16>
    %cst = arith.constant dense<0.000000e+00> : vector<512x96xf32>
    %3 = tpu.matmul %1, %2, %cst {dimension_numbers = #tpu.dot_dimension_numbers<[1], [0], [0], [1], [0, 0, 1, 1], [], []>} : vector<512x32xbf16>, vector<32x96xbf16>, vector<512x96xf32> -> vector<512x96xf32>
    %c0_3 = arith.constant 0 : index
    %c0_4 = arith.constant 0 : index
    %4 = vector.load %arg4[%c0_3, %c0_4] : memref<1x96xf32, #tpu.memory_space<vmem>>, vector<1x96xf32>
    %5 = vector.broadcast %4 : vector<1x96xf32> to vector<512x96xf32>
    %6 = arith.addf %3, %5 : vector<512x96xf32>
    %7 = arith.truncf %6 : vector<512x96xf32> to vector<512x96xbf16>
    %c0_5 = arith.constant 0 : index
    %c0_6 = arith.constant 0 : index
    %8 = vector.load %arg5[%c0_5, %c0_6] : memref<512x96xbf16, #tpu.memory_space<vmem>>, vector<512x96xbf16>
    tpu.vector_store %arg5[%c0_5, %c0_6], %7 {strides = array<i32>} : memref<512x96xbf16, #tpu.memory_space<vmem>>, vector<512x96xbf16>,
    return
  }
  func.func @transform_0(%arg0: i32, %arg1: i32) -> (i32, i32) {
    %c0_i32 = arith.constant 0 : i32
    %c0_i32_0 = arith.constant 0 : i32
    return %arg0, %c0_i32 : i32, i32
  }
  func.func @transform_1(%arg0: i32, %arg1: i32) -> (i32, i32) {
    %c0_i32 = arith.constant 0 : i32
    %c0_i32_0 = arith.constant 0 : i32
    return %c0_i32, %arg1 : i32, i32
  }
  func.func @transform_2(%arg0: i32, %arg1: i32) -> (i32, i32) {
    %c0_i32 = arith.constant 0 : i32
    %c0_i32_0 = arith.constant 0 : i32
    return %c0_i32, %arg1 : i32, i32
  }
  func.func @transform_3(%arg0: i32, %arg1: i32) -> (i32, i32) {
    %c0_i32 = arith.constant 0 : i32
    return %arg0, %arg1 : i32, i32
  }
}

module attributes {stable_mosaic.version = 11 : i64} {
  func.func @_na_kernel(%arg0: i32, %arg1: i32, %arg2: memref<1x256x32xbf16, #tpu.memory_space<vmem>>, %arg3: memref<1x256x32xbf16, #tpu.memory_space<vmem>>, %arg4: memref<1x256x32xbf16, #tpu.memory_space<vmem>>, %arg5: memref<4x256x256xf32, #tpu.memory_space<vmem>>, %arg6: memref<1x256x32xbf16, #tpu.memory_space<vmem>>) attributes {dimension_semantics = [#tpu.dimension_semantics<parallel>, #tpu.dimension_semantics<parallel>], iteration_bounds = array<i64: 2, 1>, scalar_prefetch = 0 : i64, scratch_operands = 0 : i64, tpu.core_type = #tpu.core_type<tc>, window_params = [{transform_indices = @transform_0, window_bounds = array<i64: 1, 256, 32>}, {transform_indices = @transform_1, window_bounds = array<i64: 1, 256, 32>}, {transform_indices = @transform_2, window_bounds = array<i64: 1, 256, 32>}, {transform_indices = @transform_3, window_bounds = array<i64: 4, 256, 256>}, {transform_indices = @transform_4, window_bounds = array<i64: 1, 256, 32>}]} {
    %c0 = arith.constant 0 : index
    %c0_0 = arith.constant 0 : index
    %c0_1 = arith.constant 0 : index
    %0 = vector.load %arg2[%c0, %c0_0, %c0_1] : memref<1x256x32xbf16, #tpu.memory_space<vmem>>, vector<1x256x32xbf16>
    %1 = vector.shape_cast %0 : vector<1x256x32xbf16> to vector<256x32xbf16>
    %c0_2 = arith.constant 0 : index
    %c0_3 = arith.constant 0 : index
    %c0_4 = arith.constant 0 : index
    %2 = vector.load %arg3[%c0_2, %c0_3, %c0_4] : memref<1x256x32xbf16, #tpu.memory_space<vmem>>, vector<1x256x32xbf16>
    %3 = vector.shape_cast %2 : vector<1x256x32xbf16> to vector<256x32xbf16>
    %c0_5 = arith.constant 0 : index
    %c0_6 = arith.constant 0 : index
    %c0_7 = arith.constant 0 : index
    %4 = vector.load %arg4[%c0_5, %c0_6, %c0_7] : memref<1x256x32xbf16, #tpu.memory_space<vmem>>, vector<1x256x32xbf16>
    %5 = vector.shape_cast %4 : vector<1x256x32xbf16> to vector<256x32xbf16>
    %6 = vector.extract_strided_slice %1 {offsets = [0, 0], sizes = [256, 8], strides = [1, 1]} : vector<256x32xbf16> to vector<256x8xbf16>
    %7 = vector.extract_strided_slice %3 {offsets = [0, 0], sizes = [256, 8], strides = [1, 1]} : vector<256x32xbf16> to vector<256x8xbf16>
    %8 = vector.extract_strided_slice %5 {offsets = [0, 0], sizes = [256, 8], strides = [1, 1]} : vector<256x32xbf16> to vector<256x8xbf16>
    %cst = arith.constant dense<0.000000e+00> : vector<256x256xf32>
    %9 = tpu.matmul %6, %7, %cst {dimension_numbers = #tpu.dot_dimension_numbers<[1], [1], [0], [0], [0, 0, 1, 0], [], []>} : vector<256x8xbf16>, vector<256x8xbf16>, vector<256x256xf32> -> vector<256x256xf32>
    %c0_8 = arith.constant 0 : index
    %c0_9 = arith.constant 0 : index
    %c0_10 = arith.constant 0 : index
    %10 = vector.load %arg5[%c0_8, %c0_9, %c0_10] : memref<4x256x256xf32, #tpu.memory_space<vmem>>, vector<1x256x256xf32>
    %11 = vector.shape_cast %10 : vector<1x256x256xf32> to vector<256x256xf32>
    %12 = arith.addf %9, %11 : vector<256x256xf32>
    %cst_11 = arith.constant dense<0xFF800000> : vector<256xf32>
    %13 = vector.multi_reduction <maximumf>, %12, %cst_11 [1] : vector<256x256xf32> to vector<256xf32>
    %14 = vector.shape_cast %13 : vector<256xf32> to vector<256x1xf32>
    %15 = vector.broadcast %14 : vector<256x1xf32> to vector<256x256xf32>
    %16 = arith.subf %12, %15 : vector<256x256xf32>
    %17 = math.exp %16 : vector<256x256xf32>
    %cst_12 = arith.constant dense<0.000000e+00> : vector<256xf32>
    %18 = vector.multi_reduction <add>, %17, %cst_12 [1] : vector<256x256xf32> to vector<256xf32>
    %19 = vector.shape_cast %18 : vector<256xf32> to vector<256x1xf32>
    %20 = tpu.reciprocal %19 {approx = true} : vector<256x1xf32> -> vector<256x1xf32>
    %21 = vector.broadcast %20 : vector<256x1xf32> to vector<256x256xf32>
    %22 = arith.mulf %17, %21 : vector<256x256xf32>
    %23 = arith.truncf %22 : vector<256x256xf32> to vector<256x256xbf16>
    %cst_13 = arith.constant dense<0.000000e+00> : vector<256x8xf32>
    %24 = tpu.matmul %23, %8, %cst_13 {dimension_numbers = #tpu.dot_dimension_numbers<[1], [0], [0], [1], [0, 0, 1, 1], [], []>} : vector<256x256xbf16>, vector<256x8xbf16>, vector<256x8xf32> -> vector<256x8xf32>
    %25 = vector.extract_strided_slice %1 {offsets = [0, 8], sizes = [256, 8], strides = [1, 1]} : vector<256x32xbf16> to vector<256x8xbf16>
    %26 = vector.extract_strided_slice %3 {offsets = [0, 8], sizes = [256, 8], strides = [1, 1]} : vector<256x32xbf16> to vector<256x8xbf16>
    %27 = vector.extract_strided_slice %5 {offsets = [0, 8], sizes = [256, 8], strides = [1, 1]} : vector<256x32xbf16> to vector<256x8xbf16>
    %cst_14 = arith.constant dense<0.000000e+00> : vector<256x256xf32>
    %28 = tpu.matmul %25, %26, %cst_14 {dimension_numbers = #tpu.dot_dimension_numbers<[1], [1], [0], [0], [0, 0, 1, 0], [], []>} : vector<256x8xbf16>, vector<256x8xbf16>, vector<256x256xf32> -> vector<256x256xf32>
    %c1 = arith.constant 1 : index
    %c0_15 = arith.constant 0 : index
    %c0_16 = arith.constant 0 : index
    %29 = vector.load %arg5[%c1, %c0_15, %c0_16] : memref<4x256x256xf32, #tpu.memory_space<vmem>>, vector<1x256x256xf32>
    %30 = vector.shape_cast %29 : vector<1x256x256xf32> to vector<256x256xf32>
    %31 = arith.addf %28, %30 : vector<256x256xf32>
    %cst_17 = arith.constant dense<0xFF800000> : vector<256xf32>
    %32 = vector.multi_reduction <maximumf>, %31, %cst_17 [1] : vector<256x256xf32> to vector<256xf32>
    %33 = vector.shape_cast %32 : vector<256xf32> to vector<256x1xf32>
    %34 = vector.broadcast %33 : vector<256x1xf32> to vector<256x256xf32>
    %35 = arith.subf %31, %34 : vector<256x256xf32>
    %36 = math.exp %35 : vector<256x256xf32>
    %cst_18 = arith.constant dense<0.000000e+00> : vector<256xf32>
    %37 = vector.multi_reduction <add>, %36, %cst_18 [1] : vector<256x256xf32> to vector<256xf32>
    %38 = vector.shape_cast %37 : vector<256xf32> to vector<256x1xf32>
    %39 = tpu.reciprocal %38 {approx = true} : vector<256x1xf32> -> vector<256x1xf32>
    %40 = vector.broadcast %39 : vector<256x1xf32> to vector<256x256xf32>
    %41 = arith.mulf %36, %40 : vector<256x256xf32>
    %42 = arith.truncf %41 : vector<256x256xf32> to vector<256x256xbf16>
    %cst_19 = arith.constant dense<0.000000e+00> : vector<256x8xf32>
    %43 = tpu.matmul %42, %27, %cst_19 {dimension_numbers = #tpu.dot_dimension_numbers<[1], [0], [0], [1], [0, 0, 1, 1], [], []>} : vector<256x256xbf16>, vector<256x8xbf16>, vector<256x8xf32> -> vector<256x8xf32>
    %44 = vector.extract_strided_slice %1 {offsets = [0, 16], sizes = [256, 8], strides = [1, 1]} : vector<256x32xbf16> to vector<256x8xbf16>
    %45 = vector.extract_strided_slice %3 {offsets = [0, 16], sizes = [256, 8], strides = [1, 1]} : vector<256x32xbf16> to vector<256x8xbf16>
    %46 = vector.extract_strided_slice %5 {offsets = [0, 16], sizes = [256, 8], strides = [1, 1]} : vector<256x32xbf16> to vector<256x8xbf16>
    %cst_20 = arith.constant dense<0.000000e+00> : vector<256x256xf32>
    %47 = tpu.matmul %44, %45, %cst_20 {dimension_numbers = #tpu.dot_dimension_numbers<[1], [1], [0], [0], [0, 0, 1, 0], [], []>} : vector<256x8xbf16>, vector<256x8xbf16>, vector<256x256xf32> -> vector<256x256xf32>
    %c2 = arith.constant 2 : index
    %c0_21 = arith.constant 0 : index
    %c0_22 = arith.constant 0 : index
    %48 = vector.load %arg5[%c2, %c0_21, %c0_22] : memref<4x256x256xf32, #tpu.memory_space<vmem>>, vector<1x256x256xf32>
    %49 = vector.shape_cast %48 : vector<1x256x256xf32> to vector<256x256xf32>
    %50 = arith.addf %47, %49 : vector<256x256xf32>
    %cst_23 = arith.constant dense<0xFF800000> : vector<256xf32>
    %51 = vector.multi_reduction <maximumf>, %50, %cst_23 [1] : vector<256x256xf32> to vector<256xf32>
    %52 = vector.shape_cast %51 : vector<256xf32> to vector<256x1xf32>
    %53 = vector.broadcast %52 : vector<256x1xf32> to vector<256x256xf32>
    %54 = arith.subf %50, %53 : vector<256x256xf32>
    %55 = math.exp %54 : vector<256x256xf32>
    %cst_24 = arith.constant dense<0.000000e+00> : vector<256xf32>
    %56 = vector.multi_reduction <add>, %55, %cst_24 [1] : vector<256x256xf32> to vector<256xf32>
    %57 = vector.shape_cast %56 : vector<256xf32> to vector<256x1xf32>
    %58 = tpu.reciprocal %57 {approx = true} : vector<256x1xf32> -> vector<256x1xf32>
    %59 = vector.broadcast %58 : vector<256x1xf32> to vector<256x256xf32>
    %60 = arith.mulf %55, %59 : vector<256x256xf32>
    %61 = arith.truncf %60 : vector<256x256xf32> to vector<256x256xbf16>
    %cst_25 = arith.constant dense<0.000000e+00> : vector<256x8xf32>
    %62 = tpu.matmul %61, %46, %cst_25 {dimension_numbers = #tpu.dot_dimension_numbers<[1], [0], [0], [1], [0, 0, 1, 1], [], []>} : vector<256x256xbf16>, vector<256x8xbf16>, vector<256x8xf32> -> vector<256x8xf32>
    %63 = vector.extract_strided_slice %1 {offsets = [0, 24], sizes = [256, 8], strides = [1, 1]} : vector<256x32xbf16> to vector<256x8xbf16>
    %64 = vector.extract_strided_slice %3 {offsets = [0, 24], sizes = [256, 8], strides = [1, 1]} : vector<256x32xbf16> to vector<256x8xbf16>
    %65 = vector.extract_strided_slice %5 {offsets = [0, 24], sizes = [256, 8], strides = [1, 1]} : vector<256x32xbf16> to vector<256x8xbf16>
    %cst_26 = arith.constant dense<0.000000e+00> : vector<256x256xf32>
    %66 = tpu.matmul %63, %64, %cst_26 {dimension_numbers = #tpu.dot_dimension_numbers<[1], [1], [0], [0], [0, 0, 1, 0], [], []>} : vector<256x8xbf16>, vector<256x8xbf16>, vector<256x256xf32> -> vector<256x256xf32>
    %c3 = arith.constant 3 : index
    %c0_27 = arith.constant 0 : index
    %c0_28 = arith.constant 0 : index
    %67 = vector.load %arg5[%c3, %c0_27, %c0_28] : memref<4x256x256xf32, #tpu.memory_space<vmem>>, vector<1x256x256xf32>
    %68 = vector.shape_cast %67 : vector<1x256x256xf32> to vector<256x256xf32>
    %69 = arith.addf %66, %68 : vector<256x256xf32>
    %cst_29 = arith.constant dense<0xFF800000> : vector<256xf32>
    %70 = vector.multi_reduction <maximumf>, %69, %cst_29 [1] : vector<256x256xf32> to vector<256xf32>
    %71 = vector.shape_cast %70 : vector<256xf32> to vector<256x1xf32>
    %72 = vector.broadcast %71 : vector<256x1xf32> to vector<256x256xf32>
    %73 = arith.subf %69, %72 : vector<256x256xf32>
    %74 = math.exp %73 : vector<256x256xf32>
    %cst_30 = arith.constant dense<0.000000e+00> : vector<256xf32>
    %75 = vector.multi_reduction <add>, %74, %cst_30 [1] : vector<256x256xf32> to vector<256xf32>
    %76 = vector.shape_cast %75 : vector<256xf32> to vector<256x1xf32>
    %77 = tpu.reciprocal %76 {approx = true} : vector<256x1xf32> -> vector<256x1xf32>
    %78 = vector.broadcast %77 : vector<256x1xf32> to vector<256x256xf32>
    %79 = arith.mulf %74, %78 : vector<256x256xf32>
    %80 = arith.truncf %79 : vector<256x256xf32> to vector<256x256xbf16>
    %cst_31 = arith.constant dense<0.000000e+00> : vector<256x8xf32>
    %81 = tpu.matmul %80, %65, %cst_31 {dimension_numbers = #tpu.dot_dimension_numbers<[1], [0], [0], [1], [0, 0, 1, 1], [], []>} : vector<256x256xbf16>, vector<256x8xbf16>, vector<256x8xf32> -> vector<256x8xf32>
    %82 = tpu.concatenate %24, %43, %62, %81 in 1 : vector<256x8xf32>, vector<256x8xf32>, vector<256x8xf32>, vector<256x8xf32> -> vector<256x32xf32>
    %83 = arith.truncf %82 : vector<256x32xf32> to vector<256x32xbf16>
    %c0_32 = arith.constant 0 : index
    %c0_33 = arith.constant 0 : index
    %c0_34 = arith.constant 0 : index
    %84 = vector.load %arg6[%c0_32, %c0_33, %c0_34] : memref<1x256x32xbf16, #tpu.memory_space<vmem>>, vector<1x256x32xbf16>
    %85 = vector.shape_cast %84 : vector<1x256x32xbf16> to vector<256x32xbf16>
    %86 = vector.shape_cast %83 : vector<256x32xbf16> to vector<1x256x32xbf16>
    tpu.vector_store %arg6[%c0_32, %c0_33, %c0_34], %86 {strides = array<i32>} : memref<1x256x32xbf16, #tpu.memory_space<vmem>>, vector<1x256x32xbf16>,
    return
  }
  func.func @transform_0(%arg0: i32, %arg1: i32) -> (i32, i32, i32) {
    %c0_i32 = arith.constant 0 : i32
    %c0_i32_0 = arith.constant 0 : i32
    return %arg0, %arg1, %c0_i32 : i32, i32, i32
  }
  func.func @transform_1(%arg0: i32, %arg1: i32) -> (i32, i32, i32) {
    %c0_i32 = arith.constant 0 : i32
    %c0_i32_0 = arith.constant 0 : i32
    %c0_i32_1 = arith.constant 0 : i32
    return %arg0, %c0_i32, %c0_i32_0 : i32, i32, i32
  }
  func.func @transform_2(%arg0: i32, %arg1: i32) -> (i32, i32, i32) {
    %c0_i32 = arith.constant 0 : i32
    %c0_i32_0 = arith.constant 0 : i32
    %c0_i32_1 = arith.constant 0 : i32
    return %arg0, %c0_i32, %c0_i32_0 : i32, i32, i32
  }
  func.func @transform_3(%arg0: i32, %arg1: i32) -> (i32, i32, i32) {
    %c0_i32 = arith.constant 0 : i32
    %c0_i32_0 = arith.constant 0 : i32
    %c0_i32_1 = arith.constant 0 : i32
    return %c0_i32, %arg1, %c0_i32_0 : i32, i32, i32
  }
  func.func @transform_4(%arg0: i32, %arg1: i32) -> (i32, i32, i32) {
    %c0_i32 = arith.constant 0 : i32
    %c0_i32_0 = arith.constant 0 : i32
    return %arg0, %arg1, %c0_i32 : i32, i32, i32
  }
}

module attributes {stable_mosaic.version = 11 : i64} {
  func.func @_linear_kernel(%arg0: i32, %arg1: i32, %arg2: memref<512x32xbf16, #tpu.memory_space<vmem>>, %arg3: memref<32x32xbf16, #tpu.memory_space<vmem>>, %arg4: memref<1x32xf32, #tpu.memory_space<vmem>>, %arg5: memref<512x32xf32, #tpu.memory_space<vmem>>) attributes {dimension_semantics = [#tpu.dimension_semantics<parallel>, #tpu.dimension_semantics<parallel>], iteration_bounds = array<i64: 1, 1>, scalar_prefetch = 0 : i64, scratch_operands = 0 : i64, tpu.core_type = #tpu.core_type<tc>, window_params = [{transform_indices = @transform_0, window_bounds = array<i64: 512, 32>}, {transform_indices = @transform_1, window_bounds = array<i64: 32, 32>}, {transform_indices = @transform_2, window_bounds = array<i64: 1, 32>}, {transform_indices = @transform_3, window_bounds = array<i64: 512, 32>}]} {
    %c0 = arith.constant 0 : index
    %c0_0 = arith.constant 0 : index
    %0 = vector.load %arg2[%c0, %c0_0] : memref<512x32xbf16, #tpu.memory_space<vmem>>, vector<512x32xbf16>
    %c0_1 = arith.constant 0 : index
    %c0_2 = arith.constant 0 : index
    %1 = vector.load %arg3[%c0_1, %c0_2] : memref<32x32xbf16, #tpu.memory_space<vmem>>, vector<32x32xbf16>
    %cst = arith.constant dense<0.000000e+00> : vector<512x32xf32>
    %2 = tpu.matmul %0, %1, %cst {dimension_numbers = #tpu.dot_dimension_numbers<[1], [0], [0], [1], [0, 0, 1, 1], [], []>} : vector<512x32xbf16>, vector<32x32xbf16>, vector<512x32xf32> -> vector<512x32xf32>
    %c0_3 = arith.constant 0 : index
    %c0_4 = arith.constant 0 : index
    %3 = vector.load %arg4[%c0_3, %c0_4] : memref<1x32xf32, #tpu.memory_space<vmem>>, vector<1x32xf32>
    %4 = vector.broadcast %3 : vector<1x32xf32> to vector<512x32xf32>
    %5 = arith.addf %2, %4 : vector<512x32xf32>
    %c0_5 = arith.constant 0 : index
    %c0_6 = arith.constant 0 : index
    %6 = vector.load %arg5[%c0_5, %c0_6] : memref<512x32xf32, #tpu.memory_space<vmem>>, vector<512x32xf32>
    tpu.vector_store %arg5[%c0_5, %c0_6], %5 {strides = array<i32>} : memref<512x32xf32, #tpu.memory_space<vmem>>, vector<512x32xf32>,
    return
  }
  func.func @transform_0(%arg0: i32, %arg1: i32) -> (i32, i32) {
    %c0_i32 = arith.constant 0 : i32
    %c0_i32_0 = arith.constant 0 : i32
    return %arg0, %c0_i32 : i32, i32
  }
  func.func @transform_1(%arg0: i32, %arg1: i32) -> (i32, i32) {
    %c0_i32 = arith.constant 0 : i32
    %c0_i32_0 = arith.constant 0 : i32
    return %c0_i32, %arg1 : i32, i32
  }
  func.func @transform_2(%arg0: i32, %arg1: i32) -> (i32, i32) {
    %c0_i32 = arith.constant 0 : i32
    %c0_i32_0 = arith.constant 0 : i32
    return %c0_i32, %arg1 : i32, i32
  }
  func.func @transform_3(%arg0: i32, %arg1: i32) -> (i32, i32) {
    %c0_i32 = arith.constant 0 : i32
    return %arg0, %arg1 : i32, i32
  }
}

</mosaic_0001>

<llo_original>
// kernel: _lambda_.3
$region0: #{_lambda_.3}
  #allocation0 [shape = 'u32[]', space=smem, size = 0x4, offset = 0x4, fixed_abs, tag = 'smem constant byte address 0x4 - core index']
  #allocation1 [shape = 'u32[72,128]{1,0:T(1,128)}', space=vmem, size = 0x9000, scoped, tag = 'internal scratch']
  %s0 = inlined_call_operand.vmem [shape: f32[512,32], index: 0, kind: input, shape index: {}]
  %s1 = inlined_call_operand.vmem [shape: bf16[32,96], index: 1, kind: input, shape index: {}]
  %s2 = inlined_call_operand.vmem [shape: f32[1,96], index: 2, kind: input, shape index: {}]
  %s3 = inlined_call_operand.vmem [shape: bf16[512,96], index: 3, kind: output, shape index: {}]
  %s4 = sld [smem:[#allocation0]]
  $region22: #{_lambda_.3} parent=0
    _
  %s6 = ssub.s32 1, %s4
  %s7 = scalar_select 0, %s6, %s4
  // Predicated region
  $region2: #{_lambda_.3} parent=0 // pred_check
    _
  $region3: #{_lambda_.3} parent=0 // pred_check_branch
    %9 = sbr.rel (0) target = $region5
  $region4: #{_lambda_.3} parent=0 // pred_region
    _
  $region5: #{_lambda_.3} parent=0 // pred_fallthru
    _
  // Predicated region
  $region6: #{_lambda_.3} parent=0 // pred_check
    _
  $region7: #{_lambda_.3} parent=0 // pred_check_branch
    %11 = sbr.rel (0) target = $region9
  $region8: #{_lambda_.3} parent=0 // pred_region
    _
  $region9: #{_lambda_.3} parent=0 // pred_fallthru
    _
  // Predicated region
  $region10: #{_lambda_.3} parent=0 // pred_check
    _
  $region11: #{_lambda_.3} parent=0 // pred_check_branch
    %13 = sbr.rel (0) target = $region13
  $region12: #{_lambda_.3} parent=0 // pred_region
    _
  $region13: #{_lambda_.3} parent=0 // pred_fallthru
    _
  %v15 = vld [vmem:[%s0] sm:$0xff]
  %v16 = vld [vmem:[%s0 + $0x8] sm:$0xff]
  %v17 = vld [vmem:[%s0 + $0x10] sm:$0xff]
  %v18 = vld [vmem:[%s0 + $0x18] sm:$0xff]
  %v19 = vld [vmem:[%s0 + $0x20] sm:$0xff]
  %v20 = vld [vmem:[%s0 + $0x28] sm:$0xff]
  %v21 = vld [vmem:[%s0 + $0x30] sm:$0xff]
  %v22 = vld [vmem:[%s0 + $0x38] sm:$0xff]
  %v23 = vld [vmem:[%s0 + $0x40] sm:$0xff]
  %v24 = vld [vmem:[%s0 + $0x48] sm:$0xff]
  %v25 = vld [vmem:[%s0 + $0x50] sm:$0xff]
  %v26 = vld [vmem:[%s0 + $0x58] sm:$0xff]
  %v27 = vld [vmem:[%s0 + $0x60] sm:$0xff]
  %v28 = vld [vmem:[%s0 + $0x68] sm:$0xff]
  %v29 = vld [vmem:[%s0 + $0x70] sm:$0xff]
  %v30 = vld [vmem:[%s0 + $0x78] sm:$0xff]
  %v31 = vld [vmem:[%s0 + $0x80] sm:$0xff]
  %v32 = vld [vmem:[%s0 + $0x88] sm:$0xff]
  %v33 = vld [vmem:[%s0 + $0x90] sm:$0xff]
  %v34 = vld [vmem:[%s0 + $0x98] sm:$0xff]
  %v35 = vld [vmem:[%s0 + $0xa0] sm:$0xff]
  %v36 = vld [vmem:[%s0 + $0xa8] sm:$0xff]
  %v37 = vld [vmem:[%s0 + $0xb0] sm:$0xff]
  %v38 = vld [vmem:[%s0 + $0xb8] sm:$0xff]
  %v39 = vld [vmem:[%s0 + $0xc0] sm:$0xff]
  %v40 = vld [vmem:[%s0 + $0xc8] sm:$0xff]
  %v41 = vld [vmem:[%s0 + $0xd0] sm:$0xff]
  %v42 = vld [vmem:[%s0 + $0xd8] sm:$0xff]
  %v43 = vld [vmem:[%s0 + $0xe0] sm:$0xff]
  %v44 = vld [vmem:[%s0 + $0xe8] sm:$0xff]
  %v45 = vld [vmem:[%s0 + $0xf0] sm:$0xff]
  %v46 = vld [vmem:[%s0 + $0xf8] sm:$0xff]
  %v47 = vld [vmem:[%s0 + $0x100] sm:$0xff]
  %v48 = vld [vmem:[%s0 + $0x108] sm:$0xff]
  %v49 = vld [vmem:[%s0 + $0x110] sm:$0xff]
  %v50 = vld [vmem:[%s0 + $0x118] sm:$0xff]
  %v51 = vld [vmem:[%s0 + $0x120] sm:$0xff]
  %v52 = vld [vmem:[%s0 + $0x128] sm:$0xff]
  %v53 = vld [vmem:[%s0 + $0x130] sm:$0xff]
  %v54 = vld [vmem:[%s0 + $0x138] sm:$0xff]
  %v55 = vld [vmem:[%s0 + $0x140] sm:$0xff]
  %v56 = vld [vmem:[%s0 + $0x148] sm:$0xff]
  %v57 = vld [vmem:[%s0 + $0x150] sm:$0xff]
  %v58 = vld [vmem:[%s0 + $0x158] sm:$0xff]
  %v59 = vld [vmem:[%s0 + $0x160] sm:$0xff]
  %v60 = vld [vmem:[%s0 + $0x168] sm:$0xff]
  %v61 = vld [vmem:[%s0 + $0x170] sm:$0xff]
  %v62 = vld [vmem:[%s0 + $0x178] sm:$0xff]
  %v63 = vld [vmem:[%s0 + $0x180] sm:$0xff]
  %v64 = vld [vmem:[%s0 + $0x188] sm:$0xff]
  %v65 = vld [vmem:[%s0 + $0x190] sm:$0xff]
  %v66 = vld [vmem:[%s0 + $0x198] sm:$0xff]
  %v67 = vld [vmem:[%s0 + $0x1a0] sm:$0xff]
  %v68 = vld [vmem:[%s0 + $0x1a8] sm:$0xff]
  %v69 = vld [vmem:[%s0 + $0x1b0] sm:$0xff]
  %v70 = vld [vmem:[%s0 + $0x1b8] sm:$0xff]
  %v71 = vld [vmem:[%s0 + $0x1c0] sm:$0xff]
  %v72 = vld [vmem:[%s0 + $0x1c8] sm:$0xff]
  %v73 = vld [vmem:[%s0 + $0x1d0] sm:$0xff]
  %v74 = vld [vmem:[%s0 + $0x1d8] sm:$0xff]
  %v75 = vld [vmem:[%s0 + $0x1e0] sm:$0xff]
  %v76 = vld [vmem:[%s0 + $0x1e8] sm:$0xff]
  %v77 = vld [vmem:[%s0 + $0x1f0] sm:$0xff]
  %v78 = vld [vmem:[%s0 + $0x1f8] sm:$0xff]
  %v79 = vpack.c.bf16 %v16, %v15
  %v80 = vpack.c.bf16 %v18, %v17
  %v81 = vpack.c.bf16 %v20, %v19
  %v82 = vpack.c.bf16 %v22, %v21
  %v83 = vpack.c.bf16 %v24, %v23
  %v84 = vpack.c.bf16 %v26, %v25
  %v85 = vpack.c.bf16 %v28, %v27
  %v86 = vpack.c.bf16 %v30, %v29
  %v87 = vpack.c.bf16 %v32, %v31
  %v88 = vpack.c.bf16 %v34, %v33
  %v89 = vpack.c.bf16 %v36, %v35
  %v90 = vpack.c.bf16 %v38, %v37
  %v91 = vpack.c.bf16 %v40, %v39
  %v92 = vpack.c.bf16 %v42, %v41
  %v93 = vpack.c.bf16 %v44, %v43
  %v94 = vpack.c.bf16 %v46, %v45
  %v95 = vpack.c.bf16 %v48, %v47
  %v96 = vpack.c.bf16 %v50, %v49
  %v97 = vpack.c.bf16 %v52, %v51
  %v98 = vpack.c.bf16 %v54, %v53
  %v99 = vpack.c.bf16 %v56, %v55
  %v100 = vpack.c.bf16 %v58, %v57
  %v101 = vpack.c.bf16 %v60, %v59
  %v102 = vpack.c.bf16 %v62, %v61
  %v103 = vpack.c.bf16 %v64, %v63
  %v104 = vpack.c.bf16 %v66, %v65
  %v105 = vpack.c.bf16 %v68, %v67
  %v106 = vpack.c.bf16 %v70, %v69
  %v107 = vpack.c.bf16 %v72, %v71
  %v108 = vpack.c.bf16 %v74, %v73
  %v109 = vpack.c.bf16 %v76, %v75
  %v110 = vpack.c.bf16 %v78, %v77
  %v111 = vld [vmem:[%s1] sm:$0xf]
  %v112 = vld [vmem:[%s1 + $0x4] sm:$0xf]
  %v113 = vld [vmem:[%s1 + $0x8] sm:$0xf]
  %v114 = vld [vmem:[%s1 + $0xc] sm:$0xf]
  %v115 = vld [vmem:[%s2] sm:$0x1]
  %v117 = vperm.slane %v115, 0
  %v123 = vunpack.c.l.b16 %v111
  %v124 = vunpack.c.l.b16 %v112
  %v125 = vunpack.c.l.b16 %v113
  %v126 = vunpack.c.l.b16 %v114
  %v127 = vpack.c.b16 %v124, %v123
  %v128 = vpack.c.b16 %v126, %v125
  %vm131 = vcmask 261120
  %v133 = vsel %vm131, %v79, 0
  %v136 = vsel %vm131, %v80, 0
  %v139 = vsel %vm131, %v81, 0
  %v142 = vsel %vm131, %v82, 0
  %v145 = vsel %vm131, %v83, 0
  %v148 = vsel %vm131, %v84, 0
  %v151 = vsel %vm131, %v85, 0
  %v154 = vsel %vm131, %v86, 0
  %v157 = vsel %vm131, %v87, 0
  %v160 = vsel %vm131, %v88, 0
  %v163 = vsel %vm131, %v89, 0
  %v166 = vsel %vm131, %v90, 0
  %v169 = vsel %vm131, %v91, 0
  %v172 = vsel %vm131, %v92, 0
  %v175 = vsel %vm131, %v93, 0
  %v178 = vsel %vm131, %v94, 0
  %v181 = vsel %vm131, %v95, 0
  %v184 = vsel %vm131, %v96, 0
  %v187 = vsel %vm131, %v97, 0
  %v190 = vsel %vm131, %v98, 0
  %v193 = vsel %vm131, %v99, 0
  %v196 = vsel %vm131, %v100, 0
  %v199 = vsel %vm131, %v101, 0
  %v202 = vsel %vm131, %v102, 0
  %v205 = vsel %vm131, %v103, 0
  %v208 = vsel %vm131, %v104, 0
  %v211 = vsel %vm131, %v105, 0
  %v214 = vsel %vm131, %v106, 0
  %v217 = vsel %vm131, %v107, 0
  %v220 = vsel %vm131, %v108, 0
  %v223 = vsel %vm131, %v109, 0
  %v226 = vsel %vm131, %v110, 0
  %228 = vmatpush.bf16.msra.mxu0 0
  %229 = vmatpush.bf16.msra.mxu0 0
  %230 = vmatpush.bf16.msra.mxu0 0
  %231 = vmatpush.bf16.msra.mxu0 0
  %232 = vmatpush.bf16.msra.mxu0 0
  %233 = vmatpush.bf16.msra.mxu0 0
  %234 = vmatpush.bf16.msra.mxu0 %v128
  %235 = vmatpush.bf16.msra.mxu0 %v127
  %236 = vmatmul.bf16.gmra.mxu0 %v133
  %v237 = vpop.f32.mrf.mxu0
  %v238 = vadd.f32 %v117, %v237
  %v239 = vpop.f32.mrf.mxu0
  %v240 = vadd.f32 %v117, %v239
  %241 = vmatmul.bf16.gmra.mxu0 %v136
  %v242 = vpop.f32.mrf.mxu0
  %v243 = vadd.f32 %v117, %v242
  %v244 = vpop.f32.mrf.mxu0
  %v245 = vadd.f32 %v117, %v244
  %246 = vmatmul.bf16.gmra.mxu0 %v139
  %v247 = vpop.f32.mrf.mxu0
  %v248 = vadd.f32 %v117, %v247
  %v249 = vpop.f32.mrf.mxu0
  %v250 = vadd.f32 %v117, %v249
  %251 = vmatmul.bf16.gmra.mxu0 %v142
  %v252 = vpop.f32.mrf.mxu0
  %v253 = vadd.f32 %v117, %v252
  %v254 = vpop.f32.mrf.mxu0
  %v255 = vadd.f32 %v117, %v254
  %256 = vmatmul.bf16.gmra.mxu0 %v145
  %v257 = vpop.f32.mrf.mxu0
  %v258 = vadd.f32 %v117, %v257
  %v259 = vpop.f32.mrf.mxu0
  %v260 = vadd.f32 %v117, %v259
  %261 = vmatmul.bf16.gmra.mxu0 %v148
  %v262 = vpop.f32.mrf.mxu0
  %v263 = vadd.f32 %v117, %v262
  %v264 = vpop.f32.mrf.mxu0
  %v265 = vadd.f32 %v117, %v264
  %266 = vmatmul.bf16.gmra.mxu0 %v151
  %v267 = vpop.f32.mrf.mxu0
  %v268 = vadd.f32 %v117, %v267
  %v269 = vpop.f32.mrf.mxu0
  %v270 = vadd.f32 %v117, %v269
  %271 = vmatmul.bf16.gmra.mxu0 %v154
  %v272 = vpop.f32.mrf.mxu0
  %v273 = vadd.f32 %v117, %v272
  %v274 = vpop.f32.mrf.mxu0
  %v275 = vadd.f32 %v117, %v274
  %276 = vmatmul.bf16.gmra.mxu0 %v157
  %v277 = vpop.f32.mrf.mxu0
  %v278 = vadd.f32 %v117, %v277
  %v279 = vpop.f32.mrf.mxu0
  %v280 = vadd.f32 %v117, %v279
  %281 = vmatmul.bf16.gmra.mxu0 %v160
  %v282 = vpop.f32.mrf.mxu0
  %v283 = vadd.f32 %v117, %v282
  %v284 = vpop.f32.mrf.mxu0
  %v285 = vadd.f32 %v117, %v284
  %286 = vmatmul.bf16.gmra.mxu0 %v163
  %v287 = vpop.f32.mrf.mxu0
  %v288 = vadd.f32 %v117, %v287
  %v289 = vpop.f32.mrf.mxu0
  %v290 = vadd.f32 %v117, %v289
  %291 = vmatmul.bf16.gmra.mxu0 %v166
  %v292 = vpop.f32.mrf.mxu0
  %v293 = vadd.f32 %v117, %v292
  %v294 = vpop.f32.mrf.mxu0
  %v295 = vadd.f32 %v117, %v294
  %296 = vmatmul.bf16.gmra.mxu0 %v169
  %v297 = vpop.f32.mrf.mxu0
  %v298 = vadd.f32 %v117, %v297
  %v299 = vpop.f32.mrf.mxu0
  %v300 = vadd.f32 %v117, %v299
  %301 = vmatmul.bf16.gmra.mxu0 %v172
  %v302 = vpop.f32.mrf.mxu0
  %v303 = vadd.f32 %v117, %v302
  %v304 = vpop.f32.mrf.mxu0
  %v305 = vadd.f32 %v117, %v304
  %306 = vmatmul.bf16.gmra.mxu0 %v175
  %v307 = vpop.f32.mrf.mxu0
  %v308 = vadd.f32 %v117, %v307
  %v309 = vpop.f32.mrf.mxu0
  %v310 = vadd.f32 %v117, %v309
  %311 = vmatmul.bf16.gmra.mxu0 %v178
  %v312 = vpop.f32.mrf.mxu0
  %v313 = vadd.f32 %v117, %v312
  %v314 = vpop.f32.mrf.mxu0
  %v315 = vadd.f32 %v117, %v314
  %316 = vmatmul.bf16.gmra.mxu0 %v181
  %v317 = vpop.f32.mrf.mxu0
  %v318 = vadd.f32 %v117, %v317
  %v319 = vpop.f32.mrf.mxu0
  %v320 = vadd.f32 %v117, %v319
  %321 = vmatmul.bf16.gmra.mxu0 %v184
  %v322 = vpop.f32.mrf.mxu0
  %v323 = vadd.f32 %v117, %v322
  %v324 = vpop.f32.mrf.mxu0
  %v325 = vadd.f32 %v117, %v324
  %326 = vmatmul.bf16.gmra.mxu0 %v187
  %v327 = vpop.f32.mrf.mxu0
  %v328 = vadd.f32 %v117, %v327
  %v329 = vpop.f32.mrf.mxu0
  %v330 = vadd.f32 %v117, %v329
  %331 = vmatmul.bf16.gmra.mxu0 %v190
  %v332 = vpop.f32.mrf.mxu0
  %v333 = vadd.f32 %v117, %v332
  %v334 = vpop.f32.mrf.mxu0
  %v335 = vadd.f32 %v117, %v334
  %336 = vmatmul.bf16.gmra.mxu0 %v193
  %v337 = vpop.f32.mrf.mxu0
  %v338 = vadd.f32 %v117, %v337
  %v339 = vpop.f32.mrf.mxu0
  %v340 = vadd.f32 %v117, %v339
  %341 = vmatmul.bf16.gmra.mxu0 %v196
  %v342 = vpop.f32.mrf.mxu0
  %v343 = vadd.f32 %v117, %v342
  %v344 = vpop.f32.mrf.mxu0
  %v345 = vadd.f32 %v117, %v344
  %346 = vmatmul.bf16.gmra.mxu0 %v199
  %v347 = vpop.f32.mrf.mxu0
  %v348 = vadd.f32 %v117, %v347
  %v349 = vpop.f32.mrf.mxu0
  %v350 = vadd.f32 %v117, %v349
  %351 = vmatmul.bf16.gmra.mxu0 %v202
  %v352 = vpop.f32.mrf.mxu0
  %v353 = vadd.f32 %v117, %v352
  %v354 = vpop.f32.mrf.mxu0
  %v355 = vadd.f32 %v117, %v354
  %356 = vmatmul.bf16.gmra.mxu0 %v205
  %v357 = vpop.f32.mrf.mxu0
  %v358 = vadd.f32 %v117, %v357
  %v359 = vpop.f32.mrf.mxu0
  %v360 = vadd.f32 %v117, %v359
  %361 = vmatmul.bf16.gmra.mxu0 %v208
  %v362 = vpop.f32.mrf.mxu0
  %v363 = vadd.f32 %v117, %v362
  %v364 = vpop.f32.mrf.mxu0
  %v365 = vadd.f32 %v117, %v364
  %366 = vmatmul.bf16.gmra.mxu0 %v211
  %v367 = vpop.f32.mrf.mxu0
  %v368 = vadd.f32 %v117, %v367
  %v369 = vpop.f32.mrf.mxu0
  %v370 = vadd.f32 %v117, %v369
  %371 = vmatmul.bf16.gmra.mxu0 %v214
  %v372 = vpop.f32.mrf.mxu0
  %v373 = vadd.f32 %v117, %v372
  %v374 = vpop.f32.mrf.mxu0
  %v375 = vadd.f32 %v117, %v374
  %376 = vmatmul.bf16.gmra.mxu0 %v217
  %v377 = vpop.f32.mrf.mxu0
  %v378 = vadd.f32 %v117, %v377
  %v379 = vpop.f32.mrf.mxu0
  %v380 = vadd.f32 %v117, %v379
  %381 = vmatmul.bf16.gmra.mxu0 %v220
  %v382 = vpop.f32.mrf.mxu0
  %v383 = vadd.f32 %v117, %v382
  %v384 = vpop.f32.mrf.mxu0
  %v385 = vadd.f32 %v117, %v384
  %386 = vmatmul.bf16.gmra.mxu0 %v223
  %v387 = vpop.f32.mrf.mxu0
  %v388 = vadd.f32 %v117, %v387
  %v389 = vpop.f32.mrf.mxu0
  %v390 = vadd.f32 %v117, %v389
  %391 = vmatmul.bf16.gmra.mxu0 %v226
  %v392 = vpop.f32.mrf.mxu0
  %v393 = vadd.f32 %v117, %v392
  %v394 = vpop.f32.mrf.mxu0
  %v395 = vadd.f32 %v117, %v394
  %396 = vdwg.mxu0
  %v397 = vpack.c.bf16 %v238, %v238
  %v398 = vpack.c.bf16 %v240, %v240
  %v399 = vpack.c.bf16 %v243, %v243
  %v400 = vpack.c.bf16 %v245, %v245
  %v401 = vpack.c.bf16 %v248, %v248
  %v402 = vpack.c.bf16 %v250, %v250
  %v403 = vpack.c.bf16 %v253, %v253
  %v404 = vpack.c.bf16 %v255, %v255
  %v405 = vpack.c.bf16 %v258, %v258
  %v406 = vpack.c.bf16 %v260, %v260
  %v407 = vpack.c.bf16 %v263, %v263
  %v408 = vpack.c.bf16 %v265, %v265
  %v409 = vpack.c.bf16 %v268, %v268
  %v410 = vpack.c.bf16 %v270, %v270
  %v411 = vpack.c.bf16 %v273, %v273
  %v412 = vpack.c.bf16 %v275, %v275
  %v413 = vpack.c.bf16 %v278, %v278
  %v414 = vpack.c.bf16 %v280, %v280
  %v415 = vpack.c.bf16 %v283, %v283
  %v416 = vpack.c.bf16 %v285, %v285
  %v417 = vpack.c.bf16 %v288, %v288
  %v418 = vpack.c.bf16 %v290, %v290
  %v419 = vpack.c.bf16 %v293, %v293
  %v420 = vpack.c.bf16 %v295, %v295
  %v421 = vpack.c.bf16 %v298, %v298
  %v422 = vpack.c.bf16 %v300, %v300
  %v423 = vpack.c.bf16 %v303, %v303
  %v424 = vpack.c.bf16 %v305, %v305
  %v425 = vpack.c.bf16 %v308, %v308
  %v426 = vpack.c.bf16 %v310, %v310
  %v427 = vpack.c.bf16 %v313, %v313
  %v428 = vpack.c.bf16 %v315, %v315
  %v429 = vpack.c.bf16 %v318, %v318
  %v430 = vpack.c.bf16 %v320, %v320
  %v431 = vpack.c.bf16 %v323, %v323
  %v432 = vpack.c.bf16 %v325, %v325
  %v433 = vpack.c.bf16 %v328, %v328
  %v434 = vpack.c.bf16 %v330, %v330
  %v435 = vpack.c.bf16 %v333, %v333
  %v436 = vpack.c.bf16 %v335, %v335
  %v437 = vpack.c.bf16 %v338, %v338
  %v438 = vpack.c.bf16 %v340, %v340
  %v439 = vpack.c.bf16 %v343, %v343
  %v440 = vpack.c.bf16 %v345, %v345
  %v441 = vpack.c.bf16 %v348, %v348
  %v442 = vpack.c.bf16 %v350, %v350
  %v443 = vpack.c.bf16 %v353, %v353
  %v444 = vpack.c.bf16 %v355, %v355
  %v445 = vpack.c.bf16 %v358, %v358
  %v446 = vpack.c.bf16 %v360, %v360
  %v447 = vpack.c.bf16 %v363, %v363
  %v448 = vpack.c.bf16 %v365, %v365
  %v449 = vpack.c.bf16 %v368, %v368
  %v450 = vpack.c.bf16 %v370, %v370
  %v451 = vpack.c.bf16 %v373, %v373
  %v452 = vpack.c.bf16 %v375, %v375
  %v453 = vpack.c.bf16 %v378, %v378
  %v454 = vpack.c.bf16 %v380, %v380
  %v455 = vpack.c.bf16 %v383, %v383
  %v456 = vpack.c.bf16 %v385, %v385
  %v457 = vpack.c.bf16 %v388, %v388
  %v458 = vpack.c.bf16 %v390, %v390
  %v459 = vpack.c.bf16 %v393, %v393
  %v460 = vpack.c.bf16 %v395, %v395
  %vm461 = vcmask 781312
  %462 = vst.msk [vmem:[%s3] sm:$0xf] %vm461, %v397
  %463 = vst.msk [vmem:[%s3 + $0x4] sm:$0xf] %vm461, %v398
  %464 = vst.msk [vmem:[%s3 + $0x8] sm:$0xf] %vm461, %v399
  %465 = vst.msk [vmem:[%s3 + $0xc] sm:$0xf] %vm461, %v400
  %466 = vst.msk [vmem:[%s3 + $0x10] sm:$0xf] %vm461, %v401
  %467 = vst.msk [vmem:[%s3 + $0x14] sm:$0xf] %vm461, %v402
  %468 = vst.msk [vmem:[%s3 + $0x18] sm:$0xf] %vm461, %v403
  %469 = vst.msk [vmem:[%s3 + $0x1c] sm:$0xf] %vm461, %v404
  %470 = vst.msk [vmem:[%s3 + $0x20] sm:$0xf] %vm461, %v405
  %471 = vst.msk [vmem:[%s3 + $0x24] sm:$0xf] %vm461, %v406
  %472 = vst.msk [vmem:[%s3 + $0x28] sm:$0xf] %vm461, %v407
  %473 = vst.msk [vmem:[%s3 + $0x2c] sm:$0xf] %vm461, %v408
  %474 = vst.msk [vmem:[%s3 + $0x30] sm:$0xf] %vm461, %v409
  %475 = vst.msk [vmem:[%s3 + $0x34] sm:$0xf] %vm461, %v410
  %476 = vst.msk [vmem:[%s3 + $0x38] sm:$0xf] %vm461, %v411
  %477 = vst.msk [vmem:[%s3 + $0x3c] sm:$0xf] %vm461, %v412
  %478 = vst.msk [vmem:[%s3 + $0x40] sm:$0xf] %vm461, %v413
  %479 = vst.msk [vmem:[%s3 + $0x44] sm:$0xf] %vm461, %v414
  %480 = vst.msk [vmem:[%s3 + $0x48] sm:$0xf] %vm461, %v415
  %481 = vst.msk [vmem:[%s3 + $0x4c] sm:$0xf] %vm461, %v416
  %482 = vst.msk [vmem:[%s3 + $0x50] sm:$0xf] %vm461, %v417
  %483 = vst.msk [vmem:[%s3 + $0x54] sm:$0xf] %vm461, %v418
  %484 = vst.msk [vmem:[%s3 + $0x58] sm:$0xf] %vm461, %v419
  %485 = vst.msk [vmem:[%s3 + $0x5c] sm:$0xf] %vm461, %v420
  %486 = vst.msk [vmem:[%s3 + $0x60] sm:$0xf] %vm461, %v421
  %487 = vst.msk [vmem:[%s3 + $0x64] sm:$0xf] %vm461, %v422
  %488 = vst.msk [vmem:[%s3 + $0x68] sm:$0xf] %vm461, %v423
  %489 = vst.msk [vmem:[%s3 + $0x6c] sm:$0xf] %vm461, %v424
  %490 = vst.msk [vmem:[%s3 + $0x70] sm:$0xf] %vm461, %v425
  %491 = vst.msk [vmem:[%s3 + $0x74] sm:$0xf] %vm461, %v426
  %492 = vst.msk [vmem:[%s3 + $0x78] sm:$0xf] %vm461, %v427
  %493 = vst.msk [vmem:[%s3 + $0x7c] sm:$0xf] %vm461, %v428
  %494 = vst.msk [vmem:[%s3 + $0x80] sm:$0xf] %vm461, %v429
  %495 = vst.msk [vmem:[%s3 + $0x84] sm:$0xf] %vm461, %v430
  %496 = vst.msk [vmem:[%s3 + $0x88] sm:$0xf] %vm461, %v431
  %497 = vst.msk [vmem:[%s3 + $0x8c] sm:$0xf] %vm461, %v432
  %498 = vst.msk [vmem:[%s3 + $0x90] sm:$0xf] %vm461, %v433
  %499 = vst.msk [vmem:[%s3 + $0x94] sm:$0xf] %vm461, %v434
  %500 = vst.msk [vmem:[%s3 + $0x98] sm:$0xf] %vm461, %v435
  %501 = vst.msk [vmem:[%s3 + $0x9c] sm:$0xf] %vm461, %v436
  %502 = vst.msk [vmem:[%s3 + $0xa0] sm:$0xf] %vm461, %v437
  %503 = vst.msk [vmem:[%s3 + $0xa4] sm:$0xf] %vm461, %v438
  %504 = vst.msk [vmem:[%s3 + $0xa8] sm:$0xf] %vm461, %v439
  %505 = vst.msk [vmem:[%s3 + $0xac] sm:$0xf] %vm461, %v440
  %506 = vst.msk [vmem:[%s3 + $0xb0] sm:$0xf] %vm461, %v441
  %507 = vst.msk [vmem:[%s3 + $0xb4] sm:$0xf] %vm461, %v442
  %508 = vst.msk [vmem:[%s3 + $0xb8] sm:$0xf] %vm461, %v443
  %509 = vst.msk [vmem:[%s3 + $0xbc] sm:$0xf] %vm461, %v444
  %510 = vst.msk [vmem:[%s3 + $0xc0] sm:$0xf] %vm461, %v445
  %511 = vst.msk [vmem:[%s3 + $0xc4] sm:$0xf] %vm461, %v446
  %512 = vst.msk [vmem:[%s3 + $0xc8] sm:$0xf] %vm461, %v447
  %513 = vst.msk [vmem:[%s3 + $0xcc] sm:$0xf] %vm461, %v448
  %514 = vst.msk [vmem:[%s3 + $0xd0] sm:$0xf] %vm461, %v449
  %515 = vst.msk [vmem:[%s3 + $0xd4] sm:$0xf] %vm461, %v450
  %516 = vst.msk [vmem:[%s3 + $0xd8] sm:$0xf] %vm461, %v451
  %517 = vst.msk [vmem:[%s3 + $0xdc] sm:$0xf] %vm461, %v452
  %518 = vst.msk [vmem:[%s3 + $0xe0] sm:$0xf] %vm461, %v453
  %519 = vst.msk [vmem:[%s3 + $0xe4] sm:$0xf] %vm461, %v454
  %520 = vst.msk [vmem:[%s3 + $0xe8] sm:$0xf] %vm461, %v455
  %521 = vst.msk [vmem:[%s3 + $0xec] sm:$0xf] %vm461, %v456
  %522 = vst.msk [vmem:[%s3 + $0xf0] sm:$0xf] %vm461, %v457
  %523 = vst.msk [vmem:[%s3 + $0xf4] sm:$0xf] %vm461, %v458
  %524 = vst.msk [vmem:[%s3 + $0xf8] sm:$0xf] %vm461, %v459
  %525 = vst.msk [vmem:[%s3 + $0xfc] sm:$0xf] %vm461, %v460
  // Predicated region
  $region14: #{_lambda_.3} parent=0 // pred_check
    _
  $region15: #{_lambda_.3} parent=0 // pred_check_branch
    %527 = sbr.rel (0) target = $region17
  $region16: #{_lambda_.3} parent=0 // pred_region
    _
  $region17: #{_lambda_.3} parent=0 // pred_fallthru
    _
  // Predicated region
  $region18: #{_lambda_.3} parent=0 // pred_check
    _
  $region19: #{_lambda_.3} parent=0 // pred_check_branch
    %529 = sbr.rel (0) target = $region21
  $region20: #{_lambda_.3} parent=0 // pred_region
    _
  $region21: #{_lambda_.3} parent=0 // pred_fallthru
    _

// kernel: _lambda_.4
$region0: #{_lambda_.4}
  #allocation0 [shape = 'u32[]', space=smem, size = 0x4, offset = 0x4, fixed_abs, tag = 'smem constant byte address 0x4 - core index']
  #allocation1 [shape = 'u32[72,128]{1,0:T(1,128)}', space=vmem, size = 0x9000, scoped, tag = 'internal scratch']
  %s0 = inlined_call_operand.vmem [shape: bf16[2,256,32], index: 0, kind: input, shape index: {}]
  %s1 = inlined_call_operand.vmem [shape: bf16[2,256,32], index: 1, kind: input, shape index: {}]
  %s2 = inlined_call_operand.vmem [shape: bf16[2,256,32], index: 2, kind: input, shape index: {}]
  %s3 = inlined_call_operand.vmem [shape: f32[4,256,256], index: 3, kind: input, shape index: {}]
  %s4 = inlined_call_operand.vmem [shape: bf16[2,256,32], index: 4, kind: output, shape index: {}]
  %s5 = sld [smem:[#allocation0]]
  $region49: #{_lambda_.4} parent=0
    _
  %s7 = ssub.s32 1, %s5
  %s8 = scalar_select 0, %s7, %s5
  loop: start=0, step=1, limit=4
  $region2: #{_lambda_.4} parent=0 // loop_pre_header
    _
  $region3: #{_lambda_.4} parent=0 // loop_header
    %s10 = sphi 0, %s14
    %p11 = scmp.ge.s32.totalorder %s10, 4
    %s17 = sphi 0, %s29
    %s18 = sphi 0, %s25
    %s19 = sphi 0, %s17
    %s20 = sphi 0, %s18
    %s21 = sphi 0, %s19
    %s22 = sphi 0, %s20
    %s34 = sphi 0, %s36
    %s37 = sphi 0, %s34
    %s38 = sphi 0, %s37
    %s54 = sphi 0, %s38
    %s60 = sphi 0, %s62
    %s63 = sphi 0, %s60
    %s64 = sphi 0, %s63
    %s80 = sphi 0, %s64
    %s86 = sphi 0, %s88
    %s89 = sphi 0, %s86
    %s90 = sphi 0, %s89
    %s106 = sphi 0, %s90
    %s112 = sphi 0, %s114
    %s115 = sphi 0, %s112
    %s116 = sphi 0, %s115
    %s132 = sphi 0, %s116
    %s140 = sphi 0, %s142
    %s143 = sphi 0, %s140
    %s144 = sphi 0, %s143
    %s160 = sphi 0, %s144
  $region4: #{_lambda_.4} parent=0 // loop_header_branch
    %13 = sbr.rel (%p11) target = $region8
  $region5: #{_lambda_.4} parent=0 // loop_body
    %s15 = ssub.s32 %s10, 1
    %s16 = ssub.s32 %s10, 2
    %s23 = sadd.s32 1, %s18
    %p24 = scmp.ge.s32.totalorder %s23, 1
    %s25 = scalar_select %p24, 0, %s23
    %s26 = sadd.s32 1, %s17
    %s27 = scalar_select %p24, %s26, %s17
    %p28 = scmp.ge.s32.totalorder %s27, 2
    %s29 = scalar_select %p28, 0, %s27
    %s30 = ssub.s32 %s17, %s29
    %s31 = ssub.s32 %s18, %s25
    %s32 = sor.u32 %s30, %s31
    %p33 = scmp.eq.s32.totalorder %s32, 0
    %s35 = sadd.s32 %s34, 1
    %s36 = scalar_select %p33, %s34, %s35
    %p39 = pneg %p33
    %p40 = scmp.eq.s32.totalorder %s10, 1
    %p41 = por %p39, %p40
    %p42 = scmp.ne.s32.totalorder %s34, %s37
    %p43 = scmp.eq.s32.totalorder %s10, 0
    %p44 = por %p42, %p43
    %p45 = scmp.ne.s32.totalorder %s34, %s37
    %p46 = scmp.eq.s32.totalorder %s15, 1
    %p47 = por %p45, %p46
    %p48 = scmp.ne.s32.totalorder %s37, %s38
    %p49 = scmp.eq.s32.totalorder %s15, 0
    %p50 = por %p48, %p49
    %p51 = scmp.ne.s32.totalorder %s37, %s38
    %p52 = scmp.eq.s32.totalorder %s16, 1
    %p53 = por %p51, %p52
    %p55 = scmp.ne.s32.totalorder %s38, %s54
    %p56 = scmp.eq.s32.totalorder %s16, 0
    %p57 = por %p55, %p56
    %s58 = ssub.s32 %s17, %s29
    %p59 = scmp.eq.s32.totalorder %s58, 0
    %s61 = sadd.s32 %s60, 1
    %s62 = scalar_select %p59, %s60, %s61
    %p65 = pneg %p59
    %p66 = scmp.eq.s32.totalorder %s10, 1
    %p67 = por %p65, %p66
    %p68 = scmp.ne.s32.totalorder %s60, %s63
    %p69 = scmp.eq.s32.totalorder %s10, 0
    %p70 = por %p68, %p69
    %p71 = scmp.ne.s32.totalorder %s60, %s63
    %p72 = scmp.eq.s32.totalorder %s15, 1
    %p73 = por %p71, %p72
    %p74 = scmp.ne.s32.totalorder %s63, %s64
    %p75 = scmp.eq.s32.totalorder %s15, 0
    %p76 = por %p74, %p75
    %p77 = scmp.ne.s32.totalorder %s63, %s64
    %p78 = scmp.eq.s32.totalorder %s16, 1
    %p79 = por %p77, %p78
    %p81 = scmp.ne.s32.totalorder %s64, %s80
    %p82 = scmp.eq.s32.totalorder %s16, 0
    %p83 = por %p81, %p82
    %s84 = ssub.s32 %s17, %s29
    %p85 = scmp.eq.s32.totalorder %s84, 0
    %s87 = sadd.s32 %s86, 1
    %s88 = scalar_select %p85, %s86, %s87
    %p91 = pneg %p85
    %p92 = scmp.eq.s32.totalorder %s10, 1
    %p93 = por %p91, %p92
    %p94 = scmp.ne.s32.totalorder %s86, %s89
    %p95 = scmp.eq.s32.totalorder %s10, 0
    %p96 = por %p94, %p95
    %p97 = scmp.ne.s32.totalorder %s86, %s89
    %p98 = scmp.eq.s32.totalorder %s15, 1
    %p99 = por %p97, %p98
    %p100 = scmp.ne.s32.totalorder %s89, %s90
    %p101 = scmp.eq.s32.totalorder %s15, 0
    %p102 = por %p100, %p101
    %p103 = scmp.ne.s32.totalorder %s89, %s90
    %p104 = scmp.eq.s32.totalorder %s16, 1
    %p105 = por %p103, %p104
    %p107 = scmp.ne.s32.totalorder %s90, %s106
    %p108 = scmp.eq.s32.totalorder %s16, 0
    %p109 = por %p107, %p108
    %s110 = ssub.s32 %s18, %s25
    %p111 = scmp.eq.s32.totalorder %s110, 0
    %s113 = sadd.s32 %s112, 1
    %s114 = scalar_select %p111, %s112, %s113
    %p117 = pneg %p111
    %p118 = scmp.eq.s32.totalorder %s10, 1
    %p119 = por %p117, %p118
    %p120 = scmp.ne.s32.totalorder %s112, %s115
    %p121 = scmp.eq.s32.totalorder %s10, 0
    %p122 = por %p120, %p121
    %p123 = scmp.ne.s32.totalorder %s112, %s115
    %p124 = scmp.eq.s32.totalorder %s15, 1
    %p125 = por %p123, %p124
    %p126 = scmp.ne.s32.totalorder %s115, %s116
    %p127 = scmp.eq.s32.totalorder %s15, 0
    %p128 = por %p126, %p127
    %p129 = scmp.ne.s32.totalorder %s115, %s116
    %p130 = scmp.eq.s32.totalorder %s16, 1
    %p131 = por %p129, %p130
    %p133 = scmp.ne.s32.totalorder %s116, %s132
    %p134 = scmp.eq.s32.totalorder %s16, 0
    %p135 = por %p133, %p134
    %s136 = ssub.s32 %s17, %s29
    %s137 = ssub.s32 %s18, %s25
    %s138 = sor.u32 %s136, %s137
    %p139 = scmp.eq.s32.totalorder %s138, 0
    %s141 = sadd.s32 %s140, 1
    %s142 = scalar_select %p139, %s140, %s141
    %p145 = pneg %p139
    %p146 = scmp.eq.s32.totalorder %s10, 1
    %p147 = por %p145, %p146
    %p148 = scmp.ne.s32.totalorder %s140, %s143
    %p149 = scmp.eq.s32.totalorder %s10, 0
    %p150 = por %p148, %p149
    %p151 = scmp.ne.s32.totalorder %s140, %s143
    %p152 = scmp.eq.s32.totalorder %s15, 1
    %p153 = por %p151, %p152
    %p154 = scmp.ne.s32.totalorder %s143, %s144
    %p155 = scmp.eq.s32.totalorder %s15, 0
    %p156 = por %p154, %p155
    %p157 = scmp.ne.s32.totalorder %s143, %s144
    %p158 = scmp.eq.s32.totalorder %s16, 1
    %p159 = por %p157, %p158
    %p161 = scmp.ne.s32.totalorder %s144, %s160
    %p162 = scmp.eq.s32.totalorder %s16, 0
    %p163 = por %p161, %p162
    %p164 = scmp.le.s32.totalorder 1, %s10
    %p165 = scmp.lt.s32.totalorder %s10, 3
    %p166 = pnand %p164, %p165
    %p167 = pneg %p166
    // Predicated region
    $region9: #{_lambda_.4} parent=5 // pred_check
      _
    $region10: #{_lambda_.4} parent=5 // pred_check_branch
      %169 = sbr.rel (%p166) target = $region12
    $region11: #{_lambda_.4} parent=5 // pred_region
      %s170 = ssub.s32 %s10, 1
      // Predicated region
      $region13: #{_lambda_.4} parent=11 // pred_check
        %p171 = pneg %p128
      $region14: #{_lambda_.4} parent=11 // pred_check_branch
        %173 = sbr.rel (%p171) target = $region16
      $region15: #{_lambda_.4} parent=11 // pred_region
        %s174 = smul.u32 32, %s20
        %p175 = scmp.lt.s32.totalorder %s174, 31
        %s176 = scalar_select %p175, %s174, 31
        %s177 = smul.addr %s176, 2
        %s178 = smul.addr %s177, 8
        %s179 = scalar_lea.vmem %s3, %s178
        %s180 = smul.u32 32, %s20
      $region16: #{_lambda_.4} parent=11 // pred_fallthru
        _
    $region12: #{_lambda_.4} parent=5 // pred_fallthru
      _
    %p181 = scmp.lt.s32.totalorder %s10, 2
    // Predicated region
    $region17: #{_lambda_.4} parent=5 // pred_check
      %p182 = pneg %p181
    $region18: #{_lambda_.4} parent=5 // pred_check_branch
      %184 = sbr.rel (%p182) target = $region20
    $region19: #{_lambda_.4} parent=5 // pred_region
      // Predicated region
      $region21: #{_lambda_.4} parent=19 // pred_check
        %p185 = pneg %p44
      $region22: #{_lambda_.4} parent=19 // pred_check_branch
        %187 = sbr.rel (%p185) target = $region24
      $region23: #{_lambda_.4} parent=19 // pred_region
        %s188 = smul.u32 32, %s18
        %p189 = scmp.lt.s32.totalorder %s17, 1
        %s190 = scalar_select %p189, %s17, 1
        %p191 = scmp.lt.s32.totalorder %s188, 31
        %s192 = scalar_select %p191, %s188, 31
        %s193 = smul.addr %s190, 32
        %s194 = sadd.s32 %s192, %s193
        %s195 = smul.addr %s194, 4
        %s196 = scalar_lea.vmem %s0, %s195
        %s197 = smul.u32 32, %s18
      $region24: #{_lambda_.4} parent=19 // pred_fallthru
        _
      // Predicated region
      $region25: #{_lambda_.4} parent=19 // pred_check
        %p198 = pneg %p70
      $region26: #{_lambda_.4} parent=19 // pred_check_branch
        %200 = sbr.rel (%p198) target = $region28
      $region27: #{_lambda_.4} parent=19 // pred_region
        %p201 = scmp.lt.s32.totalorder %s17, 1
        %s202 = scalar_select %p201, %s17, 1
        %s203 = smul.addr %s202, 32
        %s204 = smul.addr %s203, 4
        %s205 = scalar_lea.vmem %s1, %s204
      $region28: #{_lambda_.4} parent=19 // pred_fallthru
        _
      // Predicated region
      $region29: #{_lambda_.4} parent=19 // pred_check
        %p206 = pneg %p96
      $region30: #{_lambda_.4} parent=19 // pred_check_branch
        %208 = sbr.rel (%p206) target = $region32
      $region31: #{_lambda_.4} parent=19 // pred_region
        %p209 = scmp.lt.s32.totalorder %s17, 1
        %s210 = scalar_select %p209, %s17, 1
        %s211 = smul.addr %s210, 32
        %s212 = smul.addr %s211, 4
        %s213 = scalar_lea.vmem %s2, %s212
      $region32: #{_lambda_.4} parent=19 // pred_fallthru
        _
    $region20: #{_lambda_.4} parent=5 // pred_fallthru
      _
    %p214 = scmp.le.s32.totalorder 1, %s10
    %p215 = scmp.lt.s32.totalorder %s10, 3
    %p216 = pnand %p214, %p215
    %p217 = pneg %p216
    // Predicated region
    $region33: #{_lambda_.4} parent=5 // pred_check
      _
    $region34: #{_lambda_.4} parent=5 // pred_check_branch
      %219 = sbr.rel (%p216) target = $region36
    $region35: #{_lambda_.4} parent=5 // pred_region
      %s220 = ssub.s32 %s10, 1
      %s221 = smul.u32 32, %s20
      %p222 = scmp.lt.s32.totalorder %s19, 1
      %s223 = scalar_select %p222, %s19, 1
      %p224 = scmp.lt.s32.totalorder %s221, 31
      %s225 = scalar_select %p224, %s221, 31
      %s226 = smul.addr %s223, 32
      %s227 = sadd.s32 %s225, %s226
      %s228 = smul.addr %s227, 4
      %s229 = scalar_lea.vmem %s0, %s228
      %p230 = pneg %p50
      %p231 = pneg %p47
      %p232 = scmp.lt.s32.totalorder %s19, 1
      %s233 = scalar_select %p232, %s19, 1
      %s234 = smul.addr %s233, 32
      %s235 = smul.addr %s234, 4
      %s236 = scalar_lea.vmem %s1, %s235
      %p237 = pneg %p76
      %p238 = pneg %p73
      %p239 = scmp.lt.s32.totalorder %s19, 1
      %s240 = scalar_select %p239, %s19, 1
      %s241 = smul.addr %s240, 32
      %s242 = smul.addr %s241, 4
      %s243 = scalar_lea.vmem %s2, %s242
      %p244 = pneg %p102
      %p245 = pneg %p99
      %s246 = smul.u32 32, %s20
      %p247 = scmp.lt.s32.totalorder %s246, 31
      %s248 = scalar_select %p247, %s246, 31
      %s249 = smul.addr %s248, 2
      %s250 = smul.addr %s249, 8
      %s251 = scalar_lea.vmem %s3, %s250
      %p252 = pneg %p128
      %p253 = pneg %p125
      %p254 = pneg %p156
      %p255 = pneg %p153
      %s256 = smul.u32 32, %s20
      %p257 = scmp.lt.s32.totalorder %s19, 1
      %s258 = scalar_select %p257, %s19, 1
      %p259 = scmp.lt.s32.totalorder %s256, 31
      %s260 = scalar_select %p259, %s256, 31
      %s261 = smul.addr %s258, 32
      %s262 = sadd.s32 %s260, %s261
      %s263 = smul.addr %s262, 4
      %s264 = scalar_lea.vmem %s4, %s263
      %s265 = smul.u32 32, %s20
      %p266 = scmp.lt.s32.totalorder %s19, 1
      %s267 = scalar_select %p266, %s19, 1
      %p268 = scmp.lt.s32.totalorder %s265, 31
      %s269 = scalar_select %p268, %s265, 31
      %s270 = smul.addr %s267, 32
      %s271 = sadd.s32 %s269, %s270
      %s272 = smul.addr %s271, 4
      %s273 = scalar_lea.vmem %s0, %s272
      %s274 = smul.u32 32, %s20
      %p275 = scmp.lt.s32.totalorder %s19, 1
      %s276 = scalar_select %p275, %s19, 1
      %s277 = smul.addr %s276, 32
      %s278 = smul.addr %s277, 4
      %s279 = scalar_lea.vmem %s1, %s278
      %p280 = scmp.lt.s32.totalorder %s19, 1
      %s281 = scalar_select %p280, %s19, 1
      %s282 = smul.addr %s281, 32
      %s283 = smul.addr %s282, 4
      %s284 = scalar_lea.vmem %s2, %s283
      %s285 = smul.u32 32, %s20
      %p286 = scmp.lt.s32.totalorder %s285, 31
      %s287 = scalar_select %p286, %s285, 31
      %s288 = smul.addr %s287, 2
      %s289 = smul.addr %s288, 8
      %s290 = scalar_lea.vmem %s3, %s289
      %s291 = smul.u32 32, %s20
      %s292 = smul.u32 32, %s20
      %p293 = scmp.lt.s32.totalorder %s19, 1
      %s294 = scalar_select %p293, %s19, 1
      %p295 = scmp.lt.s32.totalorder %s292, 31
      %s296 = scalar_select %p295, %s292, 31
      %s297 = smul.addr %s294, 32
      %s298 = sadd.s32 %s296, %s297
      %s299 = smul.addr %s298, 4
      %s300 = scalar_lea.vmem %s4, %s299
      %s301 = smul.u32 32, %s20
      %v302 = vld [vmem:[%s273] sm:$0xf]
      %v303 = vld [vmem:[%s273 + $0x4] sm:$0xf]
      %v304 = vld [vmem:[%s273 + $0x8] sm:$0xf]
      %v305 = vld [vmem:[%s273 + $0xc] sm:$0xf]
      %v306 = vld [vmem:[%s273 + $0x10] sm:$0xf]
      %v307 = vld [vmem:[%s273 + $0x14] sm:$0xf]
      %v308 = vld [vmem:[%s273 + $0x18] sm:$0xf]
      %v309 = vld [vmem:[%s273 + $0x1c] sm:$0xf]
      %v310 = vld [vmem:[%s273 + $0x20] sm:$0xf]
      %v311 = vld [vmem:[%s273 + $0x24] sm:$0xf]
      %v312 = vld [vmem:[%s273 + $0x28] sm:$0xf]
      %v313 = vld [vmem:[%s273 + $0x2c] sm:$0xf]
      %v314 = vld [vmem:[%s273 + $0x30] sm:$0xf]
      %v315 = vld [vmem:[%s273 + $0x34] sm:$0xf]
      %v316 = vld [vmem:[%s273 + $0x38] sm:$0xf]
      %v317 = vld [vmem:[%s273 + $0x3c] sm:$0xf]
      %v318 = vld [vmem:[%s273 + $0x40] sm:$0xf]
      %v319 = vld [vmem:[%s273 + $0x44] sm:$0xf]
      %v320 = vld [vmem:[%s273 + $0x48] sm:$0xf]
      %v321 = vld [vmem:[%s273 + $0x4c] sm:$0xf]
      %v322 = vld [vmem:[%s273 + $0x50] sm:$0xf]
      %v323 = vld [vmem:[%s273 + $0x54] sm:$0xf]
      %v324 = vld [vmem:[%s273 + $0x58] sm:$0xf]
      %v325 = vld [vmem:[%s273 + $0x5c] sm:$0xf]
      %v326 = vld [vmem:[%s273 + $0x60] sm:$0xf]
      %v327 = vld [vmem:[%s273 + $0x64] sm:$0xf]
      %v328 = vld [vmem:[%s273 + $0x68] sm:$0xf]
      %v329 = vld [vmem:[%s273 + $0x6c] sm:$0xf]
      %v330 = vld [vmem:[%s273 + $0x70] sm:$0xf]
      %v331 = vld [vmem:[%s273 + $0x74] sm:$0xf]
      %v332 = vld [vmem:[%s273 + $0x78] sm:$0xf]
      %v333 = vld [vmem:[%s273 + $0x7c] sm:$0xf]
      %v334 = vld [vmem:[%s279] sm:$0xf]
      %v335 = vld [vmem:[%s279 + $0x4] sm:$0xf]
      %v336 = vld [vmem:[%s279 + $0x8] sm:$0xf]
      %v337 = vld [vmem:[%s279 + $0xc] sm:$0xf]
      %v338 = vld [vmem:[%s279 + $0x10] sm:$0xf]
      %v339 = vld [vmem:[%s279 + $0x14] sm:$0xf]
      %v340 = vld [vmem:[%s279 + $0x18] sm:$0xf]
      %v341 = vld [vmem:[%s279 + $0x1c] sm:$0xf]
      %v342 = vld [vmem:[%s279 + $0x20] sm:$0xf]
      %v343 = vld [vmem:[%s279 + $0x24] sm:$0xf]
      %v344 = vld [vmem:[%s279 + $0x28] sm:$0xf]
      %v345 = vld [vmem:[%s279 + $0x2c] sm:$0xf]
      %v346 = vld [vmem:[%s279 + $0x30] sm:$0xf]
      %v347 = vld [vmem:[%s279 + $0x34] sm:$0xf]
      %v348 = vld [vmem:[%s279 + $0x38] sm:$0xf]
      %v349 = vld [vmem:[%s279 + $0x3c] sm:$0xf]
      %v350 = vld [vmem:[%s279 + $0x40] sm:$0xf]
      %v351 = vld [vmem:[%s279 + $0x44] sm:$0xf]
      %v352 = vld [vmem:[%s279 + $0x48] sm:$0xf]
      %v353 = vld [vmem:[%s279 + $0x4c] sm:$0xf]
      %v354 = vld [vmem:[%s279 + $0x50] sm:$0xf]
      %v355 = vld [vmem:[%s279 + $0x54] sm:$0xf]
      %v356 = vld [vmem:[%s279 + $0x58] sm:$0xf]
      %v357 = vld [vmem:[%s279 + $0x5c] sm:$0xf]
      %v358 = vld [vmem:[%s279 + $0x60] sm:$0xf]
      %v359 = vld [vmem:[%s279 + $0x64] sm:$0xf]
      %v360 = vld [vmem:[%s279 + $0x68] sm:$0xf]
      %v361 = vld [vmem:[%s279 + $0x6c] sm:$0xf]
      %v362 = vld [vmem:[%s279 + $0x70] sm:$0xf]
      %v363 = vld [vmem:[%s279 + $0x74] sm:$0xf]
      %v364 = vld [vmem:[%s279 + $0x78] sm:$0xf]
      %v365 = vld [vmem:[%s279 + $0x7c] sm:$0xf]
      %v366 = vld [vmem:[%s284] sm:$0xf]
      %v367 = vld [vmem:[%s284 + $0x4] sm:$0xf]
      %v368 = vld [vmem:[%s284 + $0x8] sm:$0xf]
      %v369 = vld [vmem:[%s284 + $0xc] sm:$0xf]
      %v370 = vld [vmem:[%s284 + $0x10] sm:$0xf]
      %v371 = vld [vmem:[%s284 + $0x14] sm:$0xf]
      %v372 = vld [vmem:[%s284 + $0x18] sm:$0xf]
      %v373 = vld [vmem:[%s284 + $0x1c] sm:$0xf]
      %v374 = vld [vmem:[%s284 + $0x20] sm:$0xf]
      %v375 = vld [vmem:[%s284 + $0x24] sm:$0xf]
      %v376 = vld [vmem:[%s284 + $0x28] sm:$0xf]
      %v377 = vld [vmem:[%s284 + $0x2c] sm:$0xf]
      %v378 = vld [vmem:[%s284 + $0x30] sm:$0xf]
      %v379 = vld [vmem:[%s284 + $0x34] sm:$0xf]
      %v380 = vld [vmem:[%s284 + $0x38] sm:$0xf]
      %v381 = vld [vmem:[%s284 + $0x3c] sm:$0xf]
      %v382 = vld [vmem:[%s284 + $0x40] sm:$0xf]
      %v383 = vld [vmem:[%s284 + $0x44] sm:$0xf]
      %v384 = vld [vmem:[%s284 + $0x48] sm:$0xf]
      %v385 = vld [vmem:[%s284 + $0x4c] sm:$0xf]
      %v386 = vld [vmem:[%s284 + $0x50] sm:$0xf]
      %v387 = vld [vmem:[%s284 + $0x54] sm:$0xf]
      %v388 = vld [vmem:[%s284 + $0x58] sm:$0xf]
      %v389 = vld [vmem:[%s284 + $0x5c] sm:$0xf]
      %v390 = vld [vmem:[%s284 + $0x60] sm:$0xf]
      %v391 = vld [vmem:[%s284 + $0x64] sm:$0xf]
      %v392 = vld [vmem:[%s284 + $0x68] sm:$0xf]
      %v393 = vld [vmem:[%s284 + $0x6c] sm:$0xf]
      %v394 = vld [vmem:[%s284 + $0x70] sm:$0xf]
      %v395 = vld [vmem:[%s284 + $0x74] sm:$0xf]
      %v396 = vld [vmem:[%s284 + $0x78] sm:$0xf]
      %v397 = vld [vmem:[%s284 + $0x7c] sm:$0xf]
      %v398 = vld [vmem:[%s290] sm:$0xff]
      %v399 = vld [vmem:[%s290 + $0x8] sm:$0xff]
      %v400 = vld [vmem:[%s290 + $0x10] sm:$0xff]
      %v401 = vld [vmem:[%s290 + $0x18] sm:$0xff]
      %v402 = vld [vmem:[%s290 + $0x20] sm:$0xff]
      %v403 = vld [vmem:[%s290 + $0x28] sm:$0xff]
      %v404 = vld [vmem:[%s290 + $0x30] sm:$0xff]
      %v405 = vld [vmem:[%s290 + $0x38] sm:$0xff]
      %v406 = vld [vmem:[%s290 + $0x40] sm:$0xff]
      %v407 = vld [vmem:[%s290 + $0x48] sm:$0xff]
      %v408 = vld [vmem:[%s290 + $0x50] sm:$0xff]
      %v409 = vld [vmem:[%s290 + $0x58] sm:$0xff]
      %v410 = vld [vmem:[%s290 + $0x60] sm:$0xff]
      %v411 = vld [vmem:[%s290 + $0x68] sm:$0xff]
      %v412 = vld [vmem:[%s290 + $0x70] sm:$0xff]
      %v413 = vld [vmem:[%s290 + $0x78] sm:$0xff]
      %v414 = vld [vmem:[%s290 + $0x80] sm:$0xff]
      %v415 = vld [vmem:[%s290 + $0x88] sm:$0xff]
      %v416 = vld [vmem:[%s290 + $0x90] sm:$0xff]
      %v417 = vld [vmem:[%s290 + $0x98] sm:$0xff]
      %v418 = vld [vmem:[%s290 + $0xa0] sm:$0xff]
      %v419 = vld [vmem:[%s290 + $0xa8] sm:$0xff]
      %v420 = vld [vmem:[%s290 + $0xb0] sm:$0xff]
      %v421 = vld [vmem:[%s290 + $0xb8] sm:$0xff]
      %v422 = vld [vmem:[%s290 + $0xc0] sm:$0xff]
      %v423 = vld [vmem:[%s290 + $0xc8] sm:$0xff]
      %v424 = vld [vmem:[%s290 + $0xd0] sm:$0xff]
      %v425 = vld [vmem:[%s290 + $0xd8] sm:$0xff]
      %v426 = vld [vmem:[%s290 + $0xe0] sm:$0xff]
      %v427 = vld [vmem:[%s290 + $0xe8] sm:$0xff]
      %v428 = vld [vmem:[%s290 + $0xf0] sm:$0xff]
      %v429 = vld [vmem:[%s290 + $0xf8] sm:$0xff]
      %v430 = vld [vmem:[%s290 + $0x100] sm:$0xff]
      %v431 = vld [vmem:[%s290 + $0x108] sm:$0xff]
      %v432 = vld [vmem:[%s290 + $0x110] sm:$0xff]
      %v433 = vld [vmem:[%s290 + $0x118] sm:$0xff]
      %v434 = vld [vmem:[%s290 + $0x120] sm:$0xff]
      %v435 = vld [vmem:[%s290 + $0x128] sm:$0xff]
      %v436 = vld [vmem:[%s290 + $0x130] sm:$0xff]
      %v437 = vld [vmem:[%s290 + $0x138] sm:$0xff]
      %v438 = vld [vmem:[%s290 + $0x140] sm:$0xff]
      %v439 = vld [vmem:[%s290 + $0x148] sm:$0xff]
      %v440 = vld [vmem:[%s290 + $0x150] sm:$0xff]
      %v441 = vld [vmem:[%s290 + $0x158] sm:$0xff]
      %v442 = vld [vmem:[%s290 + $0x160] sm:$0xff]
      %v443 = vld [vmem:[%s290 + $0x168] sm:$0xff]
      %v444 = vld [vmem:[%s290 + $0x170] sm:$0xff]
      %v445 = vld [vmem:[%s290 + $0x178] sm:$0xff]
      %v446 = vld [vmem:[%s290 + $0x180] sm:$0xff]
      %v447 = vld [vmem:[%s290 + $0x188] sm:$0xff]
      %v448 = vld [vmem:[%s290 + $0x190] sm:$0xff]
      %v449 = vld [vmem:[%s290 + $0x198] sm:$0xff]
      %v450 = vld [vmem:[%s290 + $0x1a0] sm:$0xff]
      %v451 = vld [vmem:[%s290 + $0x1a8] sm:$0xff]
      %v452 = vld [vmem:[%s290 + $0x1b0] sm:$0xff]
      %v453 = vld [vmem:[%s290 + $0x1b8] sm:$0xff]
      %v454 = vld [vmem:[%s290 + $0x1c0] sm:$0xff]
      %v455 = vld [vmem:[%s290 + $0x1c8] sm:$0xff]
      %v456 = vld [vmem:[%s290 + $0x1d0] sm:$0xff]
      %v457 = vld [vmem:[%s290 + $0x1d8] sm:$0xff]
      %v458 = vld [vmem:[%s290 + $0x1e0] sm:$0xff]
      %v459 = vld [vmem:[%s290 + $0x1e8] sm:$0xff]
      %v460 = vld [vmem:[%s290 + $0x1f0] sm:$0xff]
      %v461 = vld [vmem:[%s290 + $0x1f8] sm:$0xff]
      %v494 = vunpack.c.l.b16 %v302
      %v495 = vunpack.c.l.b16 %v303
      %v496 = vunpack.c.l.b16 %v304
      %v497 = vunpack.c.l.b16 %v305
      %v498 = vunpack.c.l.b16 %v306
      %v499 = vunpack.c.l.b16 %v307
      %v500 = vunpack.c.l.b16 %v308
      %v501 = vunpack.c.l.b16 %v309
      %v502 = vunpack.c.l.b16 %v310
      %v503 = vunpack.c.l.b16 %v311
      %v504 = vunpack.c.l.b16 %v312
      %v505 = vunpack.c.l.b16 %v313
      %v506 = vunpack.c.l.b16 %v314
      %v507 = vunpack.c.l.b16 %v315
      %v508 = vunpack.c.l.b16 %v316
      %v509 = vunpack.c.l.b16 %v317
      %v510 = vunpack.c.l.b16 %v318
      %v511 = vunpack.c.l.b16 %v319
      %v512 = vunpack.c.l.b16 %v320
      %v513 = vunpack.c.l.b16 %v321
      %v514 = vunpack.c.l.b16 %v322
      %v515 = vunpack.c.l.b16 %v323
      %v516 = vunpack.c.l.b16 %v324
      %v517 = vunpack.c.l.b16 %v325
      %v518 = vunpack.c.l.b16 %v326
      %v519 = vunpack.c.l.b16 %v327
      %v520 = vunpack.c.l.b16 %v328
      %v521 = vunpack.c.l.b16 %v329
      %v522 = vunpack.c.l.b16 %v330
      %v523 = vunpack.c.l.b16 %v331
      %v524 = vunpack.c.l.b16 %v332
      %v525 = vunpack.c.l.b16 %v333
      %v526 = vpack.c.b16 %v495, %v494
      %v527 = vpack.c.b16 %v497, %v496
      %v528 = vpack.c.b16 %v499, %v498
      %v529 = vpack.c.b16 %v501, %v500
      %v530 = vpack.c.b16 %v503, %v502
      %v531 = vpack.c.b16 %v505, %v504
      %v532 = vpack.c.b16 %v507, %v506
      %v533 = vpack.c.b16 %v509, %v508
      %v534 = vpack.c.b16 %v511, %v510
      %v535 = vpack.c.b16 %v513, %v512
      %v536 = vpack.c.b16 %v515, %v514
      %v537 = vpack.c.b16 %v517, %v516
      %v538 = vpack.c.b16 %v519, %v518
      %v539 = vpack.c.b16 %v521, %v520
      %v540 = vpack.c.b16 %v523, %v522
      %v541 = vpack.c.b16 %v525, %v524
      %v574 = vunpack.c.l.b16 %v334
      %v575 = vunpack.c.l.b16 %v335
      %v576 = vunpack.c.l.b16 %v336
      %v577 = vunpack.c.l.b16 %v337
      %v578 = vunpack.c.l.b16 %v338
      %v579 = vunpack.c.l.b16 %v339
      %v580 = vunpack.c.l.b16 %v340
      %v581 = vunpack.c.l.b16 %v341
      %v582 = vunpack.c.l.b16 %v342
      %v583 = vunpack.c.l.b16 %v343
      %v584 = vunpack.c.l.b16 %v344
      %v585 = vunpack.c.l.b16 %v345
      %v586 = vunpack.c.l.b16 %v346
      %v587 = vunpack.c.l.b16 %v347
      %v588 = vunpack.c.l.b16 %v348
      %v589 = vunpack.c.l.b16 %v349
      %v590 = vunpack.c.l.b16 %v350
      %v591 = vunpack.c.l.b16 %v351
      %v592 = vunpack.c.l.b16 %v352
      %v593 = vunpack.c.l.b16 %v353
      %v594 = vunpack.c.l.b16 %v354
      %v595 = vunpack.c.l.b16 %v355
      %v596 = vunpack.c.l.b16 %v356
      %v597 = vunpack.c.l.b16 %v357
      %v598 = vunpack.c.l.b16 %v358
      %v599 = vunpack.c.l.b16 %v359
      %v600 = vunpack.c.l.b16 %v360
      %v601 = vunpack.c.l.b16 %v361
      %v602 = vunpack.c.l.b16 %v362
      %v603 = vunpack.c.l.b16 %v363
      %v604 = vunpack.c.l.b16 %v364
      %v605 = vunpack.c.l.b16 %v365
      %v606 = vpack.c.b16 %v575, %v574
      %v607 = vpack.c.b16 %v577, %v576
      %v608 = vpack.c.b16 %v579, %v578
      %v609 = vpack.c.b16 %v581, %v580
      %v610 = vpack.c.b16 %v583, %v582
      %v611 = vpack.c.b16 %v585, %v584
      %v612 = vpack.c.b16 %v587, %v586
      %v613 = vpack.c.b16 %v589, %v588
      %v614 = vpack.c.b16 %v591, %v590
      %v615 = vpack.c.b16 %v593, %v592
      %v616 = vpack.c.b16 %v595, %v594
      %v617 = vpack.c.b16 %v597, %v596
      %v618 = vpack.c.b16 %v599, %v598
      %v619 = vpack.c.b16 %v601, %v600
      %v620 = vpack.c.b16 %v603, %v602
      %v621 = vpack.c.b16 %v605, %v604
      %vm622 = vcmask 64512
      %v624 = vsel %vm622, %v526, 0
      %v627 = vsel %vm622, %v527, 0
      %v630 = vsel %vm622, %v528, 0
      %v633 = vsel %vm622, %v529, 0
      %v636 = vsel %vm622, %v530, 0
      %v639 = vsel %vm622, %v531, 0
      %v642 = vsel %vm622, %v532, 0
      %v645 = vsel %vm622, %v533, 0
      %v648 = vsel %vm622, %v534, 0
      %v651 = vsel %vm622, %v535, 0
      %v654 = vsel %vm622, %v536, 0
      %v657 = vsel %vm622, %v537, 0
      %v660 = vsel %vm622, %v538, 0
      %v663 = vsel %vm622, %v539, 0
      %v666 = vsel %vm622, %v540, 0
      %v669 = vsel %vm622, %v541, 0
      %v672 = vsel %vm622, %v606, 0
      %v675 = vsel %vm622, %v607, 0
      %v678 = vsel %vm622, %v608, 0
      %v681 = vsel %vm622, %v609, 0
      %v684 = vsel %vm622, %v610, 0
      %v687 = vsel %vm622, %v611, 0
      %v690 = vsel %vm622, %v612, 0
      %v693 = vsel %vm622, %v613, 0
      %v696 = vsel %vm622, %v614, 0
      %v699 = vsel %vm622, %v615, 0
      %v702 = vsel %vm622, %v616, 0
      %v705 = vsel %vm622, %v617, 0
      %v708 = vsel %vm622, %v618, 0
      %v711 = vsel %vm622, %v619, 0
      %v714 = vsel %vm622, %v620, 0
      %v717 = vsel %vm622, %v621, 0
      %719 = vmatpush.bf16.xpose.msra.mxu0 %v693
      %720 = vmatpush.bf16.xpose.msra.mxu0 %v690
      %721 = vmatpush.bf16.xpose.msra.mxu0 %v687
      %722 = vmatpush.bf16.xpose.msra.mxu0 %v684
      %723 = vmatpush.bf16.xpose.msra.mxu0 %v681
      %724 = vmatpush.bf16.xpose.msra.mxu0 %v678
      %725 = vmatpush.bf16.xpose.msra.mxu0 %v675
      %726 = vmatpush.bf16.xpose.msra.mxu0 %v672
      %727 = vmatmul.bf16.gmra.mxu0 %v624
      %v728 = vpop.f32.mrf.mxu0
      %v729 = vadd.f32 %v398, %v728
      %v730 = vpop.f32.mrf.mxu0
      %v731 = vadd.f32 %v400, %v730
      %732 = vmatmul.bf16.gmra.mxu0 %v627
      %v733 = vpop.f32.mrf.mxu0
      %v734 = vadd.f32 %v402, %v733
      %v735 = vpop.f32.mrf.mxu0
      %v736 = vadd.f32 %v404, %v735
      %737 = vmatmul.bf16.gmra.mxu0 %v630
      %v738 = vpop.f32.mrf.mxu0
      %v739 = vadd.f32 %v406, %v738
      %v740 = vpop.f32.mrf.mxu0
      %v741 = vadd.f32 %v408, %v740
      %742 = vmatmul.bf16.gmra.mxu0 %v633
      %v743 = vpop.f32.mrf.mxu0
      %v744 = vadd.f32 %v410, %v743
      %v745 = vpop.f32.mrf.mxu0
      %v746 = vadd.f32 %v412, %v745
      %747 = vmatmul.bf16.gmra.mxu0 %v636
      %v748 = vpop.f32.mrf.mxu0
      %v749 = vadd.f32 %v414, %v748
      %v750 = vpop.f32.mrf.mxu0
      %v751 = vadd.f32 %v416, %v750
      %752 = vmatmul.bf16.gmra.mxu0 %v639
      %v753 = vpop.f32.mrf.mxu0
      %v754 = vadd.f32 %v418, %v753
      %v755 = vpop.f32.mrf.mxu0
      %v756 = vadd.f32 %v420, %v755
      %757 = vmatmul.bf16.gmra.mxu0 %v642
      %v758 = vpop.f32.mrf.mxu0
      %v759 = vadd.f32 %v422, %v758
      %v760 = vpop.f32.mrf.mxu0
      %v761 = vadd.f32 %v424, %v760
      %762 = vmatmul.bf16.gmra.mxu0 %v645
      %v763 = vpop.f32.mrf.mxu0
      %v764 = vadd.f32 %v426, %v763
      %v765 = vpop.f32.mrf.mxu0
      %v766 = vadd.f32 %v428, %v765
      %767 = vmatmul.bf16.gmra.mxu0 %v648
      %v768 = vpop.f32.mrf.mxu0
      %v769 = vadd.f32 %v430, %v768
      %v770 = vpop.f32.mrf.mxu0
      %v771 = vadd.f32 %v432, %v770
      %772 = vmatmul.bf16.gmra.mxu0 %v651
      %v773 = vpop.f32.mrf.mxu0
      %v774 = vadd.f32 %v434, %v773
      %v775 = vpop.f32.mrf.mxu0
      %v776 = vadd.f32 %v436, %v775
      %777 = vmatmul.bf16.gmra.mxu0 %v654
      %v778 = vpop.f32.mrf.mxu0
      %v779 = vadd.f32 %v438, %v778
      %v780 = vpop.f32.mrf.mxu0
      %v781 = vadd.f32 %v440, %v780
      %782 = vmatmul.bf16.gmra.mxu0 %v657
      %v783 = vpop.f32.mrf.mxu0
      %v784 = vadd.f32 %v442, %v783
      %v785 = vpop.f32.mrf.mxu0
      %v786 = vadd.f32 %v444, %v785
      %787 = vmatmul.bf16.gmra.mxu0 %v660
      %v788 = vpop.f32.mrf.mxu0
      %v789 = vadd.f32 %v446, %v788
      %v790 = vpop.f32.mrf.mxu0
      %v791 = vadd.f32 %v448, %v790
      %792 = vmatmul.bf16.gmra.mxu0 %v663
      %v793 = vpop.f32.mrf.mxu0
      %v794 = vadd.f32 %v450, %v793
      %v795 = vpop.f32.mrf.mxu0
      %v796 = vadd.f32 %v452, %v795
      %797 = vmatmul.bf16.gmra.mxu0 %v666
      %v798 = vpop.f32.mrf.mxu0
      %v799 = vadd.f32 %v454, %v798
      %v800 = vpop.f32.mrf.mxu0
      %v801 = vadd.f32 %v456, %v800
      %802 = vmatmul.bf16.gmra.mxu0 %v669
      %v803 = vpop.f32.mrf.mxu0
      %v804 = vadd.f32 %v458, %v803
      %v805 = vpop.f32.mrf.mxu0
      %v806 = vadd.f32 %v460, %v805
      %807 = vdwg.mxu0
      %808 = vmatpush.bf16.xpose.msra.mxu0 %v717
      %809 = vmatpush.bf16.xpose.msra.mxu0 %v714
      %810 = vmatpush.bf16.xpose.msra.mxu0 %v711
      %811 = vmatpush.bf16.xpose.msra.mxu0 %v708
      %812 = vmatpush.bf16.xpose.msra.mxu0 %v705
      %813 = vmatpush.bf16.xpose.msra.mxu0 %v702
      %814 = vmatpush.bf16.xpose.msra.mxu0 %v699
      %815 = vmatpush.bf16.xpose.msra.mxu0 %v696
      %816 = vmatmul.bf16.gmra.mxu0 %v624
      %v817 = vpop.f32.mrf.mxu0
      %v818 = vadd.f32 %v399, %v817
      %v819 = vpop.f32.mrf.mxu0
      %v820 = vadd.f32 %v401, %v819
      %821 = vmatmul.bf16.gmra.mxu0 %v627
      %v822 = vpop.f32.mrf.mxu0
      %v823 = vadd.f32 %v403, %v822
      %v824 = vpop.f32.mrf.mxu0
      %v825 = vadd.f32 %v405, %v824
      %826 = vmatmul.bf16.gmra.mxu0 %v630
      %v827 = vpop.f32.mrf.mxu0
      %v828 = vadd.f32 %v407, %v827
      %v829 = vpop.f32.mrf.mxu0
      %v830 = vadd.f32 %v409, %v829
      %831 = vmatmul.bf16.gmra.mxu0 %v633
      %v832 = vpop.f32.mrf.mxu0
      %v833 = vadd.f32 %v411, %v832
      %v834 = vpop.f32.mrf.mxu0
      %v835 = vadd.f32 %v413, %v834
      %836 = vmatmul.bf16.gmra.mxu0 %v636
      %v837 = vpop.f32.mrf.mxu0
      %v838 = vadd.f32 %v415, %v837
      %v839 = vpop.f32.mrf.mxu0
      %v840 = vadd.f32 %v417, %v839
      %841 = vmatmul.bf16.gmra.mxu0 %v639
      %v842 = vpop.f32.mrf.mxu0
      %v843 = vadd.f32 %v419, %v842
      %v844 = vpop.f32.mrf.mxu0
      %v845 = vadd.f32 %v421, %v844
      %846 = vmatmul.bf16.gmra.mxu0 %v642
      %v847 = vpop.f32.mrf.mxu0
      %v848 = vadd.f32 %v423, %v847
      %v849 = vpop.f32.mrf.mxu0
      %v850 = vadd.f32 %v425, %v849
      %851 = vmatmul.bf16.gmra.mxu0 %v645
      %v852 = vpop.f32.mrf.mxu0
      %v853 = vadd.f32 %v427, %v852
      %v854 = vpop.f32.mrf.mxu0
      %v855 = vadd.f32 %v429, %v854
      %856 = vmatmul.bf16.gmra.mxu0 %v648
      %v857 = vpop.f32.mrf.mxu0
      %v858 = vadd.f32 %v431, %v857
      %v859 = vpop.f32.mrf.mxu0
      %v860 = vadd.f32 %v433, %v859
      %861 = vmatmul.bf16.gmra.mxu0 %v651
      %v862 = vpop.f32.mrf.mxu0
      %v863 = vadd.f32 %v435, %v862
      %v864 = vpop.f32.mrf.mxu0
      %v865 = vadd.f32 %v437, %v864
      %866 = vmatmul.bf16.gmra.mxu0 %v654
      %v867 = vpop.f32.mrf.mxu0
      %v868 = vadd.f32 %v439, %v867
      %v869 = vpop.f32.mrf.mxu0
      %v870 = vadd.f32 %v441, %v869
      %871 = vmatmul.bf16.gmra.mxu0 %v657
      %v872 = vpop.f32.mrf.mxu0
      %v873 = vadd.f32 %v443, %v872
      %v874 = vpop.f32.mrf.mxu0
      %v875 = vadd.f32 %v445, %v874
      %876 = vmatmul.bf16.gmra.mxu0 %v660
      %v877 = vpop.f32.mrf.mxu0
      %v878 = vadd.f32 %v447, %v877
      %v879 = vpop.f32.mrf.mxu0
      %v880 = vadd.f32 %v449, %v879
      %881 = vmatmul.bf16.gmra.mxu0 %v663
      %v882 = vpop.f32.mrf.mxu0
      %v883 = vadd.f32 %v451, %v882
      %v884 = vpop.f32.mrf.mxu0
      %v885 = vadd.f32 %v453, %v884
      %886 = vmatmul.bf16.gmra.mxu0 %v666
      %v887 = vpop.f32.mrf.mxu0
      %v888 = vadd.f32 %v455, %v887
      %v889 = vpop.f32.mrf.mxu0
      %v890 = vadd.f32 %v457, %v889
      %891 = vmatmul.bf16.gmra.mxu0 %v669
      %v892 = vpop.f32.mrf.mxu0
      %v893 = vadd.f32 %v459, %v892
      %v894 = vpop.f32.mrf.mxu0
      %v895 = vadd.f32 %v461, %v894
      %896 = vdwg.mxu0
      %v897 = vmax.f32 %v729, %v818
      %898 = vmax.xlane.f32.xlu0 %v897
      %v899 = vpop.xlane.xlu0 %898
      %v900 = vmax.f32 %v731, %v820
      %901 = vmax.xlane.f32.xlu0 %v900
      %v902 = vpop.xlane.xlu0 %901
      %v903 = vmax.f32 %v734, %v823
      %904 = vmax.xlane.f32.xlu0 %v903
      %v905 = vpop.xlane.xlu0 %904
      %v906 = vmax.f32 %v736, %v825
      %907 = vmax.xlane.f32.xlu0 %v906
      %v908 = vpop.xlane.xlu0 %907
      %v909 = vmax.f32 %v739, %v828
      %910 = vmax.xlane.f32.xlu0 %v909
      %v911 = vpop.xlane.xlu0 %910
      %v912 = vmax.f32 %v741, %v830
      %913 = vmax.xlane.f32.xlu0 %v912
      %v914 = vpop.xlane.xlu0 %913
      %v915 = vmax.f32 %v744, %v833
      %916 = vmax.xlane.f32.xlu0 %v915
      %v917 = vpop.xlane.xlu0 %916
      %v918 = vmax.f32 %v746, %v835
      %919 = vmax.xlane.f32.xlu0 %v918
      %v920 = vpop.xlane.xlu0 %919
      %v921 = vmax.f32 %v749, %v838
      %922 = vmax.xlane.f32.xlu0 %v921
      %v923 = vpop.xlane.xlu0 %922
      %v924 = vmax.f32 %v751, %v840
      %925 = vmax.xlane.f32.xlu0 %v924
      %v926 = vpop.xlane.xlu0 %925
      %v927 = vmax.f32 %v754, %v843
      %928 = vmax.xlane.f32.xlu0 %v927
      %v929 = vpop.xlane.xlu0 %928
      %v930 = vmax.f32 %v756, %v845
      %931 = vmax.xlane.f32.xlu0 %v930
      %v932 = vpop.xlane.xlu0 %931
      %v933 = vmax.f32 %v759, %v848
      %934 = vmax.xlane.f32.xlu0 %v933
      %v935 = vpop.xlane.xlu0 %934
      %v936 = vmax.f32 %v761, %v850
      %937 = vmax.xlane.f32.xlu0 %v936
      %v938 = vpop.xlane.xlu0 %937
      %v939 = vmax.f32 %v764, %v853
      %940 = vmax.xlane.f32.xlu0 %v939
      %v941 = vpop.xlane.xlu0 %940
      %v942 = vmax.f32 %v766, %v855
      %943 = vmax.xlane.f32.xlu0 %v942
      %v944 = vpop.xlane.xlu0 %943
      %v945 = vmax.f32 %v769, %v858
      %946 = vmax.xlane.f32.xlu0 %v945
      %v947 = vpop.xlane.xlu0 %946
      %v948 = vmax.f32 %v771, %v860
      %949 = vmax.xlane.f32.xlu0 %v948
      %v950 = vpop.xlane.xlu0 %949
      %v951 = vmax.f32 %v774, %v863
      %952 = vmax.xlane.f32.xlu0 %v951
      %v953 = vpop.xlane.xlu0 %952
      %v954 = vmax.f32 %v776, %v865
      %955 = vmax.xlane.f32.xlu0 %v954
      %v956 = vpop.xlane.xlu0 %955
      %v957 = vmax.f32 %v779, %v868
      %958 = vmax.xlane.f32.xlu0 %v957
      %v959 = vpop.xlane.xlu0 %958
      %v960 = vmax.f32 %v781, %v870
      %961 = vmax.xlane.f32.xlu0 %v960
      %v962 = vpop.xlane.xlu0 %961
      %v963 = vmax.f32 %v784, %v873
      %964 = vmax.xlane.f32.xlu0 %v963
      %v965 = vpop.xlane.xlu0 %964
      %v966 = vmax.f32 %v786, %v875
      %967 = vmax.xlane.f32.xlu0 %v966
      %v968 = vpop.xlane.xlu0 %967
      %v969 = vmax.f32 %v789, %v878
      %970 = vmax.xlane.f32.xlu0 %v969
      %v971 = vpop.xlane.xlu0 %970
      %v972 = vmax.f32 %v791, %v880
      %973 = vmax.xlane.f32.xlu0 %v972
      %v974 = vpop.xlane.xlu0 %973
      %v975 = vmax.f32 %v794, %v883
      %976 = vmax.xlane.f32.xlu0 %v975
      %v977 = vpop.xlane.xlu0 %976
      %v978 = vmax.f32 %v796, %v885
      %979 = vmax.xlane.f32.xlu0 %v978
      %v980 = vpop.xlane.xlu0 %979
      %v981 = vmax.f32 %v799, %v888
      %982 = vmax.xlane.f32.xlu0 %v981
      %v983 = vpop.xlane.xlu0 %982
      %v984 = vmax.f32 %v801, %v890
      %985 = vmax.xlane.f32.xlu0 %v984
      %v986 = vpop.xlane.xlu0 %985
      %v987 = vmax.f32 %v804, %v893
      %988 = vmax.xlane.f32.xlu0 %v987
      %v989 = vpop.xlane.xlu0 %988
      %v990 = vmax.f32 %v806, %v895
      %991 = vmax.xlane.f32.xlu0 %v990
      %v992 = vpop.xlane.xlu0 %991
      %v993 = vsub.f32 %v729, %v899
      %v994 = vsub.f32 %v818, %v899
      %v995 = vsub.f32 %v731, %v902
      %v996 = vsub.f32 %v820, %v902
      %v997 = vsub.f32 %v734, %v905
      %v998 = vsub.f32 %v823, %v905
      %v999 = vsub.f32 %v736, %v908
      %v1000 = vsub.f32 %v825, %v908
      %v1001 = vsub.f32 %v739, %v911
      %v1002 = vsub.f32 %v828, %v911
      %v1003 = vsub.f32 %v741, %v914
      %v1004 = vsub.f32 %v830, %v914
      %v1005 = vsub.f32 %v744, %v917
      %v1006 = vsub.f32 %v833, %v917
      %v1007 = vsub.f32 %v746, %v920
      %v1008 = vsub.f32 %v835, %v920
      %v1009 = vsub.f32 %v749, %v923
      %v1010 = vsub.f32 %v838, %v923
      %v1011 = vsub.f32 %v751, %v926
      %v1012 = vsub.f32 %v840, %v926
      %v1013 = vsub.f32 %v754, %v929
      %v1014 = vsub.f32 %v843, %v929
      %v1015 = vsub.f32 %v756, %v932
      %v1016 = vsub.f32 %v845, %v932
      %v1017 = vsub.f32 %v759, %v935
      %v1018 = vsub.f32 %v848, %v935
      %v1019 = vsub.f32 %v761, %v938
      %v1020 = vsub.f32 %v850, %v938
      %v1021 = vsub.f32 %v764, %v941
      %v1022 = vsub.f32 %v853, %v941
      %v1023 = vsub.f32 %v766, %v944
      %v1024 = vsub.f32 %v855, %v944
      %v1025 = vsub.f32 %v769, %v947
      %v1026 = vsub.f32 %v858, %v947
      %v1027 = vsub.f32 %v771, %v950
      %v1028 = vsub.f32 %v860, %v950
      %v1029 = vsub.f32 %v774, %v953
      %v1030 = vsub.f32 %v863, %v953
      %v1031 = vsub.f32 %v776, %v956
      %v1032 = vsub.f32 %v865, %v956
      %v1033 = vsub.f32 %v779, %v959
      %v1034 = vsub.f32 %v868, %v959
      %v1035 = vsub.f32 %v781, %v962
      %v1036 = vsub.f32 %v870, %v962
      %v1037 = vsub.f32 %v784, %v965
      %v1038 = vsub.f32 %v873, %v965
      %v1039 = vsub.f32 %v786, %v968
      %v1040 = vsub.f32 %v875, %v968
      %v1041 = vsub.f32 %v789, %v971
      %v1042 = vsub.f32 %v878, %v971
      %v1043 = vsub.f32 %v791, %v974
      %v1044 = vsub.f32 %v880, %v974
      %v1045 = vsub.f32 %v794, %v977
      %v1046 = vsub.f32 %v883, %v977
      %v1047 = vsub.f32 %v796, %v980
      %v1048 = vsub.f32 %v885, %v980
      %v1049 = vsub.f32 %v799, %v983
      %v1050 = vsub.f32 %v888, %v983
      %v1051 = vsub.f32 %v801, %v986
      %v1052 = vsub.f32 %v890, %v986
      %v1053 = vsub.f32 %v804, %v989
      %v1054 = vsub.f32 %v893, %v989
      %v1055 = vsub.f32 %v806, %v992
      %v1056 = vsub.f32 %v895, %v992
      %v1057 = vmul.f32 %v993, 1.442695
      %v1058 = vpow.pop %v1057
      %v1059 = vmul.f32 %v994, 1.442695
      %v1060 = vpow.pop %v1059
      %v1061 = vmul.f32 %v995, 1.442695
      %v1062 = vpow.pop %v1061
      %v1063 = vmul.f32 %v996, 1.442695
      %v1064 = vpow.pop %v1063
      %v1065 = vmul.f32 %v997, 1.442695
      %v1066 = vpow.pop %v1065
      %v1067 = vmul.f32 %v998, 1.442695
      %v1068 = vpow.pop %v1067
      %v1069 = vmul.f32 %v999, 1.442695
      %v1070 = vpow.pop %v1069
      %v1071 = vmul.f32 %v1000, 1.442695
      %v1072 = vpow.pop %v1071
      %v1073 = vmul.f32 %v1001, 1.442695
      %v1074 = vpow.pop %v1073
      %v1075 = vmul.f32 %v1002, 1.442695
      %v1076 = vpow.pop %v1075
      %v1077 = vmul.f32 %v1003, 1.442695
      %v1078 = vpow.pop %v1077
      %v1079 = vmul.f32 %v1004, 1.442695
      %v1080 = vpow.pop %v1079
      %v1081 = vmul.f32 %v1005, 1.442695
      %v1082 = vpow.pop %v1081
      %v1083 = vmul.f32 %v1006, 1.442695
      %v1084 = vpow.pop %v1083
      %v1085 = vmul.f32 %v1007, 1.442695
      %v1086 = vpow.pop %v1085
      %v1087 = vmul.f32 %v1008, 1.442695
      %v1088 = vpow.pop %v1087
      %v1089 = vmul.f32 %v1009, 1.442695
      %v1090 = vpow.pop %v1089
      %v1091 = vmul.f32 %v1010, 1.442695
      %v1092 = vpow.pop %v1091
      %v1093 = vmul.f32 %v1011, 1.442695
      %v1094 = vpow.pop %v1093
      %v1095 = vmul.f32 %v1012, 1.442695
      %v1096 = vpow.pop %v1095
      %v1097 = vmul.f32 %v1013, 1.442695
      %v1098 = vpow.pop %v1097
      %v1099 = vmul.f32 %v1014, 1.442695
      %v1100 = vpow.pop %v1099
      %v1101 = vmul.f32 %v1015, 1.442695
      %v1102 = vpow.pop %v1101
      %v1103 = vmul.f32 %v1016, 1.442695
      %v1104 = vpow.pop %v1103
      %v1105 = vmul.f32 %v1017, 1.442695
      %v1106 = vpow.pop %v1105
      %v1107 = vmul.f32 %v1018, 1.442695
      %v1108 = vpow.pop %v1107
      %v1109 = vmul.f32 %v1019, 1.442695
      %v1110 = vpow.pop %v1109
      %v1111 = vmul.f32 %v1020, 1.442695
      %v1112 = vpow.pop %v1111
      %v1113 = vmul.f32 %v1021, 1.442695
      %v1114 = vpow.pop %v1113
      %v1115 = vmul.f32 %v1022, 1.442695
      %v1116 = vpow.pop %v1115
      %v1117 = vmul.f32 %v1023, 1.442695
      %v1118 = vpow.pop %v1117
      %v1119 = vmul.f32 %v1024, 1.442695
      %v1120 = vpow.pop %v1119
      %v1121 = vmul.f32 %v1025, 1.442695
      %v1122 = vpow.pop %v1121
      %v1123 = vmul.f32 %v1026, 1.442695
      %v1124 = vpow.pop %v1123
      %v1125 = vmul.f32 %v1027, 1.442695
      %v1126 = vpow.pop %v1125
      %v1127 = vmul.f32 %v1028, 1.442695
      %v1128 = vpow.pop %v1127
      %v1129 = vmul.f32 %v1029, 1.442695
      %v1130 = vpow.pop %v1129
      %v1131 = vmul.f32 %v1030, 1.442695
      %v1132 = vpow.pop %v1131
      %v1133 = vmul.f32 %v1031, 1.442695
      %v1134 = vpow.pop %v1133
      %v1135 = vmul.f32 %v1032, 1.442695
      %v1136 = vpow.pop %v1135
      %v1137 = vmul.f32 %v1033, 1.442695
      %v1138 = vpow.pop %v1137
      %v1139 = vmul.f32 %v1034, 1.442695
      %v1140 = vpow.pop %v1139
      %v1141 = vmul.f32 %v1035, 1.442695
      %v1142 = vpow.pop %v1141
      %v1143 = vmul.f32 %v1036, 1.442695
      %v1144 = vpow.pop %v1143
      %v1145 = vmul.f32 %v1037, 1.442695
      %v1146 = vpow.pop %v1145
      %v1147 = vmul.f32 %v1038, 1.442695
      %v1148 = vpow.pop %v1147
      %v1149 = vmul.f32 %v1039, 1.442695
      %v1150 = vpow.pop %v1149
      %v1151 = vmul.f32 %v1040, 1.442695
      %v1152 = vpow.pop %v1151
      %v1153 = vmul.f32 %v1041, 1.442695
      %v1154 = vpow.pop %v1153
      %v1155 = vmul.f32 %v1042, 1.442695
      %v1156 = vpow.pop %v1155
      %v1157 = vmul.f32 %v1043, 1.442695
      %v1158 = vpow.pop %v1157
      %v1159 = vmul.f32 %v1044, 1.442695
      %v1160 = vpow.pop %v1159
      %v1161 = vmul.f32 %v1045, 1.442695
      %v1162 = vpow.pop %v1161
      %v1163 = vmul.f32 %v1046, 1.442695
      %v1164 = vpow.pop %v1163
      %v1165 = vmul.f32 %v1047, 1.442695
      %v1166 = vpow.pop %v1165
      %v1167 = vmul.f32 %v1048, 1.442695
      %v1168 = vpow.pop %v1167
      %v1169 = vmul.f32 %v1049, 1.442695
      %v1170 = vpow.pop %v1169
      %v1171 = vmul.f32 %v1050, 1.442695
      %v1172 = vpow.pop %v1171
      %v1173 = vmul.f32 %v1051, 1.442695
      %v1174 = vpow.pop %v1173
      %v1175 = vmul.f32 %v1052, 1.442695
      %v1176 = vpow.pop %v1175
      %v1177 = vmul.f32 %v1053, 1.442695
      %v1178 = vpow.pop %v1177
      %v1179 = vmul.f32 %v1054, 1.442695
      %v1180 = vpow.pop %v1179
      %v1181 = vmul.f32 %v1055, 1.442695
      %v1182 = vpow.pop %v1181
      %v1183 = vmul.f32 %v1056, 1.442695
      %v1184 = vpow.pop %v1183
      %v1185 = vadd.f32 %v1058, %v1060
      %1186 = vadd.xlane.f32.xlu0 %v1185
      %v1187 = vpop.xlane.xlu0 %1186
      %v1188 = vadd.f32 %v1062, %v1064
      %1189 = vadd.xlane.f32.xlu0 %v1188
      %v1190 = vpop.xlane.xlu0 %1189
      %v1191 = vadd.f32 %v1066, %v1068
      %1192 = vadd.xlane.f32.xlu0 %v1191
      %v1193 = vpop.xlane.xlu0 %1192
      %v1194 = vadd.f32 %v1070, %v1072
      %1195 = vadd.xlane.f32.xlu0 %v1194
      %v1196 = vpop.xlane.xlu0 %1195
      %v1197 = vadd.f32 %v1074, %v1076
      %1198 = vadd.xlane.f32.xlu0 %v1197
      %v1199 = vpop.xlane.xlu0 %1198
      %v1200 = vadd.f32 %v1078, %v1080
      %1201 = vadd.xlane.f32.xlu0 %v1200
      %v1202 = vpop.xlane.xlu0 %1201
      %v1203 = vadd.f32 %v1082, %v1084
      %1204 = vadd.xlane.f32.xlu0 %v1203
      %v1205 = vpop.xlane.xlu0 %1204
      %v1206 = vadd.f32 %v1086, %v1088
      %1207 = vadd.xlane.f32.xlu0 %v1206
      %v1208 = vpop.xlane.xlu0 %1207
      %v1209 = vadd.f32 %v1090, %v1092
      %1210 = vadd.xlane.f32.xlu0 %v1209
      %v1211 = vpop.xlane.xlu0 %1210
      %v1212 = vadd.f32 %v1094, %v1096
      %1213 = vadd.xlane.f32.xlu0 %v1212
      %v1214 = vpop.xlane.xlu0 %1213
      %v1215 = vadd.f32 %v1098, %v1100
      %1216 = vadd.xlane.f32.xlu0 %v1215
      %v1217 = vpop.xlane.xlu0 %1216
      %v1218 = vadd.f32 %v1102, %v1104
      %1219 = vadd.xlane.f32.xlu0 %v1218
      %v1220 = vpop.xlane.xlu0 %1219
      %v1221 = vadd.f32 %v1106, %v1108
      %1222 = vadd.xlane.f32.xlu0 %v1221
      %v1223 = vpop.xlane.xlu0 %1222
      %v1224 = vadd.f32 %v1110, %v1112
      %1225 = vadd.xlane.f32.xlu0 %v1224
      %v1226 = vpop.xlane.xlu0 %1225
      %v1227 = vadd.f32 %v1114, %v1116
      %1228 = vadd.xlane.f32.xlu0 %v1227
      %v1229 = vpop.xlane.xlu0 %1228
      %v1230 = vadd.f32 %v1118, %v1120
      %1231 = vadd.xlane.f32.xlu0 %v1230
      %v1232 = vpop.xlane.xlu0 %1231
      %v1233 = vadd.f32 %v1122, %v1124
      %1234 = vadd.xlane.f32.xlu0 %v1233
      %v1235 = vpop.xlane.xlu0 %1234
      %v1236 = vadd.f32 %v1126, %v1128
      %1237 = vadd.xlane.f32.xlu0 %v1236
      %v1238 = vpop.xlane.xlu0 %1237
      %v1239 = vadd.f32 %v1130, %v1132
      %1240 = vadd.xlane.f32.xlu0 %v1239
      %v1241 = vpop.xlane.xlu0 %1240
      %v1242 = vadd.f32 %v1134, %v1136
      %1243 = vadd.xlane.f32.xlu0 %v1242
      %v1244 = vpop.xlane.xlu0 %1243
      %v1245 = vadd.f32 %v1138, %v1140
      %1246 = vadd.xlane.f32.xlu0 %v1245
      %v1247 = vpop.xlane.xlu0 %1246
      %v1248 = vadd.f32 %v1142, %v1144
      %1249 = vadd.xlane.f32.xlu0 %v1248
      %v1250 = vpop.xlane.xlu0 %1249
      %v1251 = vadd.f32 %v1146, %v1148
      %1252 = vadd.xlane.f32.xlu0 %v1251
      %v1253 = vpop.xlane.xlu0 %1252
      %v1254 = vadd.f32 %v1150, %v1152
      %1255 = vadd.xlane.f32.xlu0 %v1254
      %v1256 = vpop.xlane.xlu0 %1255
      %v1257 = vadd.f32 %v1154, %v1156
      %1258 = vadd.xlane.f32.xlu0 %v1257
      %v1259 = vpop.xlane.xlu0 %1258
      %v1260 = vadd.f32 %v1158, %v1160
      %1261 = vadd.xlane.f32.xlu0 %v1260
      %v1262 = vpop.xlane.xlu0 %1261
      %v1263 = vadd.f32 %v1162, %v1164
      %1264 = vadd.xlane.f32.xlu0 %v1263
      %v1265 = vpop.xlane.xlu0 %1264
      %v1266 = vadd.f32 %v1166, %v1168
      %1267 = vadd.xlane.f32.xlu0 %v1266
      %v1268 = vpop.xlane.xlu0 %1267
      %v1269 = vadd.f32 %v1170, %v1172
      %1270 = vadd.xlane.f32.xlu0 %v1269
      %v1271 = vpop.xlane.xlu0 %1270
      %v1272 = vadd.f32 %v1174, %v1176
      %1273 = vadd.xlane.f32.xlu0 %v1272
      %v1274 = vpop.xlane.xlu0 %1273
      %v1275 = vadd.f32 %v1178, %v1180
      %1276 = vadd.xlane.f32.xlu0 %v1275
      %v1277 = vpop.xlane.xlu0 %1276
      %v1278 = vadd.f32 %v1182, %v1184
      %1279 = vadd.xlane.f32.xlu0 %v1278
      %v1280 = vpop.xlane.xlu0 %1279
      %v1281 = vrcp.pop %v1187
      %v1282 = vrcp.pop %v1190
      %v1283 = vrcp.pop %v1193
      %v1284 = vrcp.pop %v1196
      %v1285 = vrcp.pop %v1199
      %v1286 = vrcp.pop %v1202
      %v1287 = vrcp.pop %v1205
      %v1288 = vrcp.pop %v1208
      %v1289 = vrcp.pop %v1211
      %v1290 = vrcp.pop %v1214
      %v1291 = vrcp.pop %v1217
      %v1292 = vrcp.pop %v1220
      %v1293 = vrcp.pop %v1223
      %v1294 = vrcp.pop %v1226
      %v1295 = vrcp.pop %v1229
      %v1296 = vrcp.pop %v1232
      %v1297 = vrcp.pop %v1235
      %v1298 = vrcp.pop %v1238
      %v1299 = vrcp.pop %v1241
      %v1300 = vrcp.pop %v1244
      %v1301 = vrcp.pop %v1247
      %v1302 = vrcp.pop %v1250
      %v1303 = vrcp.pop %v1253
      %v1304 = vrcp.pop %v1256
      %v1305 = vrcp.pop %v1259
      %v1306 = vrcp.pop %v1262
      %v1307 = vrcp.pop %v1265
      %v1308 = vrcp.pop %v1268
      %v1309 = vrcp.pop %v1271
      %v1310 = vrcp.pop %v1274
      %v1311 = vrcp.pop %v1277
      %v1312 = vrcp.pop %v1280
      %v1313 = vmul.f32 %v1058, %v1281
      %v1314 = vmul.f32 %v1060, %v1281
      %v1315 = vmul.f32 %v1062, %v1282
      %v1316 = vmul.f32 %v1064, %v1282
      %v1317 = vmul.f32 %v1066, %v1283
      %v1318 = vmul.f32 %v1068, %v1283
      %v1319 = vmul.f32 %v1070, %v1284
      %v1320 = vmul.f32 %v1072, %v1284
      %v1321 = vmul.f32 %v1074, %v1285
      %v1322 = vmul.f32 %v1076, %v1285
      %v1323 = vmul.f32 %v1078, %v1286
      %v1324 = vmul.f32 %v1080, %v1286
      %v1325 = vmul.f32 %v1082, %v1287
      %v1326 = vmul.f32 %v1084, %v1287
      %v1327 = vmul.f32 %v1086, %v1288
      %v1328 = vmul.f32 %v1088, %v1288
      %v1329 = vmul.f32 %v1090, %v1289
      %v1330 = vmul.f32 %v1092, %v1289
      %v1331 = vmul.f32 %v1094, %v1290
      %v1332 = vmul.f32 %v1096, %v1290
      %v1333 = vmul.f32 %v1098, %v1291
      %v1334 = vmul.f32 %v1100, %v1291
      %v1335 = vmul.f32 %v1102, %v1292
      %v1336 = vmul.f32 %v1104, %v1292
      %v1337 = vmul.f32 %v1106, %v1293
      %v1338 = vmul.f32 %v1108, %v1293
      %v1339 = vmul.f32 %v1110, %v1294
      %v1340 = vmul.f32 %v1112, %v1294
      %v1341 = vmul.f32 %v1114, %v1295
      %v1342 = vmul.f32 %v1116, %v1295
      %v1343 = vmul.f32 %v1118, %v1296
      %v1344 = vmul.f32 %v1120, %v1296
      %v1345 = vmul.f32 %v1122, %v1297
      %v1346 = vmul.f32 %v1124, %v1297
      %v1347 = vmul.f32 %v1126, %v1298
      %v1348 = vmul.f32 %v1128, %v1298
      %v1349 = vmul.f32 %v1130, %v1299
      %v1350 = vmul.f32 %v1132, %v1299
      %v1351 = vmul.f32 %v1134, %v1300
      %v1352 = vmul.f32 %v1136, %v1300
      %v1353 = vmul.f32 %v1138, %v1301
      %v1354 = vmul.f32 %v1140, %v1301
      %v1355 = vmul.f32 %v1142, %v1302
      %v1356 = vmul.f32 %v1144, %v1302
      %v1357 = vmul.f32 %v1146, %v1303
      %v1358 = vmul.f32 %v1148, %v1303
      %v1359 = vmul.f32 %v1150, %v1304
      %v1360 = vmul.f32 %v1152, %v1304
      %v1361 = vmul.f32 %v1154, %v1305
      %v1362 = vmul.f32 %v1156, %v1305
      %v1363 = vmul.f32 %v1158, %v1306
      %v1364 = vmul.f32 %v1160, %v1306
      %v1365 = vmul.f32 %v1162, %v1307
      %v1366 = vmul.f32 %v1164, %v1307
      %v1367 = vmul.f32 %v1166, %v1308
      %v1368 = vmul.f32 %v1168, %v1308
      %v1369 = vmul.f32 %v1170, %v1309
      %v1370 = vmul.f32 %v1172, %v1309
      %v1371 = vmul.f32 %v1174, %v1310
      %v1372 = vmul.f32 %v1176, %v1310
      %v1373 = vmul.f32 %v1178, %v1311
      %v1374 = vmul.f32 %v1180, %v1311
      %v1375 = vmul.f32 %v1182, %v1312
      %v1376 = vmul.f32 %v1184, %v1312
      %v1377 = vpack.c.bf16 %v1315, %v1313
      %v1378 = vpack.c.bf16 %v1316, %v1314
      %v1379 = vpack.c.bf16 %v1319, %v1317
      %v1380 = vpack.c.bf16 %v1320, %v1318
      %v1381 = vpack.c.bf16 %v1323, %v1321
      %v1382 = vpack.c.bf16 %v1324, %v1322
      %v1383 = vpack.c.bf16 %v1327, %v1325
      %v1384 = vpack.c.bf16 %v1328, %v1326
      %v1385 = vpack.c.bf16 %v1331, %v1329
      %v1386 = vpack.c.bf16 %v1332, %v1330
      %v1387 = vpack.c.bf16 %v1335, %v1333
      %v1388 = vpack.c.bf16 %v1336, %v1334
      %v1389 = vpack.c.bf16 %v1339, %v1337
      %v1390 = vpack.c.bf16 %v1340, %v1338
      %v1391 = vpack.c.bf16 %v1343, %v1341
      %v1392 = vpack.c.bf16 %v1344, %v1342
      %v1393 = vpack.c.bf16 %v1347, %v1345
      %v1394 = vpack.c.bf16 %v1348, %v1346
      %v1395 = vpack.c.bf16 %v1351, %v1349
      %v1396 = vpack.c.bf16 %v1352, %v1350
      %v1397 = vpack.c.bf16 %v1355, %v1353
      %v1398 = vpack.c.bf16 %v1356, %v1354
      %v1399 = vpack.c.bf16 %v1359, %v1357
      %v1400 = vpack.c.bf16 %v1360, %v1358
      %v1401 = vpack.c.bf16 %v1363, %v1361
      %v1402 = vpack.c.bf16 %v1364, %v1362
      %v1403 = vpack.c.bf16 %v1367, %v1365
      %v1404 = vpack.c.bf16 %v1368, %v1366
      %v1405 = vpack.c.bf16 %v1371, %v1369
      %v1406 = vpack.c.bf16 %v1372, %v1370
      %v1407 = vpack.c.bf16 %v1375, %v1373
      %v1408 = vpack.c.bf16 %v1376, %v1374
      %v1441 = vunpack.c.l.b16 %v366
      %v1442 = vunpack.c.l.b16 %v367
      %v1443 = vunpack.c.l.b16 %v368
      %v1444 = vunpack.c.l.b16 %v369
      %v1445 = vunpack.c.l.b16 %v370
      %v1446 = vunpack.c.l.b16 %v371
      %v1447 = vunpack.c.l.b16 %v372
      %v1448 = vunpack.c.l.b16 %v373
      %v1449 = vunpack.c.l.b16 %v374
      %v1450 = vunpack.c.l.b16 %v375
      %v1451 = vunpack.c.l.b16 %v376
      %v1452 = vunpack.c.l.b16 %v377
      %v1453 = vunpack.c.l.b16 %v378
      %v1454 = vunpack.c.l.b16 %v379
      %v1455 = vunpack.c.l.b16 %v380
      %v1456 = vunpack.c.l.b16 %v381
      %v1457 = vunpack.c.l.b16 %v382
      %v1458 = vunpack.c.l.b16 %v383
      %v1459 = vunpack.c.l.b16 %v384
      %v1460 = vunpack.c.l.b16 %v385
      %v1461 = vunpack.c.l.b16 %v386
      %v1462 = vunpack.c.l.b16 %v387
      %v1463 = vunpack.c.l.b16 %v388
      %v1464 = vunpack.c.l.b16 %v389
      %v1465 = vunpack.c.l.b16 %v390
      %v1466 = vunpack.c.l.b16 %v391
      %v1467 = vunpack.c.l.b16 %v392
      %v1468 = vunpack.c.l.b16 %v393
      %v1469 = vunpack.c.l.b16 %v394
      %v1470 = vunpack.c.l.b16 %v395
      %v1471 = vunpack.c.l.b16 %v396
      %v1472 = vunpack.c.l.b16 %v397
      %v1473 = vpack.c.b16 %v1442, %v1441
      %v1474 = vpack.c.b16 %v1444, %v1443
      %v1475 = vpack.c.b16 %v1446, %v1445
      %v1476 = vpack.c.b16 %v1448, %v1447
      %v1477 = vpack.c.b16 %v1450, %v1449
      %v1478 = vpack.c.b16 %v1452, %v1451
      %v1479 = vpack.c.b16 %v1454, %v1453
      %v1480 = vpack.c.b16 %v1456, %v1455
      %v1481 = vpack.c.b16 %v1458, %v1457
      %v1482 = vpack.c.b16 %v1460, %v1459
      %v1483 = vpack.c.b16 %v1462, %v1461
      %v1484 = vpack.c.b16 %v1464, %v1463
      %v1485 = vpack.c.b16 %v1466, %v1465
      %v1486 = vpack.c.b16 %v1468, %v1467
      %v1487 = vpack.c.b16 %v1470, %v1469
      %v1488 = vpack.c.b16 %v1472, %v1471
      %1505 = vmatpush.bf16.msra.mxu0 %v1480
      %1506 = vmatpush.bf16.msra.mxu0 %v1479
      %1507 = vmatpush.bf16.msra.mxu0 %v1478
      %1508 = vmatpush.bf16.msra.mxu0 %v1477
      %1509 = vmatpush.bf16.msra.mxu0 %v1476
      %1510 = vmatpush.bf16.msra.mxu0 %v1475
      %1511 = vmatpush.bf16.msra.mxu0 %v1474
      %1512 = vmatpush.bf16.msra.mxu0 %v1473
      %1513 = vmatmul.bf16.gmra.mxu0 %v1377
      %v1514 = vpop.f32.mrf.mxu0
      %v1515 = vadd.f32 0.0, %v1514
      %v1516 = vpop.f32.mrf.mxu0
      %v1517 = vadd.f32 0.0, %v1516
      %1518 = vmatmul.bf16.gmra.mxu0 %v1379
      %v1519 = vpop.f32.mrf.mxu0
      %v1520 = vadd.f32 0.0, %v1519
      %v1521 = vpop.f32.mrf.mxu0
      %v1522 = vadd.f32 0.0, %v1521
      %1523 = vmatmul.bf16.gmra.mxu0 %v1381
      %v1524 = vpop.f32.mrf.mxu0
      %v1525 = vadd.f32 0.0, %v1524
      %v1526 = vpop.f32.mrf.mxu0
      %v1527 = vadd.f32 0.0, %v1526
      %1528 = vmatmul.bf16.gmra.mxu0 %v1383
      %v1529 = vpop.f32.mrf.mxu0
      %v1530 = vadd.f32 0.0, %v1529
      %v1531 = vpop.f32.mrf.mxu0
      %v1532 = vadd.f32 0.0, %v1531
      %1533 = vmatmul.bf16.gmra.mxu0 %v1385
      %v1534 = vpop.f32.mrf.mxu0
      %v1535 = vadd.f32 0.0, %v1534
      %v1536 = vpop.f32.mrf.mxu0
      %v1537 = vadd.f32 0.0, %v1536
      %1538 = vmatmul.bf16.gmra.mxu0 %v1387
      %v1539 = vpop.f32.mrf.mxu0
      %v1540 = vadd.f32 0.0, %v1539
      %v1541 = vpop.f32.mrf.mxu0
      %v1542 = vadd.f32 0.0, %v1541
      %1543 = vmatmul.bf16.gmra.mxu0 %v1389
      %v1544 = vpop.f32.mrf.mxu0
      %v1545 = vadd.f32 0.0, %v1544
      %v1546 = vpop.f32.mrf.mxu0
      %v1547 = vadd.f32 0.0, %v1546
      %1548 = vmatmul.bf16.gmra.mxu0 %v1391
      %v1549 = vpop.f32.mrf.mxu0
      %v1550 = vadd.f32 0.0, %v1549
      %v1551 = vpop.f32.mrf.mxu0
      %v1552 = vadd.f32 0.0, %v1551
      %1553 = vmatmul.bf16.gmra.mxu0 %v1393
      %v1554 = vpop.f32.mrf.mxu0
      %v1555 = vadd.f32 0.0, %v1554
      %v1556 = vpop.f32.mrf.mxu0
      %v1557 = vadd.f32 0.0, %v1556
      %1558 = vmatmul.bf16.gmra.mxu0 %v1395
      %v1559 = vpop.f32.mrf.mxu0
      %v1560 = vadd.f32 0.0, %v1559
      %v1561 = vpop.f32.mrf.mxu0
      %v1562 = vadd.f32 0.0, %v1561
      %1563 = vmatmul.bf16.gmra.mxu0 %v1397
      %v1564 = vpop.f32.mrf.mxu0
      %v1565 = vadd.f32 0.0, %v1564
      %v1566 = vpop.f32.mrf.mxu0
      %v1567 = vadd.f32 0.0, %v1566
      %1568 = vmatmul.bf16.gmra.mxu0 %v1399
      %v1569 = vpop.f32.mrf.mxu0
      %v1570 = vadd.f32 0.0, %v1569
      %v1571 = vpop.f32.mrf.mxu0
      %v1572 = vadd.f32 0.0, %v1571
      %1573 = vmatmul.bf16.gmra.mxu0 %v1401
      %v1574 = vpop.f32.mrf.mxu0
      %v1575 = vadd.f32 0.0, %v1574
      %v1576 = vpop.f32.mrf.mxu0
      %v1577 = vadd.f32 0.0, %v1576
      %1578 = vmatmul.bf16.gmra.mxu0 %v1403
      %v1579 = vpop.f32.mrf.mxu0
      %v1580 = vadd.f32 0.0, %v1579
      %v1581 = vpop.f32.mrf.mxu0
      %v1582 = vadd.f32 0.0, %v1581
      %1583 = vmatmul.bf16.gmra.mxu0 %v1405
      %v1584 = vpop.f32.mrf.mxu0
      %v1585 = vadd.f32 0.0, %v1584
      %v1586 = vpop.f32.mrf.mxu0
      %v1587 = vadd.f32 0.0, %v1586
      %1588 = vmatmul.bf16.gmra.mxu0 %v1407
      %v1589 = vpop.f32.mrf.mxu0
      %v1590 = vadd.f32 0.0, %v1589
      %v1591 = vpop.f32.mrf.mxu0
      %v1592 = vadd.f32 0.0, %v1591
      %1593 = vdwg.mxu0
      %1594 = vmatpush.bf16.msra.mxu0 %v1488
      %1595 = vmatpush.bf16.msra.mxu0 %v1487
      %1596 = vmatpush.bf16.msra.mxu0 %v1486
      %1597 = vmatpush.bf16.msra.mxu0 %v1485
      %1598 = vmatpush.bf16.msra.mxu0 %v1484
      %1599 = vmatpush.bf16.msra.mxu0 %v1483
      %1600 = vmatpush.bf16.msra.mxu0 %v1482
      %1601 = vmatpush.bf16.msra.mxu0 %v1481
      %1602 = vmatmul.bf16.gmra.mxu0 %v1378
      %v1603 = vpop.f32.mrf.mxu0
      %v1604 = vadd.f32 %v1515, %v1603
      %v1605 = vpop.f32.mrf.mxu0
      %v1606 = vadd.f32 %v1517, %v1605
      %1607 = vmatmul.bf16.gmra.mxu0 %v1380
      %v1608 = vpop.f32.mrf.mxu0
      %v1609 = vadd.f32 %v1520, %v1608
      %v1610 = vpop.f32.mrf.mxu0
      %v1611 = vadd.f32 %v1522, %v1610
      %1612 = vmatmul.bf16.gmra.mxu0 %v1382
      %v1613 = vpop.f32.mrf.mxu0
      %v1614 = vadd.f32 %v1525, %v1613
      %v1615 = vpop.f32.mrf.mxu0
      %v1616 = vadd.f32 %v1527, %v1615
      %1617 = vmatmul.bf16.gmra.mxu0 %v1384
      %v1618 = vpop.f32.mrf.mxu0
      %v1619 = vadd.f32 %v1530, %v1618
      %v1620 = vpop.f32.mrf.mxu0
      %v1621 = vadd.f32 %v1532, %v1620
      %1622 = vmatmul.bf16.gmra.mxu0 %v1386
      %v1623 = vpop.f32.mrf.mxu0
      %v1624 = vadd.f32 %v1535, %v1623
      %v1625 = vpop.f32.mrf.mxu0
      %v1626 = vadd.f32 %v1537, %v1625
      %1627 = vmatmul.bf16.gmra.mxu0 %v1388
      %v1628 = vpop.f32.mrf.mxu0
      %v1629 = vadd.f32 %v1540, %v1628
      %v1630 = vpop.f32.mrf.mxu0
      %v1631 = vadd.f32 %v1542, %v1630
      %1632 = vmatmul.bf16.gmra.mxu0 %v1390
      %v1633 = vpop.f32.mrf.mxu0
      %v1634 = vadd.f32 %v1545, %v1633
      %v1635 = vpop.f32.mrf.mxu0
      %v1636 = vadd.f32 %v1547, %v1635
      %1637 = vmatmul.bf16.gmra.mxu0 %v1392
      %v1638 = vpop.f32.mrf.mxu0
      %v1639 = vadd.f32 %v1550, %v1638
      %v1640 = vpop.f32.mrf.mxu0
      %v1641 = vadd.f32 %v1552, %v1640
      %1642 = vmatmul.bf16.gmra.mxu0 %v1394
      %v1643 = vpop.f32.mrf.mxu0
      %v1644 = vadd.f32 %v1555, %v1643
      %v1645 = vpop.f32.mrf.mxu0
      %v1646 = vadd.f32 %v1557, %v1645
      %1647 = vmatmul.bf16.gmra.mxu0 %v1396
      %v1648 = vpop.f32.mrf.mxu0
      %v1649 = vadd.f32 %v1560, %v1648
      %v1650 = vpop.f32.mrf.mxu0
      %v1651 = vadd.f32 %v1562, %v1650
      %1652 = vmatmul.bf16.gmra.mxu0 %v1398
      %v1653 = vpop.f32.mrf.mxu0
      %v1654 = vadd.f32 %v1565, %v1653
      %v1655 = vpop.f32.mrf.mxu0
      %v1656 = vadd.f32 %v1567, %v1655
      %1657 = vmatmul.bf16.gmra.mxu0 %v1400
      %v1658 = vpop.f32.mrf.mxu0
      %v1659 = vadd.f32 %v1570, %v1658
      %v1660 = vpop.f32.mrf.mxu0
      %v1661 = vadd.f32 %v1572, %v1660
      %1662 = vmatmul.bf16.gmra.mxu0 %v1402
      %v1663 = vpop.f32.mrf.mxu0
      %v1664 = vadd.f32 %v1575, %v1663
      %v1665 = vpop.f32.mrf.mxu0
      %v1666 = vadd.f32 %v1577, %v1665
      %1667 = vmatmul.bf16.gmra.mxu0 %v1404
      %v1668 = vpop.f32.mrf.mxu0
      %v1669 = vadd.f32 %v1580, %v1668
      %v1670 = vpop.f32.mrf.mxu0
      %v1671 = vadd.f32 %v1582, %v1670
      %1672 = vmatmul.bf16.gmra.mxu0 %v1406
      %v1673 = vpop.f32.mrf.mxu0
      %v1674 = vadd.f32 %v1585, %v1673
      %v1675 = vpop.f32.mrf.mxu0
      %v1676 = vadd.f32 %v1587, %v1675
      %1677 = vmatmul.bf16.gmra.mxu0 %v1408
      %v1678 = vpop.f32.mrf.mxu0
      %v1679 = vadd.f32 %v1590, %v1678
      %v1680 = vpop.f32.mrf.mxu0
      %v1681 = vadd.f32 %v1592, %v1680
      %1682 = vdwg.mxu0
      %s1683 = scalar_lea.vmem %s290, 512
      %v1684 = vld [vmem:[%s1683] sm:$0xff]
      %v1685 = vld [vmem:[%s1683 + $0x8] sm:$0xff]
      %v1686 = vld [vmem:[%s1683 + $0x10] sm:$0xff]
      %v1687 = vld [vmem:[%s1683 + $0x18] sm:$0xff]
      %v1688 = vld [vmem:[%s1683 + $0x20] sm:$0xff]
      %v1689 = vld [vmem:[%s1683 + $0x28] sm:$0xff]
      %v1690 = vld [vmem:[%s1683 + $0x30] sm:$0xff]
      %v1691 = vld [vmem:[%s1683 + $0x38] sm:$0xff]
      %v1692 = vld [vmem:[%s1683 + $0x40] sm:$0xff]
      %v1693 = vld [vmem:[%s1683 + $0x48] sm:$0xff]
      %v1694 = vld [vmem:[%s1683 + $0x50] sm:$0xff]
      %v1695 = vld [vmem:[%s1683 + $0x58] sm:$0xff]
      %v1696 = vld [vmem:[%s1683 + $0x60] sm:$0xff]
      %v1697 = vld [vmem:[%s1683 + $0x68] sm:$0xff]
      %v1698 = vld [vmem:[%s1683 + $0x70] sm:$0xff]
      %v1699 = vld [vmem:[%s1683 + $0x78] sm:$0xff]
      %v1700 = vld [vmem:[%s1683 + $0x80] sm:$0xff]
      %v1701 = vld [vmem:[%s1683 + $0x88] sm:$0xff]
      %v1702 = vld [vmem:[%s1683 + $0x90] sm:$0xff]
      %v1703 = vld [vmem:[%s1683 + $0x98] sm:$0xff]
      %v1704 = vld [vmem:[%s1683 + $0xa0] sm:$0xff]
      %v1705 = vld [vmem:[%s1683 + $0xa8] sm:$0xff]
      %v1706 = vld [vmem:[%s1683 + $0xb0] sm:$0xff]
      %v1707 = vld [vmem:[%s1683 + $0xb8] sm:$0xff]
      %v1708 = vld [vmem:[%s1683 + $0xc0] sm:$0xff]
      %v1709 = vld [vmem:[%s1683 + $0xc8] sm:$0xff]
      %v1710 = vld [vmem:[%s1683 + $0xd0] sm:$0xff]
      %v1711 = vld [vmem:[%s1683 + $0xd8] sm:$0xff]
      %v1712 = vld [vmem:[%s1683 + $0xe0] sm:$0xff]
      %v1713 = vld [vmem:[%s1683 + $0xe8] sm:$0xff]
      %v1714 = vld [vmem:[%s1683 + $0xf0] sm:$0xff]
      %v1715 = vld [vmem:[%s1683 + $0xf8] sm:$0xff]
      %v1716 = vld [vmem:[%s1683 + $0x100] sm:$0xff]
      %v1717 = vld [vmem:[%s1683 + $0x108] sm:$0xff]
      %v1718 = vld [vmem:[%s1683 + $0x110] sm:$0xff]
      %v1719 = vld [vmem:[%s1683 + $0x118] sm:$0xff]
      %v1720 = vld [vmem:[%s1683 + $0x120] sm:$0xff]
      %v1721 = vld [vmem:[%s1683 + $0x128] sm:$0xff]
      %v1722 = vld [vmem:[%s1683 + $0x130] sm:$0xff]
      %v1723 = vld [vmem:[%s1683 + $0x138] sm:$0xff]
      %v1724 = vld [vmem:[%s1683 + $0x140] sm:$0xff]
      %v1725 = vld [vmem:[%s1683 + $0x148] sm:$0xff]
      %v1726 = vld [vmem:[%s1683 + $0x150] sm:$0xff]
      %v1727 = vld [vmem:[%s1683 + $0x158] sm:$0xff]
      %v1728 = vld [vmem:[%s1683 + $0x160] sm:$0xff]
      %v1729 = vld [vmem:[%s1683 + $0x168] sm:$0xff]
      %v1730 = vld [vmem:[%s1683 + $0x170] sm:$0xff]
      %v1731 = vld [vmem:[%s1683 + $0x178] sm:$0xff]
      %v1732 = vld [vmem:[%s1683 + $0x180] sm:$0xff]
      %v1733 = vld [vmem:[%s1683 + $0x188] sm:$0xff]
      %v1734 = vld [vmem:[%s1683 + $0x190] sm:$0xff]
      %v1735 = vld [vmem:[%s1683 + $0x198] sm:$0xff]
      %v1736 = vld [vmem:[%s1683 + $0x1a0] sm:$0xff]
      %v1737 = vld [vmem:[%s1683 + $0x1a8] sm:$0xff]
      %v1738 = vld [vmem:[%s1683 + $0x1b0] sm:$0xff]
      %v1739 = vld [vmem:[%s1683 + $0x1b8] sm:$0xff]
      %v1740 = vld [vmem:[%s1683 + $0x1c0] sm:$0xff]
      %v1741 = vld [vmem:[%s1683 + $0x1c8] sm:$0xff]
      %v1742 = vld [vmem:[%s1683 + $0x1d0] sm:$0xff]
      %v1743 = vld [vmem:[%s1683 + $0x1d8] sm:$0xff]
      %v1744 = vld [vmem:[%s1683 + $0x1e0] sm:$0xff]
      %v1745 = vld [vmem:[%s1683 + $0x1e8] sm:$0xff]
      %v1746 = vld [vmem:[%s1683 + $0x1f0] sm:$0xff]
      %v1747 = vld [vmem:[%s1683 + $0x1f8] sm:$0xff]
      %1748 = vrot.lane.b32.xlu0 %v526, 120
      %v1749 = vpop.permute.xlu0 %1748
      %1750 = vrot.lane.b32.xlu0 %v527, 120
      %v1751 = vpop.permute.xlu0 %1750
      %1752 = vrot.lane.b32.xlu0 %v528, 120
      %v1753 = vpop.permute.xlu0 %1752
      %1754 = vrot.lane.b32.xlu0 %v529, 120
      %v1755 = vpop.permute.xlu0 %1754
      %1756 = vrot.lane.b32.xlu0 %v530, 120
      %v1757 = vpop.permute.xlu0 %1756
      %1758 = vrot.lane.b32.xlu0 %v531, 120
      %v1759 = vpop.permute.xlu0 %1758
      %1760 = vrot.lane.b32.xlu0 %v532, 120
      %v1761 = vpop.permute.xlu0 %1760
      %1762 = vrot.lane.b32.xlu0 %v533, 120
      %v1763 = vpop.permute.xlu0 %1762
      %1764 = vrot.lane.b32.xlu0 %v534, 120
      %v1765 = vpop.permute.xlu0 %1764
      %1766 = vrot.lane.b32.xlu0 %v535, 120
      %v1767 = vpop.permute.xlu0 %1766
      %1768 = vrot.lane.b32.xlu0 %v536, 120
      %v1769 = vpop.permute.xlu0 %1768
      %1770 = vrot.lane.b32.xlu0 %v537, 120
      %v1771 = vpop.permute.xlu0 %1770
      %1772 = vrot.lane.b32.xlu0 %v538, 120
      %v1773 = vpop.permute.xlu0 %1772
      %1774 = vrot.lane.b32.xlu0 %v539, 120
      %v1775 = vpop.permute.xlu0 %1774
      %1776 = vrot.lane.b32.xlu0 %v540, 120
      %v1777 = vpop.permute.xlu0 %1776
      %1778 = vrot.lane.b32.xlu0 %v541, 120
      %v1779 = vpop.permute.xlu0 %1778
      %1780 = vrot.lane.b32.xlu0 %v606, 120
      %v1781 = vpop.permute.xlu0 %1780
      %1782 = vrot.lane.b32.xlu0 %v607, 120
      %v1783 = vpop.permute.xlu0 %1782
      %1784 = vrot.lane.b32.xlu0 %v608, 120
      %v1785 = vpop.permute.xlu0 %1784
      %1786 = vrot.lane.b32.xlu0 %v609, 120
      %v1787 = vpop.permute.xlu0 %1786
      %1788 = vrot.lane.b32.xlu0 %v610, 120
      %v1789 = vpop.permute.xlu0 %1788
      %1790 = vrot.lane.b32.xlu0 %v611, 120
      %v1791 = vpop.permute.xlu0 %1790
      %1792 = vrot.lane.b32.xlu0 %v612, 120
      %v1793 = vpop.permute.xlu0 %1792
      %1794 = vrot.lane.b32.xlu0 %v613, 120
      %v1795 = vpop.permute.xlu0 %1794
      %1796 = vrot.lane.b32.xlu0 %v614, 120
      %v1797 = vpop.permute.xlu0 %1796
      %1798 = vrot.lane.b32.xlu0 %v615, 120
      %v1799 = vpop.permute.xlu0 %1798
      %1800 = vrot.lane.b32.xlu0 %v616, 120
      %v1801 = vpop.permute.xlu0 %1800
      %1802 = vrot.lane.b32.xlu0 %v617, 120
      %v1803 = vpop.permute.xlu0 %1802
      %1804 = vrot.lane.b32.xlu0 %v618, 120
      %v1805 = vpop.permute.xlu0 %1804
      %1806 = vrot.lane.b32.xlu0 %v619, 120
      %v1807 = vpop.permute.xlu0 %1806
      %1808 = vrot.lane.b32.xlu0 %v620, 120
      %v1809 = vpop.permute.xlu0 %1808
      %1810 = vrot.lane.b32.xlu0 %v621, 120
      %v1811 = vpop.permute.xlu0 %1810
      %v1813 = vsel %vm622, %v1749, 0
      %v1816 = vsel %vm622, %v1751, 0
      %v1819 = vsel %vm622, %v1753, 0
      %v1822 = vsel %vm622, %v1755, 0
      %v1825 = vsel %vm622, %v1757, 0
      %v1828 = vsel %vm622, %v1759, 0
      %v1831 = vsel %vm622, %v1761, 0
      %v1834 = vsel %vm622, %v1763, 0
      %v1837 = vsel %vm622, %v1765, 0
      %v1840 = vsel %vm622, %v1767, 0
      %v1843 = vsel %vm622, %v1769, 0
      %v1846 = vsel %vm622, %v1771, 0
      %v1849 = vsel %vm622, %v1773, 0
      %v1852 = vsel %vm622, %v1775, 0
      %v1855 = vsel %vm622, %v1777, 0
      %v1858 = vsel %vm622, %v1779, 0
      %v1861 = vsel %vm622, %v1781, 0
      %v1864 = vsel %vm622, %v1783, 0
      %v1867 = vsel %vm622, %v1785, 0
      %v1870 = vsel %vm622, %v1787, 0
      %v1873 = vsel %vm622, %v1789, 0
      %v1876 = vsel %vm622, %v1791, 0
      %v1879 = vsel %vm622, %v1793, 0
      %v1882 = vsel %vm622, %v1795, 0
      %v1885 = vsel %vm622, %v1797, 0
      %v1888 = vsel %vm622, %v1799, 0
      %v1891 = vsel %vm622, %v1801, 0
      %v1894 = vsel %vm622, %v1803, 0
      %v1897 = vsel %vm622, %v1805, 0
      %v1900 = vsel %vm622, %v1807, 0
      %v1903 = vsel %vm622, %v1809, 0
      %v1906 = vsel %vm622, %v1811, 0
      %1908 = vmatpush.bf16.xpose.msra.mxu0 %v1882
      %1909 = vmatpush.bf16.xpose.msra.mxu0 %v1879
      %1910 = vmatpush.bf16.xpose.msra.mxu0 %v1876
      %1911 = vmatpush.bf16.xpose.msra.mxu0 %v1873
      %1912 = vmatpush.bf16.xpose.msra.mxu0 %v1870
      %1913 = vmatpush.bf16.xpose.msra.mxu0 %v1867
      %1914 = vmatpush.bf16.xpose.msra.mxu0 %v1864
      %1915 = vmatpush.bf16.xpose.msra.mxu0 %v1861
      %1916 = vmatmul.bf16.gmra.mxu0 %v1813
      %v1917 = vpop.f32.mrf.mxu0
      %v1918 = vadd.f32 %v1684, %v1917
      %v1919 = vpop.f32.mrf.mxu0
      %v1920 = vadd.f32 %v1686, %v1919
      %1921 = vmatmul.bf16.gmra.mxu0 %v1816
      %v1922 = vpop.f32.mrf.mxu0
      %v1923 = vadd.f32 %v1688, %v1922
      %v1924 = vpop.f32.mrf.mxu0
      %v1925 = vadd.f32 %v1690, %v1924
      %1926 = vmatmul.bf16.gmra.mxu0 %v1819
      %v1927 = vpop.f32.mrf.mxu0
      %v1928 = vadd.f32 %v1692, %v1927
      %v1929 = vpop.f32.mrf.mxu0
      %v1930 = vadd.f32 %v1694, %v1929
      %1931 = vmatmul.bf16.gmra.mxu0 %v1822
      %v1932 = vpop.f32.mrf.mxu0
      %v1933 = vadd.f32 %v1696, %v1932
      %v1934 = vpop.f32.mrf.mxu0
      %v1935 = vadd.f32 %v1698, %v1934
      %1936 = vmatmul.bf16.gmra.mxu0 %v1825
      %v1937 = vpop.f32.mrf.mxu0
      %v1938 = vadd.f32 %v1700, %v1937
      %v1939 = vpop.f32.mrf.mxu0
      %v1940 = vadd.f32 %v1702, %v1939
      %1941 = vmatmul.bf16.gmra.mxu0 %v1828
      %v1942 = vpop.f32.mrf.mxu0
      %v1943 = vadd.f32 %v1704, %v1942
      %v1944 = vpop.f32.mrf.mxu0
      %v1945 = vadd.f32 %v1706, %v1944
      %1946 = vmatmul.bf16.gmra.mxu0 %v1831
      %v1947 = vpop.f32.mrf.mxu0
      %v1948 = vadd.f32 %v1708, %v1947
      %v1949 = vpop.f32.mrf.mxu0
      %v1950 = vadd.f32 %v1710, %v1949
      %1951 = vmatmul.bf16.gmra.mxu0 %v1834
      %v1952 = vpop.f32.mrf.mxu0
      %v1953 = vadd.f32 %v1712, %v1952
      %v1954 = vpop.f32.mrf.mxu0
      %v1955 = vadd.f32 %v1714, %v1954
      %1956 = vmatmul.bf16.gmra.mxu0 %v1837
      %v1957 = vpop.f32.mrf.mxu0
      %v1958 = vadd.f32 %v1716, %v1957
      %v1959 = vpop.f32.mrf.mxu0
      %v1960 = vadd.f32 %v1718, %v1959
      %1961 = vmatmul.bf16.gmra.mxu0 %v1840
      %v1962 = vpop.f32.mrf.mxu0
      %v1963 = vadd.f32 %v1720, %v1962
      %v1964 = vpop.f32.mrf.mxu0
      %v1965 = vadd.f32 %v1722, %v1964
      %1966 = vmatmul.bf16.gmra.mxu0 %v1843
      %v1967 = vpop.f32.mrf.mxu0
      %v1968 = vadd.f32 %v1724, %v1967
      %v1969 = vpop.f32.mrf.mxu0
      %v1970 = vadd.f32 %v1726, %v1969
      %1971 = vmatmul.bf16.gmra.mxu0 %v1846
      %v1972 = vpop.f32.mrf.mxu0
      %v1973 = vadd.f32 %v1728, %v1972
      %v1974 = vpop.f32.mrf.mxu0
      %v1975 = vadd.f32 %v1730, %v1974
      %1976 = vmatmul.bf16.gmra.mxu0 %v1849
      %v1977 = vpop.f32.mrf.mxu0
      %v1978 = vadd.f32 %v1732, %v1977
      %v1979 = vpop.f32.mrf.mxu0
      %v1980 = vadd.f32 %v1734, %v1979
      %1981 = vmatmul.bf16.gmra.mxu0 %v1852
      %v1982 = vpop.f32.mrf.mxu0
      %v1983 = vadd.f32 %v1736, %v1982
      %v1984 = vpop.f32.mrf.mxu0
      %v1985 = vadd.f32 %v1738, %v1984
      %1986 = vmatmul.bf16.gmra.mxu0 %v1855
      %v1987 = vpop.f32.mrf.mxu0
      %v1988 = vadd.f32 %v1740, %v1987
      %v1989 = vpop.f32.mrf.mxu0
      %v1990 = vadd.f32 %v1742, %v1989
      %1991 = vmatmul.bf16.gmra.mxu0 %v1858
      %v1992 = vpop.f32.mrf.mxu0
      %v1993 = vadd.f32 %v1744, %v1992
      %v1994 = vpop.f32.mrf.mxu0
      %v1995 = vadd.f32 %v1746, %v1994
      %1996 = vdwg.mxu0
      %1997 = vmatpush.bf16.xpose.msra.mxu0 %v1906
      %1998 = vmatpush.bf16.xpose.msra.mxu0 %v1903
      %1999 = vmatpush.bf16.xpose.msra.mxu0 %v1900
      %2000 = vmatpush.bf16.xpose.msra.mxu0 %v1897
      %2001 = vmatpush.bf16.xpose.msra.mxu0 %v1894
      %2002 = vmatpush.bf16.xpose.msra.mxu0 %v1891
      %2003 = vmatpush.bf16.xpose.msra.mxu0 %v1888
      %2004 = vmatpush.bf16.xpose.msra.mxu0 %v1885
      %2005 = vmatmul.bf16.gmra.mxu0 %v1813
      %v2006 = vpop.f32.mrf.mxu0
      %v2007 = vadd.f32 %v1685, %v2006
      %v2008 = vpop.f32.mrf.mxu0
      %v2009 = vadd.f32 %v1687, %v2008
      %2010 = vmatmul.bf16.gmra.mxu0 %v1816
      %v2011 = vpop.f32.mrf.mxu0
      %v2012 = vadd.f32 %v1689, %v2011
      %v2013 = vpop.f32.mrf.mxu0
      %v2014 = vadd.f32 %v1691, %v2013
      %2015 = vmatmul.bf16.gmra.mxu0 %v1819
      %v2016 = vpop.f32.mrf.mxu0
      %v2017 = vadd.f32 %v1693, %v2016
      %v2018 = vpop.f32.mrf.mxu0
      %v2019 = vadd.f32 %v1695, %v2018
      %2020 = vmatmul.bf16.gmra.mxu0 %v1822
      %v2021 = vpop.f32.mrf.mxu0
      %v2022 = vadd.f32 %v1697, %v2021
      %v2023 = vpop.f32.mrf.mxu0
      %v2024 = vadd.f32 %v1699, %v2023
      %2025 = vmatmul.bf16.gmra.mxu0 %v1825
      %v2026 = vpop.f32.mrf.mxu0
      %v2027 = vadd.f32 %v1701, %v2026
      %v2028 = vpop.f32.mrf.mxu0
      %v2029 = vadd.f32 %v1703, %v2028
      %2030 = vmatmul.bf16.gmra.mxu0 %v1828
      %v2031 = vpop.f32.mrf.mxu0
      %v2032 = vadd.f32 %v1705, %v2031
      %v2033 = vpop.f32.mrf.mxu0
      %v2034 = vadd.f32 %v1707, %v2033
      %2035 = vmatmul.bf16.gmra.mxu0 %v1831
      %v2036 = vpop.f32.mrf.mxu0
      %v2037 = vadd.f32 %v1709, %v2036
      %v2038 = vpop.f32.mrf.mxu0
      %v2039 = vadd.f32 %v1711, %v2038
      %2040 = vmatmul.bf16.gmra.mxu0 %v1834
      %v2041 = vpop.f32.mrf.mxu0
      %v2042 = vadd.f32 %v1713, %v2041
      %v2043 = vpop.f32.mrf.mxu0
      %v2044 = vadd.f32 %v1715, %v2043
      %2045 = vmatmul.bf16.gmra.mxu0 %v1837
      %v2046 = vpop.f32.mrf.mxu0
      %v2047 = vadd.f32 %v1717, %v2046
      %v2048 = vpop.f32.mrf.mxu0
      %v2049 = vadd.f32 %v1719, %v2048
      %2050 = vmatmul.bf16.gmra.mxu0 %v1840
      %v2051 = vpop.f32.mrf.mxu0
      %v2052 = vadd.f32 %v1721, %v2051
      %v2053 = vpop.f32.mrf.mxu0
      %v2054 = vadd.f32 %v1723, %v2053
      %2055 = vmatmul.bf16.gmra.mxu0 %v1843
      %v2056 = vpop.f32.mrf.mxu0
      %v2057 = vadd.f32 %v1725, %v2056
      %v2058 = vpop.f32.mrf.mxu0
      %v2059 = vadd.f32 %v1727, %v2058
      %2060 = vmatmul.bf16.gmra.mxu0 %v1846
      %v2061 = vpop.f32.mrf.mxu0
      %v2062 = vadd.f32 %v1729, %v2061
      %v2063 = vpop.f32.mrf.mxu0
      %v2064 = vadd.f32 %v1731, %v2063
      %2065 = vmatmul.bf16.gmra.mxu0 %v1849
      %v2066 = vpop.f32.mrf.mxu0
      %v2067 = vadd.f32 %v1733, %v2066
      %v2068 = vpop.f32.mrf.mxu0
      %v2069 = vadd.f32 %v1735, %v2068
      %2070 = vmatmul.bf16.gmra.mxu0 %v1852
      %v2071 = vpop.f32.mrf.mxu0
      %v2072 = vadd.f32 %v1737, %v2071
      %v2073 = vpop.f32.mrf.mxu0
      %v2074 = vadd.f32 %v1739, %v2073
      %2075 = vmatmul.bf16.gmra.mxu0 %v1855
      %v2076 = vpop.f32.mrf.mxu0
      %v2077 = vadd.f32 %v1741, %v2076
      %v2078 = vpop.f32.mrf.mxu0
      %v2079 = vadd.f32 %v1743, %v2078
      %2080 = vmatmul.bf16.gmra.mxu0 %v1858
      %v2081 = vpop.f32.mrf.mxu0
      %v2082 = vadd.f32 %v1745, %v2081
      %v2083 = vpop.f32.mrf.mxu0
      %v2084 = vadd.f32 %v1747, %v2083
      %2085 = vdwg.mxu0
      %v2086 = vmax.f32 %v1918, %v2007
      %2087 = vmax.xlane.f32.xlu0 %v2086
      %v2088 = vpop.xlane.xlu0 %2087
      %v2089 = vmax.f32 %v1920, %v2009
      %2090 = vmax.xlane.f32.xlu0 %v2089
      %v2091 = vpop.xlane.xlu0 %2090
      %v2092 = vmax.f32 %v1923, %v2012
      %2093 = vmax.xlane.f32.xlu0 %v2092
      %v2094 = vpop.xlane.xlu0 %2093
      %v2095 = vmax.f32 %v1925, %v2014
      %2096 = vmax.xlane.f32.xlu0 %v2095
      %v2097 = vpop.xlane.xlu0 %2096
      %v2098 = vmax.f32 %v1928, %v2017
      %2099 = vmax.xlane.f32.xlu0 %v2098
      %v2100 = vpop.xlane.xlu0 %2099
      %v2101 = vmax.f32 %v1930, %v2019
      %2102 = vmax.xlane.f32.xlu0 %v2101
      %v2103 = vpop.xlane.xlu0 %2102
      %v2104 = vmax.f32 %v1933, %v2022
      %2105 = vmax.xlane.f32.xlu0 %v2104
      %v2106 = vpop.xlane.xlu0 %2105
      %v2107 = vmax.f32 %v1935, %v2024
      %2108 = vmax.xlane.f32.xlu0 %v2107
      %v2109 = vpop.xlane.xlu0 %2108
      %v2110 = vmax.f32 %v1938, %v2027
      %2111 = vmax.xlane.f32.xlu0 %v2110
      %v2112 = vpop.xlane.xlu0 %2111
      %v2113 = vmax.f32 %v1940, %v2029
      %2114 = vmax.xlane.f32.xlu0 %v2113
      %v2115 = vpop.xlane.xlu0 %2114
      %v2116 = vmax.f32 %v1943, %v2032
      %2117 = vmax.xlane.f32.xlu0 %v2116
      %v2118 = vpop.xlane.xlu0 %2117
      %v2119 = vmax.f32 %v1945, %v2034
      %2120 = vmax.xlane.f32.xlu0 %v2119
      %v2121 = vpop.xlane.xlu0 %2120
      %v2122 = vmax.f32 %v1948, %v2037
      %2123 = vmax.xlane.f32.xlu0 %v2122
      %v2124 = vpop.xlane.xlu0 %2123
      %v2125 = vmax.f32 %v1950, %v2039
      %2126 = vmax.xlane.f32.xlu0 %v2125
      %v2127 = vpop.xlane.xlu0 %2126
      %v2128 = vmax.f32 %v1953, %v2042
      %2129 = vmax.xlane.f32.xlu0 %v2128
      %v2130 = vpop.xlane.xlu0 %2129
      %v2131 = vmax.f32 %v1955, %v2044
      %2132 = vmax.xlane.f32.xlu0 %v2131
      %v2133 = vpop.xlane.xlu0 %2132
      %v2134 = vmax.f32 %v1958, %v2047
      %2135 = vmax.xlane.f32.xlu0 %v2134
      %v2136 = vpop.xlane.xlu0 %2135
      %v2137 = vmax.f32 %v1960, %v2049
      %2138 = vmax.xlane.f32.xlu0 %v2137
      %v2139 = vpop.xlane.xlu0 %2138
      %v2140 = vmax.f32 %v1963, %v2052
      %2141 = vmax.xlane.f32.xlu0 %v2140
      %v2142 = vpop.xlane.xlu0 %2141
      %v2143 = vmax.f32 %v1965, %v2054
      %2144 = vmax.xlane.f32.xlu0 %v2143
      %v2145 = vpop.xlane.xlu0 %2144
      %v2146 = vmax.f32 %v1968, %v2057
      %2147 = vmax.xlane.f32.xlu0 %v2146
      %v2148 = vpop.xlane.xlu0 %2147
      %v2149 = vmax.f32 %v1970, %v2059
      %2150 = vmax.xlane.f32.xlu0 %v2149
      %v2151 = vpop.xlane.xlu0 %2150
      %v2152 = vmax.f32 %v1973, %v2062
      %2153 = vmax.xlane.f32.xlu0 %v2152
      %v2154 = vpop.xlane.xlu0 %2153
      %v2155 = vmax.f32 %v1975, %v2064
      %2156 = vmax.xlane.f32.xlu0 %v2155
      %v2157 = vpop.xlane.xlu0 %2156
      %v2158 = vmax.f32 %v1978, %v2067
      %2159 = vmax.xlane.f32.xlu0 %v2158
      %v2160 = vpop.xlane.xlu0 %2159
      %v2161 = vmax.f32 %v1980, %v2069
      %2162 = vmax.xlane.f32.xlu0 %v2161
      %v2163 = vpop.xlane.xlu0 %2162
      %v2164 = vmax.f32 %v1983, %v2072
      %2165 = vmax.xlane.f32.xlu0 %v2164
      %v2166 = vpop.xlane.xlu0 %2165
      %v2167 = vmax.f32 %v1985, %v2074
      %2168 = vmax.xlane.f32.xlu0 %v2167
      %v2169 = vpop.xlane.xlu0 %2168
      %v2170 = vmax.f32 %v1988, %v2077
      %2171 = vmax.xlane.f32.xlu0 %v2170
      %v2172 = vpop.xlane.xlu0 %2171
      %v2173 = vmax.f32 %v1990, %v2079
      %2174 = vmax.xlane.f32.xlu0 %v2173
      %v2175 = vpop.xlane.xlu0 %2174
      %v2176 = vmax.f32 %v1993, %v2082
      %2177 = vmax.xlane.f32.xlu0 %v2176
      %v2178 = vpop.xlane.xlu0 %2177
      %v2179 = vmax.f32 %v1995, %v2084
      %2180 = vmax.xlane.f32.xlu0 %v2179
      %v2181 = vpop.xlane.xlu0 %2180
      %v2182 = vsub.f32 %v1918, %v2088
      %v2183 = vsub.f32 %v2007, %v2088
      %v2184 = vsub.f32 %v1920, %v2091
      %v2185 = vsub.f32 %v2009, %v2091
      %v2186 = vsub.f32 %v1923, %v2094
      %v2187 = vsub.f32 %v2012, %v2094
      %v2188 = vsub.f32 %v1925, %v2097
      %v2189 = vsub.f32 %v2014, %v2097
      %v2190 = vsub.f32 %v1928, %v2100
      %v2191 = vsub.f32 %v2017, %v2100
      %v2192 = vsub.f32 %v1930, %v2103
      %v2193 = vsub.f32 %v2019, %v2103
      %v2194 = vsub.f32 %v1933, %v2106
      %v2195 = vsub.f32 %v2022, %v2106
      %v2196 = vsub.f32 %v1935, %v2109
      %v2197 = vsub.f32 %v2024, %v2109
      %v2198 = vsub.f32 %v1938, %v2112
      %v2199 = vsub.f32 %v2027, %v2112
      %v2200 = vsub.f32 %v1940, %v2115
      %v2201 = vsub.f32 %v2029, %v2115
      %v2202 = vsub.f32 %v1943, %v2118
      %v2203 = vsub.f32 %v2032, %v2118
      %v2204 = vsub.f32 %v1945, %v2121
      %v2205 = vsub.f32 %v2034, %v2121
      %v2206 = vsub.f32 %v1948, %v2124
      %v2207 = vsub.f32 %v2037, %v2124
      %v2208 = vsub.f32 %v1950, %v2127
      %v2209 = vsub.f32 %v2039, %v2127
      %v2210 = vsub.f32 %v1953, %v2130
      %v2211 = vsub.f32 %v2042, %v2130
      %v2212 = vsub.f32 %v1955, %v2133
      %v2213 = vsub.f32 %v2044, %v2133
      %v2214 = vsub.f32 %v1958, %v2136
      %v2215 = vsub.f32 %v2047, %v2136
      %v2216 = vsub.f32 %v1960, %v2139
      %v2217 = vsub.f32 %v2049, %v2139
      %v2218 = vsub.f32 %v1963, %v2142
      %v2219 = vsub.f32 %v2052, %v2142
      %v2220 = vsub.f32 %v1965, %v2145
      %v2221 = vsub.f32 %v2054, %v2145
      %v2222 = vsub.f32 %v1968, %v2148
      %v2223 = vsub.f32 %v2057, %v2148
      %v2224 = vsub.f32 %v1970, %v2151
      %v2225 = vsub.f32 %v2059, %v2151
      %v2226 = vsub.f32 %v1973, %v2154
      %v2227 = vsub.f32 %v2062, %v2154
      %v2228 = vsub.f32 %v1975, %v2157
      %v2229 = vsub.f32 %v2064, %v2157
      %v2230 = vsub.f32 %v1978, %v2160
      %v2231 = vsub.f32 %v2067, %v2160
      %v2232 = vsub.f32 %v1980, %v2163
      %v2233 = vsub.f32 %v2069, %v2163
      %v2234 = vsub.f32 %v1983, %v2166
      %v2235 = vsub.f32 %v2072, %v2166
      %v2236 = vsub.f32 %v1985, %v2169
      %v2237 = vsub.f32 %v2074, %v2169
      %v2238 = vsub.f32 %v1988, %v2172
      %v2239 = vsub.f32 %v2077, %v2172
      %v2240 = vsub.f32 %v1990, %v2175
      %v2241 = vsub.f32 %v2079, %v2175
      %v2242 = vsub.f32 %v1993, %v2178
      %v2243 = vsub.f32 %v2082, %v2178
      %v2244 = vsub.f32 %v1995, %v2181
      %v2245 = vsub.f32 %v2084, %v2181
      %v2246 = vmul.f32 %v2182, 1.442695
      %v2247 = vpow.pop %v2246
      %v2248 = vmul.f32 %v2183, 1.442695
      %v2249 = vpow.pop %v2248
      %v2250 = vmul.f32 %v2184, 1.442695
      %v2251 = vpow.pop %v2250
      %v2252 = vmul.f32 %v2185, 1.442695
      %v2253 = vpow.pop %v2252
      %v2254 = vmul.f32 %v2186, 1.442695
      %v2255 = vpow.pop %v2254
      %v2256 = vmul.f32 %v2187, 1.442695
      %v2257 = vpow.pop %v2256
      %v2258 = vmul.f32 %v2188, 1.442695
      %v2259 = vpow.pop %v2258
      %v2260 = vmul.f32 %v2189, 1.442695
      %v2261 = vpow.pop %v2260
      %v2262 = vmul.f32 %v2190, 1.442695
      %v2263 = vpow.pop %v2262
      %v2264 = vmul.f32 %v2191, 1.442695
      %v2265 = vpow.pop %v2264
      %v2266 = vmul.f32 %v2192, 1.442695
      %v2267 = vpow.pop %v2266
      %v2268 = vmul.f32 %v2193, 1.442695
      %v2269 = vpow.pop %v2268
      %v2270 = vmul.f32 %v2194, 1.442695
      %v2271 = vpow.pop %v2270
      %v2272 = vmul.f32 %v2195, 1.442695
      %v2273 = vpow.pop %v2272
      %v2274 = vmul.f32 %v2196, 1.442695
      %v2275 = vpow.pop %v2274
      %v2276 = vmul.f32 %v2197, 1.442695
      %v2277 = vpow.pop %v2276
      %v2278 = vmul.f32 %v2198, 1.442695
      %v2279 = vpow.pop %v2278
      %v2280 = vmul.f32 %v2199, 1.442695
      %v2281 = vpow.pop %v2280
      %v2282 = vmul.f32 %v2200, 1.442695
      %v2283 = vpow.pop %v2282
      %v2284 = vmul.f32 %v2201, 1.442695
      %v2285 = vpow.pop %v2284
      %v2286 = vmul.f32 %v2202, 1.442695
      %v2287 = vpow.pop %v2286
      %v2288 = vmul.f32 %v2203, 1.442695
      %v2289 = vpow.pop %v2288
      %v2290 = vmul.f32 %v2204, 1.442695
      %v2291 = vpow.pop %v2290
      %v2292 = vmul.f32 %v2205, 1.442695
      %v2293 = vpow.pop %v2292
      %v2294 = vmul.f32 %v2206, 1.442695
      %v2295 = vpow.pop %v2294
      %v2296 = vmul.f32 %v2207, 1.442695
      %v2297 = vpow.pop %v2296
      %v2298 = vmul.f32 %v2208, 1.442695
      %v2299 = vpow.pop %v2298
      %v2300 = vmul.f32 %v2209, 1.442695
      %v2301 = vpow.pop %v2300
      %v2302 = vmul.f32 %v2210, 1.442695
      %v2303 = vpow.pop %v2302
      %v2304 = vmul.f32 %v2211, 1.442695
      %v2305 = vpow.pop %v2304
      %v2306 = vmul.f32 %v2212, 1.442695
      %v2307 = vpow.pop %v2306
      %v2308 = vmul.f32 %v2213, 1.442695
      %v2309 = vpow.pop %v2308
      %v2310 = vmul.f32 %v2214, 1.442695
      %v2311 = vpow.pop %v2310
      %v2312 = vmul.f32 %v2215, 1.442695
      %v2313 = vpow.pop %v2312
      %v2314 = vmul.f32 %v2216, 1.442695
      %v2315 = vpow.pop %v2314
      %v2316 = vmul.f32 %v2217, 1.442695
      %v2317 = vpow.pop %v2316
      %v2318 = vmul.f32 %v2218, 1.442695
      %v2319 = vpow.pop %v2318
      %v2320 = vmul.f32 %v2219, 1.442695
      %v2321 = vpow.pop %v2320
      %v2322 = vmul.f32 %v2220, 1.442695
      %v2323 = vpow.pop %v2322
      %v2324 = vmul.f32 %v2221, 1.442695
      %v2325 = vpow.pop %v2324
      %v2326 = vmul.f32 %v2222, 1.442695
      %v2327 = vpow.pop %v2326
      %v2328 = vmul.f32 %v2223, 1.442695
      %v2329 = vpow.pop %v2328
      %v2330 = vmul.f32 %v2224, 1.442695
      %v2331 = vpow.pop %v2330
      %v2332 = vmul.f32 %v2225, 1.442695
      %v2333 = vpow.pop %v2332
      %v2334 = vmul.f32 %v2226, 1.442695
      %v2335 = vpow.pop %v2334
      %v2336 = vmul.f32 %v2227, 1.442695
      %v2337 = vpow.pop %v2336
      %v2338 = vmul.f32 %v2228, 1.442695
      %v2339 = vpow.pop %v2338
      %v2340 = vmul.f32 %v2229, 1.442695
      %v2341 = vpow.pop %v2340
      %v2342 = vmul.f32 %v2230, 1.442695
      %v2343 = vpow.pop %v2342
      %v2344 = vmul.f32 %v2231, 1.442695
      %v2345 = vpow.pop %v2344
      %v2346 = vmul.f32 %v2232, 1.442695
      %v2347 = vpow.pop %v2346
      %v2348 = vmul.f32 %v2233, 1.442695
      %v2349 = vpow.pop %v2348
      %v2350 = vmul.f32 %v2234, 1.442695
      %v2351 = vpow.pop %v2350
      %v2352 = vmul.f32 %v2235, 1.442695
      %v2353 = vpow.pop %v2352
      %v2354 = vmul.f32 %v2236, 1.442695
      %v2355 = vpow.pop %v2354
      %v2356 = vmul.f32 %v2237, 1.442695
      %v2357 = vpow.pop %v2356
      %v2358 = vmul.f32 %v2238, 1.442695
      %v2359 = vpow.pop %v2358
      %v2360 = vmul.f32 %v2239, 1.442695
      %v2361 = vpow.pop %v2360
      %v2362 = vmul.f32 %v2240, 1.442695
      %v2363 = vpow.pop %v2362
      %v2364 = vmul.f32 %v2241, 1.442695
      %v2365 = vpow.pop %v2364
      %v2366 = vmul.f32 %v2242, 1.442695
      %v2367 = vpow.pop %v2366
      %v2368 = vmul.f32 %v2243, 1.442695
      %v2369 = vpow.pop %v2368
      %v2370 = vmul.f32 %v2244, 1.442695
      %v2371 = vpow.pop %v2370
      %v2372 = vmul.f32 %v2245, 1.442695
      %v2373 = vpow.pop %v2372
      %v2374 = vadd.f32 %v2247, %v2249
      %2375 = vadd.xlane.f32.xlu0 %v2374
      %v2376 = vpop.xlane.xlu0 %2375
      %v2377 = vadd.f32 %v2251, %v2253
      %2378 = vadd.xlane.f32.xlu0 %v2377
      %v2379 = vpop.xlane.xlu0 %2378
      %v2380 = vadd.f32 %v2255, %v2257
      %2381 = vadd.xlane.f32.xlu0 %v2380
      %v2382 = vpop.xlane.xlu0 %2381
      %v2383 = vadd.f32 %v2259, %v2261
      %2384 = vadd.xlane.f32.xlu0 %v2383
      %v2385 = vpop.xlane.xlu0 %2384
      %v2386 = vadd.f32 %v2263, %v2265
      %2387 = vadd.xlane.f32.xlu0 %v2386
      %v2388 = vpop.xlane.xlu0 %2387
      %v2389 = vadd.f32 %v2267, %v2269
      %2390 = vadd.xlane.f32.xlu0 %v2389
      %v2391 = vpop.xlane.xlu0 %2390
      %v2392 = vadd.f32 %v2271, %v2273
      %2393 = vadd.xlane.f32.xlu0 %v2392
      %v2394 = vpop.xlane.xlu0 %2393
      %v2395 = vadd.f32 %v2275, %v2277
      %2396 = vadd.xlane.f32.xlu0 %v2395
      %v2397 = vpop.xlane.xlu0 %2396
      %v2398 = vadd.f32 %v2279, %v2281
      %2399 = vadd.xlane.f32.xlu0 %v2398
      %v2400 = vpop.xlane.xlu0 %2399
      %v2401 = vadd.f32 %v2283, %v2285
      %2402 = vadd.xlane.f32.xlu0 %v2401
      %v2403 = vpop.xlane.xlu0 %2402
      %v2404 = vadd.f32 %v2287, %v2289
      %2405 = vadd.xlane.f32.xlu0 %v2404
      %v2406 = vpop.xlane.xlu0 %2405
      %v2407 = vadd.f32 %v2291, %v2293
      %2408 = vadd.xlane.f32.xlu0 %v2407
      %v2409 = vpop.xlane.xlu0 %2408
      %v2410 = vadd.f32 %v2295, %v2297
      %2411 = vadd.xlane.f32.xlu0 %v2410
      %v2412 = vpop.xlane.xlu0 %2411
      %v2413 = vadd.f32 %v2299, %v2301
      %2414 = vadd.xlane.f32.xlu0 %v2413
      %v2415 = vpop.xlane.xlu0 %2414
      %v2416 = vadd.f32 %v2303, %v2305
      %2417 = vadd.xlane.f32.xlu0 %v2416
      %v2418 = vpop.xlane.xlu0 %2417
      %v2419 = vadd.f32 %v2307, %v2309
      %2420 = vadd.xlane.f32.xlu0 %v2419
      %v2421 = vpop.xlane.xlu0 %2420
      %v2422 = vadd.f32 %v2311, %v2313
      %2423 = vadd.xlane.f32.xlu0 %v2422
      %v2424 = vpop.xlane.xlu0 %2423
      %v2425 = vadd.f32 %v2315, %v2317
      %2426 = vadd.xlane.f32.xlu0 %v2425
      %v2427 = vpop.xlane.xlu0 %2426
      %v2428 = vadd.f32 %v2319, %v2321
      %2429 = vadd.xlane.f32.xlu0 %v2428
      %v2430 = vpop.xlane.xlu0 %2429
      %v2431 = vadd.f32 %v2323, %v2325
      %2432 = vadd.xlane.f32.xlu0 %v2431
      %v2433 = vpop.xlane.xlu0 %2432
      %v2434 = vadd.f32 %v2327, %v2329
      %2435 = vadd.xlane.f32.xlu0 %v2434
      %v2436 = vpop.xlane.xlu0 %2435
      %v2437 = vadd.f32 %v2331, %v2333
      %2438 = vadd.xlane.f32.xlu0 %v2437
      %v2439 = vpop.xlane.xlu0 %2438
      %v2440 = vadd.f32 %v2335, %v2337
      %2441 = vadd.xlane.f32.xlu0 %v2440
      %v2442 = vpop.xlane.xlu0 %2441
      %v2443 = vadd.f32 %v2339, %v2341
      %2444 = vadd.xlane.f32.xlu0 %v2443
      %v2445 = vpop.xlane.xlu0 %2444
      %v2446 = vadd.f32 %v2343, %v2345
      %2447 = vadd.xlane.f32.xlu0 %v2446
      %v2448 = vpop.xlane.xlu0 %2447
      %v2449 = vadd.f32 %v2347, %v2349
      %2450 = vadd.xlane.f32.xlu0 %v2449
      %v2451 = vpop.xlane.xlu0 %2450
      %v2452 = vadd.f32 %v2351, %v2353
      %2453 = vadd.xlane.f32.xlu0 %v2452
      %v2454 = vpop.xlane.xlu0 %2453
      %v2455 = vadd.f32 %v2355, %v2357
      %2456 = vadd.xlane.f32.xlu0 %v2455
      %v2457 = vpop.xlane.xlu0 %2456
      %v2458 = vadd.f32 %v2359, %v2361
      %2459 = vadd.xlane.f32.xlu0 %v2458
      %v2460 = vpop.xlane.xlu0 %2459
      %v2461 = vadd.f32 %v2363, %v2365
      %2462 = vadd.xlane.f32.xlu0 %v2461
      %v2463 = vpop.xlane.xlu0 %2462
      %v2464 = vadd.f32 %v2367, %v2369
      %2465 = vadd.xlane.f32.xlu0 %v2464
      %v2466 = vpop.xlane.xlu0 %2465
      %v2467 = vadd.f32 %v2371, %v2373
      %2468 = vadd.xlane.f32.xlu0 %v2467
      %v2469 = vpop.xlane.xlu0 %2468
      %v2470 = vrcp.pop %v2376
      %v2471 = vrcp.pop %v2379
      %v2472 = vrcp.pop %v2382
      %v2473 = vrcp.pop %v2385
      %v2474 = vrcp.pop %v2388
      %v2475 = vrcp.pop %v2391
      %v2476 = vrcp.pop %v2394
      %v2477 = vrcp.pop %v2397
      %v2478 = vrcp.pop %v2400
      %v2479 = vrcp.pop %v2403
      %v2480 = vrcp.pop %v2406
      %v2481 = vrcp.pop %v2409
      %v2482 = vrcp.pop %v2412
      %v2483 = vrcp.pop %v2415
      %v2484 = vrcp.pop %v2418
      %v2485 = vrcp.pop %v2421
      %v2486 = vrcp.pop %v2424
      %v2487 = vrcp.pop %v2427
      %v2488 = vrcp.pop %v2430
      %v2489 = vrcp.pop %v2433
      %v2490 = vrcp.pop %v2436
      %v2491 = vrcp.pop %v2439
      %v2492 = vrcp.pop %v2442
      %v2493 = vrcp.pop %v2445
      %v2494 = vrcp.pop %v2448
      %v2495 = vrcp.pop %v2451
      %v2496 = vrcp.pop %v2454
      %v2497 = vrcp.pop %v2457
      %v2498 = vrcp.pop %v2460
      %v2499 = vrcp.pop %v2463
      %v2500 = vrcp.pop %v2466
      %v2501 = vrcp.pop %v2469
      %v2502 = vmul.f32 %v2247, %v2470
      %v2503 = vmul.f32 %v2249, %v2470
      %v2504 = vmul.f32 %v2251, %v2471
      %v2505 = vmul.f32 %v2253, %v2471
      %v2506 = vmul.f32 %v2255, %v2472
      %v2507 = vmul.f32 %v2257, %v2472
      %v2508 = vmul.f32 %v2259, %v2473
      %v2509 = vmul.f32 %v2261, %v2473
      %v2510 = vmul.f32 %v2263, %v2474
      %v2511 = vmul.f32 %v2265, %v2474
      %v2512 = vmul.f32 %v2267, %v2475
      %v2513 = vmul.f32 %v2269, %v2475
      %v2514 = vmul.f32 %v2271, %v2476
      %v2515 = vmul.f32 %v2273, %v2476
      %v2516 = vmul.f32 %v2275, %v2477
      %v2517 = vmul.f32 %v2277, %v2477
      %v2518 = vmul.f32 %v2279, %v2478
      %v2519 = vmul.f32 %v2281, %v2478
      %v2520 = vmul.f32 %v2283, %v2479
      %v2521 = vmul.f32 %v2285, %v2479
      %v2522 = vmul.f32 %v2287, %v2480
      %v2523 = vmul.f32 %v2289, %v2480
      %v2524 = vmul.f32 %v2291, %v2481
      %v2525 = vmul.f32 %v2293, %v2481
      %v2526 = vmul.f32 %v2295, %v2482
      %v2527 = vmul.f32 %v2297, %v2482
      %v2528 = vmul.f32 %v2299, %v2483
      %v2529 = vmul.f32 %v2301, %v2483
      %v2530 = vmul.f32 %v2303, %v2484
      %v2531 = vmul.f32 %v2305, %v2484
      %v2532 = vmul.f32 %v2307, %v2485
      %v2533 = vmul.f32 %v2309, %v2485
      %v2534 = vmul.f32 %v2311, %v2486
      %v2535 = vmul.f32 %v2313, %v2486
      %v2536 = vmul.f32 %v2315, %v2487
      %v2537 = vmul.f32 %v2317, %v2487
      %v2538 = vmul.f32 %v2319, %v2488
      %v2539 = vmul.f32 %v2321, %v2488
      %v2540 = vmul.f32 %v2323, %v2489
      %v2541 = vmul.f32 %v2325, %v2489
      %v2542 = vmul.f32 %v2327, %v2490
      %v2543 = vmul.f32 %v2329, %v2490
      %v2544 = vmul.f32 %v2331, %v2491
      %v2545 = vmul.f32 %v2333, %v2491
      %v2546 = vmul.f32 %v2335, %v2492
      %v2547 = vmul.f32 %v2337, %v2492
      %v2548 = vmul.f32 %v2339, %v2493
      %v2549 = vmul.f32 %v2341, %v2493
      %v2550 = vmul.f32 %v2343, %v2494
      %v2551 = vmul.f32 %v2345, %v2494
      %v2552 = vmul.f32 %v2347, %v2495
      %v2553 = vmul.f32 %v2349, %v2495
      %v2554 = vmul.f32 %v2351, %v2496
      %v2555 = vmul.f32 %v2353, %v2496
      %v2556 = vmul.f32 %v2355, %v2497
      %v2557 = vmul.f32 %v2357, %v2497
      %v2558 = vmul.f32 %v2359, %v2498
      %v2559 = vmul.f32 %v2361, %v2498
      %v2560 = vmul.f32 %v2363, %v2499
      %v2561 = vmul.f32 %v2365, %v2499
      %v2562 = vmul.f32 %v2367, %v2500
      %v2563 = vmul.f32 %v2369, %v2500
      %v2564 = vmul.f32 %v2371, %v2501
      %v2565 = vmul.f32 %v2373, %v2501
      %v2566 = vpack.c.bf16 %v2504, %v2502
      %v2567 = vpack.c.bf16 %v2505, %v2503
      %v2568 = vpack.c.bf16 %v2508, %v2506
      %v2569 = vpack.c.bf16 %v2509, %v2507
      %v2570 = vpack.c.bf16 %v2512, %v2510
      %v2571 = vpack.c.bf16 %v2513, %v2511
      %v2572 = vpack.c.bf16 %v2516, %v2514
      %v2573 = vpack.c.bf16 %v2517, %v2515
      %v2574 = vpack.c.bf16 %v2520, %v2518
      %v2575 = vpack.c.bf16 %v2521, %v2519
      %v2576 = vpack.c.bf16 %v2524, %v2522
      %v2577 = vpack.c.bf16 %v2525, %v2523
      %v2578 = vpack.c.bf16 %v2528, %v2526
      %v2579 = vpack.c.bf16 %v2529, %v2527
      %v2580 = vpack.c.bf16 %v2532, %v2530
      %v2581 = vpack.c.bf16 %v2533, %v2531
      %v2582 = vpack.c.bf16 %v2536, %v2534
      %v2583 = vpack.c.bf16 %v2537, %v2535
      %v2584 = vpack.c.bf16 %v2540, %v2538
      %v2585 = vpack.c.bf16 %v2541, %v2539
      %v2586 = vpack.c.bf16 %v2544, %v2542
      %v2587 = vpack.c.bf16 %v2545, %v2543
      %v2588 = vpack.c.bf16 %v2548, %v2546
      %v2589 = vpack.c.bf16 %v2549, %v2547
      %v2590 = vpack.c.bf16 %v2552, %v2550
      %v2591 = vpack.c.bf16 %v2553, %v2551
      %v2592 = vpack.c.bf16 %v2556, %v2554
      %v2593 = vpack.c.bf16 %v2557, %v2555
      %v2594 = vpack.c.bf16 %v2560, %v2558
      %v2595 = vpack.c.bf16 %v2561, %v2559
      %v2596 = vpack.c.bf16 %v2564, %v2562
      %v2597 = vpack.c.bf16 %v2565, %v2563
      %2598 = vrot.lane.b32.xlu0 %v1473, 120
      %v2599 = vpop.permute.xlu0 %2598
      %2600 = vrot.lane.b32.xlu0 %v1474, 120
      %v2601 = vpop.permute.xlu0 %2600
      %2602 = vrot.lane.b32.xlu0 %v1475, 120
      %v2603 = vpop.permute.xlu0 %2602
      %2604 = vrot.lane.b32.xlu0 %v1476, 120
      %v2605 = vpop.permute.xlu0 %2604
      %2606 = vrot.lane.b32.xlu0 %v1477, 120
      %v2607 = vpop.permute.xlu0 %2606
      %2608 = vrot.lane.b32.xlu0 %v1478, 120
      %v2609 = vpop.permute.xlu0 %2608
      %2610 = vrot.lane.b32.xlu0 %v1479, 120
      %v2611 = vpop.permute.xlu0 %2610
      %2612 = vrot.lane.b32.xlu0 %v1480, 120
      %v2613 = vpop.permute.xlu0 %2612
      %2614 = vrot.lane.b32.xlu0 %v1481, 120
      %v2615 = vpop.permute.xlu0 %2614
      %2616 = vrot.lane.b32.xlu0 %v1482, 120
      %v2617 = vpop.permute.xlu0 %2616
      %2618 = vrot.lane.b32.xlu0 %v1483, 120
      %v2619 = vpop.permute.xlu0 %2618
      %2620 = vrot.lane.b32.xlu0 %v1484, 120
      %v2621 = vpop.permute.xlu0 %2620
      %2622 = vrot.lane.b32.xlu0 %v1485, 120
      %v2623 = vpop.permute.xlu0 %2622
      %2624 = vrot.lane.b32.xlu0 %v1486, 120
      %v2625 = vpop.permute.xlu0 %2624
      %2626 = vrot.lane.b32.xlu0 %v1487, 120
      %v2627 = vpop.permute.xlu0 %2626
      %2628 = vrot.lane.b32.xlu0 %v1488, 120
      %v2629 = vpop.permute.xlu0 %2628
      %2646 = vmatpush.bf16.msra.mxu0 %v2613
      %2647 = vmatpush.bf16.msra.mxu0 %v2611
      %2648 = vmatpush.bf16.msra.mxu0 %v2609
      %2649 = vmatpush.bf16.msra.mxu0 %v2607
      %2650 = vmatpush.bf16.msra.mxu0 %v2605
      %2651 = vmatpush.bf16.msra.mxu0 %v2603
      %2652 = vmatpush.bf16.msra.mxu0 %v2601
      %2653 = vmatpush.bf16.msra.mxu0 %v2599
      %2654 = vmatmul.bf16.gmra.mxu0 %v2566
      %v2655 = vpop.f32.mrf.mxu0
      %v2656 = vadd.f32 0.0, %v2655
      %v2657 = vpop.f32.mrf.mxu0
      %v2658 = vadd.f32 0.0, %v2657
      %2659 = vmatmul.bf16.gmra.mxu0 %v2568
      %v2660 = vpop.f32.mrf.mxu0
      %v2661 = vadd.f32 0.0, %v2660
      %v2662 = vpop.f32.mrf.mxu0
      %v2663 = vadd.f32 0.0, %v2662
      %2664 = vmatmul.bf16.gmra.mxu0 %v2570
      %v2665 = vpop.f32.mrf.mxu0
      %v2666 = vadd.f32 0.0, %v2665
      %v2667 = vpop.f32.mrf.mxu0
      %v2668 = vadd.f32 0.0, %v2667
      %2669 = vmatmul.bf16.gmra.mxu0 %v2572
      %v2670 = vpop.f32.mrf.mxu0
      %v2671 = vadd.f32 0.0, %v2670
      %v2672 = vpop.f32.mrf.mxu0
      %v2673 = vadd.f32 0.0, %v2672
      %2674 = vmatmul.bf16.gmra.mxu0 %v2574
      %v2675 = vpop.f32.mrf.mxu0
      %v2676 = vadd.f32 0.0, %v2675
      %v2677 = vpop.f32.mrf.mxu0
      %v2678 = vadd.f32 0.0, %v2677
      %2679 = vmatmul.bf16.gmra.mxu0 %v2576
      %v2680 = vpop.f32.mrf.mxu0
      %v2681 = vadd.f32 0.0, %v2680
      %v2682 = vpop.f32.mrf.mxu0
      %v2683 = vadd.f32 0.0, %v2682
      %2684 = vmatmul.bf16.gmra.mxu0 %v2578
      %v2685 = vpop.f32.mrf.mxu0
      %v2686 = vadd.f32 0.0, %v2685
      %v2687 = vpop.f32.mrf.mxu0
      %v2688 = vadd.f32 0.0, %v2687
      %2689 = vmatmul.bf16.gmra.mxu0 %v2580
      %v2690 = vpop.f32.mrf.mxu0
      %v2691 = vadd.f32 0.0, %v2690
      %v2692 = vpop.f32.mrf.mxu0
      %v2693 = vadd.f32 0.0, %v2692
      %2694 = vmatmul.bf16.gmra.mxu0 %v2582
      %v2695 = vpop.f32.mrf.mxu0
      %v2696 = vadd.f32 0.0, %v2695
      %v2697 = vpop.f32.mrf.mxu0
      %v2698 = vadd.f32 0.0, %v2697
      %2699 = vmatmul.bf16.gmra.mxu0 %v2584
      %v2700 = vpop.f32.mrf.mxu0
      %v2701 = vadd.f32 0.0, %v2700
      %v2702 = vpop.f32.mrf.mxu0
      %v2703 = vadd.f32 0.0, %v2702
      %2704 = vmatmul.bf16.gmra.mxu0 %v2586
      %v2705 = vpop.f32.mrf.mxu0
      %v2706 = vadd.f32 0.0, %v2705
      %v2707 = vpop.f32.mrf.mxu0
      %v2708 = vadd.f32 0.0, %v2707
      %2709 = vmatmul.bf16.gmra.mxu0 %v2588
      %v2710 = vpop.f32.mrf.mxu0
      %v2711 = vadd.f32 0.0, %v2710
      %v2712 = vpop.f32.mrf.mxu0
      %v2713 = vadd.f32 0.0, %v2712
      %2714 = vmatmul.bf16.gmra.mxu0 %v2590
      %v2715 = vpop.f32.mrf.mxu0
      %v2716 = vadd.f32 0.0, %v2715
      %v2717 = vpop.f32.mrf.mxu0
      %v2718 = vadd.f32 0.0, %v2717
      %2719 = vmatmul.bf16.gmra.mxu0 %v2592
      %v2720 = vpop.f32.mrf.mxu0
      %v2721 = vadd.f32 0.0, %v2720
      %v2722 = vpop.f32.mrf.mxu0
      %v2723 = vadd.f32 0.0, %v2722
      %2724 = vmatmul.bf16.gmra.mxu0 %v2594
      %v2725 = vpop.f32.mrf.mxu0
      %v2726 = vadd.f32 0.0, %v2725
      %v2727 = vpop.f32.mrf.mxu0
      %v2728 = vadd.f32 0.0, %v2727
      %2729 = vmatmul.bf16.gmra.mxu0 %v2596
      %v2730 = vpop.f32.mrf.mxu0
      %v2731 = vadd.f32 0.0, %v2730
      %v2732 = vpop.f32.mrf.mxu0
      %v2733 = vadd.f32 0.0, %v2732
      %2734 = vdwg.mxu0
      %2735 = vmatpush.bf16.msra.mxu0 %v2629
      %2736 = vmatpush.bf16.msra.mxu0 %v2627
      %2737 = vmatpush.bf16.msra.mxu0 %v2625
      %2738 = vmatpush.bf16.msra.mxu0 %v2623
      %2739 = vmatpush.bf16.msra.mxu0 %v2621
      %2740 = vmatpush.bf16.msra.mxu0 %v2619
      %2741 = vmatpush.bf16.msra.mxu0 %v2617
      %2742 = vmatpush.bf16.msra.mxu0 %v2615
      %2743 = vmatmul.bf16.gmra.mxu0 %v2567
      %v2744 = vpop.f32.mrf.mxu0
      %v2745 = vadd.f32 %v2656, %v2744
      %v2746 = vpop.f32.mrf.mxu0
      %v2747 = vadd.f32 %v2658, %v2746
      %2748 = vmatmul.bf16.gmra.mxu0 %v2569
      %v2749 = vpop.f32.mrf.mxu0
      %v2750 = vadd.f32 %v2661, %v2749
      %v2751 = vpop.f32.mrf.mxu0
      %v2752 = vadd.f32 %v2663, %v2751
      %2753 = vmatmul.bf16.gmra.mxu0 %v2571
      %v2754 = vpop.f32.mrf.mxu0
      %v2755 = vadd.f32 %v2666, %v2754
      %v2756 = vpop.f32.mrf.mxu0
      %v2757 = vadd.f32 %v2668, %v2756
      %2758 = vmatmul.bf16.gmra.mxu0 %v2573
      %v2759 = vpop.f32.mrf.mxu0
      %v2760 = vadd.f32 %v2671, %v2759
      %v2761 = vpop.f32.mrf.mxu0
      %v2762 = vadd.f32 %v2673, %v2761
      %2763 = vmatmul.bf16.gmra.mxu0 %v2575
      %v2764 = vpop.f32.mrf.mxu0
      %v2765 = vadd.f32 %v2676, %v2764
      %v2766 = vpop.f32.mrf.mxu0
      %v2767 = vadd.f32 %v2678, %v2766
      %2768 = vmatmul.bf16.gmra.mxu0 %v2577
      %v2769 = vpop.f32.mrf.mxu0
      %v2770 = vadd.f32 %v2681, %v2769
      %v2771 = vpop.f32.mrf.mxu0
      %v2772 = vadd.f32 %v2683, %v2771
      %2773 = vmatmul.bf16.gmra.mxu0 %v2579
      %v2774 = vpop.f32.mrf.mxu0
      %v2775 = vadd.f32 %v2686, %v2774
      %v2776 = vpop.f32.mrf.mxu0
      %v2777 = vadd.f32 %v2688, %v2776
      %2778 = vmatmul.bf16.gmra.mxu0 %v2581
      %v2779 = vpop.f32.mrf.mxu0
      %v2780 = vadd.f32 %v2691, %v2779
      %v2781 = vpop.f32.mrf.mxu0
      %v2782 = vadd.f32 %v2693, %v2781
      %2783 = vmatmul.bf16.gmra.mxu0 %v2583
      %v2784 = vpop.f32.mrf.mxu0
      %v2785 = vadd.f32 %v2696, %v2784
      %v2786 = vpop.f32.mrf.mxu0
      %v2787 = vadd.f32 %v2698, %v2786
      %2788 = vmatmul.bf16.gmra.mxu0 %v2585
      %v2789 = vpop.f32.mrf.mxu0
      %v2790 = vadd.f32 %v2701, %v2789
      %v2791 = vpop.f32.mrf.mxu0
      %v2792 = vadd.f32 %v2703, %v2791
      %2793 = vmatmul.bf16.gmra.mxu0 %v2587
      %v2794 = vpop.f32.mrf.mxu0
      %v2795 = vadd.f32 %v2706, %v2794
      %v2796 = vpop.f32.mrf.mxu0
      %v2797 = vadd.f32 %v2708, %v2796
      %2798 = vmatmul.bf16.gmra.mxu0 %v2589
      %v2799 = vpop.f32.mrf.mxu0
      %v2800 = vadd.f32 %v2711, %v2799
      %v2801 = vpop.f32.mrf.mxu0
      %v2802 = vadd.f32 %v2713, %v2801
      %2803 = vmatmul.bf16.gmra.mxu0 %v2591
      %v2804 = vpop.f32.mrf.mxu0
      %v2805 = vadd.f32 %v2716, %v2804
      %v2806 = vpop.f32.mrf.mxu0
      %v2807 = vadd.f32 %v2718, %v2806
      %2808 = vmatmul.bf16.gmra.mxu0 %v2593
      %v2809 = vpop.f32.mrf.mxu0
      %v2810 = vadd.f32 %v2721, %v2809
      %v2811 = vpop.f32.mrf.mxu0
      %v2812 = vadd.f32 %v2723, %v2811
      %2813 = vmatmul.bf16.gmra.mxu0 %v2595
      %v2814 = vpop.f32.mrf.mxu0
      %v2815 = vadd.f32 %v2726, %v2814
      %v2816 = vpop.f32.mrf.mxu0
      %v2817 = vadd.f32 %v2728, %v2816
      %2818 = vmatmul.bf16.gmra.mxu0 %v2597
      %v2819 = vpop.f32.mrf.mxu0
      %v2820 = vadd.f32 %v2731, %v2819
      %v2821 = vpop.f32.mrf.mxu0
      %v2822 = vadd.f32 %v2733, %v2821
      %2823 = vdwg.mxu0
      %s2824 = scalar_lea.vmem %s290, 1024
      %v2825 = vld [vmem:[%s2824] sm:$0xff]
      %v2826 = vld [vmem:[%s2824 + $0x8] sm:$0xff]
      %v2827 = vld [vmem:[%s2824 + $0x10] sm:$0xff]
      %v2828 = vld [vmem:[%s2824 + $0x18] sm:$0xff]
      %v2829 = vld [vmem:[%s2824 + $0x20] sm:$0xff]
      %v2830 = vld [vmem:[%s2824 + $0x28] sm:$0xff]
      %v2831 = vld [vmem:[%s2824 + $0x30] sm:$0xff]
      %v2832 = vld [vmem:[%s2824 + $0x38] sm:$0xff]
      %v2833 = vld [vmem:[%s2824 + $0x40] sm:$0xff]
      %v2834 = vld [vmem:[%s2824 + $0x48] sm:$0xff]
      %v2835 = vld [vmem:[%s2824 + $0x50] sm:$0xff]
      %v2836 = vld [vmem:[%s2824 + $0x58] sm:$0xff]
      %v2837 = vld [vmem:[%s2824 + $0x60] sm:$0xff]
      %v2838 = vld [vmem:[%s2824 + $0x68] sm:$0xff]
      %v2839 = vld [vmem:[%s2824 + $0x70] sm:$0xff]
      %v2840 = vld [vmem:[%s2824 + $0x78] sm:$0xff]
      %v2841 = vld [vmem:[%s2824 + $0x80] sm:$0xff]
      %v2842 = vld [vmem:[%s2824 + $0x88] sm:$0xff]
      %v2843 = vld [vmem:[%s2824 + $0x90] sm:$0xff]
      %v2844 = vld [vmem:[%s2824 + $0x98] sm:$0xff]
      %v2845 = vld [vmem:[%s2824 + $0xa0] sm:$0xff]
      %v2846 = vld [vmem:[%s2824 + $0xa8] sm:$0xff]
      %v2847 = vld [vmem:[%s2824 + $0xb0] sm:$0xff]
      %v2848 = vld [vmem:[%s2824 + $0xb8] sm:$0xff]
      %v2849 = vld [vmem:[%s2824 + $0xc0] sm:$0xff]
      %v2850 = vld [vmem:[%s2824 + $0xc8] sm:$0xff]
      %v2851 = vld [vmem:[%s2824 + $0xd0] sm:$0xff]
      %v2852 = vld [vmem:[%s2824 + $0xd8] sm:$0xff]
      %v2853 = vld [vmem:[%s2824 + $0xe0] sm:$0xff]
      %v2854 = vld [vmem:[%s2824 + $0xe8] sm:$0xff]
      %v2855 = vld [vmem:[%s2824 + $0xf0] sm:$0xff]
      %v2856 = vld [vmem:[%s2824 + $0xf8] sm:$0xff]
      %v2857 = vld [vmem:[%s2824 + $0x100] sm:$0xff]
      %v2858 = vld [vmem:[%s2824 + $0x108] sm:$0xff]
      %v2859 = vld [vmem:[%s2824 + $0x110] sm:$0xff]
      %v2860 = vld [vmem:[%s2824 + $0x118] sm:$0xff]
      %v2861 = vld [vmem:[%s2824 + $0x120] sm:$0xff]
      %v2862 = vld [vmem:[%s2824 + $0x128] sm:$0xff]
      %v2863 = vld [vmem:[%s2824 + $0x130] sm:$0xff]
      %v2864 = vld [vmem:[%s2824 + $0x138] sm:$0xff]
      %v2865 = vld [vmem:[%s2824 + $0x140] sm:$0xff]
      %v2866 = vld [vmem:[%s2824 + $0x148] sm:$0xff]
      %v2867 = vld [vmem:[%s2824 + $0x150] sm:$0xff]
      %v2868 = vld [vmem:[%s2824 + $0x158] sm:$0xff]
      %v2869 = vld [vmem:[%s2824 + $0x160] sm:$0xff]
      %v2870 = vld [vmem:[%s2824 + $0x168] sm:$0xff]
      %v2871 = vld [vmem:[%s2824 + $0x170] sm:$0xff]
      %v2872 = vld [vmem:[%s2824 + $0x178] sm:$0xff]
      %v2873 = vld [vmem:[%s2824 + $0x180] sm:$0xff]
      %v2874 = vld [vmem:[%s2824 + $0x188] sm:$0xff]
      %v2875 = vld [vmem:[%s2824 + $0x190] sm:$0xff]
      %v2876 = vld [vmem:[%s2824 + $0x198] sm:$0xff]
      %v2877 = vld [vmem:[%s2824 + $0x1a0] sm:$0xff]
      %v2878 = vld [vmem:[%s2824 + $0x1a8] sm:$0xff]
      %v2879 = vld [vmem:[%s2824 + $0x1b0] sm:$0xff]
      %v2880 = vld [vmem:[%s2824 + $0x1b8] sm:$0xff]
      %v2881 = vld [vmem:[%s2824 + $0x1c0] sm:$0xff]
      %v2882 = vld [vmem:[%s2824 + $0x1c8] sm:$0xff]
      %v2883 = vld [vmem:[%s2824 + $0x1d0] sm:$0xff]
      %v2884 = vld [vmem:[%s2824 + $0x1d8] sm:$0xff]
      %v2885 = vld [vmem:[%s2824 + $0x1e0] sm:$0xff]
      %v2886 = vld [vmem:[%s2824 + $0x1e8] sm:$0xff]
      %v2887 = vld [vmem:[%s2824 + $0x1f0] sm:$0xff]
      %v2888 = vld [vmem:[%s2824 + $0x1f8] sm:$0xff]
      %2889 = vrot.lane.b32.xlu0 %v526, 112
      %v2890 = vpop.permute.xlu0 %2889
      %2891 = vrot.lane.b32.xlu0 %v527, 112
      %v2892 = vpop.permute.xlu0 %2891
      %2893 = vrot.lane.b32.xlu0 %v528, 112
      %v2894 = vpop.permute.xlu0 %2893
      %2895 = vrot.lane.b32.xlu0 %v529, 112
      %v2896 = vpop.permute.xlu0 %2895
      %2897 = vrot.lane.b32.xlu0 %v530, 112
      %v2898 = vpop.permute.xlu0 %2897
      %2899 = vrot.lane.b32.xlu0 %v531, 112
      %v2900 = vpop.permute.xlu0 %2899
      %2901 = vrot.lane.b32.xlu0 %v532, 112
      %v2902 = vpop.permute.xlu0 %2901
      %2903 = vrot.lane.b32.xlu0 %v533, 112
      %v2904 = vpop.permute.xlu0 %2903
      %2905 = vrot.lane.b32.xlu0 %v534, 112
      %v2906 = vpop.permute.xlu0 %2905
      %2907 = vrot.lane.b32.xlu0 %v535, 112
      %v2908 = vpop.permute.xlu0 %2907
      %2909 = vrot.lane.b32.xlu0 %v536, 112
      %v2910 = vpop.permute.xlu0 %2909
      %2911 = vrot.lane.b32.xlu0 %v537, 112
      %v2912 = vpop.permute.xlu0 %2911
      %2913 = vrot.lane.b32.xlu0 %v538, 112
      %v2914 = vpop.permute.xlu0 %2913
      %2915 = vrot.lane.b32.xlu0 %v539, 112
      %v2916 = vpop.permute.xlu0 %2915
      %2917 = vrot.lane.b32.xlu0 %v540, 112
      %v2918 = vpop.permute.xlu0 %2917
      %2919 = vrot.lane.b32.xlu0 %v541, 112
      %v2920 = vpop.permute.xlu0 %2919
      %2921 = vrot.lane.b32.xlu0 %v606, 112
      %v2922 = vpop.permute.xlu0 %2921
      %2923 = vrot.lane.b32.xlu0 %v607, 112
      %v2924 = vpop.permute.xlu0 %2923
      %2925 = vrot.lane.b32.xlu0 %v608, 112
      %v2926 = vpop.permute.xlu0 %2925
      %2927 = vrot.lane.b32.xlu0 %v609, 112
      %v2928 = vpop.permute.xlu0 %2927
      %2929 = vrot.lane.b32.xlu0 %v610, 112
      %v2930 = vpop.permute.xlu0 %2929
      %2931 = vrot.lane.b32.xlu0 %v611, 112
      %v2932 = vpop.permute.xlu0 %2931
      %2933 = vrot.lane.b32.xlu0 %v612, 112
      %v2934 = vpop.permute.xlu0 %2933
      %2935 = vrot.lane.b32.xlu0 %v613, 112
      %v2936 = vpop.permute.xlu0 %2935
      %2937 = vrot.lane.b32.xlu0 %v614, 112
      %v2938 = vpop.permute.xlu0 %2937
      %2939 = vrot.lane.b32.xlu0 %v615, 112
      %v2940 = vpop.permute.xlu0 %2939
      %2941 = vrot.lane.b32.xlu0 %v616, 112
      %v2942 = vpop.permute.xlu0 %2941
      %2943 = vrot.lane.b32.xlu0 %v617, 112
      %v2944 = vpop.permute.xlu0 %2943
      %2945 = vrot.lane.b32.xlu0 %v618, 112
      %v2946 = vpop.permute.xlu0 %2945
      %2947 = vrot.lane.b32.xlu0 %v619, 112
      %v2948 = vpop.permute.xlu0 %2947
      %2949 = vrot.lane.b32.xlu0 %v620, 112
      %v2950 = vpop.permute.xlu0 %2949
      %2951 = vrot.lane.b32.xlu0 %v621, 112
      %v2952 = vpop.permute.xlu0 %2951
      %v2954 = vsel %vm622, %v2890, 0
      %v2957 = vsel %vm622, %v2892, 0
      %v2960 = vsel %vm622, %v2894, 0
      %v2963 = vsel %vm622, %v2896, 0
      %v2966 = vsel %vm622, %v2898, 0
      %v2969 = vsel %vm622, %v2900, 0
      %v2972 = vsel %vm622, %v2902, 0
      %v2975 = vsel %vm622, %v2904, 0
      %v2978 = vsel %vm622, %v2906, 0
      %v2981 = vsel %vm622, %v2908, 0
      %v2984 = vsel %vm622, %v2910, 0
      %v2987 = vsel %vm622, %v2912, 0
      %v2990 = vsel %vm622, %v2914, 0
      %v2993 = vsel %vm622, %v2916, 0
      %v2996 = vsel %vm622, %v2918, 0
      %v2999 = vsel %vm622, %v2920, 0
      %v3002 = vsel %vm622, %v2922, 0
      %v3005 = vsel %vm622, %v2924, 0
      %v3008 = vsel %vm622, %v2926, 0
      %v3011 = vsel %vm622, %v2928, 0
      %v3014 = vsel %vm622, %v2930, 0
      %v3017 = vsel %vm622, %v2932, 0
      %v3020 = vsel %vm622, %v2934, 0
      %v3023 = vsel %vm622, %v2936, 0
      %v3026 = vsel %vm622, %v2938, 0
      %v3029 = vsel %vm622, %v2940, 0
      %v3032 = vsel %vm622, %v2942, 0
      %v3035 = vsel %vm622, %v2944, 0
      %v3038 = vsel %vm622, %v2946, 0
      %v3041 = vsel %vm622, %v2948, 0
      %v3044 = vsel %vm622, %v2950, 0
      %v3047 = vsel %vm622, %v2952, 0
      %3049 = vmatpush.bf16.xpose.msra.mxu0 %v3023
      %3050 = vmatpush.bf16.xpose.msra.mxu0 %v3020
      %3051 = vmatpush.bf16.xpose.msra.mxu0 %v3017
      %3052 = vmatpush.bf16.xpose.msra.mxu0 %v3014
      %3053 = vmatpush.bf16.xpose.msra.mxu0 %v3011
      %3054 = vmatpush.bf16.xpose.msra.mxu0 %v3008
      %3055 = vmatpush.bf16.xpose.msra.mxu0 %v3005
      %3056 = vmatpush.bf16.xpose.msra.mxu0 %v3002
      %3057 = vmatmul.bf16.gmra.mxu0 %v2954
      %v3058 = vpop.f32.mrf.mxu0
      %v3059 = vadd.f32 %v2825, %v3058
      %v3060 = vpop.f32.mrf.mxu0
      %v3061 = vadd.f32 %v2827, %v3060
      %3062 = vmatmul.bf16.gmra.mxu0 %v2957
      %v3063 = vpop.f32.mrf.mxu0
      %v3064 = vadd.f32 %v2829, %v3063
      %v3065 = vpop.f32.mrf.mxu0
      %v3066 = vadd.f32 %v2831, %v3065
      %3067 = vmatmul.bf16.gmra.mxu0 %v2960
      %v3068 = vpop.f32.mrf.mxu0
      %v3069 = vadd.f32 %v2833, %v3068
      %v3070 = vpop.f32.mrf.mxu0
      %v3071 = vadd.f32 %v2835, %v3070
      %3072 = vmatmul.bf16.gmra.mxu0 %v2963
      %v3073 = vpop.f32.mrf.mxu0
      %v3074 = vadd.f32 %v2837, %v3073
      %v3075 = vpop.f32.mrf.mxu0
      %v3076 = vadd.f32 %v2839, %v3075
      %3077 = vmatmul.bf16.gmra.mxu0 %v2966
      %v3078 = vpop.f32.mrf.mxu0
      %v3079 = vadd.f32 %v2841, %v3078
      %v3080 = vpop.f32.mrf.mxu0
      %v3081 = vadd.f32 %v2843, %v3080
      %3082 = vmatmul.bf16.gmra.mxu0 %v2969
      %v3083 = vpop.f32.mrf.mxu0
      %v3084 = vadd.f32 %v2845, %v3083
      %v3085 = vpop.f32.mrf.mxu0
      %v3086 = vadd.f32 %v2847, %v3085
      %3087 = vmatmul.bf16.gmra.mxu0 %v2972
      %v3088 = vpop.f32.mrf.mxu0
      %v3089 = vadd.f32 %v2849, %v3088
      %v3090 = vpop.f32.mrf.mxu0
      %v3091 = vadd.f32 %v2851, %v3090
      %3092 = vmatmul.bf16.gmra.mxu0 %v2975
      %v3093 = vpop.f32.mrf.mxu0
      %v3094 = vadd.f32 %v2853, %v3093
      %v3095 = vpop.f32.mrf.mxu0
      %v3096 = vadd.f32 %v2855, %v3095
      %3097 = vmatmul.bf16.gmra.mxu0 %v2978
      %v3098 = vpop.f32.mrf.mxu0
      %v3099 = vadd.f32 %v2857, %v3098
      %v3100 = vpop.f32.mrf.mxu0
      %v3101 = vadd.f32 %v2859, %v3100
      %3102 = vmatmul.bf16.gmra.mxu0 %v2981
      %v3103 = vpop.f32.mrf.mxu0
      %v3104 = vadd.f32 %v2861, %v3103
      %v3105 = vpop.f32.mrf.mxu0
      %v3106 = vadd.f32 %v2863, %v3105
      %3107 = vmatmul.bf16.gmra.mxu0 %v2984
      %v3108 = vpop.f32.mrf.mxu0
      %v3109 = vadd.f32 %v2865, %v3108
      %v3110 = vpop.f32.mrf.mxu0
      %v3111 = vadd.f32 %v2867, %v3110
      %3112 = vmatmul.bf16.gmra.mxu0 %v2987
      %v3113 = vpop.f32.mrf.mxu0
      %v3114 = vadd.f32 %v2869, %v3113
      %v3115 = vpop.f32.mrf.mxu0
      %v3116 = vadd.f32 %v2871, %v3115
      %3117 = vmatmul.bf16.gmra.mxu0 %v2990
      %v3118 = vpop.f32.mrf.mxu0
      %v3119 = vadd.f32 %v2873, %v3118
      %v3120 = vpop.f32.mrf.mxu0
      %v3121 = vadd.f32 %v2875, %v3120
      %3122 = vmatmul.bf16.gmra.mxu0 %v2993
      %v3123 = vpop.f32.mrf.mxu0
      %v3124 = vadd.f32 %v2877, %v3123
      %v3125 = vpop.f32.mrf.mxu0
      %v3126 = vadd.f32 %v2879, %v3125
      %3127 = vmatmul.bf16.gmra.mxu0 %v2996
      %v3128 = vpop.f32.mrf.mxu0
      %v3129 = vadd.f32 %v2881, %v3128
      %v3130 = vpop.f32.mrf.mxu0
      %v3131 = vadd.f32 %v2883, %v3130
      %3132 = vmatmul.bf16.gmra.mxu0 %v2999
      %v3133 = vpop.f32.mrf.mxu0
      %v3134 = vadd.f32 %v2885, %v3133
      %v3135 = vpop.f32.mrf.mxu0
      %v3136 = vadd.f32 %v2887, %v3135
      %3137 = vdwg.mxu0
      %3138 = vmatpush.bf16.xpose.msra.mxu0 %v3047
      %3139 = vmatpush.bf16.xpose.msra.mxu0 %v3044
      %3140 = vmatpush.bf16.xpose.msra.mxu0 %v3041
      %3141 = vmatpush.bf16.xpose.msra.mxu0 %v3038
      %3142 = vmatpush.bf16.xpose.msra.mxu0 %v3035
      %3143 = vmatpush.bf16.xpose.msra.mxu0 %v3032
      %3144 = vmatpush.bf16.xpose.msra.mxu0 %v3029
      %3145 = vmatpush.bf16.xpose.msra.mxu0 %v3026
      %3146 = vmatmul.bf16.gmra.mxu0 %v2954
      %v3147 = vpop.f32.mrf.mxu0
      %v3148 = vadd.f32 %v2826, %v3147
      %v3149 = vpop.f32.mrf.mxu0
      %v3150 = vadd.f32 %v2828, %v3149
      %3151 = vmatmul.bf16.gmra.mxu0 %v2957
      %v3152 = vpop.f32.mrf.mxu0
      %v3153 = vadd.f32 %v2830, %v3152
      %v3154 = vpop.f32.mrf.mxu0
      %v3155 = vadd.f32 %v2832, %v3154
      %3156 = vmatmul.bf16.gmra.mxu0 %v2960
      %v3157 = vpop.f32.mrf.mxu0
      %v3158 = vadd.f32 %v2834, %v3157
      %v3159 = vpop.f32.mrf.mxu0
      %v3160 = vadd.f32 %v2836, %v3159
      %3161 = vmatmul.bf16.gmra.mxu0 %v2963
      %v3162 = vpop.f32.mrf.mxu0
      %v3163 = vadd.f32 %v2838, %v3162
      %v3164 = vpop.f32.mrf.mxu0
      %v3165 = vadd.f32 %v2840, %v3164
      %3166 = vmatmul.bf16.gmra.mxu0 %v2966
      %v3167 = vpop.f32.mrf.mxu0
      %v3168 = vadd.f32 %v2842, %v3167
      %v3169 = vpop.f32.mrf.mxu0
      %v3170 = vadd.f32 %v2844, %v3169
      %3171 = vmatmul.bf16.gmra.mxu0 %v2969
      %v3172 = vpop.f32.mrf.mxu0
      %v3173 = vadd.f32 %v2846, %v3172
      %v3174 = vpop.f32.mrf.mxu0
      %v3175 = vadd.f32 %v2848, %v3174
      %3176 = vmatmul.bf16.gmra.mxu0 %v2972
      %v3177 = vpop.f32.mrf.mxu0
      %v3178 = vadd.f32 %v2850, %v3177
      %v3179 = vpop.f32.mrf.mxu0
      %v3180 = vadd.f32 %v2852, %v3179
      %3181 = vmatmul.bf16.gmra.mxu0 %v2975
      %v3182 = vpop.f32.mrf.mxu0
      %v3183 = vadd.f32 %v2854, %v3182
      %v3184 = vpop.f32.mrf.mxu0
      %v3185 = vadd.f32 %v2856, %v3184
      %3186 = vmatmul.bf16.gmra.mxu0 %v2978
      %v3187 = vpop.f32.mrf.mxu0
      %v3188 = vadd.f32 %v2858, %v3187
      %v3189 = vpop.f32.mrf.mxu0
      %v3190 = vadd.f32 %v2860, %v3189
      %3191 = vmatmul.bf16.gmra.mxu0 %v2981
      %v3192 = vpop.f32.mrf.mxu0
      %v3193 = vadd.f32 %v2862, %v3192
      %v3194 = vpop.f32.mrf.mxu0
      %v3195 = vadd.f32 %v2864, %v3194
      %3196 = vmatmul.bf16.gmra.mxu0 %v2984
      %v3197 = vpop.f32.mrf.mxu0
      %v3198 = vadd.f32 %v2866, %v3197
      %v3199 = vpop.f32.mrf.mxu0
      %v3200 = vadd.f32 %v2868, %v3199
      %3201 = vmatmul.bf16.gmra.mxu0 %v2987
      %v3202 = vpop.f32.mrf.mxu0
      %v3203 = vadd.f32 %v2870, %v3202
      %v3204 = vpop.f32.mrf.mxu0
      %v3205 = vadd.f32 %v2872, %v3204
      %3206 = vmatmul.bf16.gmra.mxu0 %v2990
      %v3207 = vpop.f32.mrf.mxu0
      %v3208 = vadd.f32 %v2874, %v3207
      %v3209 = vpop.f32.mrf.mxu0
      %v3210 = vadd.f32 %v2876, %v3209
      %3211 = vmatmul.bf16.gmra.mxu0 %v2993
      %v3212 = vpop.f32.mrf.mxu0
      %v3213 = vadd.f32 %v2878, %v3212
      %v3214 = vpop.f32.mrf.mxu0
      %v3215 = vadd.f32 %v2880, %v3214
      %3216 = vmatmul.bf16.gmra.mxu0 %v2996
      %v3217 = vpop.f32.mrf.mxu0
      %v3218 = vadd.f32 %v2882, %v3217
      %v3219 = vpop.f32.mrf.mxu0
      %v3220 = vadd.f32 %v2884, %v3219
      %3221 = vmatmul.bf16.gmra.mxu0 %v2999
      %v3222 = vpop.f32.mrf.mxu0
      %v3223 = vadd.f32 %v2886, %v3222
      %v3224 = vpop.f32.mrf.mxu0
      %v3225 = vadd.f32 %v2888, %v3224
      %3226 = vdwg.mxu0
      %v3227 = vmax.f32 %v3059, %v3148
      %3228 = vmax.xlane.f32.xlu0 %v3227
      %v3229 = vpop.xlane.xlu0 %3228
      %v3230 = vmax.f32 %v3061, %v3150
      %3231 = vmax.xlane.f32.xlu0 %v3230
      %v3232 = vpop.xlane.xlu0 %3231
      %v3233 = vmax.f32 %v3064, %v3153
      %3234 = vmax.xlane.f32.xlu0 %v3233
      %v3235 = vpop.xlane.xlu0 %3234
      %v3236 = vmax.f32 %v3066, %v3155
      %3237 = vmax.xlane.f32.xlu0 %v3236
      %v3238 = vpop.xlane.xlu0 %3237
      %v3239 = vmax.f32 %v3069, %v3158
      %3240 = vmax.xlane.f32.xlu0 %v3239
      %v3241 = vpop.xlane.xlu0 %3240
      %v3242 = vmax.f32 %v3071, %v3160
      %3243 = vmax.xlane.f32.xlu0 %v3242
      %v3244 = vpop.xlane.xlu0 %3243
      %v3245 = vmax.f32 %v3074, %v3163
      %3246 = vmax.xlane.f32.xlu0 %v3245
      %v3247 = vpop.xlane.xlu0 %3246
      %v3248 = vmax.f32 %v3076, %v3165
      %3249 = vmax.xlane.f32.xlu0 %v3248
      %v3250 = vpop.xlane.xlu0 %3249
      %v3251 = vmax.f32 %v3079, %v3168
      %3252 = vmax.xlane.f32.xlu0 %v3251
      %v3253 = vpop.xlane.xlu0 %3252
      %v3254 = vmax.f32 %v3081, %v3170
      %3255 = vmax.xlane.f32.xlu0 %v3254
      %v3256 = vpop.xlane.xlu0 %3255
      %v3257 = vmax.f32 %v3084, %v3173
      %3258 = vmax.xlane.f32.xlu0 %v3257
      %v3259 = vpop.xlane.xlu0 %3258
      %v3260 = vmax.f32 %v3086, %v3175
      %3261 = vmax.xlane.f32.xlu0 %v3260
      %v3262 = vpop.xlane.xlu0 %3261
      %v3263 = vmax.f32 %v3089, %v3178
      %3264 = vmax.xlane.f32.xlu0 %v3263
      %v3265 = vpop.xlane.xlu0 %3264
      %v3266 = vmax.f32 %v3091, %v3180
      %3267 = vmax.xlane.f32.xlu0 %v3266
      %v3268 = vpop.xlane.xlu0 %3267
      %v3269 = vmax.f32 %v3094, %v3183
      %3270 = vmax.xlane.f32.xlu0 %v3269
      %v3271 = vpop.xlane.xlu0 %3270
      %v3272 = vmax.f32 %v3096, %v3185
      %3273 = vmax.xlane.f32.xlu0 %v3272
      %v3274 = vpop.xlane.xlu0 %3273
      %v3275 = vmax.f32 %v3099, %v3188
      %3276 = vmax.xlane.f32.xlu0 %v3275
      %v3277 = vpop.xlane.xlu0 %3276
      %v3278 = vmax.f32 %v3101, %v3190
      %3279 = vmax.xlane.f32.xlu0 %v3278
      %v3280 = vpop.xlane.xlu0 %3279
      %v3281 = vmax.f32 %v3104, %v3193
      %3282 = vmax.xlane.f32.xlu0 %v3281
      %v3283 = vpop.xlane.xlu0 %3282
      %v3284 = vmax.f32 %v3106, %v3195
      %3285 = vmax.xlane.f32.xlu0 %v3284
      %v3286 = vpop.xlane.xlu0 %3285
      %v3287 = vmax.f32 %v3109, %v3198
      %3288 = vmax.xlane.f32.xlu0 %v3287
      %v3289 = vpop.xlane.xlu0 %3288
      %v3290 = vmax.f32 %v3111, %v3200
      %3291 = vmax.xlane.f32.xlu0 %v3290
      %v3292 = vpop.xlane.xlu0 %3291
      %v3293 = vmax.f32 %v3114, %v3203
      %3294 = vmax.xlane.f32.xlu0 %v3293
      %v3295 = vpop.xlane.xlu0 %3294
      %v3296 = vmax.f32 %v3116, %v3205
      %3297 = vmax.xlane.f32.xlu0 %v3296
      %v3298 = vpop.xlane.xlu0 %3297
      %v3299 = vmax.f32 %v3119, %v3208
      %3300 = vmax.xlane.f32.xlu0 %v3299
      %v3301 = vpop.xlane.xlu0 %3300
      %v3302 = vmax.f32 %v3121, %v3210
      %3303 = vmax.xlane.f32.xlu0 %v3302
      %v3304 = vpop.xlane.xlu0 %3303
      %v3305 = vmax.f32 %v3124, %v3213
      %3306 = vmax.xlane.f32.xlu0 %v3305
      %v3307 = vpop.xlane.xlu0 %3306
      %v3308 = vmax.f32 %v3126, %v3215
      %3309 = vmax.xlane.f32.xlu0 %v3308
      %v3310 = vpop.xlane.xlu0 %3309
      %v3311 = vmax.f32 %v3129, %v3218
      %3312 = vmax.xlane.f32.xlu0 %v3311
      %v3313 = vpop.xlane.xlu0 %3312
      %v3314 = vmax.f32 %v3131, %v3220
      %3315 = vmax.xlane.f32.xlu0 %v3314
      %v3316 = vpop.xlane.xlu0 %3315
      %v3317 = vmax.f32 %v3134, %v3223
      %3318 = vmax.xlane.f32.xlu0 %v3317
      %v3319 = vpop.xlane.xlu0 %3318
      %v3320 = vmax.f32 %v3136, %v3225
      %3321 = vmax.xlane.f32.xlu0 %v3320
      %v3322 = vpop.xlane.xlu0 %3321
      %v3323 = vsub.f32 %v3059, %v3229
      %v3324 = vsub.f32 %v3148, %v3229
      %v3325 = vsub.f32 %v3061, %v3232
      %v3326 = vsub.f32 %v3150, %v3232
      %v3327 = vsub.f32 %v3064, %v3235
      %v3328 = vsub.f32 %v3153, %v3235
      %v3329 = vsub.f32 %v3066, %v3238
      %v3330 = vsub.f32 %v3155, %v3238
      %v3331 = vsub.f32 %v3069, %v3241
      %v3332 = vsub.f32 %v3158, %v3241
      %v3333 = vsub.f32 %v3071, %v3244
      %v3334 = vsub.f32 %v3160, %v3244
      %v3335 = vsub.f32 %v3074, %v3247
      %v3336 = vsub.f32 %v3163, %v3247
      %v3337 = vsub.f32 %v3076, %v3250
      %v3338 = vsub.f32 %v3165, %v3250
      %v3339 = vsub.f32 %v3079, %v3253
      %v3340 = vsub.f32 %v3168, %v3253
      %v3341 = vsub.f32 %v3081, %v3256
      %v3342 = vsub.f32 %v3170, %v3256
      %v3343 = vsub.f32 %v3084, %v3259
      %v3344 = vsub.f32 %v3173, %v3259
      %v3345 = vsub.f32 %v3086, %v3262
      %v3346 = vsub.f32 %v3175, %v3262
      %v3347 = vsub.f32 %v3089, %v3265
      %v3348 = vsub.f32 %v3178, %v3265
      %v3349 = vsub.f32 %v3091, %v3268
      %v3350 = vsub.f32 %v3180, %v3268
      %v3351 = vsub.f32 %v3094, %v3271
      %v3352 = vsub.f32 %v3183, %v3271
      %v3353 = vsub.f32 %v3096, %v3274
      %v3354 = vsub.f32 %v3185, %v3274
      %v3355 = vsub.f32 %v3099, %v3277
      %v3356 = vsub.f32 %v3188, %v3277
      %v3357 = vsub.f32 %v3101, %v3280
      %v3358 = vsub.f32 %v3190, %v3280
      %v3359 = vsub.f32 %v3104, %v3283
      %v3360 = vsub.f32 %v3193, %v3283
      %v3361 = vsub.f32 %v3106, %v3286
      %v3362 = vsub.f32 %v3195, %v3286
      %v3363 = vsub.f32 %v3109, %v3289
      %v3364 = vsub.f32 %v3198, %v3289
      %v3365 = vsub.f32 %v3111, %v3292
      %v3366 = vsub.f32 %v3200, %v3292
      %v3367 = vsub.f32 %v3114, %v3295
      %v3368 = vsub.f32 %v3203, %v3295
      %v3369 = vsub.f32 %v3116, %v3298
      %v3370 = vsub.f32 %v3205, %v3298
      %v3371 = vsub.f32 %v3119, %v3301
      %v3372 = vsub.f32 %v3208, %v3301
      %v3373 = vsub.f32 %v3121, %v3304
      %v3374 = vsub.f32 %v3210, %v3304
      %v3375 = vsub.f32 %v3124, %v3307
      %v3376 = vsub.f32 %v3213, %v3307
      %v3377 = vsub.f32 %v3126, %v3310
      %v3378 = vsub.f32 %v3215, %v3310
      %v3379 = vsub.f32 %v3129, %v3313
      %v3380 = vsub.f32 %v3218, %v3313
      %v3381 = vsub.f32 %v3131, %v3316
      %v3382 = vsub.f32 %v3220, %v3316
      %v3383 = vsub.f32 %v3134, %v3319
      %v3384 = vsub.f32 %v3223, %v3319
      %v3385 = vsub.f32 %v3136, %v3322
      %v3386 = vsub.f32 %v3225, %v3322
      %v3387 = vmul.f32 %v3323, 1.442695
      %v3388 = vpow.pop %v3387
      %v3389 = vmul.f32 %v3324, 1.442695
      %v3390 = vpow.pop %v3389
      %v3391 = vmul.f32 %v3325, 1.442695
      %v3392 = vpow.pop %v3391
      %v3393 = vmul.f32 %v3326, 1.442695
      %v3394 = vpow.pop %v3393
      %v3395 = vmul.f32 %v3327, 1.442695
      %v3396 = vpow.pop %v3395
      %v3397 = vmul.f32 %v3328, 1.442695
      %v3398 = vpow.pop %v3397
      %v3399 = vmul.f32 %v3329, 1.442695
      %v3400 = vpow.pop %v3399
      %v3401 = vmul.f32 %v3330, 1.442695
      %v3402 = vpow.pop %v3401
      %v3403 = vmul.f32 %v3331, 1.442695
      %v3404 = vpow.pop %v3403
      %v3405 = vmul.f32 %v3332, 1.442695
      %v3406 = vpow.pop %v3405
      %v3407 = vmul.f32 %v3333, 1.442695
      %v3408 = vpow.pop %v3407
      %v3409 = vmul.f32 %v3334, 1.442695
      %v3410 = vpow.pop %v3409
      %v3411 = vmul.f32 %v3335, 1.442695
      %v3412 = vpow.pop %v3411
      %v3413 = vmul.f32 %v3336, 1.442695
      %v3414 = vpow.pop %v3413
      %v3415 = vmul.f32 %v3337, 1.442695
      %v3416 = vpow.pop %v3415
      %v3417 = vmul.f32 %v3338, 1.442695
      %v3418 = vpow.pop %v3417
      %v3419 = vmul.f32 %v3339, 1.442695
      %v3420 = vpow.pop %v3419
      %v3421 = vmul.f32 %v3340, 1.442695
      %v3422 = vpow.pop %v3421
      %v3423 = vmul.f32 %v3341, 1.442695
      %v3424 = vpow.pop %v3423
      %v3425 = vmul.f32 %v3342, 1.442695
      %v3426 = vpow.pop %v3425
      %v3427 = vmul.f32 %v3343, 1.442695
      %v3428 = vpow.pop %v3427
      %v3429 = vmul.f32 %v3344, 1.442695
      %v3430 = vpow.pop %v3429
      %v3431 = vmul.f32 %v3345, 1.442695
      %v3432 = vpow.pop %v3431
      %v3433 = vmul.f32 %v3346, 1.442695
      %v3434 = vpow.pop %v3433
      %v3435 = vmul.f32 %v3347, 1.442695
      %v3436 = vpow.pop %v3435
      %v3437 = vmul.f32 %v3348, 1.442695
      %v3438 = vpow.pop %v3437
      %v3439 = vmul.f32 %v3349, 1.442695
      %v3440 = vpow.pop %v3439
      %v3441 = vmul.f32 %v3350, 1.442695
      %v3442 = vpow.pop %v3441
      %v3443 = vmul.f32 %v3351, 1.442695
      %v3444 = vpow.pop %v3443
      %v3445 = vmul.f32 %v3352, 1.442695
      %v3446 = vpow.pop %v3445
      %v3447 = vmul.f32 %v3353, 1.442695
      %v3448 = vpow.pop %v3447
      %v3449 = vmul.f32 %v3354, 1.442695
      %v3450 = vpow.pop %v3449
      %v3451 = vmul.f32 %v3355, 1.442695
      %v3452 = vpow.pop %v3451
      %v3453 = vmul.f32 %v3356, 1.442695
      %v3454 = vpow.pop %v3453
      %v3455 = vmul.f32 %v3357, 1.442695
      %v3456 = vpow.pop %v3455
      %v3457 = vmul.f32 %v3358, 1.442695
      %v3458 = vpow.pop %v3457
      %v3459 = vmul.f32 %v3359, 1.442695
      %v3460 = vpow.pop %v3459
      %v3461 = vmul.f32 %v3360, 1.442695
      %v3462 = vpow.pop %v3461
      %v3463 = vmul.f32 %v3361, 1.442695
      %v3464 = vpow.pop %v3463
      %v3465 = vmul.f32 %v3362, 1.442695
      %v3466 = vpow.pop %v3465
      %v3467 = vmul.f32 %v3363, 1.442695
      %v3468 = vpow.pop %v3467
      %v3469 = vmul.f32 %v3364, 1.442695
      %v3470 = vpow.pop %v3469
      %v3471 = vmul.f32 %v3365, 1.442695
      %v3472 = vpow.pop %v3471
      %v3473 = vmul.f32 %v3366, 1.442695
      %v3474 = vpow.pop %v3473
      %v3475 = vmul.f32 %v3367, 1.442695
      %v3476 = vpow.pop %v3475
      %v3477 = vmul.f32 %v3368, 1.442695
      %v3478 = vpow.pop %v3477
      %v3479 = vmul.f32 %v3369, 1.442695
      %v3480 = vpow.pop %v3479
      %v3481 = vmul.f32 %v3370, 1.442695
      %v3482 = vpow.pop %v3481
      %v3483 = vmul.f32 %v3371, 1.442695
      %v3484 = vpow.pop %v3483
      %v3485 = vmul.f32 %v3372, 1.442695
      %v3486 = vpow.pop %v3485
      %v3487 = vmul.f32 %v3373, 1.442695
      %v3488 = vpow.pop %v3487
      %v3489 = vmul.f32 %v3374, 1.442695
      %v3490 = vpow.pop %v3489
      %v3491 = vmul.f32 %v3375, 1.442695
      %v3492 = vpow.pop %v3491
      %v3493 = vmul.f32 %v3376, 1.442695
      %v3494 = vpow.pop %v3493
      %v3495 = vmul.f32 %v3377, 1.442695
      %v3496 = vpow.pop %v3495
      %v3497 = vmul.f32 %v3378, 1.442695
      %v3498 = vpow.pop %v3497
      %v3499 = vmul.f32 %v3379, 1.442695
      %v3500 = vpow.pop %v3499
      %v3501 = vmul.f32 %v3380, 1.442695
      %v3502 = vpow.pop %v3501
      %v3503 = vmul.f32 %v3381, 1.442695
      %v3504 = vpow.pop %v3503
      %v3505 = vmul.f32 %v3382, 1.442695
      %v3506 = vpow.pop %v3505
      %v3507 = vmul.f32 %v3383, 1.442695
      %v3508 = vpow.pop %v3507
      %v3509 = vmul.f32 %v3384, 1.442695
      %v3510 = vpow.pop %v3509
      %v3511 = vmul.f32 %v3385, 1.442695
      %v3512 = vpow.pop %v3511
      %v3513 = vmul.f32 %v3386, 1.442695
      %v3514 = vpow.pop %v3513
      %v3515 = vadd.f32 %v3388, %v3390
      %3516 = vadd.xlane.f32.xlu0 %v3515
      %v3517 = vpop.xlane.xlu0 %3516
      %v3518 = vadd.f32 %v3392, %v3394
      %3519 = vadd.xlane.f32.xlu0 %v3518
      %v3520 = vpop.xlane.xlu0 %3519
      %v3521 = vadd.f32 %v3396, %v3398
      %3522 = vadd.xlane.f32.xlu0 %v3521
      %v3523 = vpop.xlane.xlu0 %3522
      %v3524 = vadd.f32 %v3400, %v3402
      %3525 = vadd.xlane.f32.xlu0 %v3524
      %v3526 = vpop.xlane.xlu0 %3525
      %v3527 = vadd.f32 %v3404, %v3406
      %3528 = vadd.xlane.f32.xlu0 %v3527
      %v3529 = vpop.xlane.xlu0 %3528
      %v3530 = vadd.f32 %v3408, %v3410
      %3531 = vadd.xlane.f32.xlu0 %v3530
      %v3532 = vpop.xlane.xlu0 %3531
      %v3533 = vadd.f32 %v3412, %v3414
      %3534 = vadd.xlane.f32.xlu0 %v3533
      %v3535 = vpop.xlane.xlu0 %3534
      %v3536 = vadd.f32 %v3416, %v3418
      %3537 = vadd.xlane.f32.xlu0 %v3536
      %v3538 = vpop.xlane.xlu0 %3537
      %v3539 = vadd.f32 %v3420, %v3422
      %3540 = vadd.xlane.f32.xlu0 %v3539
      %v3541 = vpop.xlane.xlu0 %3540
      %v3542 = vadd.f32 %v3424, %v3426
      %3543 = vadd.xlane.f32.xlu0 %v3542
      %v3544 = vpop.xlane.xlu0 %3543
      %v3545 = vadd.f32 %v3428, %v3430
      %3546 = vadd.xlane.f32.xlu0 %v3545
      %v3547 = vpop.xlane.xlu0 %3546
      %v3548 = vadd.f32 %v3432, %v3434
      %3549 = vadd.xlane.f32.xlu0 %v3548
      %v3550 = vpop.xlane.xlu0 %3549
      %v3551 = vadd.f32 %v3436, %v3438
      %3552 = vadd.xlane.f32.xlu0 %v3551
      %v3553 = vpop.xlane.xlu0 %3552
      %v3554 = vadd.f32 %v3440, %v3442
      %3555 = vadd.xlane.f32.xlu0 %v3554
      %v3556 = vpop.xlane.xlu0 %3555
      %v3557 = vadd.f32 %v3444, %v3446
      %3558 = vadd.xlane.f32.xlu0 %v3557
      %v3559 = vpop.xlane.xlu0 %3558
      %v3560 = vadd.f32 %v3448, %v3450
      %3561 = vadd.xlane.f32.xlu0 %v3560
      %v3562 = vpop.xlane.xlu0 %3561
      %v3563 = vadd.f32 %v3452, %v3454
      %3564 = vadd.xlane.f32.xlu0 %v3563
      %v3565 = vpop.xlane.xlu0 %3564
      %v3566 = vadd.f32 %v3456, %v3458
      %3567 = vadd.xlane.f32.xlu0 %v3566
      %v3568 = vpop.xlane.xlu0 %3567
      %v3569 = vadd.f32 %v3460, %v3462
      %3570 = vadd.xlane.f32.xlu0 %v3569
      %v3571 = vpop.xlane.xlu0 %3570
      %v3572 = vadd.f32 %v3464, %v3466
      %3573 = vadd.xlane.f32.xlu0 %v3572
      %v3574 = vpop.xlane.xlu0 %3573
      %v3575 = vadd.f32 %v3468, %v3470
      %3576 = vadd.xlane.f32.xlu0 %v3575
      %v3577 = vpop.xlane.xlu0 %3576
      %v3578 = vadd.f32 %v3472, %v3474
      %3579 = vadd.xlane.f32.xlu0 %v3578
      %v3580 = vpop.xlane.xlu0 %3579
      %v3581 = vadd.f32 %v3476, %v3478
      %3582 = vadd.xlane.f32.xlu0 %v3581
      %v3583 = vpop.xlane.xlu0 %3582
      %v3584 = vadd.f32 %v3480, %v3482
      %3585 = vadd.xlane.f32.xlu0 %v3584
      %v3586 = vpop.xlane.xlu0 %3585
      %v3587 = vadd.f32 %v3484, %v3486
      %3588 = vadd.xlane.f32.xlu0 %v3587
      %v3589 = vpop.xlane.xlu0 %3588
      %v3590 = vadd.f32 %v3488, %v3490
      %3591 = vadd.xlane.f32.xlu0 %v3590
      %v3592 = vpop.xlane.xlu0 %3591
      %v3593 = vadd.f32 %v3492, %v3494
      %3594 = vadd.xlane.f32.xlu0 %v3593
      %v3595 = vpop.xlane.xlu0 %3594
      %v3596 = vadd.f32 %v3496, %v3498
      %3597 = vadd.xlane.f32.xlu0 %v3596
      %v3598 = vpop.xlane.xlu0 %3597
      %v3599 = vadd.f32 %v3500, %v3502
      %3600 = vadd.xlane.f32.xlu0 %v3599
      %v3601 = vpop.xlane.xlu0 %3600
      %v3602 = vadd.f32 %v3504, %v3506
      %3603 = vadd.xlane.f32.xlu0 %v3602
      %v3604 = vpop.xlane.xlu0 %3603
      %v3605 = vadd.f32 %v3508, %v3510
      %3606 = vadd.xlane.f32.xlu0 %v3605
      %v3607 = vpop.xlane.xlu0 %3606
      %v3608 = vadd.f32 %v3512, %v3514
      %3609 = vadd.xlane.f32.xlu0 %v3608
      %v3610 = vpop.xlane.xlu0 %3609
      %v3611 = vrcp.pop %v3517
      %v3612 = vrcp.pop %v3520
      %v3613 = vrcp.pop %v3523
      %v3614 = vrcp.pop %v3526
      %v3615 = vrcp.pop %v3529
      %v3616 = vrcp.pop %v3532
      %v3617 = vrcp.pop %v3535
      %v3618 = vrcp.pop %v3538
      %v3619 = vrcp.pop %v3541
      %v3620 = vrcp.pop %v3544
      %v3621 = vrcp.pop %v3547
      %v3622 = vrcp.pop %v3550
      %v3623 = vrcp.pop %v3553
      %v3624 = vrcp.pop %v3556
      %v3625 = vrcp.pop %v3559
      %v3626 = vrcp.pop %v3562
      %v3627 = vrcp.pop %v3565
      %v3628 = vrcp.pop %v3568
      %v3629 = vrcp.pop %v3571
      %v3630 = vrcp.pop %v3574
      %v3631 = vrcp.pop %v3577
      %v3632 = vrcp.pop %v3580
      %v3633 = vrcp.pop %v3583
      %v3634 = vrcp.pop %v3586
      %v3635 = vrcp.pop %v3589
      %v3636 = vrcp.pop %v3592
      %v3637 = vrcp.pop %v3595
      %v3638 = vrcp.pop %v3598
      %v3639 = vrcp.pop %v3601
      %v3640 = vrcp.pop %v3604
      %v3641 = vrcp.pop %v3607
      %v3642 = vrcp.pop %v3610
      %v3643 = vmul.f32 %v3388, %v3611
      %v3644 = vmul.f32 %v3390, %v3611
      %v3645 = vmul.f32 %v3392, %v3612
      %v3646 = vmul.f32 %v3394, %v3612
      %v3647 = vmul.f32 %v3396, %v3613
      %v3648 = vmul.f32 %v3398, %v3613
      %v3649 = vmul.f32 %v3400, %v3614
      %v3650 = vmul.f32 %v3402, %v3614
      %v3651 = vmul.f32 %v3404, %v3615
      %v3652 = vmul.f32 %v3406, %v3615
      %v3653 = vmul.f32 %v3408, %v3616
      %v3654 = vmul.f32 %v3410, %v3616
      %v3655 = vmul.f32 %v3412, %v3617
      %v3656 = vmul.f32 %v3414, %v3617
      %v3657 = vmul.f32 %v3416, %v3618
      %v3658 = vmul.f32 %v3418, %v3618
      %v3659 = vmul.f32 %v3420, %v3619
      %v3660 = vmul.f32 %v3422, %v3619
      %v3661 = vmul.f32 %v3424, %v3620
      %v3662 = vmul.f32 %v3426, %v3620
      %v3663 = vmul.f32 %v3428, %v3621
      %v3664 = vmul.f32 %v3430, %v3621
      %v3665 = vmul.f32 %v3432, %v3622
      %v3666 = vmul.f32 %v3434, %v3622
      %v3667 = vmul.f32 %v3436, %v3623
      %v3668 = vmul.f32 %v3438, %v3623
      %v3669 = vmul.f32 %v3440, %v3624
      %v3670 = vmul.f32 %v3442, %v3624
      %v3671 = vmul.f32 %v3444, %v3625
      %v3672 = vmul.f32 %v3446, %v3625
      %v3673 = vmul.f32 %v3448, %v3626
      %v3674 = vmul.f32 %v3450, %v3626
      %v3675 = vmul.f32 %v3452, %v3627
      %v3676 = vmul.f32 %v3454, %v3627
      %v3677 = vmul.f32 %v3456, %v3628
      %v3678 = vmul.f32 %v3458, %v3628
      %v3679 = vmul.f32 %v3460, %v3629
      %v3680 = vmul.f32 %v3462, %v3629
      %v3681 = vmul.f32 %v3464, %v3630
      %v3682 = vmul.f32 %v3466, %v3630
      %v3683 = vmul.f32 %v3468, %v3631
      %v3684 = vmul.f32 %v3470, %v3631
      %v3685 = vmul.f32 %v3472, %v3632
      %v3686 = vmul.f32 %v3474, %v3632
      %v3687 = vmul.f32 %v3476, %v3633
      %v3688 = vmul.f32 %v3478, %v3633
      %v3689 = vmul.f32 %v3480, %v3634
      %v3690 = vmul.f32 %v3482, %v3634
      %v3691 = vmul.f32 %v3484, %v3635
      %v3692 = vmul.f32 %v3486, %v3635
      %v3693 = vmul.f32 %v3488, %v3636
      %v3694 = vmul.f32 %v3490, %v3636
      %v3695 = vmul.f32 %v3492, %v3637
      %v3696 = vmul.f32 %v3494, %v3637
      %v3697 = vmul.f32 %v3496, %v3638
      %v3698 = vmul.f32 %v3498, %v3638
      %v3699 = vmul.f32 %v3500, %v3639
      %v3700 = vmul.f32 %v3502, %v3639
      %v3701 = vmul.f32 %v3504, %v3640
      %v3702 = vmul.f32 %v3506, %v3640
      %v3703 = vmul.f32 %v3508, %v3641
      %v3704 = vmul.f32 %v3510, %v3641
      %v3705 = vmul.f32 %v3512, %v3642
      %v3706 = vmul.f32 %v3514, %v3642
      %v3707 = vpack.c.bf16 %v3645, %v3643
      %v3708 = vpack.c.bf16 %v3646, %v3644
      %v3709 = vpack.c.bf16 %v3649, %v3647
      %v3710 = vpack.c.bf16 %v3650, %v3648
      %v3711 = vpack.c.bf16 %v3653, %v3651
      %v3712 = vpack.c.bf16 %v3654, %v3652
      %v3713 = vpack.c.bf16 %v3657, %v3655
      %v3714 = vpack.c.bf16 %v3658, %v3656
      %v3715 = vpack.c.bf16 %v3661, %v3659
      %v3716 = vpack.c.bf16 %v3662, %v3660
      %v3717 = vpack.c.bf16 %v3665, %v3663
      %v3718 = vpack.c.bf16 %v3666, %v3664
      %v3719 = vpack.c.bf16 %v3669, %v3667
      %v3720 = vpack.c.bf16 %v3670, %v3668
      %v3721 = vpack.c.bf16 %v3673, %v3671
      %v3722 = vpack.c.bf16 %v3674, %v3672
      %v3723 = vpack.c.bf16 %v3677, %v3675
      %v3724 = vpack.c.bf16 %v3678, %v3676
      %v3725 = vpack.c.bf16 %v3681, %v3679
      %v3726 = vpack.c.bf16 %v3682, %v3680
      %v3727 = vpack.c.bf16 %v3685, %v3683
      %v3728 = vpack.c.bf16 %v3686, %v3684
      %v3729 = vpack.c.bf16 %v3689, %v3687
      %v3730 = vpack.c.bf16 %v3690, %v3688
      %v3731 = vpack.c.bf16 %v3693, %v3691
      %v3732 = vpack.c.bf16 %v3694, %v3692
      %v3733 = vpack.c.bf16 %v3697, %v3695
      %v3734 = vpack.c.bf16 %v3698, %v3696
      %v3735 = vpack.c.bf16 %v3701, %v3699
      %v3736 = vpack.c.bf16 %v3702, %v3700
      %v3737 = vpack.c.bf16 %v3705, %v3703
      %v3738 = vpack.c.bf16 %v3706, %v3704
      %3739 = vrot.lane.b32.xlu0 %v1473, 112
      %v3740 = vpop.permute.xlu0 %3739
      %3741 = vrot.lane.b32.xlu0 %v1474, 112
      %v3742 = vpop.permute.xlu0 %3741
      %3743 = vrot.lane.b32.xlu0 %v1475, 112
      %v3744 = vpop.permute.xlu0 %3743
      %3745 = vrot.lane.b32.xlu0 %v1476, 112
      %v3746 = vpop.permute.xlu0 %3745
      %3747 = vrot.lane.b32.xlu0 %v1477, 112
      %v3748 = vpop.permute.xlu0 %3747
      %3749 = vrot.lane.b32.xlu0 %v1478, 112
      %v3750 = vpop.permute.xlu0 %3749
      %3751 = vrot.lane.b32.xlu0 %v1479, 112
      %v3752 = vpop.permute.xlu0 %3751
      %3753 = vrot.lane.b32.xlu0 %v1480, 112
      %v3754 = vpop.permute.xlu0 %3753
      %3755 = vrot.lane.b32.xlu0 %v1481, 112
      %v3756 = vpop.permute.xlu0 %3755
      %3757 = vrot.lane.b32.xlu0 %v1482, 112
      %v3758 = vpop.permute.xlu0 %3757
      %3759 = vrot.lane.b32.xlu0 %v1483, 112
      %v3760 = vpop.permute.xlu0 %3759
      %3761 = vrot.lane.b32.xlu0 %v1484, 112
      %v3762 = vpop.permute.xlu0 %3761
      %3763 = vrot.lane.b32.xlu0 %v1485, 112
      %v3764 = vpop.permute.xlu0 %3763
      %3765 = vrot.lane.b32.xlu0 %v1486, 112
      %v3766 = vpop.permute.xlu0 %3765
      %3767 = vrot.lane.b32.xlu0 %v1487, 112
      %v3768 = vpop.permute.xlu0 %3767
      %3769 = vrot.lane.b32.xlu0 %v1488, 112
      %v3770 = vpop.permute.xlu0 %3769
      %3787 = vmatpush.bf16.msra.mxu0 %v3754
      %3788 = vmatpush.bf16.msra.mxu0 %v3752
      %3789 = vmatpush.bf16.msra.mxu0 %v3750
      %3790 = vmatpush.bf16.msra.mxu0 %v3748
      %3791 = vmatpush.bf16.msra.mxu0 %v3746
      %3792 = vmatpush.bf16.msra.mxu0 %v3744
      %3793 = vmatpush.bf16.msra.mxu0 %v3742
      %3794 = vmatpush.bf16.msra.mxu0 %v3740
      %3795 = vmatmul.bf16.gmra.mxu0 %v3707
      %v3796 = vpop.f32.mrf.mxu0
      %v3797 = vadd.f32 0.0, %v3796
      %v3798 = vpop.f32.mrf.mxu0
      %v3799 = vadd.f32 0.0, %v3798
      %3800 = vmatmul.bf16.gmra.mxu0 %v3709
      %v3801 = vpop.f32.mrf.mxu0
      %v3802 = vadd.f32 0.0, %v3801
      %v3803 = vpop.f32.mrf.mxu0
      %v3804 = vadd.f32 0.0, %v3803
      %3805 = vmatmul.bf16.gmra.mxu0 %v3711
      %v3806 = vpop.f32.mrf.mxu0
      %v3807 = vadd.f32 0.0, %v3806
      %v3808 = vpop.f32.mrf.mxu0
      %v3809 = vadd.f32 0.0, %v3808
      %3810 = vmatmul.bf16.gmra.mxu0 %v3713
      %v3811 = vpop.f32.mrf.mxu0
      %v3812 = vadd.f32 0.0, %v3811
      %v3813 = vpop.f32.mrf.mxu0
      %v3814 = vadd.f32 0.0, %v3813
      %3815 = vmatmul.bf16.gmra.mxu0 %v3715
      %v3816 = vpop.f32.mrf.mxu0
      %v3817 = vadd.f32 0.0, %v3816
      %v3818 = vpop.f32.mrf.mxu0
      %v3819 = vadd.f32 0.0, %v3818
      %3820 = vmatmul.bf16.gmra.mxu0 %v3717
      %v3821 = vpop.f32.mrf.mxu0
      %v3822 = vadd.f32 0.0, %v3821
      %v3823 = vpop.f32.mrf.mxu0
      %v3824 = vadd.f32 0.0, %v3823
      %3825 = vmatmul.bf16.gmra.mxu0 %v3719
      %v3826 = vpop.f32.mrf.mxu0
      %v3827 = vadd.f32 0.0, %v3826
      %v3828 = vpop.f32.mrf.mxu0
      %v3829 = vadd.f32 0.0, %v3828
      %3830 = vmatmul.bf16.gmra.mxu0 %v3721
      %v3831 = vpop.f32.mrf.mxu0
      %v3832 = vadd.f32 0.0, %v3831
      %v3833 = vpop.f32.mrf.mxu0
      %v3834 = vadd.f32 0.0, %v3833
      %3835 = vmatmul.bf16.gmra.mxu0 %v3723
      %v3836 = vpop.f32.mrf.mxu0
      %v3837 = vadd.f32 0.0, %v3836
      %v3838 = vpop.f32.mrf.mxu0
      %v3839 = vadd.f32 0.0, %v3838
      %3840 = vmatmul.bf16.gmra.mxu0 %v3725
      %v3841 = vpop.f32.mrf.mxu0
      %v3842 = vadd.f32 0.0, %v3841
      %v3843 = vpop.f32.mrf.mxu0
      %v3844 = vadd.f32 0.0, %v3843
      %3845 = vmatmul.bf16.gmra.mxu0 %v3727
      %v3846 = vpop.f32.mrf.mxu0
      %v3847 = vadd.f32 0.0, %v3846
      %v3848 = vpop.f32.mrf.mxu0
      %v3849 = vadd.f32 0.0, %v3848
      %3850 = vmatmul.bf16.gmra.mxu0 %v3729
      %v3851 = vpop.f32.mrf.mxu0
      %v3852 = vadd.f32 0.0, %v3851
      %v3853 = vpop.f32.mrf.mxu0
      %v3854 = vadd.f32 0.0, %v3853
      %3855 = vmatmul.bf16.gmra.mxu0 %v3731
      %v3856 = vpop.f32.mrf.mxu0
      %v3857 = vadd.f32 0.0, %v3856
      %v3858 = vpop.f32.mrf.mxu0
      %v3859 = vadd.f32 0.0, %v3858
      %3860 = vmatmul.bf16.gmra.mxu0 %v3733
      %v3861 = vpop.f32.mrf.mxu0
      %v3862 = vadd.f32 0.0, %v3861
      %v3863 = vpop.f32.mrf.mxu0
      %v3864 = vadd.f32 0.0, %v3863
      %3865 = vmatmul.bf16.gmra.mxu0 %v3735
      %v3866 = vpop.f32.mrf.mxu0
      %v3867 = vadd.f32 0.0, %v3866
      %v3868 = vpop.f32.mrf.mxu0
      %v3869 = vadd.f32 0.0, %v3868
      %3870 = vmatmul.bf16.gmra.mxu0 %v3737
      %v3871 = vpop.f32.mrf.mxu0
      %v3872 = vadd.f32 0.0, %v3871
      %v3873 = vpop.f32.mrf.mxu0
      %v3874 = vadd.f32 0.0, %v3873
      %3875 = vdwg.mxu0
      %3876 = vmatpush.bf16.msra.mxu0 %v3770
      %3877 = vmatpush.bf16.msra.mxu0 %v3768
      %3878 = vmatpush.bf16.msra.mxu0 %v3766
      %3879 = vmatpush.bf16.msra.mxu0 %v3764
      %3880 = vmatpush.bf16.msra.mxu0 %v3762
      %3881 = vmatpush.bf16.msra.mxu0 %v3760
      %3882 = vmatpush.bf16.msra.mxu0 %v3758
      %3883 = vmatpush.bf16.msra.mxu0 %v3756
      %3884 = vmatmul.bf16.gmra.mxu0 %v3708
      %v3885 = vpop.f32.mrf.mxu0
      %v3886 = vadd.f32 %v3797, %v3885
      %v3887 = vpop.f32.mrf.mxu0
      %v3888 = vadd.f32 %v3799, %v3887
      %3889 = vmatmul.bf16.gmra.mxu0 %v3710
      %v3890 = vpop.f32.mrf.mxu0
      %v3891 = vadd.f32 %v3802, %v3890
      %v3892 = vpop.f32.mrf.mxu0
      %v3893 = vadd.f32 %v3804, %v3892
      %3894 = vmatmul.bf16.gmra.mxu0 %v3712
      %v3895 = vpop.f32.mrf.mxu0
      %v3896 = vadd.f32 %v3807, %v3895
      %v3897 = vpop.f32.mrf.mxu0
      %v3898 = vadd.f32 %v3809, %v3897
      %3899 = vmatmul.bf16.gmra.mxu0 %v3714
      %v3900 = vpop.f32.mrf.mxu0
      %v3901 = vadd.f32 %v3812, %v3900
      %v3902 = vpop.f32.mrf.mxu0
      %v3903 = vadd.f32 %v3814, %v3902
      %3904 = vmatmul.bf16.gmra.mxu0 %v3716
      %v3905 = vpop.f32.mrf.mxu0
      %v3906 = vadd.f32 %v3817, %v3905
      %v3907 = vpop.f32.mrf.mxu0
      %v3908 = vadd.f32 %v3819, %v3907
      %3909 = vmatmul.bf16.gmra.mxu0 %v3718
      %v3910 = vpop.f32.mrf.mxu0
      %v3911 = vadd.f32 %v3822, %v3910
      %v3912 = vpop.f32.mrf.mxu0
      %v3913 = vadd.f32 %v3824, %v3912
      %3914 = vmatmul.bf16.gmra.mxu0 %v3720
      %v3915 = vpop.f32.mrf.mxu0
      %v3916 = vadd.f32 %v3827, %v3915
      %v3917 = vpop.f32.mrf.mxu0
      %v3918 = vadd.f32 %v3829, %v3917
      %3919 = vmatmul.bf16.gmra.mxu0 %v3722
      %v3920 = vpop.f32.mrf.mxu0
      %v3921 = vadd.f32 %v3832, %v3920
      %v3922 = vpop.f32.mrf.mxu0
      %v3923 = vadd.f32 %v3834, %v3922
      %3924 = vmatmul.bf16.gmra.mxu0 %v3724
      %v3925 = vpop.f32.mrf.mxu0
      %v3926 = vadd.f32 %v3837, %v3925
      %v3927 = vpop.f32.mrf.mxu0
      %v3928 = vadd.f32 %v3839, %v3927
      %3929 = vmatmul.bf16.gmra.mxu0 %v3726
      %v3930 = vpop.f32.mrf.mxu0
      %v3931 = vadd.f32 %v3842, %v3930
      %v3932 = vpop.f32.mrf.mxu0
      %v3933 = vadd.f32 %v3844, %v3932
      %3934 = vmatmul.bf16.gmra.mxu0 %v3728
      %v3935 = vpop.f32.mrf.mxu0
      %v3936 = vadd.f32 %v3847, %v3935
      %v3937 = vpop.f32.mrf.mxu0
      %v3938 = vadd.f32 %v3849, %v3937
      %3939 = vmatmul.bf16.gmra.mxu0 %v3730
      %v3940 = vpop.f32.mrf.mxu0
      %v3941 = vadd.f32 %v3852, %v3940
      %v3942 = vpop.f32.mrf.mxu0
      %v3943 = vadd.f32 %v3854, %v3942
      %3944 = vmatmul.bf16.gmra.mxu0 %v3732
      %v3945 = vpop.f32.mrf.mxu0
      %v3946 = vadd.f32 %v3857, %v3945
      %v3947 = vpop.f32.mrf.mxu0
      %v3948 = vadd.f32 %v3859, %v3947
      %3949 = vmatmul.bf16.gmra.mxu0 %v3734
      %v3950 = vpop.f32.mrf.mxu0
      %v3951 = vadd.f32 %v3862, %v3950
      %v3952 = vpop.f32.mrf.mxu0
      %v3953 = vadd.f32 %v3864, %v3952
      %3954 = vmatmul.bf16.gmra.mxu0 %v3736
      %v3955 = vpop.f32.mrf.mxu0
      %v3956 = vadd.f32 %v3867, %v3955
      %v3957 = vpop.f32.mrf.mxu0
      %v3958 = vadd.f32 %v3869, %v3957
      %3959 = vmatmul.bf16.gmra.mxu0 %v3738
      %v3960 = vpop.f32.mrf.mxu0
      %v3961 = vadd.f32 %v3872, %v3960
      %v3962 = vpop.f32.mrf.mxu0
      %v3963 = vadd.f32 %v3874, %v3962
      %3964 = vdwg.mxu0
      %s3965 = scalar_lea.vmem %s290, 1536
      %v3966 = vld [vmem:[%s3965] sm:$0xff]
      %v3967 = vld [vmem:[%s3965 + $0x8] sm:$0xff]
      %v3968 = vld [vmem:[%s3965 + $0x10] sm:$0xff]
      %v3969 = vld [vmem:[%s3965 + $0x18] sm:$0xff]
      %v3970 = vld [vmem:[%s3965 + $0x20] sm:$0xff]
      %v3971 = vld [vmem:[%s3965 + $0x28] sm:$0xff]
      %v3972 = vld [vmem:[%s3965 + $0x30] sm:$0xff]
      %v3973 = vld [vmem:[%s3965 + $0x38] sm:$0xff]
      %v3974 = vld [vmem:[%s3965 + $0x40] sm:$0xff]
      %v3975 = vld [vmem:[%s3965 + $0x48] sm:$0xff]
      %v3976 = vld [vmem:[%s3965 + $0x50] sm:$0xff]
      %v3977 = vld [vmem:[%s3965 + $0x58] sm:$0xff]
      %v3978 = vld [vmem:[%s3965 + $0x60] sm:$0xff]
      %v3979 = vld [vmem:[%s3965 + $0x68] sm:$0xff]
      %v3980 = vld [vmem:[%s3965 + $0x70] sm:$0xff]
      %v3981 = vld [vmem:[%s3965 + $0x78] sm:$0xff]
      %v3982 = vld [vmem:[%s3965 + $0x80] sm:$0xff]
      %v3983 = vld [vmem:[%s3965 + $0x88] sm:$0xff]
      %v3984 = vld [vmem:[%s3965 + $0x90] sm:$0xff]
      %v3985 = vld [vmem:[%s3965 + $0x98] sm:$0xff]
      %v3986 = vld [vmem:[%s3965 + $0xa0] sm:$0xff]
      %v3987 = vld [vmem:[%s3965 + $0xa8] sm:$0xff]
      %v3988 = vld [vmem:[%s3965 + $0xb0] sm:$0xff]
      %v3989 = vld [vmem:[%s3965 + $0xb8] sm:$0xff]
      %v3990 = vld [vmem:[%s3965 + $0xc0] sm:$0xff]
      %v3991 = vld [vmem:[%s3965 + $0xc8] sm:$0xff]
      %v3992 = vld [vmem:[%s3965 + $0xd0] sm:$0xff]
      %v3993 = vld [vmem:[%s3965 + $0xd8] sm:$0xff]
      %v3994 = vld [vmem:[%s3965 + $0xe0] sm:$0xff]
      %v3995 = vld [vmem:[%s3965 + $0xe8] sm:$0xff]
      %v3996 = vld [vmem:[%s3965 + $0xf0] sm:$0xff]
      %v3997 = vld [vmem:[%s3965 + $0xf8] sm:$0xff]
      %v3998 = vld [vmem:[%s3965 + $0x100] sm:$0xff]
      %v3999 = vld [vmem:[%s3965 + $0x108] sm:$0xff]
      %v4000 = vld [vmem:[%s3965 + $0x110] sm:$0xff]
      %v4001 = vld [vmem:[%s3965 + $0x118] sm:$0xff]
      %v4002 = vld [vmem:[%s3965 + $0x120] sm:$0xff]
      %v4003 = vld [vmem:[%s3965 + $0x128] sm:$0xff]
      %v4004 = vld [vmem:[%s3965 + $0x130] sm:$0xff]
      %v4005 = vld [vmem:[%s3965 + $0x138] sm:$0xff]
      %v4006 = vld [vmem:[%s3965 + $0x140] sm:$0xff]
      %v4007 = vld [vmem:[%s3965 + $0x148] sm:$0xff]
      %v4008 = vld [vmem:[%s3965 + $0x150] sm:$0xff]
      %v4009 = vld [vmem:[%s3965 + $0x158] sm:$0xff]
      %v4010 = vld [vmem:[%s3965 + $0x160] sm:$0xff]
      %v4011 = vld [vmem:[%s3965 + $0x168] sm:$0xff]
      %v4012 = vld [vmem:[%s3965 + $0x170] sm:$0xff]
      %v4013 = vld [vmem:[%s3965 + $0x178] sm:$0xff]
      %v4014 = vld [vmem:[%s3965 + $0x180] sm:$0xff]
      %v4015 = vld [vmem:[%s3965 + $0x188] sm:$0xff]
      %v4016 = vld [vmem:[%s3965 + $0x190] sm:$0xff]
      %v4017 = vld [vmem:[%s3965 + $0x198] sm:$0xff]
      %v4018 = vld [vmem:[%s3965 + $0x1a0] sm:$0xff]
      %v4019 = vld [vmem:[%s3965 + $0x1a8] sm:$0xff]
      %v4020 = vld [vmem:[%s3965 + $0x1b0] sm:$0xff]
      %v4021 = vld [vmem:[%s3965 + $0x1b8] sm:$0xff]
      %v4022 = vld [vmem:[%s3965 + $0x1c0] sm:$0xff]
      %v4023 = vld [vmem:[%s3965 + $0x1c8] sm:$0xff]
      %v4024 = vld [vmem:[%s3965 + $0x1d0] sm:$0xff]
      %v4025 = vld [vmem:[%s3965 + $0x1d8] sm:$0xff]
      %v4026 = vld [vmem:[%s3965 + $0x1e0] sm:$0xff]
      %v4027 = vld [vmem:[%s3965 + $0x1e8] sm:$0xff]
      %v4028 = vld [vmem:[%s3965 + $0x1f0] sm:$0xff]
      %v4029 = vld [vmem:[%s3965 + $0x1f8] sm:$0xff]
      %4030 = vrot.lane.b32.xlu0 %v526, 104
      %v4031 = vpop.permute.xlu0 %4030
      %4032 = vrot.lane.b32.xlu0 %v527, 104
      %v4033 = vpop.permute.xlu0 %4032
      %4034 = vrot.lane.b32.xlu0 %v528, 104
      %v4035 = vpop.permute.xlu0 %4034
      %4036 = vrot.lane.b32.xlu0 %v529, 104
      %v4037 = vpop.permute.xlu0 %4036
      %4038 = vrot.lane.b32.xlu0 %v530, 104
      %v4039 = vpop.permute.xlu0 %4038
      %4040 = vrot.lane.b32.xlu0 %v531, 104
      %v4041 = vpop.permute.xlu0 %4040
      %4042 = vrot.lane.b32.xlu0 %v532, 104
      %v4043 = vpop.permute.xlu0 %4042
      %4044 = vrot.lane.b32.xlu0 %v533, 104
      %v4045 = vpop.permute.xlu0 %4044
      %4046 = vrot.lane.b32.xlu0 %v534, 104
      %v4047 = vpop.permute.xlu0 %4046
      %4048 = vrot.lane.b32.xlu0 %v535, 104
      %v4049 = vpop.permute.xlu0 %4048
      %4050 = vrot.lane.b32.xlu0 %v536, 104
      %v4051 = vpop.permute.xlu0 %4050
      %4052 = vrot.lane.b32.xlu0 %v537, 104
      %v4053 = vpop.permute.xlu0 %4052
      %4054 = vrot.lane.b32.xlu0 %v538, 104
      %v4055 = vpop.permute.xlu0 %4054
      %4056 = vrot.lane.b32.xlu0 %v539, 104
      %v4057 = vpop.permute.xlu0 %4056
      %4058 = vrot.lane.b32.xlu0 %v540, 104
      %v4059 = vpop.permute.xlu0 %4058
      %4060 = vrot.lane.b32.xlu0 %v541, 104
      %v4061 = vpop.permute.xlu0 %4060
      %4062 = vrot.lane.b32.xlu0 %v606, 104
      %v4063 = vpop.permute.xlu0 %4062
      %4064 = vrot.lane.b32.xlu0 %v607, 104
      %v4065 = vpop.permute.xlu0 %4064
      %4066 = vrot.lane.b32.xlu0 %v608, 104
      %v4067 = vpop.permute.xlu0 %4066
      %4068 = vrot.lane.b32.xlu0 %v609, 104
      %v4069 = vpop.permute.xlu0 %4068
      %4070 = vrot.lane.b32.xlu0 %v610, 104
      %v4071 = vpop.permute.xlu0 %4070
      %4072 = vrot.lane.b32.xlu0 %v611, 104
      %v4073 = vpop.permute.xlu0 %4072
      %4074 = vrot.lane.b32.xlu0 %v612, 104
      %v4075 = vpop.permute.xlu0 %4074
      %4076 = vrot.lane.b32.xlu0 %v613, 104
      %v4077 = vpop.permute.xlu0 %4076
      %4078 = vrot.lane.b32.xlu0 %v614, 104
      %v4079 = vpop.permute.xlu0 %4078
      %4080 = vrot.lane.b32.xlu0 %v615, 104
      %v4081 = vpop.permute.xlu0 %4080
      %4082 = vrot.lane.b32.xlu0 %v616, 104
      %v4083 = vpop.permute.xlu0 %4082
      %4084 = vrot.lane.b32.xlu0 %v617, 104
      %v4085 = vpop.permute.xlu0 %4084
      %4086 = vrot.lane.b32.xlu0 %v618, 104
      %v4087 = vpop.permute.xlu0 %4086
      %4088 = vrot.lane.b32.xlu0 %v619, 104
      %v4089 = vpop.permute.xlu0 %4088
      %4090 = vrot.lane.b32.xlu0 %v620, 104
      %v4091 = vpop.permute.xlu0 %4090
      %4092 = vrot.lane.b32.xlu0 %v621, 104
      %v4093 = vpop.permute.xlu0 %4092
      %v4095 = vsel %vm622, %v4031, 0
      %v4098 = vsel %vm622, %v4033, 0
      %v4101 = vsel %vm622, %v4035, 0
      %v4104 = vsel %vm622, %v4037, 0
      %v4107 = vsel %vm622, %v4039, 0
      %v4110 = vsel %vm622, %v4041, 0
      %v4113 = vsel %vm622, %v4043, 0
      %v4116 = vsel %vm622, %v4045, 0
      %v4119 = vsel %vm622, %v4047, 0
      %v4122 = vsel %vm622, %v4049, 0
      %v4125 = vsel %vm622, %v4051, 0
      %v4128 = vsel %vm622, %v4053, 0
      %v4131 = vsel %vm622, %v4055, 0
      %v4134 = vsel %vm622, %v4057, 0
      %v4137 = vsel %vm622, %v4059, 0
      %v4140 = vsel %vm622, %v4061, 0
      %v4143 = vsel %vm622, %v4063, 0
      %v4146 = vsel %vm622, %v4065, 0
      %v4149 = vsel %vm622, %v4067, 0
      %v4152 = vsel %vm622, %v4069, 0
      %v4155 = vsel %vm622, %v4071, 0
      %v4158 = vsel %vm622, %v4073, 0
      %v4161 = vsel %vm622, %v4075, 0
      %v4164 = vsel %vm622, %v4077, 0
      %v4167 = vsel %vm622, %v4079, 0
      %v4170 = vsel %vm622, %v4081, 0
      %v4173 = vsel %vm622, %v4083, 0
      %v4176 = vsel %vm622, %v4085, 0
      %v4179 = vsel %vm622, %v4087, 0
      %v4182 = vsel %vm622, %v4089, 0
      %v4185 = vsel %vm622, %v4091, 0
      %v4188 = vsel %vm622, %v4093, 0
      %4190 = vmatpush.bf16.xpose.msra.mxu0 %v4164
      %4191 = vmatpush.bf16.xpose.msra.mxu0 %v4161
      %4192 = vmatpush.bf16.xpose.msra.mxu0 %v4158
      %4193 = vmatpush.bf16.xpose.msra.mxu0 %v4155
      %4194 = vmatpush.bf16.xpose.msra.mxu0 %v4152
      %4195 = vmatpush.bf16.xpose.msra.mxu0 %v4149
      %4196 = vmatpush.bf16.xpose.msra.mxu0 %v4146
      %4197 = vmatpush.bf16.xpose.msra.mxu0 %v4143
      %4198 = vmatmul.bf16.gmra.mxu0 %v4095
      %v4199 = vpop.f32.mrf.mxu0
      %v4200 = vadd.f32 %v3966, %v4199
      %v4201 = vpop.f32.mrf.mxu0
      %v4202 = vadd.f32 %v3968, %v4201
      %4203 = vmatmul.bf16.gmra.mxu0 %v4098
      %v4204 = vpop.f32.mrf.mxu0
      %v4205 = vadd.f32 %v3970, %v4204
      %v4206 = vpop.f32.mrf.mxu0
      %v4207 = vadd.f32 %v3972, %v4206
      %4208 = vmatmul.bf16.gmra.mxu0 %v4101
      %v4209 = vpop.f32.mrf.mxu0
      %v4210 = vadd.f32 %v3974, %v4209
      %v4211 = vpop.f32.mrf.mxu0
      %v4212 = vadd.f32 %v3976, %v4211
      %4213 = vmatmul.bf16.gmra.mxu0 %v4104
      %v4214 = vpop.f32.mrf.mxu0
      %v4215 = vadd.f32 %v3978, %v4214
      %v4216 = vpop.f32.mrf.mxu0
      %v4217 = vadd.f32 %v3980, %v4216
      %4218 = vmatmul.bf16.gmra.mxu0 %v4107
      %v4219 = vpop.f32.mrf.mxu0
      %v4220 = vadd.f32 %v3982, %v4219
      %v4221 = vpop.f32.mrf.mxu0
      %v4222 = vadd.f32 %v3984, %v4221
      %4223 = vmatmul.bf16.gmra.mxu0 %v4110
      %v4224 = vpop.f32.mrf.mxu0
      %v4225 = vadd.f32 %v3986, %v4224
      %v4226 = vpop.f32.mrf.mxu0
      %v4227 = vadd.f32 %v3988, %v4226
      %4228 = vmatmul.bf16.gmra.mxu0 %v4113
      %v4229 = vpop.f32.mrf.mxu0
      %v4230 = vadd.f32 %v3990, %v4229
      %v4231 = vpop.f32.mrf.mxu0
      %v4232 = vadd.f32 %v3992, %v4231
      %4233 = vmatmul.bf16.gmra.mxu0 %v4116
      %v4234 = vpop.f32.mrf.mxu0
      %v4235 = vadd.f32 %v3994, %v4234
      %v4236 = vpop.f32.mrf.mxu0
      %v4237 = vadd.f32 %v3996, %v4236
      %4238 = vmatmul.bf16.gmra.mxu0 %v4119
      %v4239 = vpop.f32.mrf.mxu0
      %v4240 = vadd.f32 %v3998, %v4239
      %v4241 = vpop.f32.mrf.mxu0
      %v4242 = vadd.f32 %v4000, %v4241
      %4243 = vmatmul.bf16.gmra.mxu0 %v4122
      %v4244 = vpop.f32.mrf.mxu0
      %v4245 = vadd.f32 %v4002, %v4244
      %v4246 = vpop.f32.mrf.mxu0
      %v4247 = vadd.f32 %v4004, %v4246
      %4248 = vmatmul.bf16.gmra.mxu0 %v4125
      %v4249 = vpop.f32.mrf.mxu0
      %v4250 = vadd.f32 %v4006, %v4249
      %v4251 = vpop.f32.mrf.mxu0
      %v4252 = vadd.f32 %v4008, %v4251
      %4253 = vmatmul.bf16.gmra.mxu0 %v4128
      %v4254 = vpop.f32.mrf.mxu0
      %v4255 = vadd.f32 %v4010, %v4254
      %v4256 = vpop.f32.mrf.mxu0
      %v4257 = vadd.f32 %v4012, %v4256
      %4258 = vmatmul.bf16.gmra.mxu0 %v4131
      %v4259 = vpop.f32.mrf.mxu0
      %v4260 = vadd.f32 %v4014, %v4259
      %v4261 = vpop.f32.mrf.mxu0
      %v4262 = vadd.f32 %v4016, %v4261
      %4263 = vmatmul.bf16.gmra.mxu0 %v4134
      %v4264 = vpop.f32.mrf.mxu0
      %v4265 = vadd.f32 %v4018, %v4264
      %v4266 = vpop.f32.mrf.mxu0
      %v4267 = vadd.f32 %v4020, %v4266
      %4268 = vmatmul.bf16.gmra.mxu0 %v4137
      %v4269 = vpop.f32.mrf.mxu0
      %v4270 = vadd.f32 %v4022, %v4269
      %v4271 = vpop.f32.mrf.mxu0
      %v4272 = vadd.f32 %v4024, %v4271
      %4273 = vmatmul.bf16.gmra.mxu0 %v4140
      %v4274 = vpop.f32.mrf.mxu0
      %v4275 = vadd.f32 %v4026, %v4274
      %v4276 = vpop.f32.mrf.mxu0
      %v4277 = vadd.f32 %v4028, %v4276
      %4278 = vdwg.mxu0
      %4279 = vmatpush.bf16.xpose.msra.mxu0 %v4188
      %4280 = vmatpush.bf16.xpose.msra.mxu0 %v4185
      %4281 = vmatpush.bf16.xpose.msra.mxu0 %v4182
      %4282 = vmatpush.bf16.xpose.msra.mxu0 %v4179
      %4283 = vmatpush.bf16.xpose.msra.mxu0 %v4176
      %4284 = vmatpush.bf16.xpose.msra.mxu0 %v4173
      %4285 = vmatpush.bf16.xpose.msra.mxu0 %v4170
      %4286 = vmatpush.bf16.xpose.msra.mxu0 %v4167
      %4287 = vmatmul.bf16.gmra.mxu0 %v4095
      %v4288 = vpop.f32.mrf.mxu0
      %v4289 = vadd.f32 %v3967, %v4288
      %v4290 = vpop.f32.mrf.mxu0
      %v4291 = vadd.f32 %v3969, %v4290
      %4292 = vmatmul.bf16.gmra.mxu0 %v4098
      %v4293 = vpop.f32.mrf.mxu0
      %v4294 = vadd.f32 %v3971, %v4293
      %v4295 = vpop.f32.mrf.mxu0
      %v4296 = vadd.f32 %v3973, %v4295
      %4297 = vmatmul.bf16.gmra.mxu0 %v4101
      %v4298 = vpop.f32.mrf.mxu0
      %v4299 = vadd.f32 %v3975, %v4298
      %v4300 = vpop.f32.mrf.mxu0
      %v4301 = vadd.f32 %v3977, %v4300
      %4302 = vmatmul.bf16.gmra.mxu0 %v4104
      %v4303 = vpop.f32.mrf.mxu0
      %v4304 = vadd.f32 %v3979, %v4303
      %v4305 = vpop.f32.mrf.mxu0
      %v4306 = vadd.f32 %v3981, %v4305
      %4307 = vmatmul.bf16.gmra.mxu0 %v4107
      %v4308 = vpop.f32.mrf.mxu0
      %v4309 = vadd.f32 %v3983, %v4308
      %v4310 = vpop.f32.mrf.mxu0
      %v4311 = vadd.f32 %v3985, %v4310
      %4312 = vmatmul.bf16.gmra.mxu0 %v4110
      %v4313 = vpop.f32.mrf.mxu0
      %v4314 = vadd.f32 %v3987, %v4313
      %v4315 = vpop.f32.mrf.mxu0
      %v4316 = vadd.f32 %v3989, %v4315
      %4317 = vmatmul.bf16.gmra.mxu0 %v4113
      %v4318 = vpop.f32.mrf.mxu0
      %v4319 = vadd.f32 %v3991, %v4318
      %v4320 = vpop.f32.mrf.mxu0
      %v4321 = vadd.f32 %v3993, %v4320
      %4322 = vmatmul.bf16.gmra.mxu0 %v4116
      %v4323 = vpop.f32.mrf.mxu0
      %v4324 = vadd.f32 %v3995, %v4323
      %v4325 = vpop.f32.mrf.mxu0
      %v4326 = vadd.f32 %v3997, %v4325
      %4327 = vmatmul.bf16.gmra.mxu0 %v4119
      %v4328 = vpop.f32.mrf.mxu0
      %v4329 = vadd.f32 %v3999, %v4328
      %v4330 = vpop.f32.mrf.mxu0
      %v4331 = vadd.f32 %v4001, %v4330
      %4332 = vmatmul.bf16.gmra.mxu0 %v4122
      %v4333 = vpop.f32.mrf.mxu0
      %v4334 = vadd.f32 %v4003, %v4333
      %v4335 = vpop.f32.mrf.mxu0
      %v4336 = vadd.f32 %v4005, %v4335
      %4337 = vmatmul.bf16.gmra.mxu0 %v4125
      %v4338 = vpop.f32.mrf.mxu0
      %v4339 = vadd.f32 %v4007, %v4338
      %v4340 = vpop.f32.mrf.mxu0
      %v4341 = vadd.f32 %v4009, %v4340
      %4342 = vmatmul.bf16.gmra.mxu0 %v4128
      %v4343 = vpop.f32.mrf.mxu0
      %v4344 = vadd.f32 %v4011, %v4343
      %v4345 = vpop.f32.mrf.mxu0
      %v4346 = vadd.f32 %v4013, %v4345
      %4347 = vmatmul.bf16.gmra.mxu0 %v4131
      %v4348 = vpop.f32.mrf.mxu0
      %v4349 = vadd.f32 %v4015, %v4348
      %v4350 = vpop.f32.mrf.mxu0
      %v4351 = vadd.f32 %v4017, %v4350
      %4352 = vmatmul.bf16.gmra.mxu0 %v4134
      %v4353 = vpop.f32.mrf.mxu0
      %v4354 = vadd.f32 %v4019, %v4353
      %v4355 = vpop.f32.mrf.mxu0
      %v4356 = vadd.f32 %v4021, %v4355
      %4357 = vmatmul.bf16.gmra.mxu0 %v4137
      %v4358 = vpop.f32.mrf.mxu0
      %v4359 = vadd.f32 %v4023, %v4358
      %v4360 = vpop.f32.mrf.mxu0
      %v4361 = vadd.f32 %v4025, %v4360
      %4362 = vmatmul.bf16.gmra.mxu0 %v4140
      %v4363 = vpop.f32.mrf.mxu0
      %v4364 = vadd.f32 %v4027, %v4363
      %v4365 = vpop.f32.mrf.mxu0
      %v4366 = vadd.f32 %v4029, %v4365
      %4367 = vdwg.mxu0
      %v4368 = vmax.f32 %v4200, %v4289
      %4369 = vmax.xlane.f32.xlu0 %v4368
      %v4370 = vpop.xlane.xlu0 %4369
      %v4371 = vmax.f32 %v4202, %v4291
      %4372 = vmax.xlane.f32.xlu0 %v4371
      %v4373 = vpop.xlane.xlu0 %4372
      %v4374 = vmax.f32 %v4205, %v4294
      %4375 = vmax.xlane.f32.xlu0 %v4374
      %v4376 = vpop.xlane.xlu0 %4375
      %v4377 = vmax.f32 %v4207, %v4296
      %4378 = vmax.xlane.f32.xlu0 %v4377
      %v4379 = vpop.xlane.xlu0 %4378
      %v4380 = vmax.f32 %v4210, %v4299
      %4381 = vmax.xlane.f32.xlu0 %v4380
      %v4382 = vpop.xlane.xlu0 %4381
      %v4383 = vmax.f32 %v4212, %v4301
      %4384 = vmax.xlane.f32.xlu0 %v4383
      %v4385 = vpop.xlane.xlu0 %4384
      %v4386 = vmax.f32 %v4215, %v4304
      %4387 = vmax.xlane.f32.xlu0 %v4386
      %v4388 = vpop.xlane.xlu0 %4387
      %v4389 = vmax.f32 %v4217, %v4306
      %4390 = vmax.xlane.f32.xlu0 %v4389
      %v4391 = vpop.xlane.xlu0 %4390
      %v4392 = vmax.f32 %v4220, %v4309
      %4393 = vmax.xlane.f32.xlu0 %v4392
      %v4394 = vpop.xlane.xlu0 %4393
      %v4395 = vmax.f32 %v4222, %v4311
      %4396 = vmax.xlane.f32.xlu0 %v4395
      %v4397 = vpop.xlane.xlu0 %4396
      %v4398 = vmax.f32 %v4225, %v4314
      %4399 = vmax.xlane.f32.xlu0 %v4398
      %v4400 = vpop.xlane.xlu0 %4399
      %v4401 = vmax.f32 %v4227, %v4316
      %4402 = vmax.xlane.f32.xlu0 %v4401
      %v4403 = vpop.xlane.xlu0 %4402
      %v4404 = vmax.f32 %v4230, %v4319
      %4405 = vmax.xlane.f32.xlu0 %v4404
      %v4406 = vpop.xlane.xlu0 %4405
      %v4407 = vmax.f32 %v4232, %v4321
      %4408 = vmax.xlane.f32.xlu0 %v4407
      %v4409 = vpop.xlane.xlu0 %4408
      %v4410 = vmax.f32 %v4235, %v4324
      %4411 = vmax.xlane.f32.xlu0 %v4410
      %v4412 = vpop.xlane.xlu0 %4411
      %v4413 = vmax.f32 %v4237, %v4326
      %4414 = vmax.xlane.f32.xlu0 %v4413
      %v4415 = vpop.xlane.xlu0 %4414
      %v4416 = vmax.f32 %v4240, %v4329
      %4417 = vmax.xlane.f32.xlu0 %v4416
      %v4418 = vpop.xlane.xlu0 %4417
      %v4419 = vmax.f32 %v4242, %v4331
      %4420 = vmax.xlane.f32.xlu0 %v4419
      %v4421 = vpop.xlane.xlu0 %4420
      %v4422 = vmax.f32 %v4245, %v4334
      %4423 = vmax.xlane.f32.xlu0 %v4422
      %v4424 = vpop.xlane.xlu0 %4423
      %v4425 = vmax.f32 %v4247, %v4336
      %4426 = vmax.xlane.f32.xlu0 %v4425
      %v4427 = vpop.xlane.xlu0 %4426
      %v4428 = vmax.f32 %v4250, %v4339
      %4429 = vmax.xlane.f32.xlu0 %v4428
      %v4430 = vpop.xlane.xlu0 %4429
      %v4431 = vmax.f32 %v4252, %v4341
      %4432 = vmax.xlane.f32.xlu0 %v4431
      %v4433 = vpop.xlane.xlu0 %4432
      %v4434 = vmax.f32 %v4255, %v4344
      %4435 = vmax.xlane.f32.xlu0 %v4434
      %v4436 = vpop.xlane.xlu0 %4435
      %v4437 = vmax.f32 %v4257, %v4346
      %4438 = vmax.xlane.f32.xlu0 %v4437
      %v4439 = vpop.xlane.xlu0 %4438
      %v4440 = vmax.f32 %v4260, %v4349
      %4441 = vmax.xlane.f32.xlu0 %v4440
      %v4442 = vpop.xlane.xlu0 %4441
      %v4443 = vmax.f32 %v4262, %v4351
      %4444 = vmax.xlane.f32.xlu0 %v4443
      %v4445 = vpop.xlane.xlu0 %4444
      %v4446 = vmax.f32 %v4265, %v4354
      %4447 = vmax.xlane.f32.xlu0 %v4446
      %v4448 = vpop.xlane.xlu0 %4447
      %v4449 = vmax.f32 %v4267, %v4356
      %4450 = vmax.xlane.f32.xlu0 %v4449
      %v4451 = vpop.xlane.xlu0 %4450
      %v4452 = vmax.f32 %v4270, %v4359
      %4453 = vmax.xlane.f32.xlu0 %v4452
      %v4454 = vpop.xlane.xlu0 %4453
      %v4455 = vmax.f32 %v4272, %v4361
      %4456 = vmax.xlane.f32.xlu0 %v4455
      %v4457 = vpop.xlane.xlu0 %4456
      %v4458 = vmax.f32 %v4275, %v4364
      %4459 = vmax.xlane.f32.xlu0 %v4458
      %v4460 = vpop.xlane.xlu0 %4459
      %v4461 = vmax.f32 %v4277, %v4366
      %4462 = vmax.xlane.f32.xlu0 %v4461
      %v4463 = vpop.xlane.xlu0 %4462
      %v4464 = vsub.f32 %v4200, %v4370
      %v4465 = vsub.f32 %v4289, %v4370
      %v4466 = vsub.f32 %v4202, %v4373
      %v4467 = vsub.f32 %v4291, %v4373
      %v4468 = vsub.f32 %v4205, %v4376
      %v4469 = vsub.f32 %v4294, %v4376
      %v4470 = vsub.f32 %v4207, %v4379
      %v4471 = vsub.f32 %v4296, %v4379
      %v4472 = vsub.f32 %v4210, %v4382
      %v4473 = vsub.f32 %v4299, %v4382
      %v4474 = vsub.f32 %v4212, %v4385
      %v4475 = vsub.f32 %v4301, %v4385
      %v4476 = vsub.f32 %v4215, %v4388
      %v4477 = vsub.f32 %v4304, %v4388
      %v4478 = vsub.f32 %v4217, %v4391
      %v4479 = vsub.f32 %v4306, %v4391
      %v4480 = vsub.f32 %v4220, %v4394
      %v4481 = vsub.f32 %v4309, %v4394
      %v4482 = vsub.f32 %v4222, %v4397
      %v4483 = vsub.f32 %v4311, %v4397
      %v4484 = vsub.f32 %v4225, %v4400
      %v4485 = vsub.f32 %v4314, %v4400
      %v4486 = vsub.f32 %v4227, %v4403
      %v4487 = vsub.f32 %v4316, %v4403
      %v4488 = vsub.f32 %v4230, %v4406
      %v4489 = vsub.f32 %v4319, %v4406
      %v4490 = vsub.f32 %v4232, %v4409
      %v4491 = vsub.f32 %v4321, %v4409
      %v4492 = vsub.f32 %v4235, %v4412
      %v4493 = vsub.f32 %v4324, %v4412
      %v4494 = vsub.f32 %v4237, %v4415
      %v4495 = vsub.f32 %v4326, %v4415
      %v4496 = vsub.f32 %v4240, %v4418
      %v4497 = vsub.f32 %v4329, %v4418
      %v4498 = vsub.f32 %v4242, %v4421
      %v4499 = vsub.f32 %v4331, %v4421
      %v4500 = vsub.f32 %v4245, %v4424
      %v4501 = vsub.f32 %v4334, %v4424
      %v4502 = vsub.f32 %v4247, %v4427
      %v4503 = vsub.f32 %v4336, %v4427
      %v4504 = vsub.f32 %v4250, %v4430
      %v4505 = vsub.f32 %v4339, %v4430
      %v4506 = vsub.f32 %v4252, %v4433
      %v4507 = vsub.f32 %v4341, %v4433
      %v4508 = vsub.f32 %v4255, %v4436
      %v4509 = vsub.f32 %v4344, %v4436
      %v4510 = vsub.f32 %v4257, %v4439
      %v4511 = vsub.f32 %v4346, %v4439
      %v4512 = vsub.f32 %v4260, %v4442
      %v4513 = vsub.f32 %v4349, %v4442
      %v4514 = vsub.f32 %v4262, %v4445
      %v4515 = vsub.f32 %v4351, %v4445
      %v4516 = vsub.f32 %v4265, %v4448
      %v4517 = vsub.f32 %v4354, %v4448
      %v4518 = vsub.f32 %v4267, %v4451
      %v4519 = vsub.f32 %v4356, %v4451
      %v4520 = vsub.f32 %v4270, %v4454
      %v4521 = vsub.f32 %v4359, %v4454
      %v4522 = vsub.f32 %v4272, %v4457
      %v4523 = vsub.f32 %v4361, %v4457
      %v4524 = vsub.f32 %v4275, %v4460
      %v4525 = vsub.f32 %v4364, %v4460
      %v4526 = vsub.f32 %v4277, %v4463
      %v4527 = vsub.f32 %v4366, %v4463
      %v4528 = vmul.f32 %v4464, 1.442695
      %v4529 = vpow.pop %v4528
      %v4530 = vmul.f32 %v4465, 1.442695
      %v4531 = vpow.pop %v4530
      %v4532 = vmul.f32 %v4466, 1.442695
      %v4533 = vpow.pop %v4532
      %v4534 = vmul.f32 %v4467, 1.442695
      %v4535 = vpow.pop %v4534
      %v4536 = vmul.f32 %v4468, 1.442695
      %v4537 = vpow.pop %v4536
      %v4538 = vmul.f32 %v4469, 1.442695
      %v4539 = vpow.pop %v4538
      %v4540 = vmul.f32 %v4470, 1.442695
      %v4541 = vpow.pop %v4540
      %v4542 = vmul.f32 %v4471, 1.442695
      %v4543 = vpow.pop %v4542
      %v4544 = vmul.f32 %v4472, 1.442695
      %v4545 = vpow.pop %v4544
      %v4546 = vmul.f32 %v4473, 1.442695
      %v4547 = vpow.pop %v4546
      %v4548 = vmul.f32 %v4474, 1.442695
      %v4549 = vpow.pop %v4548
      %v4550 = vmul.f32 %v4475, 1.442695
      %v4551 = vpow.pop %v4550
      %v4552 = vmul.f32 %v4476, 1.442695
      %v4553 = vpow.pop %v4552
      %v4554 = vmul.f32 %v4477, 1.442695
      %v4555 = vpow.pop %v4554
      %v4556 = vmul.f32 %v4478, 1.442695
      %v4557 = vpow.pop %v4556
      %v4558 = vmul.f32 %v4479, 1.442695
      %v4559 = vpow.pop %v4558
      %v4560 = vmul.f32 %v4480, 1.442695
      %v4561 = vpow.pop %v4560
      %v4562 = vmul.f32 %v4481, 1.442695
      %v4563 = vpow.pop %v4562
      %v4564 = vmul.f32 %v4482, 1.442695
      %v4565 = vpow.pop %v4564
      %v4566 = vmul.f32 %v4483, 1.442695
      %v4567 = vpow.pop %v4566
      %v4568 = vmul.f32 %v4484, 1.442695
      %v4569 = vpow.pop %v4568
      %v4570 = vmul.f32 %v4485, 1.442695
      %v4571 = vpow.pop %v4570
      %v4572 = vmul.f32 %v4486, 1.442695
      %v4573 = vpow.pop %v4572
      %v4574 = vmul.f32 %v4487, 1.442695
      %v4575 = vpow.pop %v4574
      %v4576 = vmul.f32 %v4488, 1.442695
      %v4577 = vpow.pop %v4576
      %v4578 = vmul.f32 %v4489, 1.442695
      %v4579 = vpow.pop %v4578
      %v4580 = vmul.f32 %v4490, 1.442695
      %v4581 = vpow.pop %v4580
      %v4582 = vmul.f32 %v4491, 1.442695
      %v4583 = vpow.pop %v4582
      %v4584 = vmul.f32 %v4492, 1.442695
      %v4585 = vpow.pop %v4584
      %v4586 = vmul.f32 %v4493, 1.442695
      %v4587 = vpow.pop %v4586
      %v4588 = vmul.f32 %v4494, 1.442695
      %v4589 = vpow.pop %v4588
      %v4590 = vmul.f32 %v4495, 1.442695
      %v4591 = vpow.pop %v4590
      %v4592 = vmul.f32 %v4496, 1.442695
      %v4593 = vpow.pop %v4592
      %v4594 = vmul.f32 %v4497, 1.442695
      %v4595 = vpow.pop %v4594
      %v4596 = vmul.f32 %v4498, 1.442695
      %v4597 = vpow.pop %v4596
      %v4598 = vmul.f32 %v4499, 1.442695
      %v4599 = vpow.pop %v4598
      %v4600 = vmul.f32 %v4500, 1.442695
      %v4601 = vpow.pop %v4600
      %v4602 = vmul.f32 %v4501, 1.442695
      %v4603 = vpow.pop %v4602
      %v4604 = vmul.f32 %v4502, 1.442695
      %v4605 = vpow.pop %v4604
      %v4606 = vmul.f32 %v4503, 1.442695
      %v4607 = vpow.pop %v4606
      %v4608 = vmul.f32 %v4504, 1.442695
      %v4609 = vpow.pop %v4608
      %v4610 = vmul.f32 %v4505, 1.442695
      %v4611 = vpow.pop %v4610
      %v4612 = vmul.f32 %v4506, 1.442695
      %v4613 = vpow.pop %v4612
      %v4614 = vmul.f32 %v4507, 1.442695
      %v4615 = vpow.pop %v4614
      %v4616 = vmul.f32 %v4508, 1.442695
      %v4617 = vpow.pop %v4616
      %v4618 = vmul.f32 %v4509, 1.442695
      %v4619 = vpow.pop %v4618
      %v4620 = vmul.f32 %v4510, 1.442695
      %v4621 = vpow.pop %v4620
      %v4622 = vmul.f32 %v4511, 1.442695
      %v4623 = vpow.pop %v4622
      %v4624 = vmul.f32 %v4512, 1.442695
      %v4625 = vpow.pop %v4624
      %v4626 = vmul.f32 %v4513, 1.442695
      %v4627 = vpow.pop %v4626
      %v4628 = vmul.f32 %v4514, 1.442695
      %v4629 = vpow.pop %v4628
      %v4630 = vmul.f32 %v4515, 1.442695
      %v4631 = vpow.pop %v4630
      %v4632 = vmul.f32 %v4516, 1.442695
      %v4633 = vpow.pop %v4632
      %v4634 = vmul.f32 %v4517, 1.442695
      %v4635 = vpow.pop %v4634
      %v4636 = vmul.f32 %v4518, 1.442695
      %v4637 = vpow.pop %v4636
      %v4638 = vmul.f32 %v4519, 1.442695
      %v4639 = vpow.pop %v4638
      %v4640 = vmul.f32 %v4520, 1.442695
      %v4641 = vpow.pop %v4640
      %v4642 = vmul.f32 %v4521, 1.442695
      %v4643 = vpow.pop %v4642
      %v4644 = vmul.f32 %v4522, 1.442695
      %v4645 = vpow.pop %v4644
      %v4646 = vmul.f32 %v4523, 1.442695
      %v4647 = vpow.pop %v4646
      %v4648 = vmul.f32 %v4524, 1.442695
      %v4649 = vpow.pop %v4648
      %v4650 = vmul.f32 %v4525, 1.442695
      %v4651 = vpow.pop %v4650
      %v4652 = vmul.f32 %v4526, 1.442695
      %v4653 = vpow.pop %v4652
      %v4654 = vmul.f32 %v4527, 1.442695
      %v4655 = vpow.pop %v4654
      %v4656 = vadd.f32 %v4529, %v4531
      %4657 = vadd.xlane.f32.xlu0 %v4656
      %v4658 = vpop.xlane.xlu0 %4657
      %v4659 = vadd.f32 %v4533, %v4535
      %4660 = vadd.xlane.f32.xlu0 %v4659
      %v4661 = vpop.xlane.xlu0 %4660
      %v4662 = vadd.f32 %v4537, %v4539
      %4663 = vadd.xlane.f32.xlu0 %v4662
      %v4664 = vpop.xlane.xlu0 %4663
      %v4665 = vadd.f32 %v4541, %v4543
      %4666 = vadd.xlane.f32.xlu0 %v4665
      %v4667 = vpop.xlane.xlu0 %4666
      %v4668 = vadd.f32 %v4545, %v4547
      %4669 = vadd.xlane.f32.xlu0 %v4668
      %v4670 = vpop.xlane.xlu0 %4669
      %v4671 = vadd.f32 %v4549, %v4551
      %4672 = vadd.xlane.f32.xlu0 %v4671
      %v4673 = vpop.xlane.xlu0 %4672
      %v4674 = vadd.f32 %v4553, %v4555
      %4675 = vadd.xlane.f32.xlu0 %v4674
      %v4676 = vpop.xlane.xlu0 %4675
      %v4677 = vadd.f32 %v4557, %v4559
      %4678 = vadd.xlane.f32.xlu0 %v4677
      %v4679 = vpop.xlane.xlu0 %4678
      %v4680 = vadd.f32 %v4561, %v4563
      %4681 = vadd.xlane.f32.xlu0 %v4680
      %v4682 = vpop.xlane.xlu0 %4681
      %v4683 = vadd.f32 %v4565, %v4567
      %4684 = vadd.xlane.f32.xlu0 %v4683
      %v4685 = vpop.xlane.xlu0 %4684
      %v4686 = vadd.f32 %v4569, %v4571
      %4687 = vadd.xlane.f32.xlu0 %v4686
      %v4688 = vpop.xlane.xlu0 %4687
      %v4689 = vadd.f32 %v4573, %v4575
      %4690 = vadd.xlane.f32.xlu0 %v4689
      %v4691 = vpop.xlane.xlu0 %4690
      %v4692 = vadd.f32 %v4577, %v4579
      %4693 = vadd.xlane.f32.xlu0 %v4692
      %v4694 = vpop.xlane.xlu0 %4693
      %v4695 = vadd.f32 %v4581, %v4583
      %4696 = vadd.xlane.f32.xlu0 %v4695
      %v4697 = vpop.xlane.xlu0 %4696
      %v4698 = vadd.f32 %v4585, %v4587
      %4699 = vadd.xlane.f32.xlu0 %v4698
      %v4700 = vpop.xlane.xlu0 %4699
      %v4701 = vadd.f32 %v4589, %v4591
      %4702 = vadd.xlane.f32.xlu0 %v4701
      %v4703 = vpop.xlane.xlu0 %4702
      %v4704 = vadd.f32 %v4593, %v4595
      %4705 = vadd.xlane.f32.xlu0 %v4704
      %v4706 = vpop.xlane.xlu0 %4705
      %v4707 = vadd.f32 %v4597, %v4599
      %4708 = vadd.xlane.f32.xlu0 %v4707
      %v4709 = vpop.xlane.xlu0 %4708
      %v4710 = vadd.f32 %v4601, %v4603
      %4711 = vadd.xlane.f32.xlu0 %v4710
      %v4712 = vpop.xlane.xlu0 %4711
      %v4713 = vadd.f32 %v4605, %v4607
      %4714 = vadd.xlane.f32.xlu0 %v4713
      %v4715 = vpop.xlane.xlu0 %4714
      %v4716 = vadd.f32 %v4609, %v4611
      %4717 = vadd.xlane.f32.xlu0 %v4716
      %v4718 = vpop.xlane.xlu0 %4717
      %v4719 = vadd.f32 %v4613, %v4615
      %4720 = vadd.xlane.f32.xlu0 %v4719
      %v4721 = vpop.xlane.xlu0 %4720
      %v4722 = vadd.f32 %v4617, %v4619
      %4723 = vadd.xlane.f32.xlu0 %v4722
      %v4724 = vpop.xlane.xlu0 %4723
      %v4725 = vadd.f32 %v4621, %v4623
      %4726 = vadd.xlane.f32.xlu0 %v4725
      %v4727 = vpop.xlane.xlu0 %4726
      %v4728 = vadd.f32 %v4625, %v4627
      %4729 = vadd.xlane.f32.xlu0 %v4728
      %v4730 = vpop.xlane.xlu0 %4729
      %v4731 = vadd.f32 %v4629, %v4631
      %4732 = vadd.xlane.f32.xlu0 %v4731
      %v4733 = vpop.xlane.xlu0 %4732
      %v4734 = vadd.f32 %v4633, %v4635
      %4735 = vadd.xlane.f32.xlu0 %v4734
      %v4736 = vpop.xlane.xlu0 %4735
      %v4737 = vadd.f32 %v4637, %v4639
      %4738 = vadd.xlane.f32.xlu0 %v4737
      %v4739 = vpop.xlane.xlu0 %4738
      %v4740 = vadd.f32 %v4641, %v4643
      %4741 = vadd.xlane.f32.xlu0 %v4740
      %v4742 = vpop.xlane.xlu0 %4741
      %v4743 = vadd.f32 %v4645, %v4647
      %4744 = vadd.xlane.f32.xlu0 %v4743
      %v4745 = vpop.xlane.xlu0 %4744
      %v4746 = vadd.f32 %v4649, %v4651
      %4747 = vadd.xlane.f32.xlu0 %v4746
      %v4748 = vpop.xlane.xlu0 %4747
      %v4749 = vadd.f32 %v4653, %v4655
      %4750 = vadd.xlane.f32.xlu0 %v4749
      %v4751 = vpop.xlane.xlu0 %4750
      %v4752 = vrcp.pop %v4658
      %v4753 = vrcp.pop %v4661
      %v4754 = vrcp.pop %v4664
      %v4755 = vrcp.pop %v4667
      %v4756 = vrcp.pop %v4670
      %v4757 = vrcp.pop %v4673
      %v4758 = vrcp.pop %v4676
      %v4759 = vrcp.pop %v4679
      %v4760 = vrcp.pop %v4682
      %v4761 = vrcp.pop %v4685
      %v4762 = vrcp.pop %v4688
      %v4763 = vrcp.pop %v4691
      %v4764 = vrcp.pop %v4694
      %v4765 = vrcp.pop %v4697
      %v4766 = vrcp.pop %v4700
      %v4767 = vrcp.pop %v4703
      %v4768 = vrcp.pop %v4706
      %v4769 = vrcp.pop %v4709
      %v4770 = vrcp.pop %v4712
      %v4771 = vrcp.pop %v4715
      %v4772 = vrcp.pop %v4718
      %v4773 = vrcp.pop %v4721
      %v4774 = vrcp.pop %v4724
      %v4775 = vrcp.pop %v4727
      %v4776 = vrcp.pop %v4730
      %v4777 = vrcp.pop %v4733
      %v4778 = vrcp.pop %v4736
      %v4779 = vrcp.pop %v4739
      %v4780 = vrcp.pop %v4742
      %v4781 = vrcp.pop %v4745
      %v4782 = vrcp.pop %v4748
      %v4783 = vrcp.pop %v4751
      %v4784 = vmul.f32 %v4529, %v4752
      %v4785 = vmul.f32 %v4531, %v4752
      %v4786 = vmul.f32 %v4533, %v4753
      %v4787 = vmul.f32 %v4535, %v4753
      %v4788 = vmul.f32 %v4537, %v4754
      %v4789 = vmul.f32 %v4539, %v4754
      %v4790 = vmul.f32 %v4541, %v4755
      %v4791 = vmul.f32 %v4543, %v4755
      %v4792 = vmul.f32 %v4545, %v4756
      %v4793 = vmul.f32 %v4547, %v4756
      %v4794 = vmul.f32 %v4549, %v4757
      %v4795 = vmul.f32 %v4551, %v4757
      %v4796 = vmul.f32 %v4553, %v4758
      %v4797 = vmul.f32 %v4555, %v4758
      %v4798 = vmul.f32 %v4557, %v4759
      %v4799 = vmul.f32 %v4559, %v4759
      %v4800 = vmul.f32 %v4561, %v4760
      %v4801 = vmul.f32 %v4563, %v4760
      %v4802 = vmul.f32 %v4565, %v4761
      %v4803 = vmul.f32 %v4567, %v4761
      %v4804 = vmul.f32 %v4569, %v4762
      %v4805 = vmul.f32 %v4571, %v4762
      %v4806 = vmul.f32 %v4573, %v4763
      %v4807 = vmul.f32 %v4575, %v4763
      %v4808 = vmul.f32 %v4577, %v4764
      %v4809 = vmul.f32 %v4579, %v4764
      %v4810 = vmul.f32 %v4581, %v4765
      %v4811 = vmul.f32 %v4583, %v4765
      %v4812 = vmul.f32 %v4585, %v4766
      %v4813 = vmul.f32 %v4587, %v4766
      %v4814 = vmul.f32 %v4589, %v4767
      %v4815 = vmul.f32 %v4591, %v4767
      %v4816 = vmul.f32 %v4593, %v4768
      %v4817 = vmul.f32 %v4595, %v4768
      %v4818 = vmul.f32 %v4597, %v4769
      %v4819 = vmul.f32 %v4599, %v4769
      %v4820 = vmul.f32 %v4601, %v4770
      %v4821 = vmul.f32 %v4603, %v4770
      %v4822 = vmul.f32 %v4605, %v4771
      %v4823 = vmul.f32 %v4607, %v4771
      %v4824 = vmul.f32 %v4609, %v4772
      %v4825 = vmul.f32 %v4611, %v4772
      %v4826 = vmul.f32 %v4613, %v4773
      %v4827 = vmul.f32 %v4615, %v4773
      %v4828 = vmul.f32 %v4617, %v4774
      %v4829 = vmul.f32 %v4619, %v4774
      %v4830 = vmul.f32 %v4621, %v4775
      %v4831 = vmul.f32 %v4623, %v4775
      %v4832 = vmul.f32 %v4625, %v4776
      %v4833 = vmul.f32 %v4627, %v4776
      %v4834 = vmul.f32 %v4629, %v4777
      %v4835 = vmul.f32 %v4631, %v4777
      %v4836 = vmul.f32 %v4633, %v4778
      %v4837 = vmul.f32 %v4635, %v4778
      %v4838 = vmul.f32 %v4637, %v4779
      %v4839 = vmul.f32 %v4639, %v4779
      %v4840 = vmul.f32 %v4641, %v4780
      %v4841 = vmul.f32 %v4643, %v4780
      %v4842 = vmul.f32 %v4645, %v4781
      %v4843 = vmul.f32 %v4647, %v4781
      %v4844 = vmul.f32 %v4649, %v4782
      %v4845 = vmul.f32 %v4651, %v4782
      %v4846 = vmul.f32 %v4653, %v4783
      %v4847 = vmul.f32 %v4655, %v4783
      %v4848 = vpack.c.bf16 %v4786, %v4784
      %v4849 = vpack.c.bf16 %v4787, %v4785
      %v4850 = vpack.c.bf16 %v4790, %v4788
      %v4851 = vpack.c.bf16 %v4791, %v4789
      %v4852 = vpack.c.bf16 %v4794, %v4792
      %v4853 = vpack.c.bf16 %v4795, %v4793
      %v4854 = vpack.c.bf16 %v4798, %v4796
      %v4855 = vpack.c.bf16 %v4799, %v4797
      %v4856 = vpack.c.bf16 %v4802, %v4800
      %v4857 = vpack.c.bf16 %v4803, %v4801
      %v4858 = vpack.c.bf16 %v4806, %v4804
      %v4859 = vpack.c.bf16 %v4807, %v4805
      %v4860 = vpack.c.bf16 %v4810, %v4808
      %v4861 = vpack.c.bf16 %v4811, %v4809
      %v4862 = vpack.c.bf16 %v4814, %v4812
      %v4863 = vpack.c.bf16 %v4815, %v4813
      %v4864 = vpack.c.bf16 %v4818, %v4816
      %v4865 = vpack.c.bf16 %v4819, %v4817
      %v4866 = vpack.c.bf16 %v4822, %v4820
      %v4867 = vpack.c.bf16 %v4823, %v4821
      %v4868 = vpack.c.bf16 %v4826, %v4824
      %v4869 = vpack.c.bf16 %v4827, %v4825
      %v4870 = vpack.c.bf16 %v4830, %v4828
      %v4871 = vpack.c.bf16 %v4831, %v4829
      %v4872 = vpack.c.bf16 %v4834, %v4832
      %v4873 = vpack.c.bf16 %v4835, %v4833
      %v4874 = vpack.c.bf16 %v4838, %v4836
      %v4875 = vpack.c.bf16 %v4839, %v4837
      %v4876 = vpack.c.bf16 %v4842, %v4840
      %v4877 = vpack.c.bf16 %v4843, %v4841
      %v4878 = vpack.c.bf16 %v4846, %v4844
      %v4879 = vpack.c.bf16 %v4847, %v4845
      %4880 = vrot.lane.b32.xlu0 %v1473, 104
      %v4881 = vpop.permute.xlu0 %4880
      %4882 = vrot.lane.b32.xlu0 %v1474, 104
      %v4883 = vpop.permute.xlu0 %4882
      %4884 = vrot.lane.b32.xlu0 %v1475, 104
      %v4885 = vpop.permute.xlu0 %4884
      %4886 = vrot.lane.b32.xlu0 %v1476, 104
      %v4887 = vpop.permute.xlu0 %4886
      %4888 = vrot.lane.b32.xlu0 %v1477, 104
      %v4889 = vpop.permute.xlu0 %4888
      %4890 = vrot.lane.b32.xlu0 %v1478, 104
      %v4891 = vpop.permute.xlu0 %4890
      %4892 = vrot.lane.b32.xlu0 %v1479, 104
      %v4893 = vpop.permute.xlu0 %4892
      %4894 = vrot.lane.b32.xlu0 %v1480, 104
      %v4895 = vpop.permute.xlu0 %4894
      %4896 = vrot.lane.b32.xlu0 %v1481, 104
      %v4897 = vpop.permute.xlu0 %4896
      %4898 = vrot.lane.b32.xlu0 %v1482, 104
      %v4899 = vpop.permute.xlu0 %4898
      %4900 = vrot.lane.b32.xlu0 %v1483, 104
      %v4901 = vpop.permute.xlu0 %4900
      %4902 = vrot.lane.b32.xlu0 %v1484, 104
      %v4903 = vpop.permute.xlu0 %4902
      %4904 = vrot.lane.b32.xlu0 %v1485, 104
      %v4905 = vpop.permute.xlu0 %4904
      %4906 = vrot.lane.b32.xlu0 %v1486, 104
      %v4907 = vpop.permute.xlu0 %4906
      %4908 = vrot.lane.b32.xlu0 %v1487, 104
      %v4909 = vpop.permute.xlu0 %4908
      %4910 = vrot.lane.b32.xlu0 %v1488, 104
      %v4911 = vpop.permute.xlu0 %4910
      %4928 = vmatpush.bf16.msra.mxu0 %v4895
      %4929 = vmatpush.bf16.msra.mxu0 %v4893
      %4930 = vmatpush.bf16.msra.mxu0 %v4891
      %4931 = vmatpush.bf16.msra.mxu0 %v4889
      %4932 = vmatpush.bf16.msra.mxu0 %v4887
      %4933 = vmatpush.bf16.msra.mxu0 %v4885
      %4934 = vmatpush.bf16.msra.mxu0 %v4883
      %4935 = vmatpush.bf16.msra.mxu0 %v4881
      %4936 = vmatmul.bf16.gmra.mxu0 %v4848
      %v4937 = vpop.f32.mrf.mxu0
      %v4938 = vadd.f32 0.0, %v4937
      %v4939 = vpop.f32.mrf.mxu0
      %v4940 = vadd.f32 0.0, %v4939
      %4941 = vmatmul.bf16.gmra.mxu0 %v4850
      %v4942 = vpop.f32.mrf.mxu0
      %v4943 = vadd.f32 0.0, %v4942
      %v4944 = vpop.f32.mrf.mxu0
      %v4945 = vadd.f32 0.0, %v4944
      %4946 = vmatmul.bf16.gmra.mxu0 %v4852
      %v4947 = vpop.f32.mrf.mxu0
      %v4948 = vadd.f32 0.0, %v4947
      %v4949 = vpop.f32.mrf.mxu0
      %v4950 = vadd.f32 0.0, %v4949
      %4951 = vmatmul.bf16.gmra.mxu0 %v4854
      %v4952 = vpop.f32.mrf.mxu0
      %v4953 = vadd.f32 0.0, %v4952
      %v4954 = vpop.f32.mrf.mxu0
      %v4955 = vadd.f32 0.0, %v4954
      %4956 = vmatmul.bf16.gmra.mxu0 %v4856
      %v4957 = vpop.f32.mrf.mxu0
      %v4958 = vadd.f32 0.0, %v4957
      %v4959 = vpop.f32.mrf.mxu0
      %v4960 = vadd.f32 0.0, %v4959
      %4961 = vmatmul.bf16.gmra.mxu0 %v4858
      %v4962 = vpop.f32.mrf.mxu0
      %v4963 = vadd.f32 0.0, %v4962
      %v4964 = vpop.f32.mrf.mxu0
      %v4965 = vadd.f32 0.0, %v4964
      %4966 = vmatmul.bf16.gmra.mxu0 %v4860
      %v4967 = vpop.f32.mrf.mxu0
      %v4968 = vadd.f32 0.0, %v4967
      %v4969 = vpop.f32.mrf.mxu0
      %v4970 = vadd.f32 0.0, %v4969
      %4971 = vmatmul.bf16.gmra.mxu0 %v4862
      %v4972 = vpop.f32.mrf.mxu0
      %v4973 = vadd.f32 0.0, %v4972
      %v4974 = vpop.f32.mrf.mxu0
      %v4975 = vadd.f32 0.0, %v4974
      %4976 = vmatmul.bf16.gmra.mxu0 %v4864
      %v4977 = vpop.f32.mrf.mxu0
      %v4978 = vadd.f32 0.0, %v4977
      %v4979 = vpop.f32.mrf.mxu0
      %v4980 = vadd.f32 0.0, %v4979
      %4981 = vmatmul.bf16.gmra.mxu0 %v4866
      %v4982 = vpop.f32.mrf.mxu0
      %v4983 = vadd.f32 0.0, %v4982
      %v4984 = vpop.f32.mrf.mxu0
      %v4985 = vadd.f32 0.0, %v4984
      %4986 = vmatmul.bf16.gmra.mxu0 %v4868
      %v4987 = vpop.f32.mrf.mxu0
      %v4988 = vadd.f32 0.0, %v4987
      %v4989 = vpop.f32.mrf.mxu0
      %v4990 = vadd.f32 0.0, %v4989
      %4991 = vmatmul.bf16.gmra.mxu0 %v4870
      %v4992 = vpop.f32.mrf.mxu0
      %v4993 = vadd.f32 0.0, %v4992
      %v4994 = vpop.f32.mrf.mxu0
      %v4995 = vadd.f32 0.0, %v4994
      %4996 = vmatmul.bf16.gmra.mxu0 %v4872
      %v4997 = vpop.f32.mrf.mxu0
      %v4998 = vadd.f32 0.0, %v4997
      %v4999 = vpop.f32.mrf.mxu0
      %v5000 = vadd.f32 0.0, %v4999
      %5001 = vmatmul.bf16.gmra.mxu0 %v4874
      %v5002 = vpop.f32.mrf.mxu0
      %v5003 = vadd.f32 0.0, %v5002
      %v5004 = vpop.f32.mrf.mxu0
      %v5005 = vadd.f32 0.0, %v5004
      %5006 = vmatmul.bf16.gmra.mxu0 %v4876
      %v5007 = vpop.f32.mrf.mxu0
      %v5008 = vadd.f32 0.0, %v5007
      %v5009 = vpop.f32.mrf.mxu0
      %v5010 = vadd.f32 0.0, %v5009
      %5011 = vmatmul.bf16.gmra.mxu0 %v4878
      %v5012 = vpop.f32.mrf.mxu0
      %v5013 = vadd.f32 0.0, %v5012
      %v5014 = vpop.f32.mrf.mxu0
      %v5015 = vadd.f32 0.0, %v5014
      %5016 = vdwg.mxu0
      %5017 = vmatpush.bf16.msra.mxu0 %v4911
      %5018 = vmatpush.bf16.msra.mxu0 %v4909
      %5019 = vmatpush.bf16.msra.mxu0 %v4907
      %5020 = vmatpush.bf16.msra.mxu0 %v4905
      %5021 = vmatpush.bf16.msra.mxu0 %v4903
      %5022 = vmatpush.bf16.msra.mxu0 %v4901
      %5023 = vmatpush.bf16.msra.mxu0 %v4899
      %5024 = vmatpush.bf16.msra.mxu0 %v4897
      %5025 = vmatmul.bf16.gmra.mxu0 %v4849
      %v5026 = vpop.f32.mrf.mxu0
      %v5027 = vadd.f32 %v4938, %v5026
      %v5028 = vpop.f32.mrf.mxu0
      %v5029 = vadd.f32 %v4940, %v5028
      %5030 = vmatmul.bf16.gmra.mxu0 %v4851
      %v5031 = vpop.f32.mrf.mxu0
      %v5032 = vadd.f32 %v4943, %v5031
      %v5033 = vpop.f32.mrf.mxu0
      %v5034 = vadd.f32 %v4945, %v5033
      %5035 = vmatmul.bf16.gmra.mxu0 %v4853
      %v5036 = vpop.f32.mrf.mxu0
      %v5037 = vadd.f32 %v4948, %v5036
      %v5038 = vpop.f32.mrf.mxu0
      %v5039 = vadd.f32 %v4950, %v5038
      %5040 = vmatmul.bf16.gmra.mxu0 %v4855
      %v5041 = vpop.f32.mrf.mxu0
      %v5042 = vadd.f32 %v4953, %v5041
      %v5043 = vpop.f32.mrf.mxu0
      %v5044 = vadd.f32 %v4955, %v5043
      %5045 = vmatmul.bf16.gmra.mxu0 %v4857
      %v5046 = vpop.f32.mrf.mxu0
      %v5047 = vadd.f32 %v4958, %v5046
      %v5048 = vpop.f32.mrf.mxu0
      %v5049 = vadd.f32 %v4960, %v5048
      %5050 = vmatmul.bf16.gmra.mxu0 %v4859
      %v5051 = vpop.f32.mrf.mxu0
      %v5052 = vadd.f32 %v4963, %v5051
      %v5053 = vpop.f32.mrf.mxu0
      %v5054 = vadd.f32 %v4965, %v5053
      %5055 = vmatmul.bf16.gmra.mxu0 %v4861
      %v5056 = vpop.f32.mrf.mxu0
      %v5057 = vadd.f32 %v4968, %v5056
      %v5058 = vpop.f32.mrf.mxu0
      %v5059 = vadd.f32 %v4970, %v5058
      %5060 = vmatmul.bf16.gmra.mxu0 %v4863
      %v5061 = vpop.f32.mrf.mxu0
      %v5062 = vadd.f32 %v4973, %v5061
      %v5063 = vpop.f32.mrf.mxu0
      %v5064 = vadd.f32 %v4975, %v5063
      %5065 = vmatmul.bf16.gmra.mxu0 %v4865
      %v5066 = vpop.f32.mrf.mxu0
      %v5067 = vadd.f32 %v4978, %v5066
      %v5068 = vpop.f32.mrf.mxu0
      %v5069 = vadd.f32 %v4980, %v5068
      %5070 = vmatmul.bf16.gmra.mxu0 %v4867
      %v5071 = vpop.f32.mrf.mxu0
      %v5072 = vadd.f32 %v4983, %v5071
      %v5073 = vpop.f32.mrf.mxu0
      %v5074 = vadd.f32 %v4985, %v5073
      %5075 = vmatmul.bf16.gmra.mxu0 %v4869
      %v5076 = vpop.f32.mrf.mxu0
      %v5077 = vadd.f32 %v4988, %v5076
      %v5078 = vpop.f32.mrf.mxu0
      %v5079 = vadd.f32 %v4990, %v5078
      %5080 = vmatmul.bf16.gmra.mxu0 %v4871
      %v5081 = vpop.f32.mrf.mxu0
      %v5082 = vadd.f32 %v4993, %v5081
      %v5083 = vpop.f32.mrf.mxu0
      %v5084 = vadd.f32 %v4995, %v5083
      %5085 = vmatmul.bf16.gmra.mxu0 %v4873
      %v5086 = vpop.f32.mrf.mxu0
      %v5087 = vadd.f32 %v4998, %v5086
      %v5088 = vpop.f32.mrf.mxu0
      %v5089 = vadd.f32 %v5000, %v5088
      %5090 = vmatmul.bf16.gmra.mxu0 %v4875
      %v5091 = vpop.f32.mrf.mxu0
      %v5092 = vadd.f32 %v5003, %v5091
      %v5093 = vpop.f32.mrf.mxu0
      %v5094 = vadd.f32 %v5005, %v5093
      %5095 = vmatmul.bf16.gmra.mxu0 %v4877
      %v5096 = vpop.f32.mrf.mxu0
      %v5097 = vadd.f32 %v5008, %v5096
      %v5098 = vpop.f32.mrf.mxu0
      %v5099 = vadd.f32 %v5010, %v5098
      %5100 = vmatmul.bf16.gmra.mxu0 %v4879
      %v5101 = vpop.f32.mrf.mxu0
      %v5102 = vadd.f32 %v5013, %v5101
      %v5103 = vpop.f32.mrf.mxu0
      %v5104 = vadd.f32 %v5015, %v5103
      %5105 = vdwg.mxu0
      %5138 = vrot.lane.b32.xlu0 %v2745, 8
      %v5139 = vpop.permute.xlu0 %5138
      %5140 = vrot.lane.b32.xlu0 %v2747, 8
      %v5141 = vpop.permute.xlu0 %5140
      %5142 = vrot.lane.b32.xlu0 %v2750, 8
      %v5143 = vpop.permute.xlu0 %5142
      %5144 = vrot.lane.b32.xlu0 %v2752, 8
      %v5145 = vpop.permute.xlu0 %5144
      %5146 = vrot.lane.b32.xlu0 %v2755, 8
      %v5147 = vpop.permute.xlu0 %5146
      %5148 = vrot.lane.b32.xlu0 %v2757, 8
      %v5149 = vpop.permute.xlu0 %5148
      %5150 = vrot.lane.b32.xlu0 %v2760, 8
      %v5151 = vpop.permute.xlu0 %5150
      %5152 = vrot.lane.b32.xlu0 %v2762, 8
      %v5153 = vpop.permute.xlu0 %5152
      %5154 = vrot.lane.b32.xlu0 %v2765, 8
      %v5155 = vpop.permute.xlu0 %5154
      %5156 = vrot.lane.b32.xlu0 %v2767, 8
      %v5157 = vpop.permute.xlu0 %5156
      %5158 = vrot.lane.b32.xlu0 %v2770, 8
      %v5159 = vpop.permute.xlu0 %5158
      %5160 = vrot.lane.b32.xlu0 %v2772, 8
      %v5161 = vpop.permute.xlu0 %5160
      %5162 = vrot.lane.b32.xlu0 %v2775, 8
      %v5163 = vpop.permute.xlu0 %5162
      %5164 = vrot.lane.b32.xlu0 %v2777, 8
      %v5165 = vpop.permute.xlu0 %5164
      %5166 = vrot.lane.b32.xlu0 %v2780, 8
      %v5167 = vpop.permute.xlu0 %5166
      %5168 = vrot.lane.b32.xlu0 %v2782, 8
      %v5169 = vpop.permute.xlu0 %5168
      %5170 = vrot.lane.b32.xlu0 %v2785, 8
      %v5171 = vpop.permute.xlu0 %5170
      %5172 = vrot.lane.b32.xlu0 %v2787, 8
      %v5173 = vpop.permute.xlu0 %5172
      %5174 = vrot.lane.b32.xlu0 %v2790, 8
      %v5175 = vpop.permute.xlu0 %5174
      %5176 = vrot.lane.b32.xlu0 %v2792, 8
      %v5177 = vpop.permute.xlu0 %5176
      %5178 = vrot.lane.b32.xlu0 %v2795, 8
      %v5179 = vpop.permute.xlu0 %5178
      %5180 = vrot.lane.b32.xlu0 %v2797, 8
      %v5181 = vpop.permute.xlu0 %5180
      %5182 = vrot.lane.b32.xlu0 %v2800, 8
      %v5183 = vpop.permute.xlu0 %5182
      %5184 = vrot.lane.b32.xlu0 %v2802, 8
      %v5185 = vpop.permute.xlu0 %5184
      %5186 = vrot.lane.b32.xlu0 %v2805, 8
      %v5187 = vpop.permute.xlu0 %5186
      %5188 = vrot.lane.b32.xlu0 %v2807, 8
      %v5189 = vpop.permute.xlu0 %5188
      %5190 = vrot.lane.b32.xlu0 %v2810, 8
      %v5191 = vpop.permute.xlu0 %5190
      %5192 = vrot.lane.b32.xlu0 %v2812, 8
      %v5193 = vpop.permute.xlu0 %5192
      %5194 = vrot.lane.b32.xlu0 %v2815, 8
      %v5195 = vpop.permute.xlu0 %5194
      %5196 = vrot.lane.b32.xlu0 %v2817, 8
      %v5197 = vpop.permute.xlu0 %5196
      %5198 = vrot.lane.b32.xlu0 %v2820, 8
      %v5199 = vpop.permute.xlu0 %5198
      %5200 = vrot.lane.b32.xlu0 %v2822, 8
      %v5201 = vpop.permute.xlu0 %5200
      %5266 = vrot.lane.b32.xlu0 %v3886, 16
      %v5267 = vpop.permute.xlu0 %5266
      %5268 = vrot.lane.b32.xlu0 %v3888, 16
      %v5269 = vpop.permute.xlu0 %5268
      %5270 = vrot.lane.b32.xlu0 %v3891, 16
      %v5271 = vpop.permute.xlu0 %5270
      %5272 = vrot.lane.b32.xlu0 %v3893, 16
      %v5273 = vpop.permute.xlu0 %5272
      %5274 = vrot.lane.b32.xlu0 %v3896, 16
      %v5275 = vpop.permute.xlu0 %5274
      %5276 = vrot.lane.b32.xlu0 %v3898, 16
      %v5277 = vpop.permute.xlu0 %5276
      %5278 = vrot.lane.b32.xlu0 %v3901, 16
      %v5279 = vpop.permute.xlu0 %5278
      %5280 = vrot.lane.b32.xlu0 %v3903, 16
      %v5281 = vpop.permute.xlu0 %5280
      %5282 = vrot.lane.b32.xlu0 %v3906, 16
      %v5283 = vpop.permute.xlu0 %5282
      %5284 = vrot.lane.b32.xlu0 %v3908, 16
      %v5285 = vpop.permute.xlu0 %5284
      %5286 = vrot.lane.b32.xlu0 %v3911, 16
      %v5287 = vpop.permute.xlu0 %5286
      %5288 = vrot.lane.b32.xlu0 %v3913, 16
      %v5289 = vpop.permute.xlu0 %5288
      %5290 = vrot.lane.b32.xlu0 %v3916, 16
      %v5291 = vpop.permute.xlu0 %5290
      %5292 = vrot.lane.b32.xlu0 %v3918, 16
      %v5293 = vpop.permute.xlu0 %5292
      %5294 = vrot.lane.b32.xlu0 %v3921, 16
      %v5295 = vpop.permute.xlu0 %5294
      %5296 = vrot.lane.b32.xlu0 %v3923, 16
      %v5297 = vpop.permute.xlu0 %5296
      %5298 = vrot.lane.b32.xlu0 %v3926, 16
      %v5299 = vpop.permute.xlu0 %5298
      %5300 = vrot.lane.b32.xlu0 %v3928, 16
      %v5301 = vpop.permute.xlu0 %5300
      %5302 = vrot.lane.b32.xlu0 %v3931, 16
      %v5303 = vpop.permute.xlu0 %5302
      %5304 = vrot.lane.b32.xlu0 %v3933, 16
      %v5305 = vpop.permute.xlu0 %5304
      %5306 = vrot.lane.b32.xlu0 %v3936, 16
      %v5307 = vpop.permute.xlu0 %5306
      %5308 = vrot.lane.b32.xlu0 %v3938, 16
      %v5309 = vpop.permute.xlu0 %5308
      %5310 = vrot.lane.b32.xlu0 %v3941, 16
      %v5311 = vpop.permute.xlu0 %5310
      %5312 = vrot.lane.b32.xlu0 %v3943, 16
      %v5313 = vpop.permute.xlu0 %5312
      %5314 = vrot.lane.b32.xlu0 %v3946, 16
      %v5315 = vpop.permute.xlu0 %5314
      %5316 = vrot.lane.b32.xlu0 %v3948, 16
      %v5317 = vpop.permute.xlu0 %5316
      %5318 = vrot.lane.b32.xlu0 %v3951, 16
      %v5319 = vpop.permute.xlu0 %5318
      %5320 = vrot.lane.b32.xlu0 %v3953, 16
      %v5321 = vpop.permute.xlu0 %5320
      %5322 = vrot.lane.b32.xlu0 %v3956, 16
      %v5323 = vpop.permute.xlu0 %5322
      %5324 = vrot.lane.b32.xlu0 %v3958, 16
      %v5325 = vpop.permute.xlu0 %5324
      %5326 = vrot.lane.b32.xlu0 %v3961, 16
      %v5327 = vpop.permute.xlu0 %5326
      %5328 = vrot.lane.b32.xlu0 %v3963, 16
      %v5329 = vpop.permute.xlu0 %5328
      %5394 = vrot.lane.b32.xlu0 %v5027, 24
      %v5395 = vpop.permute.xlu0 %5394
      %5396 = vrot.lane.b32.xlu0 %v5029, 24
      %v5397 = vpop.permute.xlu0 %5396
      %5398 = vrot.lane.b32.xlu0 %v5032, 24
      %v5399 = vpop.permute.xlu0 %5398
      %5400 = vrot.lane.b32.xlu0 %v5034, 24
      %v5401 = vpop.permute.xlu0 %5400
      %5402 = vrot.lane.b32.xlu0 %v5037, 24
      %v5403 = vpop.permute.xlu0 %5402
      %5404 = vrot.lane.b32.xlu0 %v5039, 24
      %v5405 = vpop.permute.xlu0 %5404
      %5406 = vrot.lane.b32.xlu0 %v5042, 24
      %v5407 = vpop.permute.xlu0 %5406
      %5408 = vrot.lane.b32.xlu0 %v5044, 24
      %v5409 = vpop.permute.xlu0 %5408
      %5410 = vrot.lane.b32.xlu0 %v5047, 24
      %v5411 = vpop.permute.xlu0 %5410
      %5412 = vrot.lane.b32.xlu0 %v5049, 24
      %v5413 = vpop.permute.xlu0 %5412
      %5414 = vrot.lane.b32.xlu0 %v5052, 24
      %v5415 = vpop.permute.xlu0 %5414
      %5416 = vrot.lane.b32.xlu0 %v5054, 24
      %v5417 = vpop.permute.xlu0 %5416
      %5418 = vrot.lane.b32.xlu0 %v5057, 24
      %v5419 = vpop.permute.xlu0 %5418
      %5420 = vrot.lane.b32.xlu0 %v5059, 24
      %v5421 = vpop.permute.xlu0 %5420
      %5422 = vrot.lane.b32.xlu0 %v5062, 24
      %v5423 = vpop.permute.xlu0 %5422
      %5424 = vrot.lane.b32.xlu0 %v5064, 24
      %v5425 = vpop.permute.xlu0 %5424
      %5426 = vrot.lane.b32.xlu0 %v5067, 24
      %v5427 = vpop.permute.xlu0 %5426
      %5428 = vrot.lane.b32.xlu0 %v5069, 24
      %v5429 = vpop.permute.xlu0 %5428
      %5430 = vrot.lane.b32.xlu0 %v5072, 24
      %v5431 = vpop.permute.xlu0 %5430
      %5432 = vrot.lane.b32.xlu0 %v5074, 24
      %v5433 = vpop.permute.xlu0 %5432
      %5434 = vrot.lane.b32.xlu0 %v5077, 24
      %v5435 = vpop.permute.xlu0 %5434
      %5436 = vrot.lane.b32.xlu0 %v5079, 24
      %v5437 = vpop.permute.xlu0 %5436
      %5438 = vrot.lane.b32.xlu0 %v5082, 24
      %v5439 = vpop.permute.xlu0 %5438
      %5440 = vrot.lane.b32.xlu0 %v5084, 24
      %v5441 = vpop.permute.xlu0 %5440
      %5442 = vrot.lane.b32.xlu0 %v5087, 24
      %v5443 = vpop.permute.xlu0 %5442
      %5444 = vrot.lane.b32.xlu0 %v5089, 24
      %v5445 = vpop.permute.xlu0 %5444
      %5446 = vrot.lane.b32.xlu0 %v5092, 24
      %v5447 = vpop.permute.xlu0 %5446
      %5448 = vrot.lane.b32.xlu0 %v5094, 24
      %v5449 = vpop.permute.xlu0 %5448
      %5450 = vrot.lane.b32.xlu0 %v5097, 24
      %v5451 = vpop.permute.xlu0 %5450
      %5452 = vrot.lane.b32.xlu0 %v5099, 24
      %v5453 = vpop.permute.xlu0 %5452
      %5454 = vrot.lane.b32.xlu0 %v5102, 24
      %v5455 = vpop.permute.xlu0 %5454
      %5456 = vrot.lane.b32.xlu0 %v5104, 24
      %v5457 = vpop.permute.xlu0 %5456
      %v5490 = vsel %vm622, %v1604, %v5139
      %v5491 = vsel %vm622, %v1606, %v5141
      %v5492 = vsel %vm622, %v1609, %v5143
      %v5493 = vsel %vm622, %v1611, %v5145
      %v5494 = vsel %vm622, %v1614, %v5147
      %v5495 = vsel %vm622, %v1616, %v5149
      %v5496 = vsel %vm622, %v1619, %v5151
      %v5497 = vsel %vm622, %v1621, %v5153
      %v5498 = vsel %vm622, %v1624, %v5155
      %v5499 = vsel %vm622, %v1626, %v5157
      %v5500 = vsel %vm622, %v1629, %v5159
      %v5501 = vsel %vm622, %v1631, %v5161
      %v5502 = vsel %vm622, %v1634, %v5163
      %v5503 = vsel %vm622, %v1636, %v5165
      %v5504 = vsel %vm622, %v1639, %v5167
      %v5505 = vsel %vm622, %v1641, %v5169
      %v5506 = vsel %vm622, %v1644, %v5171
      %v5507 = vsel %vm622, %v1646, %v5173
      %v5508 = vsel %vm622, %v1649, %v5175
      %v5509 = vsel %vm622, %v1651, %v5177
      %v5510 = vsel %vm622, %v1654, %v5179
      %v5511 = vsel %vm622, %v1656, %v5181
      %v5512 = vsel %vm622, %v1659, %v5183
      %v5513 = vsel %vm622, %v1661, %v5185
      %v5514 = vsel %vm622, %v1664, %v5187
      %v5515 = vsel %vm622, %v1666, %v5189
      %v5516 = vsel %vm622, %v1669, %v5191
      %v5517 = vsel %vm622, %v1671, %v5193
      %v5518 = vsel %vm622, %v1674, %v5195
      %v5519 = vsel %vm622, %v1676, %v5197
      %v5520 = vsel %vm622, %v1679, %v5199
      %v5521 = vsel %vm622, %v1681, %v5201
      %vm5522 = vcmask 130048
      %v5523 = vsel %vm5522, %v5490, %v5267
      %v5524 = vsel %vm5522, %v5491, %v5269
      %v5525 = vsel %vm5522, %v5492, %v5271
      %v5526 = vsel %vm5522, %v5493, %v5273
      %v5527 = vsel %vm5522, %v5494, %v5275
      %v5528 = vsel %vm5522, %v5495, %v5277
      %v5529 = vsel %vm5522, %v5496, %v5279
      %v5530 = vsel %vm5522, %v5497, %v5281
      %v5531 = vsel %vm5522, %v5498, %v5283
      %v5532 = vsel %vm5522, %v5499, %v5285
      %v5533 = vsel %vm5522, %v5500, %v5287
      %v5534 = vsel %vm5522, %v5501, %v5289
      %v5535 = vsel %vm5522, %v5502, %v5291
      %v5536 = vsel %vm5522, %v5503, %v5293
      %v5537 = vsel %vm5522, %v5504, %v5295
      %v5538 = vsel %vm5522, %v5505, %v5297
      %v5539 = vsel %vm5522, %v5506, %v5299
      %v5540 = vsel %vm5522, %v5507, %v5301
      %v5541 = vsel %vm5522, %v5508, %v5303
      %v5542 = vsel %vm5522, %v5509, %v5305
      %v5543 = vsel %vm5522, %v5510, %v5307
      %v5544 = vsel %vm5522, %v5511, %v5309
      %v5545 = vsel %vm5522, %v5512, %v5311
      %v5546 = vsel %vm5522, %v5513, %v5313
      %v5547 = vsel %vm5522, %v5514, %v5315
      %v5548 = vsel %vm5522, %v5515, %v5317
      %v5549 = vsel %vm5522, %v5516, %v5319
      %v5550 = vsel %vm5522, %v5517, %v5321
      %v5551 = vsel %vm5522, %v5518, %v5323
      %v5552 = vsel %vm5522, %v5519, %v5325
      %v5553 = vsel %vm5522, %v5520, %v5327
      %v5554 = vsel %vm5522, %v5521, %v5329
      %vm5555 = vcmask 195584
      %v5556 = vsel %vm5555, %v5523, %v5395
      %v5557 = vsel %vm5555, %v5524, %v5397
      %v5558 = vsel %vm5555, %v5525, %v5399
      %v5559 = vsel %vm5555, %v5526, %v5401
      %v5560 = vsel %vm5555, %v5527, %v5403
      %v5561 = vsel %vm5555, %v5528, %v5405
      %v5562 = vsel %vm5555, %v5529, %v5407
      %v5563 = vsel %vm5555, %v5530, %v5409
      %v5564 = vsel %vm5555, %v5531, %v5411
      %v5565 = vsel %vm5555, %v5532, %v5413
      %v5566 = vsel %vm5555, %v5533, %v5415
      %v5567 = vsel %vm5555, %v5534, %v5417
      %v5568 = vsel %vm5555, %v5535, %v5419
      %v5569 = vsel %vm5555, %v5536, %v5421
      %v5570 = vsel %vm5555, %v5537, %v5423
      %v5571 = vsel %vm5555, %v5538, %v5425
      %v5572 = vsel %vm5555, %v5539, %v5427
      %v5573 = vsel %vm5555, %v5540, %v5429
      %v5574 = vsel %vm5555, %v5541, %v5431
      %v5575 = vsel %vm5555, %v5542, %v5433
      %v5576 = vsel %vm5555, %v5543, %v5435
      %v5577 = vsel %vm5555, %v5544, %v5437
      %v5578 = vsel %vm5555, %v5545, %v5439
      %v5579 = vsel %vm5555, %v5546, %v5441
      %v5580 = vsel %vm5555, %v5547, %v5443
      %v5581 = vsel %vm5555, %v5548, %v5445
      %v5582 = vsel %vm5555, %v5549, %v5447
      %v5583 = vsel %vm5555, %v5550, %v5449
      %v5584 = vsel %vm5555, %v5551, %v5451
      %v5585 = vsel %vm5555, %v5552, %v5453
      %v5586 = vsel %vm5555, %v5553, %v5455
      %v5587 = vsel %vm5555, %v5554, %v5457
      %v5588 = vpack.c.bf16 %v5556, %v5556
      %v5589 = vpack.c.bf16 %v5557, %v5557
      %v5590 = vpack.c.bf16 %v5558, %v5558
      %v5591 = vpack.c.bf16 %v5559, %v5559
      %v5592 = vpack.c.bf16 %v5560, %v5560
      %v5593 = vpack.c.bf16 %v5561, %v5561
      %v5594 = vpack.c.bf16 %v5562, %v5562
      %v5595 = vpack.c.bf16 %v5563, %v5563
      %v5596 = vpack.c.bf16 %v5564, %v5564
      %v5597 = vpack.c.bf16 %v5565, %v5565
      %v5598 = vpack.c.bf16 %v5566, %v5566
      %v5599 = vpack.c.bf16 %v5567, %v5567
      %v5600 = vpack.c.bf16 %v5568, %v5568
      %v5601 = vpack.c.bf16 %v5569, %v5569
      %v5602 = vpack.c.bf16 %v5570, %v5570
      %v5603 = vpack.c.bf16 %v5571, %v5571
      %v5604 = vpack.c.bf16 %v5572, %v5572
      %v5605 = vpack.c.bf16 %v5573, %v5573
      %v5606 = vpack.c.bf16 %v5574, %v5574
      %v5607 = vpack.c.bf16 %v5575, %v5575
      %v5608 = vpack.c.bf16 %v5576, %v5576
      %v5609 = vpack.c.bf16 %v5577, %v5577
      %v5610 = vpack.c.bf16 %v5578, %v5578
      %v5611 = vpack.c.bf16 %v5579, %v5579
      %v5612 = vpack.c.bf16 %v5580, %v5580
      %v5613 = vpack.c.bf16 %v5581, %v5581
      %v5614 = vpack.c.bf16 %v5582, %v5582
      %v5615 = vpack.c.bf16 %v5583, %v5583
      %v5616 = vpack.c.bf16 %v5584, %v5584
      %v5617 = vpack.c.bf16 %v5585, %v5585
      %v5618 = vpack.c.bf16 %v5586, %v5586
      %v5619 = vpack.c.bf16 %v5587, %v5587
      %vm5620 = vcmask 257024
      %5621 = vst.msk [vmem:[%s300] sm:$0xf] %vm5620, %v5588
      %5622 = vst.msk [vmem:[%s300 + $0x4] sm:$0xf] %vm5620, %v5589
      %5623 = vst.msk [vmem:[%s300 + $0x8] sm:$0xf] %vm5620, %v5590
      %5624 = vst.msk [vmem:[%s300 + $0xc] sm:$0xf] %vm5620, %v5591
      %5625 = vst.msk [vmem:[%s300 + $0x10] sm:$0xf] %vm5620, %v5592
      %5626 = vst.msk [vmem:[%s300 + $0x14] sm:$0xf] %vm5620, %v5593
      %5627 = vst.msk [vmem:[%s300 + $0x18] sm:$0xf] %vm5620, %v5594
      %5628 = vst.msk [vmem:[%s300 + $0x1c] sm:$0xf] %vm5620, %v5595
      %5629 = vst.msk [vmem:[%s300 + $0x20] sm:$0xf] %vm5620, %v5596
      %5630 = vst.msk [vmem:[%s300 + $0x24] sm:$0xf] %vm5620, %v5597
      %5631 = vst.msk [vmem:[%s300 + $0x28] sm:$0xf] %vm5620, %v5598
      %5632 = vst.msk [vmem:[%s300 + $0x2c] sm:$0xf] %vm5620, %v5599
      %5633 = vst.msk [vmem:[%s300 + $0x30] sm:$0xf] %vm5620, %v5600
      %5634 = vst.msk [vmem:[%s300 + $0x34] sm:$0xf] %vm5620, %v5601
      %5635 = vst.msk [vmem:[%s300 + $0x38] sm:$0xf] %vm5620, %v5602
      %5636 = vst.msk [vmem:[%s300 + $0x3c] sm:$0xf] %vm5620, %v5603
      %5637 = vst.msk [vmem:[%s300 + $0x40] sm:$0xf] %vm5620, %v5604
      %5638 = vst.msk [vmem:[%s300 + $0x44] sm:$0xf] %vm5620, %v5605
      %5639 = vst.msk [vmem:[%s300 + $0x48] sm:$0xf] %vm5620, %v5606
      %5640 = vst.msk [vmem:[%s300 + $0x4c] sm:$0xf] %vm5620, %v5607
      %5641 = vst.msk [vmem:[%s300 + $0x50] sm:$0xf] %vm5620, %v5608
      %5642 = vst.msk [vmem:[%s300 + $0x54] sm:$0xf] %vm5620, %v5609
      %5643 = vst.msk [vmem:[%s300 + $0x58] sm:$0xf] %vm5620, %v5610
      %5644 = vst.msk [vmem:[%s300 + $0x5c] sm:$0xf] %vm5620, %v5611
      %5645 = vst.msk [vmem:[%s300 + $0x60] sm:$0xf] %vm5620, %v5612
      %5646 = vst.msk [vmem:[%s300 + $0x64] sm:$0xf] %vm5620, %v5613
      %5647 = vst.msk [vmem:[%s300 + $0x68] sm:$0xf] %vm5620, %v5614
      %5648 = vst.msk [vmem:[%s300 + $0x6c] sm:$0xf] %vm5620, %v5615
      %5649 = vst.msk [vmem:[%s300 + $0x70] sm:$0xf] %vm5620, %v5616
      %5650 = vst.msk [vmem:[%s300 + $0x74] sm:$0xf] %vm5620, %v5617
      %5651 = vst.msk [vmem:[%s300 + $0x78] sm:$0xf] %vm5620, %v5618
      %5652 = vst.msk [vmem:[%s300 + $0x7c] sm:$0xf] %vm5620, %v5619
      %s5653 = smul.u32 32, %s20
      %p5654 = scmp.lt.s32.totalorder %s19, 1
      %s5655 = scalar_select %p5654, %s19, 1
      %p5656 = scmp.lt.s32.totalorder %s5653, 31
      %s5657 = scalar_select %p5656, %s5653, 31
      %s5658 = smul.addr %s5655, 32
      %s5659 = sadd.s32 %s5657, %s5658
      %s5660 = smul.addr %s5659, 4
      %s5661 = scalar_lea.vmem %s4, %s5660
      // Predicated region
      $region37: #{_lambda_.4} parent=35 // pred_check
        %p5662 = pneg %p153
      $region38: #{_lambda_.4} parent=35 // pred_check_branch
        %5664 = sbr.rel (%p5662) target = $region40
      $region39: #{_lambda_.4} parent=35 // pred_region
        %s5665 = smul.u32 32, %s20
      $region40: #{_lambda_.4} parent=35 // pred_fallthru
        _
    $region36: #{_lambda_.4} parent=5 // pred_fallthru
      _
    %p5666 = scmp.le.s32.totalorder 2, %s10
    // Predicated region
    $region41: #{_lambda_.4} parent=5 // pred_check
      %p5667 = pneg %p5666
    $region42: #{_lambda_.4} parent=5 // pred_check_branch
      %5669 = sbr.rel (%p5667) target = $region44
    $region43: #{_lambda_.4} parent=5 // pred_region
      %s5670 = ssub.s32 %s10, 2
      // Predicated region
      $region45: #{_lambda_.4} parent=43 // pred_check
        %p5671 = pneg %p159
      $region46: #{_lambda_.4} parent=43 // pred_check_branch
        %5673 = sbr.rel (%p5671) target = $region48
      $region47: #{_lambda_.4} parent=43 // pred_region
        %s5674 = smul.u32 32, %s22
        %p5675 = scmp.lt.s32.totalorder %s21, 1
        %s5676 = scalar_select %p5675, %s21, 1
        %p5677 = scmp.lt.s32.totalorder %s5674, 31
        %s5678 = scalar_select %p5677, %s5674, 31
        %s5679 = smul.addr %s5676, 32
        %s5680 = sadd.s32 %s5678, %s5679
        %s5681 = smul.addr %s5680, 4
        %s5682 = scalar_lea.vmem %s4, %s5681
      $region48: #{_lambda_.4} parent=43 // pred_fallthru
        _
    $region44: #{_lambda_.4} parent=5 // pred_fallthru
      _
  $region6: #{_lambda_.4} parent=0 // loop_footer
    %s14 = sadd.s32 1, %s10
  $region7: #{_lambda_.4} parent=0 // loop_footer_branch
    %9 = sbr.rel target = $region3
  $region8: #{_lambda_.4} parent=0 // loop_exit
    _

// kernel: _lambda_.5
$region0: #{_lambda_.5}
  #allocation0 [shape = 'u32[]', space=smem, size = 0x4, offset = 0x4, fixed_abs, tag = 'smem constant byte address 0x4 - core index']
  #allocation1 [shape = 'u32[72,128]{1,0:T(1,128)}', space=vmem, size = 0x9000, scoped, tag = 'internal scratch']
  %s0 = inlined_call_operand.vmem [shape: bf16[512,32], index: 0, kind: input, shape index: {}]
  %s1 = inlined_call_operand.vmem [shape: bf16[32,32], index: 1, kind: input, shape index: {}]
  %s2 = inlined_call_operand.vmem [shape: f32[1,32], index: 2, kind: input, shape index: {}]
  %s3 = inlined_call_operand.hbm [shape: f32[512,32], index: 3, kind: output, shape index: {}]
  %s4 = sld [smem:[#allocation0]]
  $region22: #{_lambda_.5} parent=0
    _
  %s6 = ssub.s32 1, %s4
  %s7 = scalar_select 0, %s6, %s4
  $region1: #{_lambda_.5} parent=0
    #allocation2 [shape = 'u8[262144]{0}', space=vmem, size = 0x40000, scoped, tag = 'output window, operand 0, single buffered']
    #allocation3 [shape = 's32[1]{0}', space=sflag, size = 0x4, scoped, tag = 'scoped memory for _lambda_.5']
    %8 = vsyncpa [#allocation3], 0
    // Predicated region
    $region2: #{_lambda_.5} parent=1 // pred_check
      _
    $region3: #{_lambda_.5} parent=1 // pred_check_branch
      %10 = sbr.rel (0) target = $region5
    $region4: #{_lambda_.5} parent=1 // pred_region
      _
    $region5: #{_lambda_.5} parent=1 // pred_fallthru
      _
    // Predicated region
    $region6: #{_lambda_.5} parent=1 // pred_check
      _
    $region7: #{_lambda_.5} parent=1 // pred_check_branch
      %12 = sbr.rel (0) target = $region9
    $region8: #{_lambda_.5} parent=1 // pred_region
      _
    $region9: #{_lambda_.5} parent=1 // pred_fallthru
      _
    // Predicated region
    $region10: #{_lambda_.5} parent=1 // pred_check
      _
    $region11: #{_lambda_.5} parent=1 // pred_check_branch
      %14 = sbr.rel (0) target = $region13
    $region12: #{_lambda_.5} parent=1 // pred_region
      _
    $region13: #{_lambda_.5} parent=1 // pred_fallthru
      _
    %v16 = vld [vmem:[%s0] sm:$0xf]
    %v17 = vld [vmem:[%s0 + $0x4] sm:$0xf]
    %v18 = vld [vmem:[%s0 + $0x8] sm:$0xf]
    %v19 = vld [vmem:[%s0 + $0xc] sm:$0xf]
    %v20 = vld [vmem:[%s0 + $0x10] sm:$0xf]
    %v21 = vld [vmem:[%s0 + $0x14] sm:$0xf]
    %v22 = vld [vmem:[%s0 + $0x18] sm:$0xf]
    %v23 = vld [vmem:[%s0 + $0x1c] sm:$0xf]
    %v24 = vld [vmem:[%s0 + $0x20] sm:$0xf]
    %v25 = vld [vmem:[%s0 + $0x24] sm:$0xf]
    %v26 = vld [vmem:[%s0 + $0x28] sm:$0xf]
    %v27 = vld [vmem:[%s0 + $0x2c] sm:$0xf]
    %v28 = vld [vmem:[%s0 + $0x30] sm:$0xf]
    %v29 = vld [vmem:[%s0 + $0x34] sm:$0xf]
    %v30 = vld [vmem:[%s0 + $0x38] sm:$0xf]
    %v31 = vld [vmem:[%s0 + $0x3c] sm:$0xf]
    %v32 = vld [vmem:[%s0 + $0x40] sm:$0xf]
    %v33 = vld [vmem:[%s0 + $0x44] sm:$0xf]
    %v34 = vld [vmem:[%s0 + $0x48] sm:$0xf]
    %v35 = vld [vmem:[%s0 + $0x4c] sm:$0xf]
    %v36 = vld [vmem:[%s0 + $0x50] sm:$0xf]
    %v37 = vld [vmem:[%s0 + $0x54] sm:$0xf]
    %v38 = vld [vmem:[%s0 + $0x58] sm:$0xf]
    %v39 = vld [vmem:[%s0 + $0x5c] sm:$0xf]
    %v40 = vld [vmem:[%s0 + $0x60] sm:$0xf]
    %v41 = vld [vmem:[%s0 + $0x64] sm:$0xf]
    %v42 = vld [vmem:[%s0 + $0x68] sm:$0xf]
    %v43 = vld [vmem:[%s0 + $0x6c] sm:$0xf]
    %v44 = vld [vmem:[%s0 + $0x70] sm:$0xf]
    %v45 = vld [vmem:[%s0 + $0x74] sm:$0xf]
    %v46 = vld [vmem:[%s0 + $0x78] sm:$0xf]
    %v47 = vld [vmem:[%s0 + $0x7c] sm:$0xf]
    %v48 = vld [vmem:[%s0 + $0x80] sm:$0xf]
    %v49 = vld [vmem:[%s0 + $0x84] sm:$0xf]
    %v50 = vld [vmem:[%s0 + $0x88] sm:$0xf]
    %v51 = vld [vmem:[%s0 + $0x8c] sm:$0xf]
    %v52 = vld [vmem:[%s0 + $0x90] sm:$0xf]
    %v53 = vld [vmem:[%s0 + $0x94] sm:$0xf]
    %v54 = vld [vmem:[%s0 + $0x98] sm:$0xf]
    %v55 = vld [vmem:[%s0 + $0x9c] sm:$0xf]
    %v56 = vld [vmem:[%s0 + $0xa0] sm:$0xf]
    %v57 = vld [vmem:[%s0 + $0xa4] sm:$0xf]
    %v58 = vld [vmem:[%s0 + $0xa8] sm:$0xf]
    %v59 = vld [vmem:[%s0 + $0xac] sm:$0xf]
    %v60 = vld [vmem:[%s0 + $0xb0] sm:$0xf]
    %v61 = vld [vmem:[%s0 + $0xb4] sm:$0xf]
    %v62 = vld [vmem:[%s0 + $0xb8] sm:$0xf]
    %v63 = vld [vmem:[%s0 + $0xbc] sm:$0xf]
    %v64 = vld [vmem:[%s0 + $0xc0] sm:$0xf]
    %v65 = vld [vmem:[%s0 + $0xc4] sm:$0xf]
    %v66 = vld [vmem:[%s0 + $0xc8] sm:$0xf]
    %v67 = vld [vmem:[%s0 + $0xcc] sm:$0xf]
    %v68 = vld [vmem:[%s0 + $0xd0] sm:$0xf]
    %v69 = vld [vmem:[%s0 + $0xd4] sm:$0xf]
    %v70 = vld [vmem:[%s0 + $0xd8] sm:$0xf]
    %v71 = vld [vmem:[%s0 + $0xdc] sm:$0xf]
    %v72 = vld [vmem:[%s0 + $0xe0] sm:$0xf]
    %v73 = vld [vmem:[%s0 + $0xe4] sm:$0xf]
    %v74 = vld [vmem:[%s0 + $0xe8] sm:$0xf]
    %v75 = vld [vmem:[%s0 + $0xec] sm:$0xf]
    %v76 = vld [vmem:[%s0 + $0xf0] sm:$0xf]
    %v77 = vld [vmem:[%s0 + $0xf4] sm:$0xf]
    %v78 = vld [vmem:[%s0 + $0xf8] sm:$0xf]
    %v79 = vld [vmem:[%s0 + $0xfc] sm:$0xf]
    %v80 = vld [vmem:[%s1] sm:$0xf]
    %v81 = vld [vmem:[%s1 + $0x4] sm:$0xf]
    %v82 = vld [vmem:[%s1 + $0x8] sm:$0xf]
    %v83 = vld [vmem:[%s1 + $0xc] sm:$0xf]
    %v84 = vld [vmem:[%s2] sm:$0x1]
    %v86 = vperm.slane %v84, 0
    %v152 = vunpack.c.l.b16 %v16
    %v153 = vunpack.c.l.b16 %v17
    %v154 = vunpack.c.l.b16 %v18
    %v155 = vunpack.c.l.b16 %v19
    %v156 = vunpack.c.l.b16 %v20
    %v157 = vunpack.c.l.b16 %v21
    %v158 = vunpack.c.l.b16 %v22
    %v159 = vunpack.c.l.b16 %v23
    %v160 = vunpack.c.l.b16 %v24
    %v161 = vunpack.c.l.b16 %v25
    %v162 = vunpack.c.l.b16 %v26
    %v163 = vunpack.c.l.b16 %v27
    %v164 = vunpack.c.l.b16 %v28
    %v165 = vunpack.c.l.b16 %v29
    %v166 = vunpack.c.l.b16 %v30
    %v167 = vunpack.c.l.b16 %v31
    %v168 = vunpack.c.l.b16 %v32
    %v169 = vunpack.c.l.b16 %v33
    %v170 = vunpack.c.l.b16 %v34
    %v171 = vunpack.c.l.b16 %v35
    %v172 = vunpack.c.l.b16 %v36
    %v173 = vunpack.c.l.b16 %v37
    %v174 = vunpack.c.l.b16 %v38
    %v175 = vunpack.c.l.b16 %v39
    %v176 = vunpack.c.l.b16 %v40
    %v177 = vunpack.c.l.b16 %v41
    %v178 = vunpack.c.l.b16 %v42
    %v179 = vunpack.c.l.b16 %v43
    %v180 = vunpack.c.l.b16 %v44
    %v181 = vunpack.c.l.b16 %v45
    %v182 = vunpack.c.l.b16 %v46
    %v183 = vunpack.c.l.b16 %v47
    %v184 = vunpack.c.l.b16 %v48
    %v185 = vunpack.c.l.b16 %v49
    %v186 = vunpack.c.l.b16 %v50
    %v187 = vunpack.c.l.b16 %v51
    %v188 = vunpack.c.l.b16 %v52
    %v189 = vunpack.c.l.b16 %v53
    %v190 = vunpack.c.l.b16 %v54
    %v191 = vunpack.c.l.b16 %v55
    %v192 = vunpack.c.l.b16 %v56
    %v193 = vunpack.c.l.b16 %v57
    %v194 = vunpack.c.l.b16 %v58
    %v195 = vunpack.c.l.b16 %v59
    %v196 = vunpack.c.l.b16 %v60
    %v197 = vunpack.c.l.b16 %v61
    %v198 = vunpack.c.l.b16 %v62
    %v199 = vunpack.c.l.b16 %v63
    %v200 = vunpack.c.l.b16 %v64
    %v201 = vunpack.c.l.b16 %v65
    %v202 = vunpack.c.l.b16 %v66
    %v203 = vunpack.c.l.b16 %v67
    %v204 = vunpack.c.l.b16 %v68
    %v205 = vunpack.c.l.b16 %v69
    %v206 = vunpack.c.l.b16 %v70
    %v207 = vunpack.c.l.b16 %v71
    %v208 = vunpack.c.l.b16 %v72
    %v209 = vunpack.c.l.b16 %v73
    %v210 = vunpack.c.l.b16 %v74
    %v211 = vunpack.c.l.b16 %v75
    %v212 = vunpack.c.l.b16 %v76
    %v213 = vunpack.c.l.b16 %v77
    %v214 = vunpack.c.l.b16 %v78
    %v215 = vunpack.c.l.b16 %v79
    %v216 = vpack.c.b16 %v153, %v152
    %v217 = vpack.c.b16 %v155, %v154
    %v218 = vpack.c.b16 %v157, %v156
    %v219 = vpack.c.b16 %v159, %v158
    %v220 = vpack.c.b16 %v161, %v160
    %v221 = vpack.c.b16 %v163, %v162
    %v222 = vpack.c.b16 %v165, %v164
    %v223 = vpack.c.b16 %v167, %v166
    %v224 = vpack.c.b16 %v169, %v168
    %v225 = vpack.c.b16 %v171, %v170
    %v226 = vpack.c.b16 %v173, %v172
    %v227 = vpack.c.b16 %v175, %v174
    %v228 = vpack.c.b16 %v177, %v176
    %v229 = vpack.c.b16 %v179, %v178
    %v230 = vpack.c.b16 %v181, %v180
    %v231 = vpack.c.b16 %v183, %v182
    %v232 = vpack.c.b16 %v185, %v184
    %v233 = vpack.c.b16 %v187, %v186
    %v234 = vpack.c.b16 %v189, %v188
    %v235 = vpack.c.b16 %v191, %v190
    %v236 = vpack.c.b16 %v193, %v192
    %v237 = vpack.c.b16 %v195, %v194
    %v238 = vpack.c.b16 %v197, %v196
    %v239 = vpack.c.b16 %v199, %v198
    %v240 = vpack.c.b16 %v201, %v200
    %v241 = vpack.c.b16 %v203, %v202
    %v242 = vpack.c.b16 %v205, %v204
    %v243 = vpack.c.b16 %v207, %v206
    %v244 = vpack.c.b16 %v209, %v208
    %v245 = vpack.c.b16 %v211, %v210
    %v246 = vpack.c.b16 %v213, %v212
    %v247 = vpack.c.b16 %v215, %v214
    %v252 = vunpack.c.l.b16 %v80
    %v253 = vunpack.c.l.b16 %v81
    %v254 = vunpack.c.l.b16 %v82
    %v255 = vunpack.c.l.b16 %v83
    %v256 = vpack.c.b16 %v253, %v252
    %v257 = vpack.c.b16 %v255, %v254
    %vm260 = vcmask 261120
    %v262 = vsel %vm260, %v216, 0
    %v265 = vsel %vm260, %v217, 0
    %v268 = vsel %vm260, %v218, 0
    %v271 = vsel %vm260, %v219, 0
    %v274 = vsel %vm260, %v220, 0
    %v277 = vsel %vm260, %v221, 0
    %v280 = vsel %vm260, %v222, 0
    %v283 = vsel %vm260, %v223, 0
    %v286 = vsel %vm260, %v224, 0
    %v289 = vsel %vm260, %v225, 0
    %v292 = vsel %vm260, %v226, 0
    %v295 = vsel %vm260, %v227, 0
    %v298 = vsel %vm260, %v228, 0
    %v301 = vsel %vm260, %v229, 0
    %v304 = vsel %vm260, %v230, 0
    %v307 = vsel %vm260, %v231, 0
    %v310 = vsel %vm260, %v232, 0
    %v313 = vsel %vm260, %v233, 0
    %v316 = vsel %vm260, %v234, 0
    %v319 = vsel %vm260, %v235, 0
    %v322 = vsel %vm260, %v236, 0
    %v325 = vsel %vm260, %v237, 0
    %v328 = vsel %vm260, %v238, 0
    %v331 = vsel %vm260, %v239, 0
    %v334 = vsel %vm260, %v240, 0
    %v337 = vsel %vm260, %v241, 0
    %v340 = vsel %vm260, %v242, 0
    %v343 = vsel %vm260, %v243, 0
    %v346 = vsel %vm260, %v244, 0
    %v349 = vsel %vm260, %v245, 0
    %v352 = vsel %vm260, %v246, 0
    %v355 = vsel %vm260, %v247, 0
    %357 = vmatpush.bf16.msra.mxu0 0
    %358 = vmatpush.bf16.msra.mxu0 0
    %359 = vmatpush.bf16.msra.mxu0 0
    %360 = vmatpush.bf16.msra.mxu0 0
    %361 = vmatpush.bf16.msra.mxu0 0
    %362 = vmatpush.bf16.msra.mxu0 0
    %363 = vmatpush.bf16.msra.mxu0 %v257
    %364 = vmatpush.bf16.msra.mxu0 %v256
    %365 = vmatmul.bf16.gmra.mxu0 %v262
    %v366 = vpop.f32.mrf.mxu0
    %v367 = vadd.f32 %v86, %v366
    %v368 = vpop.f32.mrf.mxu0
    %v369 = vadd.f32 %v86, %v368
    %370 = vmatmul.bf16.gmra.mxu0 %v265
    %v371 = vpop.f32.mrf.mxu0
    %v372 = vadd.f32 %v86, %v371
    %v373 = vpop.f32.mrf.mxu0
    %v374 = vadd.f32 %v86, %v373
    %375 = vmatmul.bf16.gmra.mxu0 %v268
    %v376 = vpop.f32.mrf.mxu0
    %v377 = vadd.f32 %v86, %v376
    %v378 = vpop.f32.mrf.mxu0
    %v379 = vadd.f32 %v86, %v378
    %380 = vmatmul.bf16.gmra.mxu0 %v271
    %v381 = vpop.f32.mrf.mxu0
    %v382 = vadd.f32 %v86, %v381
    %v383 = vpop.f32.mrf.mxu0
    %v384 = vadd.f32 %v86, %v383
    %385 = vmatmul.bf16.gmra.mxu0 %v274
    %v386 = vpop.f32.mrf.mxu0
    %v387 = vadd.f32 %v86, %v386
    %v388 = vpop.f32.mrf.mxu0
    %v389 = vadd.f32 %v86, %v388
    %390 = vmatmul.bf16.gmra.mxu0 %v277
    %v391 = vpop.f32.mrf.mxu0
    %v392 = vadd.f32 %v86, %v391
    %v393 = vpop.f32.mrf.mxu0
    %v394 = vadd.f32 %v86, %v393
    %395 = vmatmul.bf16.gmra.mxu0 %v280
    %v396 = vpop.f32.mrf.mxu0
    %v397 = vadd.f32 %v86, %v396
    %v398 = vpop.f32.mrf.mxu0
    %v399 = vadd.f32 %v86, %v398
    %400 = vmatmul.bf16.gmra.mxu0 %v283
    %v401 = vpop.f32.mrf.mxu0
    %v402 = vadd.f32 %v86, %v401
    %v403 = vpop.f32.mrf.mxu0
    %v404 = vadd.f32 %v86, %v403
    %405 = vmatmul.bf16.gmra.mxu0 %v286
    %v406 = vpop.f32.mrf.mxu0
    %v407 = vadd.f32 %v86, %v406
    %v408 = vpop.f32.mrf.mxu0
    %v409 = vadd.f32 %v86, %v408
    %410 = vmatmul.bf16.gmra.mxu0 %v289
    %v411 = vpop.f32.mrf.mxu0
    %v412 = vadd.f32 %v86, %v411
    %v413 = vpop.f32.mrf.mxu0
    %v414 = vadd.f32 %v86, %v413
    %415 = vmatmul.bf16.gmra.mxu0 %v292
    %v416 = vpop.f32.mrf.mxu0
    %v417 = vadd.f32 %v86, %v416
    %v418 = vpop.f32.mrf.mxu0
    %v419 = vadd.f32 %v86, %v418
    %420 = vmatmul.bf16.gmra.mxu0 %v295
    %v421 = vpop.f32.mrf.mxu0
    %v422 = vadd.f32 %v86, %v421
    %v423 = vpop.f32.mrf.mxu0
    %v424 = vadd.f32 %v86, %v423
    %425 = vmatmul.bf16.gmra.mxu0 %v298
    %v426 = vpop.f32.mrf.mxu0
    %v427 = vadd.f32 %v86, %v426
    %v428 = vpop.f32.mrf.mxu0
    %v429 = vadd.f32 %v86, %v428
    %430 = vmatmul.bf16.gmra.mxu0 %v301
    %v431 = vpop.f32.mrf.mxu0
    %v432 = vadd.f32 %v86, %v431
    %v433 = vpop.f32.mrf.mxu0
    %v434 = vadd.f32 %v86, %v433
    %435 = vmatmul.bf16.gmra.mxu0 %v304
    %v436 = vpop.f32.mrf.mxu0
    %v437 = vadd.f32 %v86, %v436
    %v438 = vpop.f32.mrf.mxu0
    %v439 = vadd.f32 %v86, %v438
    %440 = vmatmul.bf16.gmra.mxu0 %v307
    %v441 = vpop.f32.mrf.mxu0
    %v442 = vadd.f32 %v86, %v441
    %v443 = vpop.f32.mrf.mxu0
    %v444 = vadd.f32 %v86, %v443
    %445 = vmatmul.bf16.gmra.mxu0 %v310
    %v446 = vpop.f32.mrf.mxu0
    %v447 = vadd.f32 %v86, %v446
    %v448 = vpop.f32.mrf.mxu0
    %v449 = vadd.f32 %v86, %v448
    %450 = vmatmul.bf16.gmra.mxu0 %v313
    %v451 = vpop.f32.mrf.mxu0
    %v452 = vadd.f32 %v86, %v451
    %v453 = vpop.f32.mrf.mxu0
    %v454 = vadd.f32 %v86, %v453
    %455 = vmatmul.bf16.gmra.mxu0 %v316
    %v456 = vpop.f32.mrf.mxu0
    %v457 = vadd.f32 %v86, %v456
    %v458 = vpop.f32.mrf.mxu0
    %v459 = vadd.f32 %v86, %v458
    %460 = vmatmul.bf16.gmra.mxu0 %v319
    %v461 = vpop.f32.mrf.mxu0
    %v462 = vadd.f32 %v86, %v461
    %v463 = vpop.f32.mrf.mxu0
    %v464 = vadd.f32 %v86, %v463
    %465 = vmatmul.bf16.gmra.mxu0 %v322
    %v466 = vpop.f32.mrf.mxu0
    %v467 = vadd.f32 %v86, %v466
    %v468 = vpop.f32.mrf.mxu0
    %v469 = vadd.f32 %v86, %v468
    %470 = vmatmul.bf16.gmra.mxu0 %v325
    %v471 = vpop.f32.mrf.mxu0
    %v472 = vadd.f32 %v86, %v471
    %v473 = vpop.f32.mrf.mxu0
    %v474 = vadd.f32 %v86, %v473
    %475 = vmatmul.bf16.gmra.mxu0 %v328
    %v476 = vpop.f32.mrf.mxu0
    %v477 = vadd.f32 %v86, %v476
    %v478 = vpop.f32.mrf.mxu0
    %v479 = vadd.f32 %v86, %v478
    %480 = vmatmul.bf16.gmra.mxu0 %v331
    %v481 = vpop.f32.mrf.mxu0
    %v482 = vadd.f32 %v86, %v481
    %v483 = vpop.f32.mrf.mxu0
    %v484 = vadd.f32 %v86, %v483
    %485 = vmatmul.bf16.gmra.mxu0 %v334
    %v486 = vpop.f32.mrf.mxu0
    %v487 = vadd.f32 %v86, %v486
    %v488 = vpop.f32.mrf.mxu0
    %v489 = vadd.f32 %v86, %v488
    %490 = vmatmul.bf16.gmra.mxu0 %v337
    %v491 = vpop.f32.mrf.mxu0
    %v492 = vadd.f32 %v86, %v491
    %v493 = vpop.f32.mrf.mxu0
    %v494 = vadd.f32 %v86, %v493
    %495 = vmatmul.bf16.gmra.mxu0 %v340
    %v496 = vpop.f32.mrf.mxu0
    %v497 = vadd.f32 %v86, %v496
    %v498 = vpop.f32.mrf.mxu0
    %v499 = vadd.f32 %v86, %v498
    %500 = vmatmul.bf16.gmra.mxu0 %v343
    %v501 = vpop.f32.mrf.mxu0
    %v502 = vadd.f32 %v86, %v501
    %v503 = vpop.f32.mrf.mxu0
    %v504 = vadd.f32 %v86, %v503
    %505 = vmatmul.bf16.gmra.mxu0 %v346
    %v506 = vpop.f32.mrf.mxu0
    %v507 = vadd.f32 %v86, %v506
    %v508 = vpop.f32.mrf.mxu0
    %v509 = vadd.f32 %v86, %v508
    %510 = vmatmul.bf16.gmra.mxu0 %v349
    %v511 = vpop.f32.mrf.mxu0
    %v512 = vadd.f32 %v86, %v511
    %v513 = vpop.f32.mrf.mxu0
    %v514 = vadd.f32 %v86, %v513
    %515 = vmatmul.bf16.gmra.mxu0 %v352
    %v516 = vpop.f32.mrf.mxu0
    %v517 = vadd.f32 %v86, %v516
    %v518 = vpop.f32.mrf.mxu0
    %v519 = vadd.f32 %v86, %v518
    %520 = vmatmul.bf16.gmra.mxu0 %v355
    %v521 = vpop.f32.mrf.mxu0
    %v522 = vadd.f32 %v86, %v521
    %v523 = vpop.f32.mrf.mxu0
    %v524 = vadd.f32 %v86, %v523
    %525 = vdwg.mxu0
    %526 = vst.msk [vmem:[#allocation2] sm:$0xff] %vm260, %v367
    %527 = vst.msk [vmem:[#allocation2 + $0x8] sm:$0xff] %vm260, %v369
    %528 = vst.msk [vmem:[#allocation2 + $0x10] sm:$0xff] %vm260, %v372
    %529 = vst.msk [vmem:[#allocation2 + $0x18] sm:$0xff] %vm260, %v374
    %530 = vst.msk [vmem:[#allocation2 + $0x20] sm:$0xff] %vm260, %v377
    %531 = vst.msk [vmem:[#allocation2 + $0x28] sm:$0xff] %vm260, %v379
    %532 = vst.msk [vmem:[#allocation2 + $0x30] sm:$0xff] %vm260, %v382
    %533 = vst.msk [vmem:[#allocation2 + $0x38] sm:$0xff] %vm260, %v384
    %534 = vst.msk [vmem:[#allocation2 + $0x40] sm:$0xff] %vm260, %v387
    %535 = vst.msk [vmem:[#allocation2 + $0x48] sm:$0xff] %vm260, %v389
    %536 = vst.msk [vmem:[#allocation2 + $0x50] sm:$0xff] %vm260, %v392
    %537 = vst.msk [vmem:[#allocation2 + $0x58] sm:$0xff] %vm260, %v394
    %538 = vst.msk [vmem:[#allocation2 + $0x60] sm:$0xff] %vm260, %v397
    %539 = vst.msk [vmem:[#allocation2 + $0x68] sm:$0xff] %vm260, %v399
    %540 = vst.msk [vmem:[#allocation2 + $0x70] sm:$0xff] %vm260, %v402
    %541 = vst.msk [vmem:[#allocation2 + $0x78] sm:$0xff] %vm260, %v404
    %542 = vst.msk [vmem:[#allocation2 + $0x80] sm:$0xff] %vm260, %v407
    %543 = vst.msk [vmem:[#allocation2 + $0x88] sm:$0xff] %vm260, %v409
    %544 = vst.msk [vmem:[#allocation2 + $0x90] sm:$0xff] %vm260, %v412
    %545 = vst.msk [vmem:[#allocation2 + $0x98] sm:$0xff] %vm260, %v414
    %546 = vst.msk [vmem:[#allocation2 + $0xa0] sm:$0xff] %vm260, %v417
    %547 = vst.msk [vmem:[#allocation2 + $0xa8] sm:$0xff] %vm260, %v419
    %548 = vst.msk [vmem:[#allocation2 + $0xb0] sm:$0xff] %vm260, %v422
    %549 = vst.msk [vmem:[#allocation2 + $0xb8] sm:$0xff] %vm260, %v424
    %550 = vst.msk [vmem:[#allocation2 + $0xc0] sm:$0xff] %vm260, %v427
    %551 = vst.msk [vmem:[#allocation2 + $0xc8] sm:$0xff] %vm260, %v429
    %552 = vst.msk [vmem:[#allocation2 + $0xd0] sm:$0xff] %vm260, %v432
    %553 = vst.msk [vmem:[#allocation2 + $0xd8] sm:$0xff] %vm260, %v434
    %554 = vst.msk [vmem:[#allocation2 + $0xe0] sm:$0xff] %vm260, %v437
    %555 = vst.msk [vmem:[#allocation2 + $0xe8] sm:$0xff] %vm260, %v439
    %556 = vst.msk [vmem:[#allocation2 + $0xf0] sm:$0xff] %vm260, %v442
    %557 = vst.msk [vmem:[#allocation2 + $0xf8] sm:$0xff] %vm260, %v444
    %558 = vst.msk [vmem:[#allocation2 + $0x100] sm:$0xff] %vm260, %v447
    %559 = vst.msk [vmem:[#allocation2 + $0x108] sm:$0xff] %vm260, %v449
    %560 = vst.msk [vmem:[#allocation2 + $0x110] sm:$0xff] %vm260, %v452
    %561 = vst.msk [vmem:[#allocation2 + $0x118] sm:$0xff] %vm260, %v454
    %562 = vst.msk [vmem:[#allocation2 + $0x120] sm:$0xff] %vm260, %v457
    %563 = vst.msk [vmem:[#allocation2 + $0x128] sm:$0xff] %vm260, %v459
    %564 = vst.msk [vmem:[#allocation2 + $0x130] sm:$0xff] %vm260, %v462
    %565 = vst.msk [vmem:[#allocation2 + $0x138] sm:$0xff] %vm260, %v464
    %566 = vst.msk [vmem:[#allocation2 + $0x140] sm:$0xff] %vm260, %v467
    %567 = vst.msk [vmem:[#allocation2 + $0x148] sm:$0xff] %vm260, %v469
    %568 = vst.msk [vmem:[#allocation2 + $0x150] sm:$0xff] %vm260, %v472
    %569 = vst.msk [vmem:[#allocation2 + $0x158] sm:$0xff] %vm260, %v474
    %570 = vst.msk [vmem:[#allocation2 + $0x160] sm:$0xff] %vm260, %v477
    %571 = vst.msk [vmem:[#allocation2 + $0x168] sm:$0xff] %vm260, %v479
    %572 = vst.msk [vmem:[#allocation2 + $0x170] sm:$0xff] %vm260, %v482
    %573 = vst.msk [vmem:[#allocation2 + $0x178] sm:$0xff] %vm260, %v484
    %574 = vst.msk [vmem:[#allocation2 + $0x180] sm:$0xff] %vm260, %v487
    %575 = vst.msk [vmem:[#allocation2 + $0x188] sm:$0xff] %vm260, %v489
    %576 = vst.msk [vmem:[#allocation2 + $0x190] sm:$0xff] %vm260, %v492
    %577 = vst.msk [vmem:[#allocation2 + $0x198] sm:$0xff] %vm260, %v494
    %578 = vst.msk [vmem:[#allocation2 + $0x1a0] sm:$0xff] %vm260, %v497
    %579 = vst.msk [vmem:[#allocation2 + $0x1a8] sm:$0xff] %vm260, %v499
    %580 = vst.msk [vmem:[#allocation2 + $0x1b0] sm:$0xff] %vm260, %v502
    %581 = vst.msk [vmem:[#allocation2 + $0x1b8] sm:$0xff] %vm260, %v504
    %582 = vst.msk [vmem:[#allocation2 + $0x1c0] sm:$0xff] %vm260, %v507
    %583 = vst.msk [vmem:[#allocation2 + $0x1c8] sm:$0xff] %vm260, %v509
    %584 = vst.msk [vmem:[#allocation2 + $0x1d0] sm:$0xff] %vm260, %v512
    %585 = vst.msk [vmem:[#allocation2 + $0x1d8] sm:$0xff] %vm260, %v514
    %586 = vst.msk [vmem:[#allocation2 + $0x1e0] sm:$0xff] %vm260, %v517
    %587 = vst.msk [vmem:[#allocation2 + $0x1e8] sm:$0xff] %vm260, %v519
    %588 = vst.msk [vmem:[#allocation2 + $0x1f0] sm:$0xff] %vm260, %v522
    %589 = vst.msk [vmem:[#allocation2 + $0x1f8] sm:$0xff] %vm260, %v524
    // Predicated region
    $region14: #{_lambda_.5} parent=1 // pred_check
      _
    $region15: #{_lambda_.5} parent=1 // pred_check_branch
      %591 = sbr.rel (0) target = $region17
    $region16: #{_lambda_.5} parent=1 // pred_region
      %593 = vsyncadd [#allocation3], 0
      %s594 = sshll.u32 [#allocation2], 4
      %s595 = int_to_ptr.vmem [resolvable:$true] %s594
      %s596 = sshll.u32 %s3, 4
      %s597 = int_to_ptr.hbm [resolvable:$true] %s596
      %602 = dma.vmem_to_hbm [thread:$0]  %s595, 8192, %s597, [#allocation3], 128, 128, 8
    $region17: #{_lambda_.5} parent=1 // pred_fallthru
      _
    // Predicated region
    $region18: #{_lambda_.5} parent=1 // pred_check
      _
    $region19: #{_lambda_.5} parent=1 // pred_check_branch
      %604 = sbr.rel (0) target = $region21
    $region20: #{_lambda_.5} parent=1 // pred_region
      %606 = dma.done [#allocation3], 8192
    $region21: #{_lambda_.5} parent=1 // pred_fallthru
      _
    %607 = vsyncpa [#allocation3], 1

</llo_original>
